<compile_context>
chip_gen: v6e
topology: v6e:2x2x1
jax: 0.10.0
libtpu: 0.0.40
codegen_flags: <defaults>
</compile_context>

<pallas_src>
import functools
import math

import jax
import jax.numpy as jnp
from jax.experimental import pallas as pl
from jax.experimental.pallas import tpu as pltpu  # noqa: F401  (TPU backend)


# --------------------------------------------------------------------------
# Config (mirrors the relevant BertConfig fields)
# --------------------------------------------------------------------------

class Config:
    hidden_size = 32
    num_attention_heads = 4
    intermediate_size = 64
    encoder_width = 48
    num_hidden_layers = 2
    add_cross_attention = True
    cross_attention_freq = 2
    layer_norm_eps = 1e-12
    # dropout probs -> identity at inference; position_embedding_type='absolute'
    # chunk_size_feed_forward = 0 (apply_chunking_to_forward is a no-op)


# --------------------------------------------------------------------------
# Fused encoder kernel: the ENTIRE 2-layer forward for the whole batch in one
# kernel invocation.  All weights are VMEM-resident (<120 KB total).
# --------------------------------------------------------------------------

def _encoder_kernel(x_ref, enc_ref, *refs, cfg, mat_layout, vec_layout,
                    n_mat_banks, B, Q, S_enc):
    mat_refs = refs[:n_mat_banks]
    vec_ref = refs[n_mat_banks]
    out_ref = refs[n_mat_banks + 1]

    H = cfg.hidden_size
    nH = cfg.num_attention_heads
    d = H // nH
    eps = cfg.layer_norm_eps
    f32 = jnp.float32

    def W(name):                                    # static slice of a matrix bank
        bi, off, nc = mat_layout[name]
        return mat_refs[bi][:, off:off + nc].astype(f32)

    def V(name):                                    # static slice of the vector bank
        off, n = vec_layout[name]
        return vec_ref[:, off:off + n].astype(f32)  # (1, n) row, broadcasts

    x = x_ref[...].astype(f32)                      # (B*Q, H)
    enc = enc_ref[...].astype(f32)                  # (B*S_enc, E)

    def layer_norm(h, g, b):
        mean = jnp.mean(h, axis=-1, keepdims=True)
        c = h - mean
        var = jnp.mean(c * c, axis=-1, keepdims=True)
        return c * jax.lax.rsqrt(var + eps) * g + b

    def attention(q, k, v, Sk):
        # q: (B*Q, H) -- 1/sqrt(d) already folded into the Q projection.
        # k, v: (B*Sk, H).  Rows grouped per batch element.
        # 1) per-(batch, head) scores, stacked along sublanes -> ONE softmax pass
        blocks = []
        for b in range(B):
            qb = q[b * Q:(b + 1) * Q, :]
            kb = k[b * Sk:(b + 1) * Sk, :]
            for h in range(nH):
                lo, hi = h * d, (h + 1) * d
                blocks.append(jax.lax.dot_general(
                    qb[:, lo:hi], kb[:, lo:hi],
                    (((1,), (1,)), ((), ())),
                    preferred_element_type=f32))            # (Q, Sk)
        s = jnp.concatenate(blocks, axis=0)                  # (B*nH*Q, Sk)
        s = s - jnp.max(s, axis=-1, keepdims=True)
        p = jnp.exp(s)
        p = p / jnp.sum(p, axis=-1, keepdims=True)           # exact softmax
        # 2) per-(batch, head) context, merged into one (B*Q, H) block so the
        #    output projection downstream is a single matmul + single bias add.
        ctx_rows = []
        for b in range(B):
            vb = v[b * Sk:(b + 1) * Sk, :]
            ctx_heads = []
            for h in range(nH):
                lo, hi = h * d, (h + 1) * d
                r = (b * nH + h) * Q
                ctx_heads.append(jnp.dot(p[r:r + Q, :], vb[:, lo:hi],
                                         preferred_element_type=f32))   # (Q, d)
            ctx_rows.append(jnp.concatenate(ctx_heads, axis=1))         # (Q, H)
        return jnp.concatenate(ctx_rows, axis=0)                        # (B*Q, H)

    def self_attn_block(h_in, pfx):
        # fused QKV GEMM: (B*Q, H) @ (H, 3H)
        qkv = jnp.dot(h_in, W(pfx + 'qkv_w'),
                      preferred_element_type=f32) + V(pfx + 'qkv_b')
        ctx = attention(qkv[:, 0 * H:1 * H], qkv[:, 1 * H:2 * H],
                        qkv[:, 2 * H:3 * H], Q)
        dense = jnp.dot(ctx, W(pfx + 'o_w'),
                        preferred_element_type=f32) + V(pfx + 'o_b')
        return layer_norm(dense + h_in, V(pfx + 'ln_g'), V(pfx + 'ln_b'))

    def cross_attn_block(h_in, pfx):
        q = jnp.dot(h_in, W(pfx + 'q_w'),
                    preferred_element_type=f32) + V(pfx + 'q_b')
        # fused KV GEMM over encoder states: (B*S_enc, E) @ (E, 2H)
        kv = jnp.dot(enc, W(pfx + 'kv_w'),
                     preferred_element_type=f32) + V(pfx + 'kv_b')
        ctx = attention(q, kv[:, :H], kv[:, H:2 * H], S_enc)
        dense = jnp.dot(ctx, W(pfx + 'o_w'),
                        preferred_element_type=f32) + V(pfx + 'o_b')
        return layer_norm(dense + h_in, V(pfx + 'ln_g'), V(pfx + 'ln_b'))

    def ffn_block(h_in, pfx):
        inter = jnp.dot(h_in, W(pfx + 'i_w'),
                        preferred_element_type=f32) + V(pfx + 'i_b')
        inter = jax.nn.gelu(inter, approximate=True)          # tanh-approx GELU
        out = jnp.dot(inter, W(pfx + 'o_w'),
                      preferred_element_type=f32) + V(pfx + 'o_b')
        return layer_norm(out + h_in, V(pfx + 'ln_g'), V(pfx + 'ln_b'))

    # layer loop fully unrolled inside the single kernel
    for i in range(cfg.num_hidden_layers):
        x = self_attn_block(x, f'l{i}.sa.')                   # BertAttention
        if f'l{i}.ca.q_w' in mat_layout:                      # layer 0 only
            x = cross_attn_block(x, f'l{i}.ca.')
        x = ffn_block(x, f'l{i}.ff.')                         # feed_forward_chunk_query
        # TODO(synk): text-branch feed_forward_chunk / concat is unused because
        # hidden_states carry query tokens only (query_length == seq_len).

    out_ref[...] = x.astype(out_ref.dtype)


# --------------------------------------------------------------------------
# One-time weight repacking (cached; NOT on the per-call path):
#   - fuse Q/K/V (K/V for cross) into single GEMM weights
#   - fold 1/sqrt(head_dim) into the Q projection weights/bias
#   - consolidate all matrices into one bank per distinct row count and all
#     bias/LayerNorm vectors into one (1, N) row -> 4 pallas_call weight inputs
# --------------------------------------------------------------------------

def pack_weights(params, cfg):
    H = cfg.hidden_size
    scale = 1.0 / math.sqrt(H // cfg.num_attention_heads)

    mats, vecs = [], []

    def add_self(pfx, p):
        mats.append((pfx + 'qkv_w',
                     jnp.concatenate([p['q_w'] * scale, p['k_w'], p['v_w']], axis=1)))
        vecs.append((pfx + 'qkv_b',
                     jnp.concatenate([p['q_b'] * scale, p['k_b'], p['v_b']])))
        mats.append((pfx + 'o_w', p['o_w'])); vecs.append((pfx + 'o_b', p['o_b']))
        vecs.append((pfx + 'ln_g', p['ln_g'])); vecs.append((pfx + 'ln_b', p['ln_b']))

    def add_cross(pfx, p):
        mats.append((pfx + 'q_w', p['q_w'] * scale))
        vecs.append((pfx + 'q_b', p['q_b'] * scale))
        mats.append((pfx + 'kv_w', jnp.concatenate([p['k_w'], p['v_w']], axis=1)))
        vecs.append((pfx + 'kv_b', jnp.concatenate([p['k_b'], p['v_b']])))
        mats.append((pfx + 'o_w', p['o_w'])); vecs.append((pfx + 'o_b', p['o_b']))
        vecs.append((pfx + 'ln_g', p['ln_g'])); vecs.append((pfx + 'ln_b', p['ln_b']))

    def add_ffn(pfx, p):
        mats.append((pfx + 'i_w', p['i_w'])); vecs.append((pfx + 'i_b', p['i_b']))
        mats.append((pfx + 'o_w', p['o_w'])); vecs.append((pfx + 'o_b', p['o_b']))
        vecs.append((pfx + 'ln_g', p['ln_g'])); vecs.append((pfx + 'ln_b', p['ln_b']))

    for i, lp in enumerate(params['layers']):
        add_self(f'l{i}.sa.', lp['self_attn'])
        if lp['cross_attn'] is not None:
            add_cross(f'l{i}.ca.', lp['cross_attn'])
        add_ffn(f'l{i}.ff.', lp['ffn_query'])

    # group matrices by leading (contraction) dim -> one bank per row count
    groups = {}
    for name, arr in mats:
        groups.setdefault(arr.shape[0], []).append((name, arr))
    mat_banks, mat_layout = [], {}
    for bi, rows in enumerate(sorted(groups)):
        off, cols = 0, []
        for name, arr in groups[rows]:
            mat_layout[name] = (bi, off, arr.shape[1])
            off += arr.shape[1]
            cols.append(arr)
        mat_banks.append(jnp.concatenate(cols, axis=1).astype(jnp.float32))

    # all 1-D vectors into one (1, total) row
    vec_layout, off, segs = {}, 0, []
    for name, arr in vecs:
        vec_layout[name] = (off, arr.shape[0])
        off += arr.shape[0]
        segs.append(arr)
    vec_bank = jnp.concatenate(segs).reshape(1, off).astype(jnp.float32)

    return mat_banks, vec_bank, mat_layout, vec_layout


# --------------------------------------------------------------------------
# Wrapper factory: builds a jitted forward bound to the (static) weight layout
# --------------------------------------------------------------------------

def _cost_estimate(cfg, B, Q, S_enc):
    H, I, E = cfg.hidden_size, cfg.intermediate_size, cfg.encoder_width
    nH = cfg.num_attention_heads
    d = H // nH
    BQ = B * Q
    flops = transc = weight_elems = 0
    for i in range(cfg.num_hidden_layers):
        has_cross = cfg.add_cross_attention and i % cfg.cross_attention_freq == 0
        flops += 2 * BQ * H * 3 * H + 2 * BQ * H * H          # self-attn proj
        flops += 2 * B * nH * Q * Q * d * 2                    # scores + p@v
        transc += B * nH * Q * Q
        weight_elems += H * 4 * H
        if has_cross:
            flops += 2 * BQ * H * H + 2 * B * S_enc * E * 2 * H
            flops += 2 * B * nH * Q * S_enc * d * 2 + 2 * BQ * H * H
            transc += B * nH * Q * S_enc
            weight_elems += 2 * H * H + E * 2 * H
        flops += 2 * BQ * H * I + 2 * BQ * I * H               # query FFN
        transc += BQ * I
        weight_elems += 2 * H * I
    bytes_accessed = 4 * (2 * BQ * H + B * S_enc * E + weight_elems)
    return pl.CostEstimate(flops=int(flops), transcendentals=int(transc),
                           bytes_accessed=int(bytes_accessed))


def build_forward(cfg, mat_layout, vec_layout, n_mat_banks, B, Q, S_enc):
    H, E = cfg.hidden_size, cfg.encoder_width
    kernel = functools.partial(
        _encoder_kernel, cfg=cfg, mat_layout=mat_layout, vec_layout=vec_layout,
        n_mat_banks=n_mat_banks, B=B, Q=Q, S_enc=S_enc)
    cost = _cost_estimate(cfg, B, Q, S_enc)

    def fwd(hidden_states, encoder_hidden_states, *banks):
        # Batch folded into the GEMM M dimension; single kernel step (no grid).
        x2d = hidden_states.reshape(B * Q, H)
        enc2d = encoder_hidden_states.reshape(B * S_enc, E)
        out2d = pl.pallas_call(
            kernel,
            out_shape=jax.ShapeDtypeStruct((B * Q, H), hidden_states.dtype),
            cost_estimate=cost,
        )(x2d, enc2d, *banks)
        return out2d.reshape(B, Q, H)

    return jax.jit(fwd)


# --------------------------------------------------------------------------
# Pure-JAX reference (unfused, mirrors the PyTorch module math)
# --------------------------------------------------------------------------

def bert_encoder_reference(hidden_states, encoder_hidden_states, params, cfg):
    H = cfg.hidden_size
    nH = cfg.num_attention_heads
    d = H // nH
    scale = 1.0 / math.sqrt(d)
    eps = cfg.layer_norm_eps

    def ln(h, g, b):
        mean = h.mean(-1, keepdims=True)
        var = ((h - mean) ** 2).mean(-1, keepdims=True)
        return (h - mean) / jnp.sqrt(var + eps) * g + b

    def heads(x, Bx, Sx):
        return x.reshape(Bx, Sx, nH, d).transpose(0, 2, 1, 3)

    def mha(q_src, kv_src, p):
        Bq, Sq, _ = q_src.shape
        Sk = kv_src.shape[1]
        q = heads(q_src @ p['q_w'] + p['q_b'], Bq, Sq)
        k = heads(kv_src @ p['k_w'] + p['k_b'], Bq, Sk)
        v = heads(kv_src @ p['v_w'] + p['v_b'], Bq, Sk)
        s = jnp.einsum('bhqd,bhkd->bhqk', q, k) * scale
        a = jax.nn.softmax(s, axis=-1)
        ctx = jnp.einsum('bhqk,bhkd->bhqd', a, v)
        ctx = ctx.transpose(0, 2, 1, 3).reshape(Bq, Sq, H)
        dense = ctx @ p['o_w'] + p['o_b']
        return ln(dense + q_src, p['ln_g'], p['ln_b'])

    def ffn(x, p):
        inter = jax.nn.gelu(x @ p['i_w'] + p['i_b'], approximate=True)
        out = inter @ p['o_w'] + p['o_b']
        return ln(out + x, p['ln_g'], p['ln_b'])

    hs = hidden_states
    for lp in params['layers']:
        hs = mha(hs, hs, lp['self_attn'])
        if lp['cross_attn'] is not None:
            hs = mha(hs, encoder_hidden_states, lp['cross_attn'])
        hs = ffn(hs, lp['ffn_query'])
    return hs


# --------------------------------------------------------------------------
# Deterministic synthetic parameters (shapes from the module __init__)
# --------------------------------------------------------------------------

def init_params(cfg, key):
    H, I, E = cfg.hidden_size, cfg.intermediate_size, cfg.encoder_width
    keys = iter(jax.random.split(key, 512))

    def lin_p(in_d, out_d):
        w = jax.random.normal(next(keys), (in_d, out_d), jnp.float32) * 0.02
        b = jax.random.normal(next(keys), (out_d,), jnp.float32) * 0.02
        return w, b

    def attn_p(kv_dim):
        qw, qb = lin_p(H, H)
        kw, kb = lin_p(kv_dim, H)
        vw, vb = lin_p(kv_dim, H)
        ow, ob = lin_p(H, H)
        return dict(q_w=qw, q_b=qb, k_w=kw, k_b=kb, v_w=vw, v_b=vb,
                    o_w=ow, o_b=ob,
                    ln_g=jnp.ones((H,), jnp.float32),
                    ln_b=jnp.zeros((H,), jnp.float32))

    def ffn_p():
        iw, ib = lin_p(H, I)
        ow, ob = lin_p(I, H)
        return dict(i_w=iw, i_b=ib, o_w=ow, o_b=ob,
                    ln_g=jnp.ones((H,), jnp.float32),
                    ln_b=jnp.zeros((H,), jnp.float32))

    layers = []
    for i in range(cfg.num_hidden_layers):
        has_cross = cfg.add_cross_attention and (i % cfg.cross_attention_freq == 0)
        layers.append(dict(
            self_attn=attn_p(H),
            cross_attn=attn_p(E) if has_cross else None,
            ffn=ffn_p(),          # text feed-forward branch (present, unused here)
            ffn_query=ffn_p(),    # query feed-forward branch (used)
        ))
    return dict(layers=layers)


# --------------------------------------------------------------------------

if __name__ == "__main__":
    cfg = Config()
    key = jax.random.PRNGKey(0)
    k_hs, k_enc, k_par = jax.random.split(key, 3)

    B, Q, S_enc = 2, 8, 16
    hidden_states = jax.random.normal(k_hs, (B, Q, cfg.hidden_size), jnp.float32)
    encoder_hidden_states = jax.random.normal(
        k_enc, (B, S_enc, cfg.encoder_width), jnp.float32)
    params = init_params(cfg, k_par)

    # --- one-time setup (cached across calls): weight repack + jitted forward
    mat_banks, vec_bank, mat_layout, vec_layout = pack_weights(params, cfg)
    forward = build_forward(cfg, mat_layout, vec_layout, len(mat_banks),
                            B, Q, S_enc)

    out = forward(hidden_states, encoder_hidden_states, *mat_banks, vec_bank)
    out = jax.block_until_ready(out)

    ref = bert_encoder_reference(hidden_states, encoder_hidden_states,
                                 params, cfg)
    assert out.shape == (B, Q, cfg.hidden_size)
    max_err = float(jnp.max(jnp.abs(out - ref)))
    assert max_err < 3e-3, f"max_err={max_err}"

    print("KERNEL_OK")
</pallas_src>

<mosaic_0001>
module attributes {stable_mosaic.version = 11 : i64} {
  func.func @_encoder_kernel(%arg0: memref<16x32xf32, #tpu.memory_space<vmem>>, %arg1: memref<32x48xf32, #tpu.memory_space<vmem>>, %arg2: memref<32x448xf32, #tpu.memory_space<vmem>>, %arg3: memref<48x64xf32, #tpu.memory_space<vmem>>, %arg4: memref<64x64xf32, #tpu.memory_space<vmem>>, %arg5: memref<1x896xf32, #tpu.memory_space<vmem>>, %arg6: memref<16x32xf32, #tpu.memory_space<vmem>>) attributes {dimension_semantics = [], scalar_prefetch = 0 : i64, scratch_operands = 0 : i64, tpu.core_type = #tpu.core_type<tc>} {
    %c0 = arith.constant 0 : index
    %c0_0 = arith.constant 0 : index
    %0 = vector.load %arg0[%c0, %c0_0] : memref<16x32xf32, #tpu.memory_space<vmem>>, vector<16x32xf32>
    %c0_1 = arith.constant 0 : index
    %c0_2 = arith.constant 0 : index
    %1 = vector.load %arg1[%c0_1, %c0_2] : memref<32x48xf32, #tpu.memory_space<vmem>>, vector<32x48xf32>
    %c0_3 = arith.constant 0 : index
    %c0_4 = arith.constant 0 : index
    %2 = vector.load %arg2[%c0_3, %c0_4] : memref<32x448xf32, #tpu.memory_space<vmem>>, vector<32x96xf32>
    %cst = arith.constant dense<0.000000e+00> : vector<16x96xf32>
    %3 = tpu.matmul %0, %2, %cst {dimension_numbers = #tpu.dot_dimension_numbers<[1], [0], [0], [1], [0, 0, 1, 1], [], []>} : vector<16x32xf32>, vector<32x96xf32>, vector<16x96xf32> -> vector<16x96xf32>
    %c0_5 = arith.constant 0 : index
    %c0_6 = arith.constant 0 : index
    %4 = vector.load %arg5[%c0_5, %c0_6] : memref<1x896xf32, #tpu.memory_space<vmem>>, vector<1x96xf32>
    %5 = vector.broadcast %4 : vector<1x96xf32> to vector<16x96xf32>
    %6 = arith.addf %3, %5 : vector<16x96xf32>
    %7 = vector.extract_strided_slice %6 {offsets = [0, 0], sizes = [16, 32], strides = [1, 1]} : vector<16x96xf32> to vector<16x32xf32>
    %8 = vector.extract_strided_slice %6 {offsets = [0, 32], sizes = [16, 32], strides = [1, 1]} : vector<16x96xf32> to vector<16x32xf32>
    %9 = vector.extract_strided_slice %6 {offsets = [0, 64], sizes = [16, 32], strides = [1, 1]} : vector<16x96xf32> to vector<16x32xf32>
    %10 = vector.extract_strided_slice %7 {offsets = [0, 0], sizes = [8, 32], strides = [1, 1]} : vector<16x32xf32> to vector<8x32xf32>
    %11 = vector.extract_strided_slice %8 {offsets = [0, 0], sizes = [8, 32], strides = [1, 1]} : vector<16x32xf32> to vector<8x32xf32>
    %12 = vector.extract_strided_slice %10 {offsets = [0, 0], sizes = [8, 8], strides = [1, 1]} : vector<8x32xf32> to vector<8x8xf32>
    %13 = vector.extract_strided_slice %11 {offsets = [0, 0], sizes = [8, 8], strides = [1, 1]} : vector<8x32xf32> to vector<8x8xf32>
    %cst_7 = arith.constant dense<0.000000e+00> : vector<8x8xf32>
    %14 = tpu.matmul %12, %13, %cst_7 {dimension_numbers = #tpu.dot_dimension_numbers<[1], [1], [0], [0], [0, 0, 1, 0], [], []>} : vector<8x8xf32>, vector<8x8xf32>, vector<8x8xf32> -> vector<8x8xf32>
    %15 = vector.extract_strided_slice %10 {offsets = [0, 8], sizes = [8, 8], strides = [1, 1]} : vector<8x32xf32> to vector<8x8xf32>
    %16 = vector.extract_strided_slice %11 {offsets = [0, 8], sizes = [8, 8], strides = [1, 1]} : vector<8x32xf32> to vector<8x8xf32>
    %cst_8 = arith.constant dense<0.000000e+00> : vector<8x8xf32>
    %17 = tpu.matmul %15, %16, %cst_8 {dimension_numbers = #tpu.dot_dimension_numbers<[1], [1], [0], [0], [0, 0, 1, 0], [], []>} : vector<8x8xf32>, vector<8x8xf32>, vector<8x8xf32> -> vector<8x8xf32>
    %18 = vector.extract_strided_slice %10 {offsets = [0, 16], sizes = [8, 8], strides = [1, 1]} : vector<8x32xf32> to vector<8x8xf32>
    %19 = vector.extract_strided_slice %11 {offsets = [0, 16], sizes = [8, 8], strides = [1, 1]} : vector<8x32xf32> to vector<8x8xf32>
    %cst_9 = arith.constant dense<0.000000e+00> : vector<8x8xf32>
    %20 = tpu.matmul %18, %19, %cst_9 {dimension_numbers = #tpu.dot_dimension_numbers<[1], [1], [0], [0], [0, 0, 1, 0], [], []>} : vector<8x8xf32>, vector<8x8xf32>, vector<8x8xf32> -> vector<8x8xf32>
    %21 = vector.extract_strided_slice %10 {offsets = [0, 24], sizes = [8, 8], strides = [1, 1]} : vector<8x32xf32> to vector<8x8xf32>
    %22 = vector.extract_strided_slice %11 {offsets = [0, 24], sizes = [8, 8], strides = [1, 1]} : vector<8x32xf32> to vector<8x8xf32>
    %cst_10 = arith.constant dense<0.000000e+00> : vector<8x8xf32>
    %23 = tpu.matmul %21, %22, %cst_10 {dimension_numbers = #tpu.dot_dimension_numbers<[1], [1], [0], [0], [0, 0, 1, 0], [], []>} : vector<8x8xf32>, vector<8x8xf32>, vector<8x8xf32> -> vector<8x8xf32>
    %24 = vector.extract_strided_slice %7 {offsets = [8, 0], sizes = [8, 32], strides = [1, 1]} : vector<16x32xf32> to vector<8x32xf32>
    %25 = vector.extract_strided_slice %8 {offsets = [8, 0], sizes = [8, 32], strides = [1, 1]} : vector<16x32xf32> to vector<8x32xf32>
    %26 = vector.extract_strided_slice %24 {offsets = [0, 0], sizes = [8, 8], strides = [1, 1]} : vector<8x32xf32> to vector<8x8xf32>
    %27 = vector.extract_strided_slice %25 {offsets = [0, 0], sizes = [8, 8], strides = [1, 1]} : vector<8x32xf32> to vector<8x8xf32>
    %cst_11 = arith.constant dense<0.000000e+00> : vector<8x8xf32>
    %28 = tpu.matmul %26, %27, %cst_11 {dimension_numbers = #tpu.dot_dimension_numbers<[1], [1], [0], [0], [0, 0, 1, 0], [], []>} : vector<8x8xf32>, vector<8x8xf32>, vector<8x8xf32> -> vector<8x8xf32>
    %29 = vector.extract_strided_slice %24 {offsets = [0, 8], sizes = [8, 8], strides = [1, 1]} : vector<8x32xf32> to vector<8x8xf32>
    %30 = vector.extract_strided_slice %25 {offsets = [0, 8], sizes = [8, 8], strides = [1, 1]} : vector<8x32xf32> to vector<8x8xf32>
    %cst_12 = arith.constant dense<0.000000e+00> : vector<8x8xf32>
    %31 = tpu.matmul %29, %30, %cst_12 {dimension_numbers = #tpu.dot_dimension_numbers<[1], [1], [0], [0], [0, 0, 1, 0], [], []>} : vector<8x8xf32>, vector<8x8xf32>, vector<8x8xf32> -> vector<8x8xf32>
    %32 = vector.extract_strided_slice %24 {offsets = [0, 16], sizes = [8, 8], strides = [1, 1]} : vector<8x32xf32> to vector<8x8xf32>
    %33 = vector.extract_strided_slice %25 {offsets = [0, 16], sizes = [8, 8], strides = [1, 1]} : vector<8x32xf32> to vector<8x8xf32>
    %cst_13 = arith.constant dense<0.000000e+00> : vector<8x8xf32>
    %34 = tpu.matmul %32, %33, %cst_13 {dimension_numbers = #tpu.dot_dimension_numbers<[1], [1], [0], [0], [0, 0, 1, 0], [], []>} : vector<8x8xf32>, vector<8x8xf32>, vector<8x8xf32> -> vector<8x8xf32>
    %35 = vector.extract_strided_slice %24 {offsets = [0, 24], sizes = [8, 8], strides = [1, 1]} : vector<8x32xf32> to vector<8x8xf32>
    %36 = vector.extract_strided_slice %25 {offsets = [0, 24], sizes = [8, 8], strides = [1, 1]} : vector<8x32xf32> to vector<8x8xf32>
    %cst_14 = arith.constant dense<0.000000e+00> : vector<8x8xf32>
    %37 = tpu.matmul %35, %36, %cst_14 {dimension_numbers = #tpu.dot_dimension_numbers<[1], [1], [0], [0], [0, 0, 1, 0], [], []>} : vector<8x8xf32>, vector<8x8xf32>, vector<8x8xf32> -> vector<8x8xf32>
    %38 = tpu.concatenate %14, %17, %20, %23, %28, %31, %34, %37 in 0 : vector<8x8xf32>, vector<8x8xf32>, vector<8x8xf32>, vector<8x8xf32>, vector<8x8xf32>, vector<8x8xf32>, vector<8x8xf32>, vector<8x8xf32> -> vector<64x8xf32>
    %cst_15 = arith.constant dense<0xFF800000> : vector<64xf32>
    %39 = vector.multi_reduction <maximumf>, %38, %cst_15 [1] : vector<64x8xf32> to vector<64xf32>
    %40 = vector.shape_cast %39 : vector<64xf32> to vector<64x1xf32>
    %41 = vector.broadcast %40 : vector<64x1xf32> to vector<64x8xf32>
    %42 = arith.subf %38, %41 : vector<64x8xf32>
    %43 = math.exp %42 : vector<64x8xf32>
    %cst_16 = arith.constant dense<0.000000e+00> : vector<64xf32>
    %44 = vector.multi_reduction <add>, %43, %cst_16 [1] : vector<64x8xf32> to vector<64xf32>
    %45 = vector.shape_cast %44 : vector<64xf32> to vector<64x1xf32>
    %46 = vector.broadcast %45 : vector<64x1xf32> to vector<64x8xf32>
    %47 = arith.divf %43, %46 : vector<64x8xf32>
    %48 = vector.extract_strided_slice %9 {offsets = [0, 0], sizes = [8, 32], strides = [1, 1]} : vector<16x32xf32> to vector<8x32xf32>
    %49 = vector.extract_strided_slice %47 {offsets = [0, 0], sizes = [8, 8], strides = [1, 1]} : vector<64x8xf32> to vector<8x8xf32>
    %50 = vector.extract_strided_slice %48 {offsets = [0, 0], sizes = [8, 8], strides = [1, 1]} : vector<8x32xf32> to vector<8x8xf32>
    %cst_17 = arith.constant dense<0.000000e+00> : vector<8x8xf32>
    %51 = tpu.matmul %49, %50, %cst_17 {dimension_numbers = #tpu.dot_dimension_numbers<[1], [0], [0], [1], [0, 0, 1, 1], [], []>} : vector<8x8xf32>, vector<8x8xf32>, vector<8x8xf32> -> vector<8x8xf32>
    %52 = vector.extract_strided_slice %47 {offsets = [8, 0], sizes = [8, 8], strides = [1, 1]} : vector<64x8xf32> to vector<8x8xf32>
    %53 = vector.extract_strided_slice %48 {offsets = [0, 8], sizes = [8, 8], strides = [1, 1]} : vector<8x32xf32> to vector<8x8xf32>
    %cst_18 = arith.constant dense<0.000000e+00> : vector<8x8xf32>
    %54 = tpu.matmul %52, %53, %cst_18 {dimension_numbers = #tpu.dot_dimension_numbers<[1], [0], [0], [1], [0, 0, 1, 1], [], []>} : vector<8x8xf32>, vector<8x8xf32>, vector<8x8xf32> -> vector<8x8xf32>
    %55 = vector.extract_strided_slice %47 {offsets = [16, 0], sizes = [8, 8], strides = [1, 1]} : vector<64x8xf32> to vector<8x8xf32>
    %56 = vector.extract_strided_slice %48 {offsets = [0, 16], sizes = [8, 8], strides = [1, 1]} : vector<8x32xf32> to vector<8x8xf32>
    %cst_19 = arith.constant dense<0.000000e+00> : vector<8x8xf32>
    %57 = tpu.matmul %55, %56, %cst_19 {dimension_numbers = #tpu.dot_dimension_numbers<[1], [0], [0], [1], [0, 0, 1, 1], [], []>} : vector<8x8xf32>, vector<8x8xf32>, vector<8x8xf32> -> vector<8x8xf32>
    %58 = vector.extract_strided_slice %47 {offsets = [24, 0], sizes = [8, 8], strides = [1, 1]} : vector<64x8xf32> to vector<8x8xf32>
    %59 = vector.extract_strided_slice %48 {offsets = [0, 24], sizes = [8, 8], strides = [1, 1]} : vector<8x32xf32> to vector<8x8xf32>
    %cst_20 = arith.constant dense<0.000000e+00> : vector<8x8xf32>
    %60 = tpu.matmul %58, %59, %cst_20 {dimension_numbers = #tpu.dot_dimension_numbers<[1], [0], [0], [1], [0, 0, 1, 1], [], []>} : vector<8x8xf32>, vector<8x8xf32>, vector<8x8xf32> -> vector<8x8xf32>
    %61 = tpu.concatenate %51, %54, %57, %60 in 1 : vector<8x8xf32>, vector<8x8xf32>, vector<8x8xf32>, vector<8x8xf32> -> vector<8x32xf32>
    %62 = vector.extract_strided_slice %9 {offsets = [8, 0], sizes = [8, 32], strides = [1, 1]} : vector<16x32xf32> to vector<8x32xf32>
    %63 = vector.extract_strided_slice %47 {offsets = [32, 0], sizes = [8, 8], strides = [1, 1]} : vector<64x8xf32> to vector<8x8xf32>
    %64 = vector.extract_strided_slice %62 {offsets = [0, 0], sizes = [8, 8], strides = [1, 1]} : vector<8x32xf32> to vector<8x8xf32>
    %cst_21 = arith.constant dense<0.000000e+00> : vector<8x8xf32>
    %65 = tpu.matmul %63, %64, %cst_21 {dimension_numbers = #tpu.dot_dimension_numbers<[1], [0], [0], [1], [0, 0, 1, 1], [], []>} : vector<8x8xf32>, vector<8x8xf32>, vector<8x8xf32> -> vector<8x8xf32>
    %66 = vector.extract_strided_slice %47 {offsets = [40, 0], sizes = [8, 8], strides = [1, 1]} : vector<64x8xf32> to vector<8x8xf32>
    %67 = vector.extract_strided_slice %62 {offsets = [0, 8], sizes = [8, 8], strides = [1, 1]} : vector<8x32xf32> to vector<8x8xf32>
    %cst_22 = arith.constant dense<0.000000e+00> : vector<8x8xf32>
    %68 = tpu.matmul %66, %67, %cst_22 {dimension_numbers = #tpu.dot_dimension_numbers<[1], [0], [0], [1], [0, 0, 1, 1], [], []>} : vector<8x8xf32>, vector<8x8xf32>, vector<8x8xf32> -> vector<8x8xf32>
    %69 = vector.extract_strided_slice %47 {offsets = [48, 0], sizes = [8, 8], strides = [1, 1]} : vector<64x8xf32> to vector<8x8xf32>
    %70 = vector.extract_strided_slice %62 {offsets = [0, 16], sizes = [8, 8], strides = [1, 1]} : vector<8x32xf32> to vector<8x8xf32>
    %cst_23 = arith.constant dense<0.000000e+00> : vector<8x8xf32>
    %71 = tpu.matmul %69, %70, %cst_23 {dimension_numbers = #tpu.dot_dimension_numbers<[1], [0], [0], [1], [0, 0, 1, 1], [], []>} : vector<8x8xf32>, vector<8x8xf32>, vector<8x8xf32> -> vector<8x8xf32>
    %72 = vector.extract_strided_slice %47 {offsets = [56, 0], sizes = [8, 8], strides = [1, 1]} : vector<64x8xf32> to vector<8x8xf32>
    %73 = vector.extract_strided_slice %62 {offsets = [0, 24], sizes = [8, 8], strides = [1, 1]} : vector<8x32xf32> to vector<8x8xf32>
    %cst_24 = arith.constant dense<0.000000e+00> : vector<8x8xf32>
    %74 = tpu.matmul %72, %73, %cst_24 {dimension_numbers = #tpu.dot_dimension_numbers<[1], [0], [0], [1], [0, 0, 1, 1], [], []>} : vector<8x8xf32>, vector<8x8xf32>, vector<8x8xf32> -> vector<8x8xf32>
    %75 = tpu.concatenate %65, %68, %71, %74 in 1 : vector<8x8xf32>, vector<8x8xf32>, vector<8x8xf32>, vector<8x8xf32> -> vector<8x32xf32>
    %76 = tpu.concatenate %61, %75 in 0 : vector<8x32xf32>, vector<8x32xf32> -> vector<16x32xf32>
    %c0_25 = arith.constant 0 : index
    %c96 = arith.constant 96 : index
    %77 = vector.load %arg2[%c0_25, %c96] : memref<32x448xf32, #tpu.memory_space<vmem>>, vector<32x32xf32>
    %cst_26 = arith.constant dense<0.000000e+00> : vector<16x32xf32>
    %78 = tpu.matmul %76, %77, %cst_26 {dimension_numbers = #tpu.dot_dimension_numbers<[1], [0], [0], [1], [0, 0, 1, 1], [], []>} : vector<16x32xf32>, vector<32x32xf32>, vector<16x32xf32> -> vector<16x32xf32>
    %c0_27 = arith.constant 0 : index
    %c96_28 = arith.constant 96 : index
    %79 = vector.load %arg5[%c0_27, %c96_28] : memref<1x896xf32, #tpu.memory_space<vmem>>, vector<1x32xf32>
    %80 = vector.broadcast %79 : vector<1x32xf32> to vector<16x32xf32>
    %81 = arith.addf %78, %80 : vector<16x32xf32>
    %82 = arith.addf %81, %0 : vector<16x32xf32>
    %c0_29 = arith.constant 0 : index
    %c128 = arith.constant 128 : index
    %83 = vector.load %arg5[%c0_29, %c128] : memref<1x896xf32, #tpu.memory_space<vmem>>, vector<1x32xf32>
    %c0_30 = arith.constant 0 : index
    %c160 = arith.constant 160 : index
    %84 = vector.load %arg5[%c0_30, %c160] : memref<1x896xf32, #tpu.memory_space<vmem>>, vector<1x32xf32>
    %cst_31 = arith.constant dense<0.000000e+00> : vector<16xf32>
    %85 = vector.multi_reduction <add>, %82, %cst_31 [1] : vector<16x32xf32> to vector<16xf32>
    %86 = vector.shape_cast %85 : vector<16xf32> to vector<16x1xf32>
    %cst_32 = arith.constant 3.200000e+01 : f32
    %87 = vector.broadcast %cst_32 : f32 to vector<16x1xf32>
    %88 = arith.divf %86, %87 : vector<16x1xf32>
    %89 = vector.broadcast %88 : vector<16x1xf32> to vector<16x32xf32>
    %90 = arith.subf %82, %89 : vector<16x32xf32>
    %91 = arith.mulf %90, %90 : vector<16x32xf32>
    %cst_33 = arith.constant dense<0.000000e+00> : vector<16xf32>
    %92 = vector.multi_reduction <add>, %91, %cst_33 [1] : vector<16x32xf32> to vector<16xf32>
    %93 = vector.shape_cast %92 : vector<16xf32> to vector<16x1xf32>
    %cst_34 = arith.constant 3.200000e+01 : f32
    %94 = vector.broadcast %cst_34 : f32 to vector<16x1xf32>
    %95 = arith.divf %93, %94 : vector<16x1xf32>
    %cst_35 = arith.constant 9.99999996E-13 : f32
    %96 = vector.broadcast %cst_35 : f32 to vector<16x1xf32>
    %97 = arith.addf %95, %96 : vector<16x1xf32>
    %98 = math.rsqrt %97 : vector<16x1xf32>
    %99 = vector.broadcast %98 : vector<16x1xf32> to vector<16x32xf32>
    %100 = arith.mulf %90, %99 : vector<16x32xf32>
    %101 = vector.broadcast %83 : vector<1x32xf32> to vector<16x32xf32>
    %102 = arith.mulf %100, %101 : vector<16x32xf32>
    %103 = vector.broadcast %84 : vector<1x32xf32> to vector<16x32xf32>
    %104 = arith.addf %102, %103 : vector<16x32xf32>
    %c0_36 = arith.constant 0 : index
    %c128_37 = arith.constant 128 : index
    %105 = vector.load %arg2[%c0_36, %c128_37] : memref<32x448xf32, #tpu.memory_space<vmem>>, vector<32x32xf32>
    %cst_38 = arith.constant dense<0.000000e+00> : vector<16x32xf32>
    %106 = tpu.matmul %104, %105, %cst_38 {dimension_numbers = #tpu.dot_dimension_numbers<[1], [0], [0], [1], [0, 0, 1, 1], [], []>} : vector<16x32xf32>, vector<32x32xf32>, vector<16x32xf32> -> vector<16x32xf32>
    %c0_39 = arith.constant 0 : index
    %c192 = arith.constant 192 : index
    %107 = vector.load %arg5[%c0_39, %c192] : memref<1x896xf32, #tpu.memory_space<vmem>>, vector<1x32xf32>
    %108 = vector.broadcast %107 : vector<1x32xf32> to vector<16x32xf32>
    %109 = arith.addf %106, %108 : vector<16x32xf32>
    %c0_40 = arith.constant 0 : index
    %c0_41 = arith.constant 0 : index
    %110 = vector.load %arg3[%c0_40, %c0_41] : memref<48x64xf32, #tpu.memory_space<vmem>>, vector<48x64xf32>
    %cst_42 = arith.constant dense<0.000000e+00> : vector<32x64xf32>
    %111 = tpu.matmul %1, %110, %cst_42 {dimension_numbers = #tpu.dot_dimension_numbers<[1], [0], [0], [1], [0, 0, 1, 1], [], []>} : vector<32x48xf32>, vector<48x64xf32>, vector<32x64xf32> -> vector<32x64xf32>
    %c0_43 = arith.constant 0 : index
    %c224 = arith.constant 224 : index
    %112 = vector.load %arg5[%c0_43, %c224] : memref<1x896xf32, #tpu.memory_space<vmem>>, vector<1x64xf32>
    %113 = vector.broadcast %112 : vector<1x64xf32> to vector<32x64xf32>
    %114 = arith.addf %111, %113 : vector<32x64xf32>
    %115 = vector.extract_strided_slice %114 {offsets = [0, 0], sizes = [32, 32], strides = [1, 1]} : vector<32x64xf32> to vector<32x32xf32>
    %116 = vector.extract_strided_slice %114 {offsets = [0, 32], sizes = [32, 32], strides = [1, 1]} : vector<32x64xf32> to vector<32x32xf32>
    %117 = vector.extract_strided_slice %109 {offsets = [0, 0], sizes = [8, 32], strides = [1, 1]} : vector<16x32xf32> to vector<8x32xf32>
    %118 = vector.extract_strided_slice %115 {offsets = [0, 0], sizes = [16, 32], strides = [1, 1]} : vector<32x32xf32> to vector<16x32xf32>
    %119 = vector.extract_strided_slice %117 {offsets = [0, 0], sizes = [8, 8], strides = [1, 1]} : vector<8x32xf32> to vector<8x8xf32>
    %120 = vector.extract_strided_slice %118 {offsets = [0, 0], sizes = [16, 8], strides = [1, 1]} : vector<16x32xf32> to vector<16x8xf32>
    %cst_44 = arith.constant dense<0.000000e+00> : vector<8x16xf32>
    %121 = tpu.matmul %119, %120, %cst_44 {dimension_numbers = #tpu.dot_dimension_numbers<[1], [1], [0], [0], [0, 0, 1, 0], [], []>} : vector<8x8xf32>, vector<16x8xf32>, vector<8x16xf32> -> vector<8x16xf32>
    %122 = vector.extract_strided_slice %117 {offsets = [0, 8], sizes = [8, 8], strides = [1, 1]} : vector<8x32xf32> to vector<8x8xf32>
    %123 = vector.extract_strided_slice %118 {offsets = [0, 8], sizes = [16, 8], strides = [1, 1]} : vector<16x32xf32> to vector<16x8xf32>
    %cst_45 = arith.constant dense<0.000000e+00> : vector<8x16xf32>
    %124 = tpu.matmul %122, %123, %cst_45 {dimension_numbers = #tpu.dot_dimension_numbers<[1], [1], [0], [0], [0, 0, 1, 0], [], []>} : vector<8x8xf32>, vector<16x8xf32>, vector<8x16xf32> -> vector<8x16xf32>
    %125 = vector.extract_strided_slice %117 {offsets = [0, 16], sizes = [8, 8], strides = [1, 1]} : vector<8x32xf32> to vector<8x8xf32>
    %126 = vector.extract_strided_slice %118 {offsets = [0, 16], sizes = [16, 8], strides = [1, 1]} : vector<16x32xf32> to vector<16x8xf32>
    %cst_46 = arith.constant dense<0.000000e+00> : vector<8x16xf32>
    %127 = tpu.matmul %125, %126, %cst_46 {dimension_numbers = #tpu.dot_dimension_numbers<[1], [1], [0], [0], [0, 0, 1, 0], [], []>} : vector<8x8xf32>, vector<16x8xf32>, vector<8x16xf32> -> vector<8x16xf32>
    %128 = vector.extract_strided_slice %117 {offsets = [0, 24], sizes = [8, 8], strides = [1, 1]} : vector<8x32xf32> to vector<8x8xf32>
    %129 = vector.extract_strided_slice %118 {offsets = [0, 24], sizes = [16, 8], strides = [1, 1]} : vector<16x32xf32> to vector<16x8xf32>
    %cst_47 = arith.constant dense<0.000000e+00> : vector<8x16xf32>
    %130 = tpu.matmul %128, %129, %cst_47 {dimension_numbers = #tpu.dot_dimension_numbers<[1], [1], [0], [0], [0, 0, 1, 0], [], []>} : vector<8x8xf32>, vector<16x8xf32>, vector<8x16xf32> -> vector<8x16xf32>
    %131 = vector.extract_strided_slice %109 {offsets = [8, 0], sizes = [8, 32], strides = [1, 1]} : vector<16x32xf32> to vector<8x32xf32>
    %132 = vector.extract_strided_slice %115 {offsets = [16, 0], sizes = [16, 32], strides = [1, 1]} : vector<32x32xf32> to vector<16x32xf32>
    %133 = vector.extract_strided_slice %131 {offsets = [0, 0], sizes = [8, 8], strides = [1, 1]} : vector<8x32xf32> to vector<8x8xf32>
    %134 = vector.extract_strided_slice %132 {offsets = [0, 0], sizes = [16, 8], strides = [1, 1]} : vector<16x32xf32> to vector<16x8xf32>
    %cst_48 = arith.constant dense<0.000000e+00> : vector<8x16xf32>
    %135 = tpu.matmul %133, %134, %cst_48 {dimension_numbers = #tpu.dot_dimension_numbers<[1], [1], [0], [0], [0, 0, 1, 0], [], []>} : vector<8x8xf32>, vector<16x8xf32>, vector<8x16xf32> -> vector<8x16xf32>
    %136 = vector.extract_strided_slice %131 {offsets = [0, 8], sizes = [8, 8], strides = [1, 1]} : vector<8x32xf32> to vector<8x8xf32>
    %137 = vector.extract_strided_slice %132 {offsets = [0, 8], sizes = [16, 8], strides = [1, 1]} : vector<16x32xf32> to vector<16x8xf32>
    %cst_49 = arith.constant dense<0.000000e+00> : vector<8x16xf32>
    %138 = tpu.matmul %136, %137, %cst_49 {dimension_numbers = #tpu.dot_dimension_numbers<[1], [1], [0], [0], [0, 0, 1, 0], [], []>} : vector<8x8xf32>, vector<16x8xf32>, vector<8x16xf32> -> vector<8x16xf32>
    %139 = vector.extract_strided_slice %131 {offsets = [0, 16], sizes = [8, 8], strides = [1, 1]} : vector<8x32xf32> to vector<8x8xf32>
    %140 = vector.extract_strided_slice %132 {offsets = [0, 16], sizes = [16, 8], strides = [1, 1]} : vector<16x32xf32> to vector<16x8xf32>
    %cst_50 = arith.constant dense<0.000000e+00> : vector<8x16xf32>
    %141 = tpu.matmul %139, %140, %cst_50 {dimension_numbers = #tpu.dot_dimension_numbers<[1], [1], [0], [0], [0, 0, 1, 0], [], []>} : vector<8x8xf32>, vector<16x8xf32>, vector<8x16xf32> -> vector<8x16xf32>
    %142 = vector.extract_strided_slice %131 {offsets = [0, 24], sizes = [8, 8], strides = [1, 1]} : vector<8x32xf32> to vector<8x8xf32>
    %143 = vector.extract_strided_slice %132 {offsets = [0, 24], sizes = [16, 8], strides = [1, 1]} : vector<16x32xf32> to vector<16x8xf32>
    %cst_51 = arith.constant dense<0.000000e+00> : vector<8x16xf32>
    %144 = tpu.matmul %142, %143, %cst_51 {dimension_numbers = #tpu.dot_dimension_numbers<[1], [1], [0], [0], [0, 0, 1, 0], [], []>} : vector<8x8xf32>, vector<16x8xf32>, vector<8x16xf32> -> vector<8x16xf32>
    %145 = tpu.concatenate %121, %124, %127, %130, %135, %138, %141, %144 in 0 : vector<8x16xf32>, vector<8x16xf32>, vector<8x16xf32>, vector<8x16xf32>, vector<8x16xf32>, vector<8x16xf32>, vector<8x16xf32>, vector<8x16xf32> -> vector<64x16xf32>
    %cst_52 = arith.constant dense<0xFF800000> : vector<64xf32>
    %146 = vector.multi_reduction <maximumf>, %145, %cst_52 [1] : vector<64x16xf32> to vector<64xf32>
    %147 = vector.shape_cast %146 : vector<64xf32> to vector<64x1xf32>
    %148 = vector.broadcast %147 : vector<64x1xf32> to vector<64x16xf32>
    %149 = arith.subf %145, %148 : vector<64x16xf32>
    %150 = math.exp %149 : vector<64x16xf32>
    %cst_53 = arith.constant dense<0.000000e+00> : vector<64xf32>
    %151 = vector.multi_reduction <add>, %150, %cst_53 [1] : vector<64x16xf32> to vector<64xf32>
    %152 = vector.shape_cast %151 : vector<64xf32> to vector<64x1xf32>
    %153 = vector.broadcast %152 : vector<64x1xf32> to vector<64x16xf32>
    %154 = arith.divf %150, %153 : vector<64x16xf32>
    %155 = vector.extract_strided_slice %116 {offsets = [0, 0], sizes = [16, 32], strides = [1, 1]} : vector<32x32xf32> to vector<16x32xf32>
    %156 = vector.extract_strided_slice %154 {offsets = [0, 0], sizes = [8, 16], strides = [1, 1]} : vector<64x16xf32> to vector<8x16xf32>
    %157 = vector.extract_strided_slice %155 {offsets = [0, 0], sizes = [16, 8], strides = [1, 1]} : vector<16x32xf32> to vector<16x8xf32>
    %cst_54 = arith.constant dense<0.000000e+00> : vector<8x8xf32>
    %158 = tpu.matmul %156, %157, %cst_54 {dimension_numbers = #tpu.dot_dimension_numbers<[1], [0], [0], [1], [0, 0, 1, 1], [], []>} : vector<8x16xf32>, vector<16x8xf32>, vector<8x8xf32> -> vector<8x8xf32>
    %159 = vector.extract_strided_slice %154 {offsets = [8, 0], sizes = [8, 16], strides = [1, 1]} : vector<64x16xf32> to vector<8x16xf32>
    %160 = vector.extract_strided_slice %155 {offsets = [0, 8], sizes = [16, 8], strides = [1, 1]} : vector<16x32xf32> to vector<16x8xf32>
    %cst_55 = arith.constant dense<0.000000e+00> : vector<8x8xf32>
    %161 = tpu.matmul %159, %160, %cst_55 {dimension_numbers = #tpu.dot_dimension_numbers<[1], [0], [0], [1], [0, 0, 1, 1], [], []>} : vector<8x16xf32>, vector<16x8xf32>, vector<8x8xf32> -> vector<8x8xf32>
    %162 = vector.extract_strided_slice %154 {offsets = [16, 0], sizes = [8, 16], strides = [1, 1]} : vector<64x16xf32> to vector<8x16xf32>
    %163 = vector.extract_strided_slice %155 {offsets = [0, 16], sizes = [16, 8], strides = [1, 1]} : vector<16x32xf32> to vector<16x8xf32>
    %cst_56 = arith.constant dense<0.000000e+00> : vector<8x8xf32>
    %164 = tpu.matmul %162, %163, %cst_56 {dimension_numbers = #tpu.dot_dimension_numbers<[1], [0], [0], [1], [0, 0, 1, 1], [], []>} : vector<8x16xf32>, vector<16x8xf32>, vector<8x8xf32> -> vector<8x8xf32>
    %165 = vector.extract_strided_slice %154 {offsets = [24, 0], sizes = [8, 16], strides = [1, 1]} : vector<64x16xf32> to vector<8x16xf32>
    %166 = vector.extract_strided_slice %155 {offsets = [0, 24], sizes = [16, 8], strides = [1, 1]} : vector<16x32xf32> to vector<16x8xf32>
    %cst_57 = arith.constant dense<0.000000e+00> : vector<8x8xf32>
    %167 = tpu.matmul %165, %166, %cst_57 {dimension_numbers = #tpu.dot_dimension_numbers<[1], [0], [0], [1], [0, 0, 1, 1], [], []>} : vector<8x16xf32>, vector<16x8xf32>, vector<8x8xf32> -> vector<8x8xf32>
    %168 = tpu.concatenate %158, %161, %164, %167 in 1 : vector<8x8xf32>, vector<8x8xf32>, vector<8x8xf32>, vector<8x8xf32> -> vector<8x32xf32>
    %169 = vector.extract_strided_slice %116 {offsets = [16, 0], sizes = [16, 32], strides = [1, 1]} : vector<32x32xf32> to vector<16x32xf32>
    %170 = vector.extract_strided_slice %154 {offsets = [32, 0], sizes = [8, 16], strides = [1, 1]} : vector<64x16xf32> to vector<8x16xf32>
    %171 = vector.extract_strided_slice %169 {offsets = [0, 0], sizes = [16, 8], strides = [1, 1]} : vector<16x32xf32> to vector<16x8xf32>
    %cst_58 = arith.constant dense<0.000000e+00> : vector<8x8xf32>
    %172 = tpu.matmul %170, %171, %cst_58 {dimension_numbers = #tpu.dot_dimension_numbers<[1], [0], [0], [1], [0, 0, 1, 1], [], []>} : vector<8x16xf32>, vector<16x8xf32>, vector<8x8xf32> -> vector<8x8xf32>
    %173 = vector.extract_strided_slice %154 {offsets = [40, 0], sizes = [8, 16], strides = [1, 1]} : vector<64x16xf32> to vector<8x16xf32>
    %174 = vector.extract_strided_slice %169 {offsets = [0, 8], sizes = [16, 8], strides = [1, 1]} : vector<16x32xf32> to vector<16x8xf32>
    %cst_59 = arith.constant dense<0.000000e+00> : vector<8x8xf32>
    %175 = tpu.matmul %173, %174, %cst_59 {dimension_numbers = #tpu.dot_dimension_numbers<[1], [0], [0], [1], [0, 0, 1, 1], [], []>} : vector<8x16xf32>, vector<16x8xf32>, vector<8x8xf32> -> vector<8x8xf32>
    %176 = vector.extract_strided_slice %154 {offsets = [48, 0], sizes = [8, 16], strides = [1, 1]} : vector<64x16xf32> to vector<8x16xf32>
    %177 = vector.extract_strided_slice %169 {offsets = [0, 16], sizes = [16, 8], strides = [1, 1]} : vector<16x32xf32> to vector<16x8xf32>
    %cst_60 = arith.constant dense<0.000000e+00> : vector<8x8xf32>
    %178 = tpu.matmul %176, %177, %cst_60 {dimension_numbers = #tpu.dot_dimension_numbers<[1], [0], [0], [1], [0, 0, 1, 1], [], []>} : vector<8x16xf32>, vector<16x8xf32>, vector<8x8xf32> -> vector<8x8xf32>
    %179 = vector.extract_strided_slice %154 {offsets = [56, 0], sizes = [8, 16], strides = [1, 1]} : vector<64x16xf32> to vector<8x16xf32>
    %180 = vector.extract_strided_slice %169 {offsets = [0, 24], sizes = [16, 8], strides = [1, 1]} : vector<16x32xf32> to vector<16x8xf32>
    %cst_61 = arith.constant dense<0.000000e+00> : vector<8x8xf32>
    %181 = tpu.matmul %179, %180, %cst_61 {dimension_numbers = #tpu.dot_dimension_numbers<[1], [0], [0], [1], [0, 0, 1, 1], [], []>} : vector<8x16xf32>, vector<16x8xf32>, vector<8x8xf32> -> vector<8x8xf32>
    %182 = tpu.concatenate %172, %175, %178, %181 in 1 : vector<8x8xf32>, vector<8x8xf32>, vector<8x8xf32>, vector<8x8xf32> -> vector<8x32xf32>
    %183 = tpu.concatenate %168, %182 in 0 : vector<8x32xf32>, vector<8x32xf32> -> vector<16x32xf32>
    %c0_62 = arith.constant 0 : index
    %c160_63 = arith.constant 160 : index
    %184 = vector.load %arg2[%c0_62, %c160_63] : memref<32x448xf32, #tpu.memory_space<vmem>>, vector<32x32xf32>
    %cst_64 = arith.constant dense<0.000000e+00> : vector<16x32xf32>
    %185 = tpu.matmul %183, %184, %cst_64 {dimension_numbers = #tpu.dot_dimension_numbers<[1], [0], [0], [1], [0, 0, 1, 1], [], []>} : vector<16x32xf32>, vector<32x32xf32>, vector<16x32xf32> -> vector<16x32xf32>
    %c0_65 = arith.constant 0 : index
    %c288 = arith.constant 288 : index
    %186 = vector.load %arg5[%c0_65, %c288] : memref<1x896xf32, #tpu.memory_space<vmem>>, vector<1x32xf32>
    %187 = vector.broadcast %186 : vector<1x32xf32> to vector<16x32xf32>
    %188 = arith.addf %185, %187 : vector<16x32xf32>
    %189 = arith.addf %188, %104 : vector<16x32xf32>
    %c0_66 = arith.constant 0 : index
    %c320 = arith.constant 320 : index
    %190 = vector.load %arg5[%c0_66, %c320] : memref<1x896xf32, #tpu.memory_space<vmem>>, vector<1x32xf32>
    %c0_67 = arith.constant 0 : index
    %c352 = arith.constant 352 : index
    %191 = vector.load %arg5[%c0_67, %c352] : memref<1x896xf32, #tpu.memory_space<vmem>>, vector<1x32xf32>
    %cst_68 = arith.constant dense<0.000000e+00> : vector<16xf32>
    %192 = vector.multi_reduction <add>, %189, %cst_68 [1] : vector<16x32xf32> to vector<16xf32>
    %193 = vector.shape_cast %192 : vector<16xf32> to vector<16x1xf32>
    %cst_69 = arith.constant 3.200000e+01 : f32
    %194 = vector.broadcast %cst_69 : f32 to vector<16x1xf32>
    %195 = arith.divf %193, %194 : vector<16x1xf32>
    %196 = vector.broadcast %195 : vector<16x1xf32> to vector<16x32xf32>
    %197 = arith.subf %189, %196 : vector<16x32xf32>
    %198 = arith.mulf %197, %197 : vector<16x32xf32>
    %cst_70 = arith.constant dense<0.000000e+00> : vector<16xf32>
    %199 = vector.multi_reduction <add>, %198, %cst_70 [1] : vector<16x32xf32> to vector<16xf32>
    %200 = vector.shape_cast %199 : vector<16xf32> to vector<16x1xf32>
    %cst_71 = arith.constant 3.200000e+01 : f32
    %201 = vector.broadcast %cst_71 : f32 to vector<16x1xf32>
    %202 = arith.divf %200, %201 : vector<16x1xf32>
    %cst_72 = arith.constant 9.99999996E-13 : f32
    %203 = vector.broadcast %cst_72 : f32 to vector<16x1xf32>
    %204 = arith.addf %202, %203 : vector<16x1xf32>
    %205 = math.rsqrt %204 : vector<16x1xf32>
    %206 = vector.broadcast %205 : vector<16x1xf32> to vector<16x32xf32>
    %207 = arith.mulf %197, %206 : vector<16x32xf32>
    %208 = vector.broadcast %190 : vector<1x32xf32> to vector<16x32xf32>
    %209 = arith.mulf %207, %208 : vector<16x32xf32>
    %210 = vector.broadcast %191 : vector<1x32xf32> to vector<16x32xf32>
    %211 = arith.addf %209, %210 : vector<16x32xf32>
    %c0_73 = arith.constant 0 : index
    %c192_74 = arith.constant 192 : index
    %212 = vector.load %arg2[%c0_73, %c192_74] : memref<32x448xf32, #tpu.memory_space<vmem>>, vector<32x64xf32>
    %cst_75 = arith.constant dense<0.000000e+00> : vector<16x64xf32>
    %213 = tpu.matmul %211, %212, %cst_75 {dimension_numbers = #tpu.dot_dimension_numbers<[1], [0], [0], [1], [0, 0, 1, 1], [], []>} : vector<16x32xf32>, vector<32x64xf32>, vector<16x64xf32> -> vector<16x64xf32>
    %c0_76 = arith.constant 0 : index
    %c384 = arith.constant 384 : index
    %214 = vector.load %arg5[%c0_76, %c384] : memref<1x896xf32, #tpu.memory_space<vmem>>, vector<1x64xf32>
    %215 = vector.broadcast %214 : vector<1x64xf32> to vector<16x64xf32>
    %216 = arith.addf %213, %215 : vector<16x64xf32>
    %217 = arith.mulf %216, %216 : vector<16x64xf32>
    %218 = arith.mulf %216, %217 : vector<16x64xf32>
    %cst_77 = arith.constant 4.471500e-02 : f32
    %219 = vector.broadcast %cst_77 : f32 to vector<16x64xf32>
    %220 = arith.mulf %219, %218 : vector<16x64xf32>
    %221 = arith.addf %216, %220 : vector<16x64xf32>
    %cst_78 = arith.constant 0.797884583 : f32
    %222 = vector.broadcast %cst_78 : f32 to vector<16x64xf32>
    %223 = arith.mulf %222, %221 : vector<16x64xf32>
    %224 = math.tanh %223 : vector<16x64xf32>
    %cst_79 = arith.constant 1.000000e+00 : f32
    %225 = vector.broadcast %cst_79 : f32 to vector<16x64xf32>
    %226 = arith.addf %225, %224 : vector<16x64xf32>
    %cst_80 = arith.constant 5.000000e-01 : f32
    %227 = vector.broadcast %cst_80 : f32 to vector<16x64xf32>
    %228 = arith.mulf %227, %226 : vector<16x64xf32>
    %229 = arith.mulf %216, %228 : vector<16x64xf32>
    %c0_81 = arith.constant 0 : index
    %c0_82 = arith.constant 0 : index
    %230 = vector.load %arg4[%c0_81, %c0_82] : memref<64x64xf32, #tpu.memory_space<vmem>>, vector<64x32xf32>
    %cst_83 = arith.constant dense<0.000000e+00> : vector<16x32xf32>
    %231 = tpu.matmul %229, %230, %cst_83 {dimension_numbers = #tpu.dot_dimension_numbers<[1], [0], [0], [1], [0, 0, 1, 1], [], []>} : vector<16x64xf32>, vector<64x32xf32>, vector<16x32xf32> -> vector<16x32xf32>
    %c0_84 = arith.constant 0 : index
    %c448 = arith.constant 448 : index
    %232 = vector.load %arg5[%c0_84, %c448] : memref<1x896xf32, #tpu.memory_space<vmem>>, vector<1x32xf32>
    %233 = vector.broadcast %232 : vector<1x32xf32> to vector<16x32xf32>
    %234 = arith.addf %231, %233 : vector<16x32xf32>
    %235 = arith.addf %234, %211 : vector<16x32xf32>
    %c0_85 = arith.constant 0 : index
    %c480 = arith.constant 480 : index
    %236 = vector.load %arg5[%c0_85, %c480] : memref<1x896xf32, #tpu.memory_space<vmem>>, vector<1x32xf32>
    %c0_86 = arith.constant 0 : index
    %c512 = arith.constant 512 : index
    %237 = vector.load %arg5[%c0_86, %c512] : memref<1x896xf32, #tpu.memory_space<vmem>>, vector<1x32xf32>
    %cst_87 = arith.constant dense<0.000000e+00> : vector<16xf32>
    %238 = vector.multi_reduction <add>, %235, %cst_87 [1] : vector<16x32xf32> to vector<16xf32>
    %239 = vector.shape_cast %238 : vector<16xf32> to vector<16x1xf32>
    %cst_88 = arith.constant 3.200000e+01 : f32
    %240 = vector.broadcast %cst_88 : f32 to vector<16x1xf32>
    %241 = arith.divf %239, %240 : vector<16x1xf32>
    %242 = vector.broadcast %241 : vector<16x1xf32> to vector<16x32xf32>
    %243 = arith.subf %235, %242 : vector<16x32xf32>
    %244 = arith.mulf %243, %243 : vector<16x32xf32>
    %cst_89 = arith.constant dense<0.000000e+00> : vector<16xf32>
    %245 = vector.multi_reduction <add>, %244, %cst_89 [1] : vector<16x32xf32> to vector<16xf32>
    %246 = vector.shape_cast %245 : vector<16xf32> to vector<16x1xf32>
    %cst_90 = arith.constant 3.200000e+01 : f32
    %247 = vector.broadcast %cst_90 : f32 to vector<16x1xf32>
    %248 = arith.divf %246, %247 : vector<16x1xf32>
    %cst_91 = arith.constant 9.99999996E-13 : f32
    %249 = vector.broadcast %cst_91 : f32 to vector<16x1xf32>
    %250 = arith.addf %248, %249 : vector<16x1xf32>
    %251 = math.rsqrt %250 : vector<16x1xf32>
    %252 = vector.broadcast %251 : vector<16x1xf32> to vector<16x32xf32>
    %253 = arith.mulf %243, %252 : vector<16x32xf32>
    %254 = vector.broadcast %236 : vector<1x32xf32> to vector<16x32xf32>
    %255 = arith.mulf %253, %254 : vector<16x32xf32>
    %256 = vector.broadcast %237 : vector<1x32xf32> to vector<16x32xf32>
    %257 = arith.addf %255, %256 : vector<16x32xf32>
    %c0_92 = arith.constant 0 : index
    %c256 = arith.constant 256 : index
    %258 = vector.load %arg2[%c0_92, %c256] : memref<32x448xf32, #tpu.memory_space<vmem>>, vector<32x96xf32>
    %cst_93 = arith.constant dense<0.000000e+00> : vector<16x96xf32>
    %259 = tpu.matmul %257, %258, %cst_93 {dimension_numbers = #tpu.dot_dimension_numbers<[1], [0], [0], [1], [0, 0, 1, 1], [], []>} : vector<16x32xf32>, vector<32x96xf32>, vector<16x96xf32> -> vector<16x96xf32>
    %c0_94 = arith.constant 0 : index
    %c544 = arith.constant 544 : index
    %260 = vector.load %arg5[%c0_94, %c544] : memref<1x896xf32, #tpu.memory_space<vmem>>, vector<1x96xf32>
    %261 = vector.broadcast %260 : vector<1x96xf32> to vector<16x96xf32>
    %262 = arith.addf %259, %261 : vector<16x96xf32>
    %263 = vector.extract_strided_slice %262 {offsets = [0, 0], sizes = [16, 32], strides = [1, 1]} : vector<16x96xf32> to vector<16x32xf32>
    %264 = vector.extract_strided_slice %262 {offsets = [0, 32], sizes = [16, 32], strides = [1, 1]} : vector<16x96xf32> to vector<16x32xf32>
    %265 = vector.extract_strided_slice %262 {offsets = [0, 64], sizes = [16, 32], strides = [1, 1]} : vector<16x96xf32> to vector<16x32xf32>
    %266 = vector.extract_strided_slice %263 {offsets = [0, 0], sizes = [8, 32], strides = [1, 1]} : vector<16x32xf32> to vector<8x32xf32>
    %267 = vector.extract_strided_slice %264 {offsets = [0, 0], sizes = [8, 32], strides = [1, 1]} : vector<16x32xf32> to vector<8x32xf32>
    %268 = vector.extract_strided_slice %266 {offsets = [0, 0], sizes = [8, 8], strides = [1, 1]} : vector<8x32xf32> to vector<8x8xf32>
    %269 = vector.extract_strided_slice %267 {offsets = [0, 0], sizes = [8, 8], strides = [1, 1]} : vector<8x32xf32> to vector<8x8xf32>
    %cst_95 = arith.constant dense<0.000000e+00> : vector<8x8xf32>
    %270 = tpu.matmul %268, %269, %cst_95 {dimension_numbers = #tpu.dot_dimension_numbers<[1], [1], [0], [0], [0, 0, 1, 0], [], []>} : vector<8x8xf32>, vector<8x8xf32>, vector<8x8xf32> -> vector<8x8xf32>
    %271 = vector.extract_strided_slice %266 {offsets = [0, 8], sizes = [8, 8], strides = [1, 1]} : vector<8x32xf32> to vector<8x8xf32>
    %272 = vector.extract_strided_slice %267 {offsets = [0, 8], sizes = [8, 8], strides = [1, 1]} : vector<8x32xf32> to vector<8x8xf32>
    %cst_96 = arith.constant dense<0.000000e+00> : vector<8x8xf32>
    %273 = tpu.matmul %271, %272, %cst_96 {dimension_numbers = #tpu.dot_dimension_numbers<[1], [1], [0], [0], [0, 0, 1, 0], [], []>} : vector<8x8xf32>, vector<8x8xf32>, vector<8x8xf32> -> vector<8x8xf32>
    %274 = vector.extract_strided_slice %266 {offsets = [0, 16], sizes = [8, 8], strides = [1, 1]} : vector<8x32xf32> to vector<8x8xf32>
    %275 = vector.extract_strided_slice %267 {offsets = [0, 16], sizes = [8, 8], strides = [1, 1]} : vector<8x32xf32> to vector<8x8xf32>
    %cst_97 = arith.constant dense<0.000000e+00> : vector<8x8xf32>
    %276 = tpu.matmul %274, %275, %cst_97 {dimension_numbers = #tpu.dot_dimension_numbers<[1], [1], [0], [0], [0, 0, 1, 0], [], []>} : vector<8x8xf32>, vector<8x8xf32>, vector<8x8xf32> -> vector<8x8xf32>
    %277 = vector.extract_strided_slice %266 {offsets = [0, 24], sizes = [8, 8], strides = [1, 1]} : vector<8x32xf32> to vector<8x8xf32>
    %278 = vector.extract_strided_slice %267 {offsets = [0, 24], sizes = [8, 8], strides = [1, 1]} : vector<8x32xf32> to vector<8x8xf32>
    %cst_98 = arith.constant dense<0.000000e+00> : vector<8x8xf32>
    %279 = tpu.matmul %277, %278, %cst_98 {dimension_numbers = #tpu.dot_dimension_numbers<[1], [1], [0], [0], [0, 0, 1, 0], [], []>} : vector<8x8xf32>, vector<8x8xf32>, vector<8x8xf32> -> vector<8x8xf32>
    %280 = vector.extract_strided_slice %263 {offsets = [8, 0], sizes = [8, 32], strides = [1, 1]} : vector<16x32xf32> to vector<8x32xf32>
    %281 = vector.extract_strided_slice %264 {offsets = [8, 0], sizes = [8, 32], strides = [1, 1]} : vector<16x32xf32> to vector<8x32xf32>
    %282 = vector.extract_strided_slice %280 {offsets = [0, 0], sizes = [8, 8], strides = [1, 1]} : vector<8x32xf32> to vector<8x8xf32>
    %283 = vector.extract_strided_slice %281 {offsets = [0, 0], sizes = [8, 8], strides = [1, 1]} : vector<8x32xf32> to vector<8x8xf32>
    %cst_99 = arith.constant dense<0.000000e+00> : vector<8x8xf32>
    %284 = tpu.matmul %282, %283, %cst_99 {dimension_numbers = #tpu.dot_dimension_numbers<[1], [1], [0], [0], [0, 0, 1, 0], [], []>} : vector<8x8xf32>, vector<8x8xf32>, vector<8x8xf32> -> vector<8x8xf32>
    %285 = vector.extract_strided_slice %280 {offsets = [0, 8], sizes = [8, 8], strides = [1, 1]} : vector<8x32xf32> to vector<8x8xf32>
    %286 = vector.extract_strided_slice %281 {offsets = [0, 8], sizes = [8, 8], strides = [1, 1]} : vector<8x32xf32> to vector<8x8xf32>
    %cst_100 = arith.constant dense<0.000000e+00> : vector<8x8xf32>
    %287 = tpu.matmul %285, %286, %cst_100 {dimension_numbers = #tpu.dot_dimension_numbers<[1], [1], [0], [0], [0, 0, 1, 0], [], []>} : vector<8x8xf32>, vector<8x8xf32>, vector<8x8xf32> -> vector<8x8xf32>
    %288 = vector.extract_strided_slice %280 {offsets = [0, 16], sizes = [8, 8], strides = [1, 1]} : vector<8x32xf32> to vector<8x8xf32>
    %289 = vector.extract_strided_slice %281 {offsets = [0, 16], sizes = [8, 8], strides = [1, 1]} : vector<8x32xf32> to vector<8x8xf32>
    %cst_101 = arith.constant dense<0.000000e+00> : vector<8x8xf32>
    %290 = tpu.matmul %288, %289, %cst_101 {dimension_numbers = #tpu.dot_dimension_numbers<[1], [1], [0], [0], [0, 0, 1, 0], [], []>} : vector<8x8xf32>, vector<8x8xf32>, vector<8x8xf32> -> vector<8x8xf32>
    %291 = vector.extract_strided_slice %280 {offsets = [0, 24], sizes = [8, 8], strides = [1, 1]} : vector<8x32xf32> to vector<8x8xf32>
    %292 = vector.extract_strided_slice %281 {offsets = [0, 24], sizes = [8, 8], strides = [1, 1]} : vector<8x32xf32> to vector<8x8xf32>
    %cst_102 = arith.constant dense<0.000000e+00> : vector<8x8xf32>
    %293 = tpu.matmul %291, %292, %cst_102 {dimension_numbers = #tpu.dot_dimension_numbers<[1], [1], [0], [0], [0, 0, 1, 0], [], []>} : vector<8x8xf32>, vector<8x8xf32>, vector<8x8xf32> -> vector<8x8xf32>
    %294 = tpu.concatenate %270, %273, %276, %279, %284, %287, %290, %293 in 0 : vector<8x8xf32>, vector<8x8xf32>, vector<8x8xf32>, vector<8x8xf32>, vector<8x8xf32>, vector<8x8xf32>, vector<8x8xf32>, vector<8x8xf32> -> vector<64x8xf32>
    %cst_103 = arith.constant dense<0xFF800000> : vector<64xf32>
    %295 = vector.multi_reduction <maximumf>, %294, %cst_103 [1] : vector<64x8xf32> to vector<64xf32>
    %296 = vector.shape_cast %295 : vector<64xf32> to vector<64x1xf32>
    %297 = vector.broadcast %296 : vector<64x1xf32> to vector<64x8xf32>
    %298 = arith.subf %294, %297 : vector<64x8xf32>
    %299 = math.exp %298 : vector<64x8xf32>
    %cst_104 = arith.constant dense<0.000000e+00> : vector<64xf32>
    %300 = vector.multi_reduction <add>, %299, %cst_104 [1] : vector<64x8xf32> to vector<64xf32>
    %301 = vector.shape_cast %300 : vector<64xf32> to vector<64x1xf32>
    %302 = vector.broadcast %301 : vector<64x1xf32> to vector<64x8xf32>
    %303 = arith.divf %299, %302 : vector<64x8xf32>
    %304 = vector.extract_strided_slice %265 {offsets = [0, 0], sizes = [8, 32], strides = [1, 1]} : vector<16x32xf32> to vector<8x32xf32>
    %305 = vector.extract_strided_slice %303 {offsets = [0, 0], sizes = [8, 8], strides = [1, 1]} : vector<64x8xf32> to vector<8x8xf32>
    %306 = vector.extract_strided_slice %304 {offsets = [0, 0], sizes = [8, 8], strides = [1, 1]} : vector<8x32xf32> to vector<8x8xf32>
    %cst_105 = arith.constant dense<0.000000e+00> : vector<8x8xf32>
    %307 = tpu.matmul %305, %306, %cst_105 {dimension_numbers = #tpu.dot_dimension_numbers<[1], [0], [0], [1], [0, 0, 1, 1], [], []>} : vector<8x8xf32>, vector<8x8xf32>, vector<8x8xf32> -> vector<8x8xf32>
    %308 = vector.extract_strided_slice %303 {offsets = [8, 0], sizes = [8, 8], strides = [1, 1]} : vector<64x8xf32> to vector<8x8xf32>
    %309 = vector.extract_strided_slice %304 {offsets = [0, 8], sizes = [8, 8], strides = [1, 1]} : vector<8x32xf32> to vector<8x8xf32>
    %cst_106 = arith.constant dense<0.000000e+00> : vector<8x8xf32>
    %310 = tpu.matmul %308, %309, %cst_106 {dimension_numbers = #tpu.dot_dimension_numbers<[1], [0], [0], [1], [0, 0, 1, 1], [], []>} : vector<8x8xf32>, vector<8x8xf32>, vector<8x8xf32> -> vector<8x8xf32>
    %311 = vector.extract_strided_slice %303 {offsets = [16, 0], sizes = [8, 8], strides = [1, 1]} : vector<64x8xf32> to vector<8x8xf32>
    %312 = vector.extract_strided_slice %304 {offsets = [0, 16], sizes = [8, 8], strides = [1, 1]} : vector<8x32xf32> to vector<8x8xf32>
    %cst_107 = arith.constant dense<0.000000e+00> : vector<8x8xf32>
    %313 = tpu.matmul %311, %312, %cst_107 {dimension_numbers = #tpu.dot_dimension_numbers<[1], [0], [0], [1], [0, 0, 1, 1], [], []>} : vector<8x8xf32>, vector<8x8xf32>, vector<8x8xf32> -> vector<8x8xf32>
    %314 = vector.extract_strided_slice %303 {offsets = [24, 0], sizes = [8, 8], strides = [1, 1]} : vector<64x8xf32> to vector<8x8xf32>
    %315 = vector.extract_strided_slice %304 {offsets = [0, 24], sizes = [8, 8], strides = [1, 1]} : vector<8x32xf32> to vector<8x8xf32>
    %cst_108 = arith.constant dense<0.000000e+00> : vector<8x8xf32>
    %316 = tpu.matmul %314, %315, %cst_108 {dimension_numbers = #tpu.dot_dimension_numbers<[1], [0], [0], [1], [0, 0, 1, 1], [], []>} : vector<8x8xf32>, vector<8x8xf32>, vector<8x8xf32> -> vector<8x8xf32>
    %317 = tpu.concatenate %307, %310, %313, %316 in 1 : vector<8x8xf32>, vector<8x8xf32>, vector<8x8xf32>, vector<8x8xf32> -> vector<8x32xf32>
    %318 = vector.extract_strided_slice %265 {offsets = [8, 0], sizes = [8, 32], strides = [1, 1]} : vector<16x32xf32> to vector<8x32xf32>
    %319 = vector.extract_strided_slice %303 {offsets = [32, 0], sizes = [8, 8], strides = [1, 1]} : vector<64x8xf32> to vector<8x8xf32>
    %320 = vector.extract_strided_slice %318 {offsets = [0, 0], sizes = [8, 8], strides = [1, 1]} : vector<8x32xf32> to vector<8x8xf32>
    %cst_109 = arith.constant dense<0.000000e+00> : vector<8x8xf32>
    %321 = tpu.matmul %319, %320, %cst_109 {dimension_numbers = #tpu.dot_dimension_numbers<[1], [0], [0], [1], [0, 0, 1, 1], [], []>} : vector<8x8xf32>, vector<8x8xf32>, vector<8x8xf32> -> vector<8x8xf32>
    %322 = vector.extract_strided_slice %303 {offsets = [40, 0], sizes = [8, 8], strides = [1, 1]} : vector<64x8xf32> to vector<8x8xf32>
    %323 = vector.extract_strided_slice %318 {offsets = [0, 8], sizes = [8, 8], strides = [1, 1]} : vector<8x32xf32> to vector<8x8xf32>
    %cst_110 = arith.constant dense<0.000000e+00> : vector<8x8xf32>
    %324 = tpu.matmul %322, %323, %cst_110 {dimension_numbers = #tpu.dot_dimension_numbers<[1], [0], [0], [1], [0, 0, 1, 1], [], []>} : vector<8x8xf32>, vector<8x8xf32>, vector<8x8xf32> -> vector<8x8xf32>
    %325 = vector.extract_strided_slice %303 {offsets = [48, 0], sizes = [8, 8], strides = [1, 1]} : vector<64x8xf32> to vector<8x8xf32>
    %326 = vector.extract_strided_slice %318 {offsets = [0, 16], sizes = [8, 8], strides = [1, 1]} : vector<8x32xf32> to vector<8x8xf32>
    %cst_111 = arith.constant dense<0.000000e+00> : vector<8x8xf32>
    %327 = tpu.matmul %325, %326, %cst_111 {dimension_numbers = #tpu.dot_dimension_numbers<[1], [0], [0], [1], [0, 0, 1, 1], [], []>} : vector<8x8xf32>, vector<8x8xf32>, vector<8x8xf32> -> vector<8x8xf32>
    %328 = vector.extract_strided_slice %303 {offsets = [56, 0], sizes = [8, 8], strides = [1, 1]} : vector<64x8xf32> to vector<8x8xf32>
    %329 = vector.extract_strided_slice %318 {offsets = [0, 24], sizes = [8, 8], strides = [1, 1]} : vector<8x32xf32> to vector<8x8xf32>
    %cst_112 = arith.constant dense<0.000000e+00> : vector<8x8xf32>
    %330 = tpu.matmul %328, %329, %cst_112 {dimension_numbers = #tpu.dot_dimension_numbers<[1], [0], [0], [1], [0, 0, 1, 1], [], []>} : vector<8x8xf32>, vector<8x8xf32>, vector<8x8xf32> -> vector<8x8xf32>
    %331 = tpu.concatenate %321, %324, %327, %330 in 1 : vector<8x8xf32>, vector<8x8xf32>, vector<8x8xf32>, vector<8x8xf32> -> vector<8x32xf32>
    %332 = tpu.concatenate %317, %331 in 0 : vector<8x32xf32>, vector<8x32xf32> -> vector<16x32xf32>
    %c0_113 = arith.constant 0 : index
    %c352_114 = arith.constant 352 : index
    %333 = vector.load %arg2[%c0_113, %c352_114] : memref<32x448xf32, #tpu.memory_space<vmem>>, vector<32x32xf32>
    %cst_115 = arith.constant dense<0.000000e+00> : vector<16x32xf32>
    %334 = tpu.matmul %332, %333, %cst_115 {dimension_numbers = #tpu.dot_dimension_numbers<[1], [0], [0], [1], [0, 0, 1, 1], [], []>} : vector<16x32xf32>, vector<32x32xf32>, vector<16x32xf32> -> vector<16x32xf32>
    %c0_116 = arith.constant 0 : index
    %c640 = arith.constant 640 : index
    %335 = vector.load %arg5[%c0_116, %c640] : memref<1x896xf32, #tpu.memory_space<vmem>>, vector<1x32xf32>
    %336 = vector.broadcast %335 : vector<1x32xf32> to vector<16x32xf32>
    %337 = arith.addf %334, %336 : vector<16x32xf32>
    %338 = arith.addf %337, %257 : vector<16x32xf32>
    %c0_117 = arith.constant 0 : index
    %c672 = arith.constant 672 : index
    %339 = vector.load %arg5[%c0_117, %c672] : memref<1x896xf32, #tpu.memory_space<vmem>>, vector<1x32xf32>
    %c0_118 = arith.constant 0 : index
    %c704 = arith.constant 704 : index
    %340 = vector.load %arg5[%c0_118, %c704] : memref<1x896xf32, #tpu.memory_space<vmem>>, vector<1x32xf32>
    %cst_119 = arith.constant dense<0.000000e+00> : vector<16xf32>
    %341 = vector.multi_reduction <add>, %338, %cst_119 [1] : vector<16x32xf32> to vector<16xf32>
    %342 = vector.shape_cast %341 : vector<16xf32> to vector<16x1xf32>
    %cst_120 = arith.constant 3.200000e+01 : f32
    %343 = vector.broadcast %cst_120 : f32 to vector<16x1xf32>
    %344 = arith.divf %342, %343 : vector<16x1xf32>
    %345 = vector.broadcast %344 : vector<16x1xf32> to vector<16x32xf32>
    %346 = arith.subf %338, %345 : vector<16x32xf32>
    %347 = arith.mulf %346, %346 : vector<16x32xf32>
    %cst_121 = arith.constant dense<0.000000e+00> : vector<16xf32>
    %348 = vector.multi_reduction <add>, %347, %cst_121 [1] : vector<16x32xf32> to vector<16xf32>
    %349 = vector.shape_cast %348 : vector<16xf32> to vector<16x1xf32>
    %cst_122 = arith.constant 3.200000e+01 : f32
    %350 = vector.broadcast %cst_122 : f32 to vector<16x1xf32>
    %351 = arith.divf %349, %350 : vector<16x1xf32>
    %cst_123 = arith.constant 9.99999996E-13 : f32
    %352 = vector.broadcast %cst_123 : f32 to vector<16x1xf32>
    %353 = arith.addf %351, %352 : vector<16x1xf32>
    %354 = math.rsqrt %353 : vector<16x1xf32>
    %355 = vector.broadcast %354 : vector<16x1xf32> to vector<16x32xf32>
    %356 = arith.mulf %346, %355 : vector<16x32xf32>
    %357 = vector.broadcast %339 : vector<1x32xf32> to vector<16x32xf32>
    %358 = arith.mulf %356, %357 : vector<16x32xf32>
    %359 = vector.broadcast %340 : vector<1x32xf32> to vector<16x32xf32>
    %360 = arith.addf %358, %359 : vector<16x32xf32>
    %c0_124 = arith.constant 0 : index
    %c384_125 = arith.constant 384 : index
    %361 = vector.load %arg2[%c0_124, %c384_125] : memref<32x448xf32, #tpu.memory_space<vmem>>, vector<32x64xf32>
    %cst_126 = arith.constant dense<0.000000e+00> : vector<16x64xf32>
    %362 = tpu.matmul %360, %361, %cst_126 {dimension_numbers = #tpu.dot_dimension_numbers<[1], [0], [0], [1], [0, 0, 1, 1], [], []>} : vector<16x32xf32>, vector<32x64xf32>, vector<16x64xf32> -> vector<16x64xf32>
    %c0_127 = arith.constant 0 : index
    %c736 = arith.constant 736 : index
    %363 = vector.load %arg5[%c0_127, %c736] : memref<1x896xf32, #tpu.memory_space<vmem>>, vector<1x64xf32>
    %364 = vector.broadcast %363 : vector<1x64xf32> to vector<16x64xf32>
    %365 = arith.addf %362, %364 : vector<16x64xf32>
    %366 = arith.mulf %365, %365 : vector<16x64xf32>
    %367 = arith.mulf %365, %366 : vector<16x64xf32>
    %cst_128 = arith.constant 4.471500e-02 : f32
    %368 = vector.broadcast %cst_128 : f32 to vector<16x64xf32>
    %369 = arith.mulf %368, %367 : vector<16x64xf32>
    %370 = arith.addf %365, %369 : vector<16x64xf32>
    %cst_129 = arith.constant 0.797884583 : f32
    %371 = vector.broadcast %cst_129 : f32 to vector<16x64xf32>
    %372 = arith.mulf %371, %370 : vector<16x64xf32>
    %373 = math.tanh %372 : vector<16x64xf32>
    %cst_130 = arith.constant 1.000000e+00 : f32
    %374 = vector.broadcast %cst_130 : f32 to vector<16x64xf32>
    %375 = arith.addf %374, %373 : vector<16x64xf32>
    %cst_131 = arith.constant 5.000000e-01 : f32
    %376 = vector.broadcast %cst_131 : f32 to vector<16x64xf32>
    %377 = arith.mulf %376, %375 : vector<16x64xf32>
    %378 = arith.mulf %365, %377 : vector<16x64xf32>
    %c0_132 = arith.constant 0 : index
    %c32 = arith.constant 32 : index
    %379 = vector.load %arg4[%c0_132, %c32] : memref<64x64xf32, #tpu.memory_space<vmem>>, vector<64x32xf32>
    %cst_133 = arith.constant dense<0.000000e+00> : vector<16x32xf32>
    %380 = tpu.matmul %378, %379, %cst_133 {dimension_numbers = #tpu.dot_dimension_numbers<[1], [0], [0], [1], [0, 0, 1, 1], [], []>} : vector<16x64xf32>, vector<64x32xf32>, vector<16x32xf32> -> vector<16x32xf32>
    %c0_134 = arith.constant 0 : index
    %c800 = arith.constant 800 : index
    %381 = vector.load %arg5[%c0_134, %c800] : memref<1x896xf32, #tpu.memory_space<vmem>>, vector<1x32xf32>
    %382 = vector.broadcast %381 : vector<1x32xf32> to vector<16x32xf32>
    %383 = arith.addf %380, %382 : vector<16x32xf32>
    %384 = arith.addf %383, %360 : vector<16x32xf32>
    %c0_135 = arith.constant 0 : index
    %c832 = arith.constant 832 : index
    %385 = vector.load %arg5[%c0_135, %c832] : memref<1x896xf32, #tpu.memory_space<vmem>>, vector<1x32xf32>
    %c0_136 = arith.constant 0 : index
    %c864 = arith.constant 864 : index
    %386 = vector.load %arg5[%c0_136, %c864] : memref<1x896xf32, #tpu.memory_space<vmem>>, vector<1x32xf32>
    %cst_137 = arith.constant dense<0.000000e+00> : vector<16xf32>
    %387 = vector.multi_reduction <add>, %384, %cst_137 [1] : vector<16x32xf32> to vector<16xf32>
    %388 = vector.shape_cast %387 : vector<16xf32> to vector<16x1xf32>
    %cst_138 = arith.constant 3.200000e+01 : f32
    %389 = vector.broadcast %cst_138 : f32 to vector<16x1xf32>
    %390 = arith.divf %388, %389 : vector<16x1xf32>
    %391 = vector.broadcast %390 : vector<16x1xf32> to vector<16x32xf32>
    %392 = arith.subf %384, %391 : vector<16x32xf32>
    %393 = arith.mulf %392, %392 : vector<16x32xf32>
    %cst_139 = arith.constant dense<0.000000e+00> : vector<16xf32>
    %394 = vector.multi_reduction <add>, %393, %cst_139 [1] : vector<16x32xf32> to vector<16xf32>
    %395 = vector.shape_cast %394 : vector<16xf32> to vector<16x1xf32>
    %cst_140 = arith.constant 3.200000e+01 : f32
    %396 = vector.broadcast %cst_140 : f32 to vector<16x1xf32>
    %397 = arith.divf %395, %396 : vector<16x1xf32>
    %cst_141 = arith.constant 9.99999996E-13 : f32
    %398 = vector.broadcast %cst_141 : f32 to vector<16x1xf32>
    %399 = arith.addf %397, %398 : vector<16x1xf32>
    %400 = math.rsqrt %399 : vector<16x1xf32>
    %401 = vector.broadcast %400 : vector<16x1xf32> to vector<16x32xf32>
    %402 = arith.mulf %392, %401 : vector<16x32xf32>
    %403 = vector.broadcast %385 : vector<1x32xf32> to vector<16x32xf32>
    %404 = arith.mulf %402, %403 : vector<16x32xf32>
    %405 = vector.broadcast %386 : vector<1x32xf32> to vector<16x32xf32>
    %406 = arith.addf %404, %405 : vector<16x32xf32>
    %c0_142 = arith.constant 0 : index
    %c0_143 = arith.constant 0 : index
    %407 = vector.load %arg6[%c0_142, %c0_143] : memref<16x32xf32, #tpu.memory_space<vmem>>, vector<16x32xf32>
    tpu.vector_store %arg6[%c0_142, %c0_143], %406 {strides = array<i32>} : memref<16x32xf32, #tpu.memory_space<vmem>>, vector<16x32xf32>,
    return
  }
}

</mosaic_0001>

<llo_original>
// kernel: fwd.1
$region0: #{fwd.1}
  #allocation0 [shape = 'u32[]', space=smem, size = 0x4, offset = 0x4, fixed_abs, tag = 'smem constant byte address 0x4 - core index']
  #allocation1 [shape = 'u32[144,128]{1,0:T(1,128)}', space=vmem, size = 0x12000, scoped, tag = 'internal scratch']
  %s0 = inlined_call_operand.hbm [shape: f32[16,32], index: 0, kind: input, shape index: {}]
  %s1 = inlined_call_operand.hbm [shape: f32[32,48], index: 1, kind: input, shape index: {}]
  %s2 = inlined_call_operand.hbm [shape: f32[32,448], index: 2, kind: input, shape index: {}]
  %s3 = inlined_call_operand.hbm [shape: f32[48,64], index: 3, kind: input, shape index: {}]
  %s4 = inlined_call_operand.hbm [shape: f32[64,64], index: 4, kind: input, shape index: {}]
  %s5 = inlined_call_operand.vmem [shape: f32[1,896], index: 5, kind: input, shape index: {}]
  %s6 = inlined_call_operand.hbm [shape: f32[16,32], index: 6, kind: output, shape index: {}]
  %s7 = sld [smem:[#allocation0]]
  $region54: #{fwd.1} parent=0
    _
  %s9 = ssub.s32 1, %s7
  %s10 = scalar_select 0, %s9, %s7
  $region1: #{fwd.1} parent=0
    #allocation2 [shape = 'u8[8192]{0}', space=vmem, size = 0x2000, scoped, tag = 'input window, operand 0, single buffered']
    #allocation3 [shape = 's32[1]{0}', space=sflag, size = 0x4, scoped, tag = 'scoped memory for fwd.1']
    #allocation4 [shape = 's32[1]{0}', space=sflag, size = 0x4, scoped, tag = 'scoped memory for fwd.1']
    #allocation5 [shape = 'u8[16384]{0}', space=vmem, size = 0x4000, scoped, tag = 'input window, operand 1, single buffered']
    #allocation6 [shape = 's32[1]{0}', space=sflag, size = 0x4, scoped, tag = 'scoped memory for fwd.1']
    #allocation7 [shape = 'u8[65536]{0}', space=vmem, size = 0x10000, scoped, tag = 'input window, operand 2, single buffered']
    #allocation8 [shape = 'u8[24576]{0}', space=vmem, size = 0x6000, scoped, tag = 'input window, operand 3, single buffered']
    #allocation9 [shape = 's32[1]{0}', space=sflag, size = 0x4, scoped, tag = 'scoped memory for fwd.1']
    #allocation10 [shape = 'u8[32768]{0}', space=vmem, size = 0x8000, scoped, tag = 'input window, operand 4, single buffered']
    #allocation11 [shape = 'u8[8192]{0}', space=vmem, size = 0x2000, scoped, tag = 'output window, operand 0, single buffered']
    %11 = vsyncpa [#allocation3], 0
    %12 = vsyncpa [#allocation6], 0
    %13 = vsyncpa [#allocation9], 0
    %14 = vsyncpa [#allocation4], 0
    // Predicated region
    $region2: #{fwd.1} parent=1 // pred_check
      _
    $region3: #{fwd.1} parent=1 // pred_check_branch
      %16 = sbr.rel (0) target = $region5
    $region4: #{fwd.1} parent=1 // pred_region
      %s18 = ssub.s32 256, 256
      %19 = vsyncadd [#allocation3], %s18
      %s20 = sshll.u32 [#allocation2], 4
      %s21 = int_to_ptr.vmem [resolvable:$true] %s20
      %26 = dma.hbm_to_vmem [thread:$0]  %s0, 256, %s21, [#allocation3], 128, 128, 8
    $region5: #{fwd.1} parent=1 // pred_fallthru
      _
    // Predicated region
    $region6: #{fwd.1} parent=1 // pred_check
      _
    $region7: #{fwd.1} parent=1 // pred_check_branch
      %28 = sbr.rel (0) target = $region9
    $region8: #{fwd.1} parent=1 // pred_region
      %s30 = ssub.s32 512, 512
      %31 = vsyncadd [#allocation6], %s30
      %s32 = sshll.u32 [#allocation5], 4
      %s33 = int_to_ptr.vmem [resolvable:$true] %s32
      %38 = dma.hbm_to_vmem [thread:$0]  %s1, 512, %s33, [#allocation6], 128, 128, 8
    $region9: #{fwd.1} parent=1 // pred_fallthru
      _
    // Predicated region
    $region10: #{fwd.1} parent=1 // pred_check
      _
    $region11: #{fwd.1} parent=1 // pred_check_branch
      %40 = sbr.rel (0) target = $region13
    $region12: #{fwd.1} parent=1 // pred_region
      %s42 = ssub.s32 2048, 2048
      %43 = vsyncadd [#allocation6], %s42
      %s44 = sshll.u32 [#allocation7], 4
      %s45 = int_to_ptr.vmem [resolvable:$true] %s44
      %50 = dma.hbm_to_vmem [thread:$0]  %s2, 2048, %s45, [#allocation6], 512, 512, 32
    $region13: #{fwd.1} parent=1 // pred_fallthru
      _
    // Predicated region
    $region14: #{fwd.1} parent=1 // pred_check
      _
    $region15: #{fwd.1} parent=1 // pred_check_branch
      %52 = sbr.rel (0) target = $region17
    $region16: #{fwd.1} parent=1 // pred_region
      %s54 = ssub.s32 768, 768
      %55 = vsyncadd [#allocation9], %s54
      %s56 = sshll.u32 [#allocation8], 4
      %s57 = int_to_ptr.vmem [resolvable:$true] %s56
      %62 = dma.hbm_to_vmem [thread:$0]  %s3, 768, %s57, [#allocation9], 128, 128, 8
    $region17: #{fwd.1} parent=1 // pred_fallthru
      _
    // Predicated region
    $region18: #{fwd.1} parent=1 // pred_check
      _
    $region19: #{fwd.1} parent=1 // pred_check_branch
      %64 = sbr.rel (0) target = $region21
    $region20: #{fwd.1} parent=1 // pred_region
      %s66 = ssub.s32 1024, 1024
      %67 = vsyncadd [#allocation9], %s66
      %s68 = sshll.u32 [#allocation10], 4
      %s69 = int_to_ptr.vmem [resolvable:$true] %s68
      %74 = dma.hbm_to_vmem [thread:$0]  %s4, 1024, %s69, [#allocation9], 128, 128, 8
    $region21: #{fwd.1} parent=1 // pred_fallthru
      _
    // Predicated region
    $region22: #{fwd.1} parent=1 // pred_check
      _
    $region23: #{fwd.1} parent=1 // pred_check_branch
      %76 = sbr.rel (0) target = $region25
    $region24: #{fwd.1} parent=1 // pred_region
      _
    $region25: #{fwd.1} parent=1 // pred_fallthru
      _
    // Predicated region
    $region26: #{fwd.1} parent=1 // pred_check
      _
    $region27: #{fwd.1} parent=1 // pred_check_branch
      %78 = sbr.rel (0) target = $region29
    $region28: #{fwd.1} parent=1 // pred_region
      %79 = dma.done [#allocation3], 256
    $region29: #{fwd.1} parent=1 // pred_fallthru
      _
    // Predicated region
    $region30: #{fwd.1} parent=1 // pred_check
      _
    $region31: #{fwd.1} parent=1 // pred_check_branch
      %81 = sbr.rel (0) target = $region33
    $region32: #{fwd.1} parent=1 // pred_region
      %82 = dma.done [#allocation6], 512
    $region33: #{fwd.1} parent=1 // pred_fallthru
      _
    // Predicated region
    $region34: #{fwd.1} parent=1 // pred_check
      _
    $region35: #{fwd.1} parent=1 // pred_check_branch
      %84 = sbr.rel (0) target = $region37
    $region36: #{fwd.1} parent=1 // pred_region
      %85 = dma.done [#allocation6], 2048
    $region37: #{fwd.1} parent=1 // pred_fallthru
      _
    // Predicated region
    $region38: #{fwd.1} parent=1 // pred_check
      _
    $region39: #{fwd.1} parent=1 // pred_check_branch
      %87 = sbr.rel (0) target = $region41
    $region40: #{fwd.1} parent=1 // pred_region
      %88 = dma.done [#allocation9], 768
    $region41: #{fwd.1} parent=1 // pred_fallthru
      _
    // Predicated region
    $region42: #{fwd.1} parent=1 // pred_check
      _
    $region43: #{fwd.1} parent=1 // pred_check_branch
      %90 = sbr.rel (0) target = $region45
    $region44: #{fwd.1} parent=1 // pred_region
      %91 = dma.done [#allocation9], 1024
    $region45: #{fwd.1} parent=1 // pred_fallthru
      _
    %v92 = vld [vmem:[#allocation2] sm:$0xff]
    %v93 = vld [vmem:[#allocation2 + $0x8] sm:$0xff]
    %v94 = vld [vmem:[#allocation5] sm:$0xff]
    %v95 = vld [vmem:[#allocation5 + $0x8] sm:$0xff]
    %v96 = vld [vmem:[#allocation5 + $0x10] sm:$0xff]
    %v97 = vld [vmem:[#allocation5 + $0x18] sm:$0xff]
    %v98 = vld [vmem:[#allocation7] sm:$0xff]
    %v99 = vld [vmem:[#allocation7 + $0x20] sm:$0xff]
    %v100 = vld [vmem:[#allocation7 + $0x40] sm:$0xff]
    %v101 = vld [vmem:[#allocation7 + $0x60] sm:$0xff]
    %v102 = vld [vmem:[%s5] sm:$0x1]
    %v104 = vlaneseq
    %v105 = vshrl.u32 %v104, 7
    %v106 = vsub.s32 0, %v105
    %v107 = vrot.slane %v102, %v106
    %vm109 = vcmask 261120
    %v111 = vsel %vm109, %v92, 0
    %v114 = vsel %vm109, %v93, 0
    %116 = vmatprep.subr.mxu0 0.0
    %117 = vmatpush1.msra.mxu0 0.0
    %118 = vmatprep.subr.mxu0 0.0
    %119 = vmatpush1.msra.mxu0 0.0
    %120 = vmatprep.subr.mxu0 0.0
    %121 = vmatpush1.msra.mxu0 0.0
    %122 = vmatprep.subr.mxu0 0.0
    %123 = vmatpush1.msra.mxu0 0.0
    %124 = vmatprep.subr.mxu0 0.0
    %125 = vmatpush1.msra.mxu0 0.0
    %126 = vmatprep.subr.mxu0 0.0
    %127 = vmatpush1.msra.mxu0 0.0
    %128 = vmatprep.subr.mxu0 0.0
    %129 = vmatpush1.msra.mxu0 0.0
    %130 = vmatprep.subr.mxu0 0.0
    %131 = vmatpush1.msra.mxu0 0.0
    %132 = vmatprep.subr.mxu0 0.0
    %133 = vmatpush1.msra.mxu0 0.0
    %134 = vmatprep.subr.mxu0 0.0
    %135 = vmatpush1.msra.mxu0 0.0
    %136 = vmatprep.subr.mxu0 0.0
    %137 = vmatpush1.msra.mxu0 0.0
    %138 = vmatprep.subr.mxu0 0.0
    %139 = vmatpush1.msra.mxu0 0.0
    %140 = vmatprep.subr.mxu0 0.0
    %141 = vmatpush1.msra.mxu0 %v101
    %142 = vmatprep.subr.mxu0 0.0
    %143 = vmatpush1.msra.mxu0 %v100
    %144 = vmatprep.subr.mxu0 0.0
    %145 = vmatpush1.msra.mxu0 %v99
    %146 = vmatprep.subr.mxu0 0.0
    %147 = vmatpush1.msra.mxu0 %v98
    %148 = vmatprep.subr.mxu0 0.0
    %149 = vmatpush2.msra.mxu0 0.0
    %150 = vmatprep.subr.mxu0 0.0
    %151 = vmatpush2.msra.mxu0 0.0
    %152 = vmatprep.subr.mxu0 0.0
    %153 = vmatpush2.msra.mxu0 0.0
    %154 = vmatprep.subr.mxu0 0.0
    %155 = vmatpush2.msra.mxu0 0.0
    %156 = vmatprep.subr.mxu0 0.0
    %157 = vmatpush2.msra.mxu0 0.0
    %158 = vmatprep.subr.mxu0 0.0
    %159 = vmatpush2.msra.mxu0 0.0
    %160 = vmatprep.subr.mxu0 0.0
    %161 = vmatpush2.msra.mxu0 0.0
    %162 = vmatprep.subr.mxu0 0.0
    %163 = vmatpush2.msra.mxu0 0.0
    %164 = vmatprep.subr.mxu0 0.0
    %165 = vmatpush2.msra.mxu0 0.0
    %166 = vmatprep.subr.mxu0 0.0
    %167 = vmatpush2.msra.mxu0 0.0
    %168 = vmatprep.subr.mxu0 0.0
    %169 = vmatpush2.msra.mxu0 0.0
    %170 = vmatprep.subr.mxu0 0.0
    %171 = vmatpush2.msra.mxu0 0.0
    %172 = vmatprep.subr.mxu0 0.0
    %173 = vmatpush2.msra.mxu0 0.0
    %174 = vmatprep.subr.mxu0 0.0
    %175 = vmatpush2.msra.mxu0 0.0
    %176 = vmatprep.subr.mxu0 0.0
    %177 = vmatpush2.msra.mxu0 0.0
    %178 = vmatprep.subr.mxu0 0.0
    %179 = vmatpush2.msra.mxu0 0.0
    %180 = vmatprep.mubr.f32.mxu0 0.0
    %181 = vmatmul.mubr.f32.gmra.mxu0 %v111
    %v182 = vpop.f32.mrf.mxu0
    %v183 = vadd.f32 %v107, %v182
    %v184 = vpop.f32.mrf.mxu0
    %185 = vmatprep.mubr.f32.mxu0 0.0
    %186 = vmatmul.mubr.f32.gmra.mxu0 %v114
    %v187 = vpop.f32.mrf.mxu0
    %v188 = vadd.f32 %v107, %v187
    %v189 = vpop.f32.mrf.mxu0
    %190 = vdwg.mxu0
    %192 = vrot.lane.b32.xlu0 %v183, 96
    %v193 = vpop.permute.xlu0 %192
    %vm194 = vcmask 64512
    %v195 = vsel %vm194, %v183, 0
    %v197 = vsel %vm194, %v193, 0
    %199 = vmatprep.subr.mxu0 0.0
    %200 = vmatpush1.xpose.msra.mxu0 0.0
    %201 = vmatprep.subr.mxu0 0.0
    %202 = vmatpush1.xpose.msra.mxu0 0.0
    %203 = vmatprep.subr.mxu0 0.0
    %204 = vmatpush1.xpose.msra.mxu0 0.0
    %205 = vmatprep.subr.mxu0 0.0
    %206 = vmatpush1.xpose.msra.mxu0 0.0
    %207 = vmatprep.subr.mxu0 0.0
    %208 = vmatpush1.xpose.msra.mxu0 0.0
    %209 = vmatprep.subr.mxu0 0.0
    %210 = vmatpush1.xpose.msra.mxu0 0.0
    %211 = vmatprep.subr.mxu0 0.0
    %212 = vmatpush1.xpose.msra.mxu0 0.0
    %213 = vmatprep.subr.mxu0 0.0
    %214 = vmatpush1.xpose.msra.mxu0 0.0
    %215 = vmatprep.subr.mxu0 0.0
    %216 = vmatpush1.xpose.msra.mxu0 0.0
    %217 = vmatprep.subr.mxu0 0.0
    %218 = vmatpush1.xpose.msra.mxu0 0.0
    %219 = vmatprep.subr.mxu0 0.0
    %220 = vmatpush1.xpose.msra.mxu0 0.0
    %221 = vmatprep.subr.mxu0 0.0
    %222 = vmatpush1.xpose.msra.mxu0 0.0
    %223 = vmatprep.subr.mxu0 0.0
    %224 = vmatpush1.xpose.msra.mxu0 0.0
    %225 = vmatprep.subr.mxu0 0.0
    %226 = vmatpush1.xpose.msra.mxu0 0.0
    %227 = vmatprep.subr.mxu0 0.0
    %228 = vmatpush1.xpose.msra.mxu0 0.0
    %229 = vmatprep.subr.mxu0 0.0
    %230 = vmatpush1.xpose.msra.mxu0 %v197
    %231 = vmatprep.subr.mxu0 0.0
    %232 = vmatpush2.xpose.msra.mxu0 0.0
    %233 = vmatprep.subr.mxu0 0.0
    %234 = vmatpush2.xpose.msra.mxu0 0.0
    %235 = vmatprep.subr.mxu0 0.0
    %236 = vmatpush2.xpose.msra.mxu0 0.0
    %237 = vmatprep.subr.mxu0 0.0
    %238 = vmatpush2.xpose.msra.mxu0 0.0
    %239 = vmatprep.subr.mxu0 0.0
    %240 = vmatpush2.xpose.msra.mxu0 0.0
    %241 = vmatprep.subr.mxu0 0.0
    %242 = vmatpush2.xpose.msra.mxu0 0.0
    %243 = vmatprep.subr.mxu0 0.0
    %244 = vmatpush2.xpose.msra.mxu0 0.0
    %245 = vmatprep.subr.mxu0 0.0
    %246 = vmatpush2.xpose.msra.mxu0 0.0
    %247 = vmatprep.subr.mxu0 0.0
    %248 = vmatpush2.xpose.msra.mxu0 0.0
    %249 = vmatprep.subr.mxu0 0.0
    %250 = vmatpush2.xpose.msra.mxu0 0.0
    %251 = vmatprep.subr.mxu0 0.0
    %252 = vmatpush2.xpose.msra.mxu0 0.0
    %253 = vmatprep.subr.mxu0 0.0
    %254 = vmatpush2.xpose.msra.mxu0 0.0
    %255 = vmatprep.subr.mxu0 0.0
    %256 = vmatpush2.xpose.msra.mxu0 0.0
    %257 = vmatprep.subr.mxu0 0.0
    %258 = vmatpush2.xpose.msra.mxu0 0.0
    %259 = vmatprep.subr.mxu0 0.0
    %260 = vmatpush2.xpose.msra.mxu0 0.0
    %261 = vmatprep.subr.mxu0 0.0
    %262 = vmatpush2.xpose.msra.mxu0 0.0
    %263 = vmatprep.mubr.f32.mxu0 0.0
    %264 = vmatmul.mubr.f32.gmra.mxu0 %v195
    %v265 = vpop.f32.mrf.mxu0
    %v266 = vadd.f32 0.0, %v265
    %v267 = vpop.f32.mrf.mxu0
    %268 = vdwg.mxu0
    %269 = vrot.lane.b32.xlu0 %v183, 120
    %v270 = vpop.permute.xlu0 %269
    %271 = vrot.lane.b32.xlu0 %v183, 88
    %v272 = vpop.permute.xlu0 %271
    %v273 = vsel %vm194, %v270, 0
    %v275 = vsel %vm194, %v272, 0
    %277 = vmatprep.subr.mxu0 0.0
    %278 = vmatpush1.xpose.msra.mxu0 0.0
    %279 = vmatprep.subr.mxu0 0.0
    %280 = vmatpush1.xpose.msra.mxu0 0.0
    %281 = vmatprep.subr.mxu0 0.0
    %282 = vmatpush1.xpose.msra.mxu0 0.0
    %283 = vmatprep.subr.mxu0 0.0
    %284 = vmatpush1.xpose.msra.mxu0 0.0
    %285 = vmatprep.subr.mxu0 0.0
    %286 = vmatpush1.xpose.msra.mxu0 0.0
    %287 = vmatprep.subr.mxu0 0.0
    %288 = vmatpush1.xpose.msra.mxu0 0.0
    %289 = vmatprep.subr.mxu0 0.0
    %290 = vmatpush1.xpose.msra.mxu0 0.0
    %291 = vmatprep.subr.mxu0 0.0
    %292 = vmatpush1.xpose.msra.mxu0 0.0
    %293 = vmatprep.subr.mxu0 0.0
    %294 = vmatpush1.xpose.msra.mxu0 0.0
    %295 = vmatprep.subr.mxu0 0.0
    %296 = vmatpush1.xpose.msra.mxu0 0.0
    %297 = vmatprep.subr.mxu0 0.0
    %298 = vmatpush1.xpose.msra.mxu0 0.0
    %299 = vmatprep.subr.mxu0 0.0
    %300 = vmatpush1.xpose.msra.mxu0 0.0
    %301 = vmatprep.subr.mxu0 0.0
    %302 = vmatpush1.xpose.msra.mxu0 0.0
    %303 = vmatprep.subr.mxu0 0.0
    %304 = vmatpush1.xpose.msra.mxu0 0.0
    %305 = vmatprep.subr.mxu0 0.0
    %306 = vmatpush1.xpose.msra.mxu0 0.0
    %307 = vmatprep.subr.mxu0 0.0
    %308 = vmatpush1.xpose.msra.mxu0 %v275
    %309 = vmatprep.subr.mxu0 0.0
    %310 = vmatpush2.xpose.msra.mxu0 0.0
    %311 = vmatprep.subr.mxu0 0.0
    %312 = vmatpush2.xpose.msra.mxu0 0.0
    %313 = vmatprep.subr.mxu0 0.0
    %314 = vmatpush2.xpose.msra.mxu0 0.0
    %315 = vmatprep.subr.mxu0 0.0
    %316 = vmatpush2.xpose.msra.mxu0 0.0
    %317 = vmatprep.subr.mxu0 0.0
    %318 = vmatpush2.xpose.msra.mxu0 0.0
    %319 = vmatprep.subr.mxu0 0.0
    %320 = vmatpush2.xpose.msra.mxu0 0.0
    %321 = vmatprep.subr.mxu0 0.0
    %322 = vmatpush2.xpose.msra.mxu0 0.0
    %323 = vmatprep.subr.mxu0 0.0
    %324 = vmatpush2.xpose.msra.mxu0 0.0
    %325 = vmatprep.subr.mxu0 0.0
    %326 = vmatpush2.xpose.msra.mxu0 0.0
    %327 = vmatprep.subr.mxu0 0.0
    %328 = vmatpush2.xpose.msra.mxu0 0.0
    %329 = vmatprep.subr.mxu0 0.0
    %330 = vmatpush2.xpose.msra.mxu0 0.0
    %331 = vmatprep.subr.mxu0 0.0
    %332 = vmatpush2.xpose.msra.mxu0 0.0
    %333 = vmatprep.subr.mxu0 0.0
    %334 = vmatpush2.xpose.msra.mxu0 0.0
    %335 = vmatprep.subr.mxu0 0.0
    %336 = vmatpush2.xpose.msra.mxu0 0.0
    %337 = vmatprep.subr.mxu0 0.0
    %338 = vmatpush2.xpose.msra.mxu0 0.0
    %339 = vmatprep.subr.mxu0 0.0
    %340 = vmatpush2.xpose.msra.mxu0 0.0
    %341 = vmatprep.mubr.f32.mxu0 0.0
    %342 = vmatmul.mubr.f32.gmra.mxu0 %v273
    %v343 = vpop.f32.mrf.mxu0
    %v344 = vadd.f32 0.0, %v343
    %v345 = vpop.f32.mrf.mxu0
    %346 = vdwg.mxu0
    %347 = vrot.lane.b32.xlu0 %v183, 112
    %v348 = vpop.permute.xlu0 %347
    %349 = vrot.lane.b32.xlu0 %v183, 80
    %v350 = vpop.permute.xlu0 %349
    %v351 = vsel %vm194, %v348, 0
    %v353 = vsel %vm194, %v350, 0
    %355 = vmatprep.subr.mxu0 0.0
    %356 = vmatpush1.xpose.msra.mxu0 0.0
    %357 = vmatprep.subr.mxu0 0.0
    %358 = vmatpush1.xpose.msra.mxu0 0.0
    %359 = vmatprep.subr.mxu0 0.0
    %360 = vmatpush1.xpose.msra.mxu0 0.0
    %361 = vmatprep.subr.mxu0 0.0
    %362 = vmatpush1.xpose.msra.mxu0 0.0
    %363 = vmatprep.subr.mxu0 0.0
    %364 = vmatpush1.xpose.msra.mxu0 0.0
    %365 = vmatprep.subr.mxu0 0.0
    %366 = vmatpush1.xpose.msra.mxu0 0.0
    %367 = vmatprep.subr.mxu0 0.0
    %368 = vmatpush1.xpose.msra.mxu0 0.0
    %369 = vmatprep.subr.mxu0 0.0
    %370 = vmatpush1.xpose.msra.mxu0 0.0
    %371 = vmatprep.subr.mxu0 0.0
    %372 = vmatpush1.xpose.msra.mxu0 0.0
    %373 = vmatprep.subr.mxu0 0.0
    %374 = vmatpush1.xpose.msra.mxu0 0.0
    %375 = vmatprep.subr.mxu0 0.0
    %376 = vmatpush1.xpose.msra.mxu0 0.0
    %377 = vmatprep.subr.mxu0 0.0
    %378 = vmatpush1.xpose.msra.mxu0 0.0
    %379 = vmatprep.subr.mxu0 0.0
    %380 = vmatpush1.xpose.msra.mxu0 0.0
    %381 = vmatprep.subr.mxu0 0.0
    %382 = vmatpush1.xpose.msra.mxu0 0.0
    %383 = vmatprep.subr.mxu0 0.0
    %384 = vmatpush1.xpose.msra.mxu0 0.0
    %385 = vmatprep.subr.mxu0 0.0
    %386 = vmatpush1.xpose.msra.mxu0 %v353
    %387 = vmatprep.subr.mxu0 0.0
    %388 = vmatpush2.xpose.msra.mxu0 0.0
    %389 = vmatprep.subr.mxu0 0.0
    %390 = vmatpush2.xpose.msra.mxu0 0.0
    %391 = vmatprep.subr.mxu0 0.0
    %392 = vmatpush2.xpose.msra.mxu0 0.0
    %393 = vmatprep.subr.mxu0 0.0
    %394 = vmatpush2.xpose.msra.mxu0 0.0
    %395 = vmatprep.subr.mxu0 0.0
    %396 = vmatpush2.xpose.msra.mxu0 0.0
    %397 = vmatprep.subr.mxu0 0.0
    %398 = vmatpush2.xpose.msra.mxu0 0.0
    %399 = vmatprep.subr.mxu0 0.0
    %400 = vmatpush2.xpose.msra.mxu0 0.0
    %401 = vmatprep.subr.mxu0 0.0
    %402 = vmatpush2.xpose.msra.mxu0 0.0
    %403 = vmatprep.subr.mxu0 0.0
    %404 = vmatpush2.xpose.msra.mxu0 0.0
    %405 = vmatprep.subr.mxu0 0.0
    %406 = vmatpush2.xpose.msra.mxu0 0.0
    %407 = vmatprep.subr.mxu0 0.0
    %408 = vmatpush2.xpose.msra.mxu0 0.0
    %409 = vmatprep.subr.mxu0 0.0
    %410 = vmatpush2.xpose.msra.mxu0 0.0
    %411 = vmatprep.subr.mxu0 0.0
    %412 = vmatpush2.xpose.msra.mxu0 0.0
    %413 = vmatprep.subr.mxu0 0.0
    %414 = vmatpush2.xpose.msra.mxu0 0.0
    %415 = vmatprep.subr.mxu0 0.0
    %416 = vmatpush2.xpose.msra.mxu0 0.0
    %417 = vmatprep.subr.mxu0 0.0
    %418 = vmatpush2.xpose.msra.mxu0 0.0
    %419 = vmatprep.mubr.f32.mxu0 0.0
    %420 = vmatmul.mubr.f32.gmra.mxu0 %v351
    %v421 = vpop.f32.mrf.mxu0
    %v422 = vadd.f32 0.0, %v421
    %v423 = vpop.f32.mrf.mxu0
    %424 = vdwg.mxu0
    %425 = vrot.lane.b32.xlu0 %v183, 104
    %v426 = vpop.permute.xlu0 %425
    %427 = vrot.lane.b32.xlu0 %v183, 72
    %v428 = vpop.permute.xlu0 %427
    %v429 = vsel %vm194, %v426, 0
    %v431 = vsel %vm194, %v428, 0
    %433 = vmatprep.subr.mxu0 0.0
    %434 = vmatpush1.xpose.msra.mxu0 0.0
    %435 = vmatprep.subr.mxu0 0.0
    %436 = vmatpush1.xpose.msra.mxu0 0.0
    %437 = vmatprep.subr.mxu0 0.0
    %438 = vmatpush1.xpose.msra.mxu0 0.0
    %439 = vmatprep.subr.mxu0 0.0
    %440 = vmatpush1.xpose.msra.mxu0 0.0
    %441 = vmatprep.subr.mxu0 0.0
    %442 = vmatpush1.xpose.msra.mxu0 0.0
    %443 = vmatprep.subr.mxu0 0.0
    %444 = vmatpush1.xpose.msra.mxu0 0.0
    %445 = vmatprep.subr.mxu0 0.0
    %446 = vmatpush1.xpose.msra.mxu0 0.0
    %447 = vmatprep.subr.mxu0 0.0
    %448 = vmatpush1.xpose.msra.mxu0 0.0
    %449 = vmatprep.subr.mxu0 0.0
    %450 = vmatpush1.xpose.msra.mxu0 0.0
    %451 = vmatprep.subr.mxu0 0.0
    %452 = vmatpush1.xpose.msra.mxu0 0.0
    %453 = vmatprep.subr.mxu0 0.0
    %454 = vmatpush1.xpose.msra.mxu0 0.0
    %455 = vmatprep.subr.mxu0 0.0
    %456 = vmatpush1.xpose.msra.mxu0 0.0
    %457 = vmatprep.subr.mxu0 0.0
    %458 = vmatpush1.xpose.msra.mxu0 0.0
    %459 = vmatprep.subr.mxu0 0.0
    %460 = vmatpush1.xpose.msra.mxu0 0.0
    %461 = vmatprep.subr.mxu0 0.0
    %462 = vmatpush1.xpose.msra.mxu0 0.0
    %463 = vmatprep.subr.mxu0 0.0
    %464 = vmatpush1.xpose.msra.mxu0 %v431
    %465 = vmatprep.subr.mxu0 0.0
    %466 = vmatpush2.xpose.msra.mxu0 0.0
    %467 = vmatprep.subr.mxu0 0.0
    %468 = vmatpush2.xpose.msra.mxu0 0.0
    %469 = vmatprep.subr.mxu0 0.0
    %470 = vmatpush2.xpose.msra.mxu0 0.0
    %471 = vmatprep.subr.mxu0 0.0
    %472 = vmatpush2.xpose.msra.mxu0 0.0
    %473 = vmatprep.subr.mxu0 0.0
    %474 = vmatpush2.xpose.msra.mxu0 0.0
    %475 = vmatprep.subr.mxu0 0.0
    %476 = vmatpush2.xpose.msra.mxu0 0.0
    %477 = vmatprep.subr.mxu0 0.0
    %478 = vmatpush2.xpose.msra.mxu0 0.0
    %479 = vmatprep.subr.mxu0 0.0
    %480 = vmatpush2.xpose.msra.mxu0 0.0
    %481 = vmatprep.subr.mxu0 0.0
    %482 = vmatpush2.xpose.msra.mxu0 0.0
    %483 = vmatprep.subr.mxu0 0.0
    %484 = vmatpush2.xpose.msra.mxu0 0.0
    %485 = vmatprep.subr.mxu0 0.0
    %486 = vmatpush2.xpose.msra.mxu0 0.0
    %487 = vmatprep.subr.mxu0 0.0
    %488 = vmatpush2.xpose.msra.mxu0 0.0
    %489 = vmatprep.subr.mxu0 0.0
    %490 = vmatpush2.xpose.msra.mxu0 0.0
    %491 = vmatprep.subr.mxu0 0.0
    %492 = vmatpush2.xpose.msra.mxu0 0.0
    %493 = vmatprep.subr.mxu0 0.0
    %494 = vmatpush2.xpose.msra.mxu0 0.0
    %495 = vmatprep.subr.mxu0 0.0
    %496 = vmatpush2.xpose.msra.mxu0 0.0
    %497 = vmatprep.mubr.f32.mxu0 0.0
    %498 = vmatmul.mubr.f32.gmra.mxu0 %v429
    %v499 = vpop.f32.mrf.mxu0
    %v500 = vadd.f32 0.0, %v499
    %v501 = vpop.f32.mrf.mxu0
    %502 = vdwg.mxu0
    %504 = vrot.lane.b32.xlu0 %v188, 96
    %v505 = vpop.permute.xlu0 %504
    %v506 = vsel %vm194, %v188, 0
    %v508 = vsel %vm194, %v505, 0
    %510 = vmatprep.subr.mxu0 0.0
    %511 = vmatpush1.xpose.msra.mxu0 0.0
    %512 = vmatprep.subr.mxu0 0.0
    %513 = vmatpush1.xpose.msra.mxu0 0.0
    %514 = vmatprep.subr.mxu0 0.0
    %515 = vmatpush1.xpose.msra.mxu0 0.0
    %516 = vmatprep.subr.mxu0 0.0
    %517 = vmatpush1.xpose.msra.mxu0 0.0
    %518 = vmatprep.subr.mxu0 0.0
    %519 = vmatpush1.xpose.msra.mxu0 0.0
    %520 = vmatprep.subr.mxu0 0.0
    %521 = vmatpush1.xpose.msra.mxu0 0.0
    %522 = vmatprep.subr.mxu0 0.0
    %523 = vmatpush1.xpose.msra.mxu0 0.0
    %524 = vmatprep.subr.mxu0 0.0
    %525 = vmatpush1.xpose.msra.mxu0 0.0
    %526 = vmatprep.subr.mxu0 0.0
    %527 = vmatpush1.xpose.msra.mxu0 0.0
    %528 = vmatprep.subr.mxu0 0.0
    %529 = vmatpush1.xpose.msra.mxu0 0.0
    %530 = vmatprep.subr.mxu0 0.0
    %531 = vmatpush1.xpose.msra.mxu0 0.0
    %532 = vmatprep.subr.mxu0 0.0
    %533 = vmatpush1.xpose.msra.mxu0 0.0
    %534 = vmatprep.subr.mxu0 0.0
    %535 = vmatpush1.xpose.msra.mxu0 0.0
    %536 = vmatprep.subr.mxu0 0.0
    %537 = vmatpush1.xpose.msra.mxu0 0.0
    %538 = vmatprep.subr.mxu0 0.0
    %539 = vmatpush1.xpose.msra.mxu0 0.0
    %540 = vmatprep.subr.mxu0 0.0
    %541 = vmatpush1.xpose.msra.mxu0 %v508
    %542 = vmatprep.subr.mxu0 0.0
    %543 = vmatpush2.xpose.msra.mxu0 0.0
    %544 = vmatprep.subr.mxu0 0.0
    %545 = vmatpush2.xpose.msra.mxu0 0.0
    %546 = vmatprep.subr.mxu0 0.0
    %547 = vmatpush2.xpose.msra.mxu0 0.0
    %548 = vmatprep.subr.mxu0 0.0
    %549 = vmatpush2.xpose.msra.mxu0 0.0
    %550 = vmatprep.subr.mxu0 0.0
    %551 = vmatpush2.xpose.msra.mxu0 0.0
    %552 = vmatprep.subr.mxu0 0.0
    %553 = vmatpush2.xpose.msra.mxu0 0.0
    %554 = vmatprep.subr.mxu0 0.0
    %555 = vmatpush2.xpose.msra.mxu0 0.0
    %556 = vmatprep.subr.mxu0 0.0
    %557 = vmatpush2.xpose.msra.mxu0 0.0
    %558 = vmatprep.subr.mxu0 0.0
    %559 = vmatpush2.xpose.msra.mxu0 0.0
    %560 = vmatprep.subr.mxu0 0.0
    %561 = vmatpush2.xpose.msra.mxu0 0.0
    %562 = vmatprep.subr.mxu0 0.0
    %563 = vmatpush2.xpose.msra.mxu0 0.0
    %564 = vmatprep.subr.mxu0 0.0
    %565 = vmatpush2.xpose.msra.mxu0 0.0
    %566 = vmatprep.subr.mxu0 0.0
    %567 = vmatpush2.xpose.msra.mxu0 0.0
    %568 = vmatprep.subr.mxu0 0.0
    %569 = vmatpush2.xpose.msra.mxu0 0.0
    %570 = vmatprep.subr.mxu0 0.0
    %571 = vmatpush2.xpose.msra.mxu0 0.0
    %572 = vmatprep.subr.mxu0 0.0
    %573 = vmatpush2.xpose.msra.mxu0 0.0
    %574 = vmatprep.mubr.f32.mxu0 0.0
    %575 = vmatmul.mubr.f32.gmra.mxu0 %v506
    %v576 = vpop.f32.mrf.mxu0
    %v577 = vadd.f32 0.0, %v576
    %v578 = vpop.f32.mrf.mxu0
    %579 = vdwg.mxu0
    %580 = vrot.lane.b32.xlu0 %v188, 120
    %v581 = vpop.permute.xlu0 %580
    %582 = vrot.lane.b32.xlu0 %v188, 88
    %v583 = vpop.permute.xlu0 %582
    %v584 = vsel %vm194, %v581, 0
    %v586 = vsel %vm194, %v583, 0
    %588 = vmatprep.subr.mxu0 0.0
    %589 = vmatpush1.xpose.msra.mxu0 0.0
    %590 = vmatprep.subr.mxu0 0.0
    %591 = vmatpush1.xpose.msra.mxu0 0.0
    %592 = vmatprep.subr.mxu0 0.0
    %593 = vmatpush1.xpose.msra.mxu0 0.0
    %594 = vmatprep.subr.mxu0 0.0
    %595 = vmatpush1.xpose.msra.mxu0 0.0
    %596 = vmatprep.subr.mxu0 0.0
    %597 = vmatpush1.xpose.msra.mxu0 0.0
    %598 = vmatprep.subr.mxu0 0.0
    %599 = vmatpush1.xpose.msra.mxu0 0.0
    %600 = vmatprep.subr.mxu0 0.0
    %601 = vmatpush1.xpose.msra.mxu0 0.0
    %602 = vmatprep.subr.mxu0 0.0
    %603 = vmatpush1.xpose.msra.mxu0 0.0
    %604 = vmatprep.subr.mxu0 0.0
    %605 = vmatpush1.xpose.msra.mxu0 0.0
    %606 = vmatprep.subr.mxu0 0.0
    %607 = vmatpush1.xpose.msra.mxu0 0.0
    %608 = vmatprep.subr.mxu0 0.0
    %609 = vmatpush1.xpose.msra.mxu0 0.0
    %610 = vmatprep.subr.mxu0 0.0
    %611 = vmatpush1.xpose.msra.mxu0 0.0
    %612 = vmatprep.subr.mxu0 0.0
    %613 = vmatpush1.xpose.msra.mxu0 0.0
    %614 = vmatprep.subr.mxu0 0.0
    %615 = vmatpush1.xpose.msra.mxu0 0.0
    %616 = vmatprep.subr.mxu0 0.0
    %617 = vmatpush1.xpose.msra.mxu0 0.0
    %618 = vmatprep.subr.mxu0 0.0
    %619 = vmatpush1.xpose.msra.mxu0 %v586
    %620 = vmatprep.subr.mxu0 0.0
    %621 = vmatpush2.xpose.msra.mxu0 0.0
    %622 = vmatprep.subr.mxu0 0.0
    %623 = vmatpush2.xpose.msra.mxu0 0.0
    %624 = vmatprep.subr.mxu0 0.0
    %625 = vmatpush2.xpose.msra.mxu0 0.0
    %626 = vmatprep.subr.mxu0 0.0
    %627 = vmatpush2.xpose.msra.mxu0 0.0
    %628 = vmatprep.subr.mxu0 0.0
    %629 = vmatpush2.xpose.msra.mxu0 0.0
    %630 = vmatprep.subr.mxu0 0.0
    %631 = vmatpush2.xpose.msra.mxu0 0.0
    %632 = vmatprep.subr.mxu0 0.0
    %633 = vmatpush2.xpose.msra.mxu0 0.0
    %634 = vmatprep.subr.mxu0 0.0
    %635 = vmatpush2.xpose.msra.mxu0 0.0
    %636 = vmatprep.subr.mxu0 0.0
    %637 = vmatpush2.xpose.msra.mxu0 0.0
    %638 = vmatprep.subr.mxu0 0.0
    %639 = vmatpush2.xpose.msra.mxu0 0.0
    %640 = vmatprep.subr.mxu0 0.0
    %641 = vmatpush2.xpose.msra.mxu0 0.0
    %642 = vmatprep.subr.mxu0 0.0
    %643 = vmatpush2.xpose.msra.mxu0 0.0
    %644 = vmatprep.subr.mxu0 0.0
    %645 = vmatpush2.xpose.msra.mxu0 0.0
    %646 = vmatprep.subr.mxu0 0.0
    %647 = vmatpush2.xpose.msra.mxu0 0.0
    %648 = vmatprep.subr.mxu0 0.0
    %649 = vmatpush2.xpose.msra.mxu0 0.0
    %650 = vmatprep.subr.mxu0 0.0
    %651 = vmatpush2.xpose.msra.mxu0 0.0
    %652 = vmatprep.mubr.f32.mxu0 0.0
    %653 = vmatmul.mubr.f32.gmra.mxu0 %v584
    %v654 = vpop.f32.mrf.mxu0
    %v655 = vadd.f32 0.0, %v654
    %v656 = vpop.f32.mrf.mxu0
    %657 = vdwg.mxu0
    %658 = vrot.lane.b32.xlu0 %v188, 112
    %v659 = vpop.permute.xlu0 %658
    %660 = vrot.lane.b32.xlu0 %v188, 80
    %v661 = vpop.permute.xlu0 %660
    %v662 = vsel %vm194, %v659, 0
    %v664 = vsel %vm194, %v661, 0
    %666 = vmatprep.subr.mxu0 0.0
    %667 = vmatpush1.xpose.msra.mxu0 0.0
    %668 = vmatprep.subr.mxu0 0.0
    %669 = vmatpush1.xpose.msra.mxu0 0.0
    %670 = vmatprep.subr.mxu0 0.0
    %671 = vmatpush1.xpose.msra.mxu0 0.0
    %672 = vmatprep.subr.mxu0 0.0
    %673 = vmatpush1.xpose.msra.mxu0 0.0
    %674 = vmatprep.subr.mxu0 0.0
    %675 = vmatpush1.xpose.msra.mxu0 0.0
    %676 = vmatprep.subr.mxu0 0.0
    %677 = vmatpush1.xpose.msra.mxu0 0.0
    %678 = vmatprep.subr.mxu0 0.0
    %679 = vmatpush1.xpose.msra.mxu0 0.0
    %680 = vmatprep.subr.mxu0 0.0
    %681 = vmatpush1.xpose.msra.mxu0 0.0
    %682 = vmatprep.subr.mxu0 0.0
    %683 = vmatpush1.xpose.msra.mxu0 0.0
    %684 = vmatprep.subr.mxu0 0.0
    %685 = vmatpush1.xpose.msra.mxu0 0.0
    %686 = vmatprep.subr.mxu0 0.0
    %687 = vmatpush1.xpose.msra.mxu0 0.0
    %688 = vmatprep.subr.mxu0 0.0
    %689 = vmatpush1.xpose.msra.mxu0 0.0
    %690 = vmatprep.subr.mxu0 0.0
    %691 = vmatpush1.xpose.msra.mxu0 0.0
    %692 = vmatprep.subr.mxu0 0.0
    %693 = vmatpush1.xpose.msra.mxu0 0.0
    %694 = vmatprep.subr.mxu0 0.0
    %695 = vmatpush1.xpose.msra.mxu0 0.0
    %696 = vmatprep.subr.mxu0 0.0
    %697 = vmatpush1.xpose.msra.mxu0 %v664
    %698 = vmatprep.subr.mxu0 0.0
    %699 = vmatpush2.xpose.msra.mxu0 0.0
    %700 = vmatprep.subr.mxu0 0.0
    %701 = vmatpush2.xpose.msra.mxu0 0.0
    %702 = vmatprep.subr.mxu0 0.0
    %703 = vmatpush2.xpose.msra.mxu0 0.0
    %704 = vmatprep.subr.mxu0 0.0
    %705 = vmatpush2.xpose.msra.mxu0 0.0
    %706 = vmatprep.subr.mxu0 0.0
    %707 = vmatpush2.xpose.msra.mxu0 0.0
    %708 = vmatprep.subr.mxu0 0.0
    %709 = vmatpush2.xpose.msra.mxu0 0.0
    %710 = vmatprep.subr.mxu0 0.0
    %711 = vmatpush2.xpose.msra.mxu0 0.0
    %712 = vmatprep.subr.mxu0 0.0
    %713 = vmatpush2.xpose.msra.mxu0 0.0
    %714 = vmatprep.subr.mxu0 0.0
    %715 = vmatpush2.xpose.msra.mxu0 0.0
    %716 = vmatprep.subr.mxu0 0.0
    %717 = vmatpush2.xpose.msra.mxu0 0.0
    %718 = vmatprep.subr.mxu0 0.0
    %719 = vmatpush2.xpose.msra.mxu0 0.0
    %720 = vmatprep.subr.mxu0 0.0
    %721 = vmatpush2.xpose.msra.mxu0 0.0
    %722 = vmatprep.subr.mxu0 0.0
    %723 = vmatpush2.xpose.msra.mxu0 0.0
    %724 = vmatprep.subr.mxu0 0.0
    %725 = vmatpush2.xpose.msra.mxu0 0.0
    %726 = vmatprep.subr.mxu0 0.0
    %727 = vmatpush2.xpose.msra.mxu0 0.0
    %728 = vmatprep.subr.mxu0 0.0
    %729 = vmatpush2.xpose.msra.mxu0 0.0
    %730 = vmatprep.mubr.f32.mxu0 0.0
    %731 = vmatmul.mubr.f32.gmra.mxu0 %v662
    %v732 = vpop.f32.mrf.mxu0
    %v733 = vadd.f32 0.0, %v732
    %v734 = vpop.f32.mrf.mxu0
    %735 = vdwg.mxu0
    %736 = vrot.lane.b32.xlu0 %v188, 104
    %v737 = vpop.permute.xlu0 %736
    %738 = vrot.lane.b32.xlu0 %v188, 72
    %v739 = vpop.permute.xlu0 %738
    %v740 = vsel %vm194, %v737, 0
    %v742 = vsel %vm194, %v739, 0
    %744 = vmatprep.subr.mxu0 0.0
    %745 = vmatpush1.xpose.msra.mxu0 0.0
    %746 = vmatprep.subr.mxu0 0.0
    %747 = vmatpush1.xpose.msra.mxu0 0.0
    %748 = vmatprep.subr.mxu0 0.0
    %749 = vmatpush1.xpose.msra.mxu0 0.0
    %750 = vmatprep.subr.mxu0 0.0
    %751 = vmatpush1.xpose.msra.mxu0 0.0
    %752 = vmatprep.subr.mxu0 0.0
    %753 = vmatpush1.xpose.msra.mxu0 0.0
    %754 = vmatprep.subr.mxu0 0.0
    %755 = vmatpush1.xpose.msra.mxu0 0.0
    %756 = vmatprep.subr.mxu0 0.0
    %757 = vmatpush1.xpose.msra.mxu0 0.0
    %758 = vmatprep.subr.mxu0 0.0
    %759 = vmatpush1.xpose.msra.mxu0 0.0
    %760 = vmatprep.subr.mxu0 0.0
    %761 = vmatpush1.xpose.msra.mxu0 0.0
    %762 = vmatprep.subr.mxu0 0.0
    %763 = vmatpush1.xpose.msra.mxu0 0.0
    %764 = vmatprep.subr.mxu0 0.0
    %765 = vmatpush1.xpose.msra.mxu0 0.0
    %766 = vmatprep.subr.mxu0 0.0
    %767 = vmatpush1.xpose.msra.mxu0 0.0
    %768 = vmatprep.subr.mxu0 0.0
    %769 = vmatpush1.xpose.msra.mxu0 0.0
    %770 = vmatprep.subr.mxu0 0.0
    %771 = vmatpush1.xpose.msra.mxu0 0.0
    %772 = vmatprep.subr.mxu0 0.0
    %773 = vmatpush1.xpose.msra.mxu0 0.0
    %774 = vmatprep.subr.mxu0 0.0
    %775 = vmatpush1.xpose.msra.mxu0 %v742
    %776 = vmatprep.subr.mxu0 0.0
    %777 = vmatpush2.xpose.msra.mxu0 0.0
    %778 = vmatprep.subr.mxu0 0.0
    %779 = vmatpush2.xpose.msra.mxu0 0.0
    %780 = vmatprep.subr.mxu0 0.0
    %781 = vmatpush2.xpose.msra.mxu0 0.0
    %782 = vmatprep.subr.mxu0 0.0
    %783 = vmatpush2.xpose.msra.mxu0 0.0
    %784 = vmatprep.subr.mxu0 0.0
    %785 = vmatpush2.xpose.msra.mxu0 0.0
    %786 = vmatprep.subr.mxu0 0.0
    %787 = vmatpush2.xpose.msra.mxu0 0.0
    %788 = vmatprep.subr.mxu0 0.0
    %789 = vmatpush2.xpose.msra.mxu0 0.0
    %790 = vmatprep.subr.mxu0 0.0
    %791 = vmatpush2.xpose.msra.mxu0 0.0
    %792 = vmatprep.subr.mxu0 0.0
    %793 = vmatpush2.xpose.msra.mxu0 0.0
    %794 = vmatprep.subr.mxu0 0.0
    %795 = vmatpush2.xpose.msra.mxu0 0.0
    %796 = vmatprep.subr.mxu0 0.0
    %797 = vmatpush2.xpose.msra.mxu0 0.0
    %798 = vmatprep.subr.mxu0 0.0
    %799 = vmatpush2.xpose.msra.mxu0 0.0
    %800 = vmatprep.subr.mxu0 0.0
    %801 = vmatpush2.xpose.msra.mxu0 0.0
    %802 = vmatprep.subr.mxu0 0.0
    %803 = vmatpush2.xpose.msra.mxu0 0.0
    %804 = vmatprep.subr.mxu0 0.0
    %805 = vmatpush2.xpose.msra.mxu0 0.0
    %806 = vmatprep.subr.mxu0 0.0
    %807 = vmatpush2.xpose.msra.mxu0 0.0
    %808 = vmatprep.mubr.f32.mxu0 0.0
    %809 = vmatmul.mubr.f32.gmra.mxu0 %v740
    %v810 = vpop.f32.mrf.mxu0
    %v811 = vadd.f32 0.0, %v810
    %v812 = vpop.f32.mrf.mxu0
    %813 = vdwg.mxu0
    %v814 = vsel %vm194, %v266, -inf
    %815 = vmax.xlane.f32.xlu0 %v814
    %v816 = vpop.xlane.xlu0 %815
    %v817 = vsel %vm194, %v344, -inf
    %818 = vmax.xlane.f32.xlu0 %v817
    %v819 = vpop.xlane.xlu0 %818
    %v820 = vsel %vm194, %v422, -inf
    %821 = vmax.xlane.f32.xlu0 %v820
    %v822 = vpop.xlane.xlu0 %821
    %v823 = vsel %vm194, %v500, -inf
    %824 = vmax.xlane.f32.xlu0 %v823
    %v825 = vpop.xlane.xlu0 %824
    %v826 = vsel %vm194, %v577, -inf
    %827 = vmax.xlane.f32.xlu0 %v826
    %v828 = vpop.xlane.xlu0 %827
    %v829 = vsel %vm194, %v655, -inf
    %830 = vmax.xlane.f32.xlu0 %v829
    %v831 = vpop.xlane.xlu0 %830
    %v832 = vsel %vm194, %v733, -inf
    %833 = vmax.xlane.f32.xlu0 %v832
    %v834 = vpop.xlane.xlu0 %833
    %v835 = vsel %vm194, %v811, -inf
    %836 = vmax.xlane.f32.xlu0 %v835
    %v837 = vpop.xlane.xlu0 %836
    %v838 = vsub.f32 %v266, %v816
    %v839 = vsub.f32 %v344, %v819
    %v840 = vsub.f32 %v422, %v822
    %v841 = vsub.f32 %v500, %v825
    %v842 = vsub.f32 %v577, %v828
    %v843 = vsub.f32 %v655, %v831
    %v844 = vsub.f32 %v733, %v834
    %v845 = vsub.f32 %v811, %v837
    %v846 = vmul.f32 %v838, 1.442695
    %v847 = vpow.pop %v846
    %v848 = vmul.f32 %v839, 1.442695
    %v849 = vpow.pop %v848
    %v850 = vmul.f32 %v840, 1.442695
    %v851 = vpow.pop %v850
    %v852 = vmul.f32 %v841, 1.442695
    %v853 = vpow.pop %v852
    %v854 = vmul.f32 %v842, 1.442695
    %v855 = vpow.pop %v854
    %v856 = vmul.f32 %v843, 1.442695
    %v857 = vpow.pop %v856
    %v858 = vmul.f32 %v844, 1.442695
    %v859 = vpow.pop %v858
    %v860 = vmul.f32 %v845, 1.442695
    %v861 = vpow.pop %v860
    %v862 = vsel %vm194, %v847, 0.0
    %863 = vadd.xlane.f32.xlu0 %v862
    %v864 = vpop.xlane.xlu0 %863
    %v865 = vsel %vm194, %v849, 0.0
    %866 = vadd.xlane.f32.xlu0 %v865
    %v867 = vpop.xlane.xlu0 %866
    %v868 = vsel %vm194, %v851, 0.0
    %869 = vadd.xlane.f32.xlu0 %v868
    %v870 = vpop.xlane.xlu0 %869
    %v871 = vsel %vm194, %v853, 0.0
    %872 = vadd.xlane.f32.xlu0 %v871
    %v873 = vpop.xlane.xlu0 %872
    %v874 = vsel %vm194, %v855, 0.0
    %875 = vadd.xlane.f32.xlu0 %v874
    %v876 = vpop.xlane.xlu0 %875
    %v877 = vsel %vm194, %v857, 0.0
    %878 = vadd.xlane.f32.xlu0 %v877
    %v879 = vpop.xlane.xlu0 %878
    %v880 = vsel %vm194, %v859, 0.0
    %881 = vadd.xlane.f32.xlu0 %v880
    %v882 = vpop.xlane.xlu0 %881
    %v883 = vsel %vm194, %v861, 0.0
    %884 = vadd.xlane.f32.xlu0 %v883
    %v885 = vpop.xlane.xlu0 %884
    %v886 = vrcp.pop %v864
    %v887 = vmul.f32 %v847, %v886
    %v888 = vrcp.pop %v867
    %v889 = vmul.f32 %v849, %v888
    %v890 = vrcp.pop %v870
    %v891 = vmul.f32 %v851, %v890
    %v892 = vrcp.pop %v873
    %v893 = vmul.f32 %v853, %v892
    %v894 = vrcp.pop %v876
    %v895 = vmul.f32 %v855, %v894
    %v896 = vrcp.pop %v879
    %v897 = vmul.f32 %v857, %v896
    %v898 = vrcp.pop %v882
    %v899 = vmul.f32 %v859, %v898
    %v900 = vrcp.pop %v885
    %v901 = vmul.f32 %v861, %v900
    %902 = vrot.lane.b32.xlu0 %v183, 64
    %v903 = vpop.permute.xlu0 %902
    %v906 = vsel %vm194, %v887, 0
    %908 = vmatprep.subr.mxu0 0.0
    %909 = vmatpush1.msra.mxu0 0.0
    %910 = vmatprep.subr.mxu0 0.0
    %911 = vmatpush1.msra.mxu0 0.0
    %912 = vmatprep.subr.mxu0 0.0
    %913 = vmatpush1.msra.mxu0 0.0
    %914 = vmatprep.subr.mxu0 0.0
    %915 = vmatpush1.msra.mxu0 0.0
    %916 = vmatprep.subr.mxu0 0.0
    %917 = vmatpush1.msra.mxu0 0.0
    %918 = vmatprep.subr.mxu0 0.0
    %919 = vmatpush1.msra.mxu0 0.0
    %920 = vmatprep.subr.mxu0 0.0
    %921 = vmatpush1.msra.mxu0 0.0
    %922 = vmatprep.subr.mxu0 0.0
    %923 = vmatpush1.msra.mxu0 0.0
    %924 = vmatprep.subr.mxu0 0.0
    %925 = vmatpush1.msra.mxu0 0.0
    %926 = vmatprep.subr.mxu0 0.0
    %927 = vmatpush1.msra.mxu0 0.0
    %928 = vmatprep.subr.mxu0 0.0
    %929 = vmatpush1.msra.mxu0 0.0
    %930 = vmatprep.subr.mxu0 0.0
    %931 = vmatpush1.msra.mxu0 0.0
    %932 = vmatprep.subr.mxu0 0.0
    %933 = vmatpush1.msra.mxu0 0.0
    %934 = vmatprep.subr.mxu0 0.0
    %935 = vmatpush1.msra.mxu0 0.0
    %936 = vmatprep.subr.mxu0 0.0
    %937 = vmatpush1.msra.mxu0 0.0
    %938 = vmatprep.subr.mxu0 0.0
    %939 = vmatpush1.msra.mxu0 %v903
    %940 = vmatprep.subr.mxu0 0.0
    %941 = vmatpush2.msra.mxu0 0.0
    %942 = vmatprep.subr.mxu0 0.0
    %943 = vmatpush2.msra.mxu0 0.0
    %944 = vmatprep.subr.mxu0 0.0
    %945 = vmatpush2.msra.mxu0 0.0
    %946 = vmatprep.subr.mxu0 0.0
    %947 = vmatpush2.msra.mxu0 0.0
    %948 = vmatprep.subr.mxu0 0.0
    %949 = vmatpush2.msra.mxu0 0.0
    %950 = vmatprep.subr.mxu0 0.0
    %951 = vmatpush2.msra.mxu0 0.0
    %952 = vmatprep.subr.mxu0 0.0
    %953 = vmatpush2.msra.mxu0 0.0
    %954 = vmatprep.subr.mxu0 0.0
    %955 = vmatpush2.msra.mxu0 0.0
    %956 = vmatprep.subr.mxu0 0.0
    %957 = vmatpush2.msra.mxu0 0.0
    %958 = vmatprep.subr.mxu0 0.0
    %959 = vmatpush2.msra.mxu0 0.0
    %960 = vmatprep.subr.mxu0 0.0
    %961 = vmatpush2.msra.mxu0 0.0
    %962 = vmatprep.subr.mxu0 0.0
    %963 = vmatpush2.msra.mxu0 0.0
    %964 = vmatprep.subr.mxu0 0.0
    %965 = vmatpush2.msra.mxu0 0.0
    %966 = vmatprep.subr.mxu0 0.0
    %967 = vmatpush2.msra.mxu0 0.0
    %968 = vmatprep.subr.mxu0 0.0
    %969 = vmatpush2.msra.mxu0 0.0
    %970 = vmatprep.subr.mxu0 0.0
    %971 = vmatpush2.msra.mxu0 0.0
    %972 = vmatprep.mubr.f32.mxu0 0.0
    %973 = vmatmul.mubr.f32.gmra.mxu0 %v906
    %v974 = vpop.f32.mrf.mxu0
    %v975 = vadd.f32 0.0, %v974
    %v976 = vpop.f32.mrf.mxu0
    %977 = vdwg.mxu0
    %978 = vrot.lane.b32.xlu0 %v183, 56
    %v979 = vpop.permute.xlu0 %978
    %v982 = vsel %vm194, %v889, 0
    %984 = vmatprep.subr.mxu0 0.0
    %985 = vmatpush1.msra.mxu0 0.0
    %986 = vmatprep.subr.mxu0 0.0
    %987 = vmatpush1.msra.mxu0 0.0
    %988 = vmatprep.subr.mxu0 0.0
    %989 = vmatpush1.msra.mxu0 0.0
    %990 = vmatprep.subr.mxu0 0.0
    %991 = vmatpush1.msra.mxu0 0.0
    %992 = vmatprep.subr.mxu0 0.0
    %993 = vmatpush1.msra.mxu0 0.0
    %994 = vmatprep.subr.mxu0 0.0
    %995 = vmatpush1.msra.mxu0 0.0
    %996 = vmatprep.subr.mxu0 0.0
    %997 = vmatpush1.msra.mxu0 0.0
    %998 = vmatprep.subr.mxu0 0.0
    %999 = vmatpush1.msra.mxu0 0.0
    %1000 = vmatprep.subr.mxu0 0.0
    %1001 = vmatpush1.msra.mxu0 0.0
    %1002 = vmatprep.subr.mxu0 0.0
    %1003 = vmatpush1.msra.mxu0 0.0
    %1004 = vmatprep.subr.mxu0 0.0
    %1005 = vmatpush1.msra.mxu0 0.0
    %1006 = vmatprep.subr.mxu0 0.0
    %1007 = vmatpush1.msra.mxu0 0.0
    %1008 = vmatprep.subr.mxu0 0.0
    %1009 = vmatpush1.msra.mxu0 0.0
    %1010 = vmatprep.subr.mxu0 0.0
    %1011 = vmatpush1.msra.mxu0 0.0
    %1012 = vmatprep.subr.mxu0 0.0
    %1013 = vmatpush1.msra.mxu0 0.0
    %1014 = vmatprep.subr.mxu0 0.0
    %1015 = vmatpush1.msra.mxu0 %v979
    %1016 = vmatprep.subr.mxu0 0.0
    %1017 = vmatpush2.msra.mxu0 0.0
    %1018 = vmatprep.subr.mxu0 0.0
    %1019 = vmatpush2.msra.mxu0 0.0
    %1020 = vmatprep.subr.mxu0 0.0
    %1021 = vmatpush2.msra.mxu0 0.0
    %1022 = vmatprep.subr.mxu0 0.0
    %1023 = vmatpush2.msra.mxu0 0.0
    %1024 = vmatprep.subr.mxu0 0.0
    %1025 = vmatpush2.msra.mxu0 0.0
    %1026 = vmatprep.subr.mxu0 0.0
    %1027 = vmatpush2.msra.mxu0 0.0
    %1028 = vmatprep.subr.mxu0 0.0
    %1029 = vmatpush2.msra.mxu0 0.0
    %1030 = vmatprep.subr.mxu0 0.0
    %1031 = vmatpush2.msra.mxu0 0.0
    %1032 = vmatprep.subr.mxu0 0.0
    %1033 = vmatpush2.msra.mxu0 0.0
    %1034 = vmatprep.subr.mxu0 0.0
    %1035 = vmatpush2.msra.mxu0 0.0
    %1036 = vmatprep.subr.mxu0 0.0
    %1037 = vmatpush2.msra.mxu0 0.0
    %1038 = vmatprep.subr.mxu0 0.0
    %1039 = vmatpush2.msra.mxu0 0.0
    %1040 = vmatprep.subr.mxu0 0.0
    %1041 = vmatpush2.msra.mxu0 0.0
    %1042 = vmatprep.subr.mxu0 0.0
    %1043 = vmatpush2.msra.mxu0 0.0
    %1044 = vmatprep.subr.mxu0 0.0
    %1045 = vmatpush2.msra.mxu0 0.0
    %1046 = vmatprep.subr.mxu0 0.0
    %1047 = vmatpush2.msra.mxu0 0.0
    %1048 = vmatprep.mubr.f32.mxu0 0.0
    %1049 = vmatmul.mubr.f32.gmra.mxu0 %v982
    %v1050 = vpop.f32.mrf.mxu0
    %v1051 = vadd.f32 0.0, %v1050
    %v1052 = vpop.f32.mrf.mxu0
    %1053 = vdwg.mxu0
    %1054 = vrot.lane.b32.xlu0 %v183, 48
    %v1055 = vpop.permute.xlu0 %1054
    %v1058 = vsel %vm194, %v891, 0
    %1060 = vmatprep.subr.mxu0 0.0
    %1061 = vmatpush1.msra.mxu0 0.0
    %1062 = vmatprep.subr.mxu0 0.0
    %1063 = vmatpush1.msra.mxu0 0.0
    %1064 = vmatprep.subr.mxu0 0.0
    %1065 = vmatpush1.msra.mxu0 0.0
    %1066 = vmatprep.subr.mxu0 0.0
    %1067 = vmatpush1.msra.mxu0 0.0
    %1068 = vmatprep.subr.mxu0 0.0
    %1069 = vmatpush1.msra.mxu0 0.0
    %1070 = vmatprep.subr.mxu0 0.0
    %1071 = vmatpush1.msra.mxu0 0.0
    %1072 = vmatprep.subr.mxu0 0.0
    %1073 = vmatpush1.msra.mxu0 0.0
    %1074 = vmatprep.subr.mxu0 0.0
    %1075 = vmatpush1.msra.mxu0 0.0
    %1076 = vmatprep.subr.mxu0 0.0
    %1077 = vmatpush1.msra.mxu0 0.0
    %1078 = vmatprep.subr.mxu0 0.0
    %1079 = vmatpush1.msra.mxu0 0.0
    %1080 = vmatprep.subr.mxu0 0.0
    %1081 = vmatpush1.msra.mxu0 0.0
    %1082 = vmatprep.subr.mxu0 0.0
    %1083 = vmatpush1.msra.mxu0 0.0
    %1084 = vmatprep.subr.mxu0 0.0
    %1085 = vmatpush1.msra.mxu0 0.0
    %1086 = vmatprep.subr.mxu0 0.0
    %1087 = vmatpush1.msra.mxu0 0.0
    %1088 = vmatprep.subr.mxu0 0.0
    %1089 = vmatpush1.msra.mxu0 0.0
    %1090 = vmatprep.subr.mxu0 0.0
    %1091 = vmatpush1.msra.mxu0 %v1055
    %1092 = vmatprep.subr.mxu0 0.0
    %1093 = vmatpush2.msra.mxu0 0.0
    %1094 = vmatprep.subr.mxu0 0.0
    %1095 = vmatpush2.msra.mxu0 0.0
    %1096 = vmatprep.subr.mxu0 0.0
    %1097 = vmatpush2.msra.mxu0 0.0
    %1098 = vmatprep.subr.mxu0 0.0
    %1099 = vmatpush2.msra.mxu0 0.0
    %1100 = vmatprep.subr.mxu0 0.0
    %1101 = vmatpush2.msra.mxu0 0.0
    %1102 = vmatprep.subr.mxu0 0.0
    %1103 = vmatpush2.msra.mxu0 0.0
    %1104 = vmatprep.subr.mxu0 0.0
    %1105 = vmatpush2.msra.mxu0 0.0
    %1106 = vmatprep.subr.mxu0 0.0
    %1107 = vmatpush2.msra.mxu0 0.0
    %1108 = vmatprep.subr.mxu0 0.0
    %1109 = vmatpush2.msra.mxu0 0.0
    %1110 = vmatprep.subr.mxu0 0.0
    %1111 = vmatpush2.msra.mxu0 0.0
    %1112 = vmatprep.subr.mxu0 0.0
    %1113 = vmatpush2.msra.mxu0 0.0
    %1114 = vmatprep.subr.mxu0 0.0
    %1115 = vmatpush2.msra.mxu0 0.0
    %1116 = vmatprep.subr.mxu0 0.0
    %1117 = vmatpush2.msra.mxu0 0.0
    %1118 = vmatprep.subr.mxu0 0.0
    %1119 = vmatpush2.msra.mxu0 0.0
    %1120 = vmatprep.subr.mxu0 0.0
    %1121 = vmatpush2.msra.mxu0 0.0
    %1122 = vmatprep.subr.mxu0 0.0
    %1123 = vmatpush2.msra.mxu0 0.0
    %1124 = vmatprep.mubr.f32.mxu0 0.0
    %1125 = vmatmul.mubr.f32.gmra.mxu0 %v1058
    %v1126 = vpop.f32.mrf.mxu0
    %v1127 = vadd.f32 0.0, %v1126
    %v1128 = vpop.f32.mrf.mxu0
    %1129 = vdwg.mxu0
    %1130 = vrot.lane.b32.xlu0 %v183, 40
    %v1131 = vpop.permute.xlu0 %1130
    %v1134 = vsel %vm194, %v893, 0
    %1136 = vmatprep.subr.mxu0 0.0
    %1137 = vmatpush1.msra.mxu0 0.0
    %1138 = vmatprep.subr.mxu0 0.0
    %1139 = vmatpush1.msra.mxu0 0.0
    %1140 = vmatprep.subr.mxu0 0.0
    %1141 = vmatpush1.msra.mxu0 0.0
    %1142 = vmatprep.subr.mxu0 0.0
    %1143 = vmatpush1.msra.mxu0 0.0
    %1144 = vmatprep.subr.mxu0 0.0
    %1145 = vmatpush1.msra.mxu0 0.0
    %1146 = vmatprep.subr.mxu0 0.0
    %1147 = vmatpush1.msra.mxu0 0.0
    %1148 = vmatprep.subr.mxu0 0.0
    %1149 = vmatpush1.msra.mxu0 0.0
    %1150 = vmatprep.subr.mxu0 0.0
    %1151 = vmatpush1.msra.mxu0 0.0
    %1152 = vmatprep.subr.mxu0 0.0
    %1153 = vmatpush1.msra.mxu0 0.0
    %1154 = vmatprep.subr.mxu0 0.0
    %1155 = vmatpush1.msra.mxu0 0.0
    %1156 = vmatprep.subr.mxu0 0.0
    %1157 = vmatpush1.msra.mxu0 0.0
    %1158 = vmatprep.subr.mxu0 0.0
    %1159 = vmatpush1.msra.mxu0 0.0
    %1160 = vmatprep.subr.mxu0 0.0
    %1161 = vmatpush1.msra.mxu0 0.0
    %1162 = vmatprep.subr.mxu0 0.0
    %1163 = vmatpush1.msra.mxu0 0.0
    %1164 = vmatprep.subr.mxu0 0.0
    %1165 = vmatpush1.msra.mxu0 0.0
    %1166 = vmatprep.subr.mxu0 0.0
    %1167 = vmatpush1.msra.mxu0 %v1131
    %1168 = vmatprep.subr.mxu0 0.0
    %1169 = vmatpush2.msra.mxu0 0.0
    %1170 = vmatprep.subr.mxu0 0.0
    %1171 = vmatpush2.msra.mxu0 0.0
    %1172 = vmatprep.subr.mxu0 0.0
    %1173 = vmatpush2.msra.mxu0 0.0
    %1174 = vmatprep.subr.mxu0 0.0
    %1175 = vmatpush2.msra.mxu0 0.0
    %1176 = vmatprep.subr.mxu0 0.0
    %1177 = vmatpush2.msra.mxu0 0.0
    %1178 = vmatprep.subr.mxu0 0.0
    %1179 = vmatpush2.msra.mxu0 0.0
    %1180 = vmatprep.subr.mxu0 0.0
    %1181 = vmatpush2.msra.mxu0 0.0
    %1182 = vmatprep.subr.mxu0 0.0
    %1183 = vmatpush2.msra.mxu0 0.0
    %1184 = vmatprep.subr.mxu0 0.0
    %1185 = vmatpush2.msra.mxu0 0.0
    %1186 = vmatprep.subr.mxu0 0.0
    %1187 = vmatpush2.msra.mxu0 0.0
    %1188 = vmatprep.subr.mxu0 0.0
    %1189 = vmatpush2.msra.mxu0 0.0
    %1190 = vmatprep.subr.mxu0 0.0
    %1191 = vmatpush2.msra.mxu0 0.0
    %1192 = vmatprep.subr.mxu0 0.0
    %1193 = vmatpush2.msra.mxu0 0.0
    %1194 = vmatprep.subr.mxu0 0.0
    %1195 = vmatpush2.msra.mxu0 0.0
    %1196 = vmatprep.subr.mxu0 0.0
    %1197 = vmatpush2.msra.mxu0 0.0
    %1198 = vmatprep.subr.mxu0 0.0
    %1199 = vmatpush2.msra.mxu0 0.0
    %1200 = vmatprep.mubr.f32.mxu0 0.0
    %1201 = vmatmul.mubr.f32.gmra.mxu0 %v1134
    %v1202 = vpop.f32.mrf.mxu0
    %v1203 = vadd.f32 0.0, %v1202
    %v1204 = vpop.f32.mrf.mxu0
    %1205 = vdwg.mxu0
    %1207 = vrot.lane.b32.xlu0 %v1051, 8
    %v1208 = vpop.permute.xlu0 %1207
    %1211 = vrot.lane.b32.xlu0 %v1127, 16
    %v1212 = vpop.permute.xlu0 %1211
    %1215 = vrot.lane.b32.xlu0 %v1203, 24
    %v1216 = vpop.permute.xlu0 %1215
    %v1218 = vsel %vm194, %v975, %v1208
    %vm1219 = vcmask 130048
    %v1220 = vsel %vm1219, %v1218, %v1212
    %vm1221 = vcmask 195584
    %v1222 = vsel %vm1221, %v1220, %v1216
    %1223 = vrot.lane.b32.xlu0 %v188, 64
    %v1224 = vpop.permute.xlu0 %1223
    %v1227 = vsel %vm194, %v895, 0
    %1229 = vmatprep.subr.mxu0 0.0
    %1230 = vmatpush1.msra.mxu0 0.0
    %1231 = vmatprep.subr.mxu0 0.0
    %1232 = vmatpush1.msra.mxu0 0.0
    %1233 = vmatprep.subr.mxu0 0.0
    %1234 = vmatpush1.msra.mxu0 0.0
    %1235 = vmatprep.subr.mxu0 0.0
    %1236 = vmatpush1.msra.mxu0 0.0
    %1237 = vmatprep.subr.mxu0 0.0
    %1238 = vmatpush1.msra.mxu0 0.0
    %1239 = vmatprep.subr.mxu0 0.0
    %1240 = vmatpush1.msra.mxu0 0.0
    %1241 = vmatprep.subr.mxu0 0.0
    %1242 = vmatpush1.msra.mxu0 0.0
    %1243 = vmatprep.subr.mxu0 0.0
    %1244 = vmatpush1.msra.mxu0 0.0
    %1245 = vmatprep.subr.mxu0 0.0
    %1246 = vmatpush1.msra.mxu0 0.0
    %1247 = vmatprep.subr.mxu0 0.0
    %1248 = vmatpush1.msra.mxu0 0.0
    %1249 = vmatprep.subr.mxu0 0.0
    %1250 = vmatpush1.msra.mxu0 0.0
    %1251 = vmatprep.subr.mxu0 0.0
    %1252 = vmatpush1.msra.mxu0 0.0
    %1253 = vmatprep.subr.mxu0 0.0
    %1254 = vmatpush1.msra.mxu0 0.0
    %1255 = vmatprep.subr.mxu0 0.0
    %1256 = vmatpush1.msra.mxu0 0.0
    %1257 = vmatprep.subr.mxu0 0.0
    %1258 = vmatpush1.msra.mxu0 0.0
    %1259 = vmatprep.subr.mxu0 0.0
    %1260 = vmatpush1.msra.mxu0 %v1224
    %1261 = vmatprep.subr.mxu0 0.0
    %1262 = vmatpush2.msra.mxu0 0.0
    %1263 = vmatprep.subr.mxu0 0.0
    %1264 = vmatpush2.msra.mxu0 0.0
    %1265 = vmatprep.subr.mxu0 0.0
    %1266 = vmatpush2.msra.mxu0 0.0
    %1267 = vmatprep.subr.mxu0 0.0
    %1268 = vmatpush2.msra.mxu0 0.0
    %1269 = vmatprep.subr.mxu0 0.0
    %1270 = vmatpush2.msra.mxu0 0.0
    %1271 = vmatprep.subr.mxu0 0.0
    %1272 = vmatpush2.msra.mxu0 0.0
    %1273 = vmatprep.subr.mxu0 0.0
    %1274 = vmatpush2.msra.mxu0 0.0
    %1275 = vmatprep.subr.mxu0 0.0
    %1276 = vmatpush2.msra.mxu0 0.0
    %1277 = vmatprep.subr.mxu0 0.0
    %1278 = vmatpush2.msra.mxu0 0.0
    %1279 = vmatprep.subr.mxu0 0.0
    %1280 = vmatpush2.msra.mxu0 0.0
    %1281 = vmatprep.subr.mxu0 0.0
    %1282 = vmatpush2.msra.mxu0 0.0
    %1283 = vmatprep.subr.mxu0 0.0
    %1284 = vmatpush2.msra.mxu0 0.0
    %1285 = vmatprep.subr.mxu0 0.0
    %1286 = vmatpush2.msra.mxu0 0.0
    %1287 = vmatprep.subr.mxu0 0.0
    %1288 = vmatpush2.msra.mxu0 0.0
    %1289 = vmatprep.subr.mxu0 0.0
    %1290 = vmatpush2.msra.mxu0 0.0
    %1291 = vmatprep.subr.mxu0 0.0
    %1292 = vmatpush2.msra.mxu0 0.0
    %1293 = vmatprep.mubr.f32.mxu0 0.0
    %1294 = vmatmul.mubr.f32.gmra.mxu0 %v1227
    %v1295 = vpop.f32.mrf.mxu0
    %v1296 = vadd.f32 0.0, %v1295
    %v1297 = vpop.f32.mrf.mxu0
    %1298 = vdwg.mxu0
    %1299 = vrot.lane.b32.xlu0 %v188, 56
    %v1300 = vpop.permute.xlu0 %1299
    %v1303 = vsel %vm194, %v897, 0
    %1305 = vmatprep.subr.mxu0 0.0
    %1306 = vmatpush1.msra.mxu0 0.0
    %1307 = vmatprep.subr.mxu0 0.0
    %1308 = vmatpush1.msra.mxu0 0.0
    %1309 = vmatprep.subr.mxu0 0.0
    %1310 = vmatpush1.msra.mxu0 0.0
    %1311 = vmatprep.subr.mxu0 0.0
    %1312 = vmatpush1.msra.mxu0 0.0
    %1313 = vmatprep.subr.mxu0 0.0
    %1314 = vmatpush1.msra.mxu0 0.0
    %1315 = vmatprep.subr.mxu0 0.0
    %1316 = vmatpush1.msra.mxu0 0.0
    %1317 = vmatprep.subr.mxu0 0.0
    %1318 = vmatpush1.msra.mxu0 0.0
    %1319 = vmatprep.subr.mxu0 0.0
    %1320 = vmatpush1.msra.mxu0 0.0
    %1321 = vmatprep.subr.mxu0 0.0
    %1322 = vmatpush1.msra.mxu0 0.0
    %1323 = vmatprep.subr.mxu0 0.0
    %1324 = vmatpush1.msra.mxu0 0.0
    %1325 = vmatprep.subr.mxu0 0.0
    %1326 = vmatpush1.msra.mxu0 0.0
    %1327 = vmatprep.subr.mxu0 0.0
    %1328 = vmatpush1.msra.mxu0 0.0
    %1329 = vmatprep.subr.mxu0 0.0
    %1330 = vmatpush1.msra.mxu0 0.0
    %1331 = vmatprep.subr.mxu0 0.0
    %1332 = vmatpush1.msra.mxu0 0.0
    %1333 = vmatprep.subr.mxu0 0.0
    %1334 = vmatpush1.msra.mxu0 0.0
    %1335 = vmatprep.subr.mxu0 0.0
    %1336 = vmatpush1.msra.mxu0 %v1300
    %1337 = vmatprep.subr.mxu0 0.0
    %1338 = vmatpush2.msra.mxu0 0.0
    %1339 = vmatprep.subr.mxu0 0.0
    %1340 = vmatpush2.msra.mxu0 0.0
    %1341 = vmatprep.subr.mxu0 0.0
    %1342 = vmatpush2.msra.mxu0 0.0
    %1343 = vmatprep.subr.mxu0 0.0
    %1344 = vmatpush2.msra.mxu0 0.0
    %1345 = vmatprep.subr.mxu0 0.0
    %1346 = vmatpush2.msra.mxu0 0.0
    %1347 = vmatprep.subr.mxu0 0.0
    %1348 = vmatpush2.msra.mxu0 0.0
    %1349 = vmatprep.subr.mxu0 0.0
    %1350 = vmatpush2.msra.mxu0 0.0
    %1351 = vmatprep.subr.mxu0 0.0
    %1352 = vmatpush2.msra.mxu0 0.0
    %1353 = vmatprep.subr.mxu0 0.0
    %1354 = vmatpush2.msra.mxu0 0.0
    %1355 = vmatprep.subr.mxu0 0.0
    %1356 = vmatpush2.msra.mxu0 0.0
    %1357 = vmatprep.subr.mxu0 0.0
    %1358 = vmatpush2.msra.mxu0 0.0
    %1359 = vmatprep.subr.mxu0 0.0
    %1360 = vmatpush2.msra.mxu0 0.0
    %1361 = vmatprep.subr.mxu0 0.0
    %1362 = vmatpush2.msra.mxu0 0.0
    %1363 = vmatprep.subr.mxu0 0.0
    %1364 = vmatpush2.msra.mxu0 0.0
    %1365 = vmatprep.subr.mxu0 0.0
    %1366 = vmatpush2.msra.mxu0 0.0
    %1367 = vmatprep.subr.mxu0 0.0
    %1368 = vmatpush2.msra.mxu0 0.0
    %1369 = vmatprep.mubr.f32.mxu0 0.0
    %1370 = vmatmul.mubr.f32.gmra.mxu0 %v1303
    %v1371 = vpop.f32.mrf.mxu0
    %v1372 = vadd.f32 0.0, %v1371
    %v1373 = vpop.f32.mrf.mxu0
    %1374 = vdwg.mxu0
    %1375 = vrot.lane.b32.xlu0 %v188, 48
    %v1376 = vpop.permute.xlu0 %1375
    %v1379 = vsel %vm194, %v899, 0
    %1381 = vmatprep.subr.mxu0 0.0
    %1382 = vmatpush1.msra.mxu0 0.0
    %1383 = vmatprep.subr.mxu0 0.0
    %1384 = vmatpush1.msra.mxu0 0.0
    %1385 = vmatprep.subr.mxu0 0.0
    %1386 = vmatpush1.msra.mxu0 0.0
    %1387 = vmatprep.subr.mxu0 0.0
    %1388 = vmatpush1.msra.mxu0 0.0
    %1389 = vmatprep.subr.mxu0 0.0
    %1390 = vmatpush1.msra.mxu0 0.0
    %1391 = vmatprep.subr.mxu0 0.0
    %1392 = vmatpush1.msra.mxu0 0.0
    %1393 = vmatprep.subr.mxu0 0.0
    %1394 = vmatpush1.msra.mxu0 0.0
    %1395 = vmatprep.subr.mxu0 0.0
    %1396 = vmatpush1.msra.mxu0 0.0
    %1397 = vmatprep.subr.mxu0 0.0
    %1398 = vmatpush1.msra.mxu0 0.0
    %1399 = vmatprep.subr.mxu0 0.0
    %1400 = vmatpush1.msra.mxu0 0.0
    %1401 = vmatprep.subr.mxu0 0.0
    %1402 = vmatpush1.msra.mxu0 0.0
    %1403 = vmatprep.subr.mxu0 0.0
    %1404 = vmatpush1.msra.mxu0 0.0
    %1405 = vmatprep.subr.mxu0 0.0
    %1406 = vmatpush1.msra.mxu0 0.0
    %1407 = vmatprep.subr.mxu0 0.0
    %1408 = vmatpush1.msra.mxu0 0.0
    %1409 = vmatprep.subr.mxu0 0.0
    %1410 = vmatpush1.msra.mxu0 0.0
    %1411 = vmatprep.subr.mxu0 0.0
    %1412 = vmatpush1.msra.mxu0 %v1376
    %1413 = vmatprep.subr.mxu0 0.0
    %1414 = vmatpush2.msra.mxu0 0.0
    %1415 = vmatprep.subr.mxu0 0.0
    %1416 = vmatpush2.msra.mxu0 0.0
    %1417 = vmatprep.subr.mxu0 0.0
    %1418 = vmatpush2.msra.mxu0 0.0
    %1419 = vmatprep.subr.mxu0 0.0
    %1420 = vmatpush2.msra.mxu0 0.0
    %1421 = vmatprep.subr.mxu0 0.0
    %1422 = vmatpush2.msra.mxu0 0.0
    %1423 = vmatprep.subr.mxu0 0.0
    %1424 = vmatpush2.msra.mxu0 0.0
    %1425 = vmatprep.subr.mxu0 0.0
    %1426 = vmatpush2.msra.mxu0 0.0
    %1427 = vmatprep.subr.mxu0 0.0
    %1428 = vmatpush2.msra.mxu0 0.0
    %1429 = vmatprep.subr.mxu0 0.0
    %1430 = vmatpush2.msra.mxu0 0.0
    %1431 = vmatprep.subr.mxu0 0.0
    %1432 = vmatpush2.msra.mxu0 0.0
    %1433 = vmatprep.subr.mxu0 0.0
    %1434 = vmatpush2.msra.mxu0 0.0
    %1435 = vmatprep.subr.mxu0 0.0
    %1436 = vmatpush2.msra.mxu0 0.0
    %1437 = vmatprep.subr.mxu0 0.0
    %1438 = vmatpush2.msra.mxu0 0.0
    %1439 = vmatprep.subr.mxu0 0.0
    %1440 = vmatpush2.msra.mxu0 0.0
    %1441 = vmatprep.subr.mxu0 0.0
    %1442 = vmatpush2.msra.mxu0 0.0
    %1443 = vmatprep.subr.mxu0 0.0
    %1444 = vmatpush2.msra.mxu0 0.0
    %1445 = vmatprep.mubr.f32.mxu0 0.0
    %1446 = vmatmul.mubr.f32.gmra.mxu0 %v1379
    %v1447 = vpop.f32.mrf.mxu0
    %v1448 = vadd.f32 0.0, %v1447
    %v1449 = vpop.f32.mrf.mxu0
    %1450 = vdwg.mxu0
    %1451 = vrot.lane.b32.xlu0 %v188, 40
    %v1452 = vpop.permute.xlu0 %1451
    %v1455 = vsel %vm194, %v901, 0
    %1457 = vmatprep.subr.mxu0 0.0
    %1458 = vmatpush1.msra.mxu0 0.0
    %1459 = vmatprep.subr.mxu0 0.0
    %1460 = vmatpush1.msra.mxu0 0.0
    %1461 = vmatprep.subr.mxu0 0.0
    %1462 = vmatpush1.msra.mxu0 0.0
    %1463 = vmatprep.subr.mxu0 0.0
    %1464 = vmatpush1.msra.mxu0 0.0
    %1465 = vmatprep.subr.mxu0 0.0
    %1466 = vmatpush1.msra.mxu0 0.0
    %1467 = vmatprep.subr.mxu0 0.0
    %1468 = vmatpush1.msra.mxu0 0.0
    %1469 = vmatprep.subr.mxu0 0.0
    %1470 = vmatpush1.msra.mxu0 0.0
    %1471 = vmatprep.subr.mxu0 0.0
    %1472 = vmatpush1.msra.mxu0 0.0
    %1473 = vmatprep.subr.mxu0 0.0
    %1474 = vmatpush1.msra.mxu0 0.0
    %1475 = vmatprep.subr.mxu0 0.0
    %1476 = vmatpush1.msra.mxu0 0.0
    %1477 = vmatprep.subr.mxu0 0.0
    %1478 = vmatpush1.msra.mxu0 0.0
    %1479 = vmatprep.subr.mxu0 0.0
    %1480 = vmatpush1.msra.mxu0 0.0
    %1481 = vmatprep.subr.mxu0 0.0
    %1482 = vmatpush1.msra.mxu0 0.0
    %1483 = vmatprep.subr.mxu0 0.0
    %1484 = vmatpush1.msra.mxu0 0.0
    %1485 = vmatprep.subr.mxu0 0.0
    %1486 = vmatpush1.msra.mxu0 0.0
    %1487 = vmatprep.subr.mxu0 0.0
    %1488 = vmatpush1.msra.mxu0 %v1452
    %1489 = vmatprep.subr.mxu0 0.0
    %1490 = vmatpush2.msra.mxu0 0.0
    %1491 = vmatprep.subr.mxu0 0.0
    %1492 = vmatpush2.msra.mxu0 0.0
    %1493 = vmatprep.subr.mxu0 0.0
    %1494 = vmatpush2.msra.mxu0 0.0
    %1495 = vmatprep.subr.mxu0 0.0
    %1496 = vmatpush2.msra.mxu0 0.0
    %1497 = vmatprep.subr.mxu0 0.0
    %1498 = vmatpush2.msra.mxu0 0.0
    %1499 = vmatprep.subr.mxu0 0.0
    %1500 = vmatpush2.msra.mxu0 0.0
    %1501 = vmatprep.subr.mxu0 0.0
    %1502 = vmatpush2.msra.mxu0 0.0
    %1503 = vmatprep.subr.mxu0 0.0
    %1504 = vmatpush2.msra.mxu0 0.0
    %1505 = vmatprep.subr.mxu0 0.0
    %1506 = vmatpush2.msra.mxu0 0.0
    %1507 = vmatprep.subr.mxu0 0.0
    %1508 = vmatpush2.msra.mxu0 0.0
    %1509 = vmatprep.subr.mxu0 0.0
    %1510 = vmatpush2.msra.mxu0 0.0
    %1511 = vmatprep.subr.mxu0 0.0
    %1512 = vmatpush2.msra.mxu0 0.0
    %1513 = vmatprep.subr.mxu0 0.0
    %1514 = vmatpush2.msra.mxu0 0.0
    %1515 = vmatprep.subr.mxu0 0.0
    %1516 = vmatpush2.msra.mxu0 0.0
    %1517 = vmatprep.subr.mxu0 0.0
    %1518 = vmatpush2.msra.mxu0 0.0
    %1519 = vmatprep.subr.mxu0 0.0
    %1520 = vmatpush2.msra.mxu0 0.0
    %1521 = vmatprep.mubr.f32.mxu0 0.0
    %1522 = vmatmul.mubr.f32.gmra.mxu0 %v1455
    %v1523 = vpop.f32.mrf.mxu0
    %v1524 = vadd.f32 0.0, %v1523
    %v1525 = vpop.f32.mrf.mxu0
    %1526 = vdwg.mxu0
    %1528 = vrot.lane.b32.xlu0 %v1372, 8
    %v1529 = vpop.permute.xlu0 %1528
    %1532 = vrot.lane.b32.xlu0 %v1448, 16
    %v1533 = vpop.permute.xlu0 %1532
    %1536 = vrot.lane.b32.xlu0 %v1524, 24
    %v1537 = vpop.permute.xlu0 %1536
    %v1539 = vsel %vm194, %v1296, %v1529
    %v1540 = vsel %vm1219, %v1539, %v1533
    %v1541 = vsel %vm1221, %v1540, %v1537
    %1546 = vrot.lane.b32.xlu0 %v98, 32
    %v1547 = vpop.permute.xlu0 %1546
    %1548 = vrot.lane.b32.xlu0 %v99, 32
    %v1549 = vpop.permute.xlu0 %1548
    %1550 = vrot.lane.b32.xlu0 %v100, 32
    %v1551 = vpop.permute.xlu0 %1550
    %1552 = vrot.lane.b32.xlu0 %v101, 32
    %v1553 = vpop.permute.xlu0 %1552
    %1558 = vrot.lane.b32.xlu0 %v107, 32
    %v1559 = vpop.permute.xlu0 %1558
    %v1562 = vsel %vm109, %v1222, 0
    %v1565 = vsel %vm109, %v1541, 0
    %1567 = vmatprep.subr.mxu0 0.0
    %1568 = vmatpush1.msra.mxu0 0.0
    %1569 = vmatprep.subr.mxu0 0.0
    %1570 = vmatpush1.msra.mxu0 0.0
    %1571 = vmatprep.subr.mxu0 0.0
    %1572 = vmatpush1.msra.mxu0 0.0
    %1573 = vmatprep.subr.mxu0 0.0
    %1574 = vmatpush1.msra.mxu0 0.0
    %1575 = vmatprep.subr.mxu0 0.0
    %1576 = vmatpush1.msra.mxu0 0.0
    %1577 = vmatprep.subr.mxu0 0.0
    %1578 = vmatpush1.msra.mxu0 0.0
    %1579 = vmatprep.subr.mxu0 0.0
    %1580 = vmatpush1.msra.mxu0 0.0
    %1581 = vmatprep.subr.mxu0 0.0
    %1582 = vmatpush1.msra.mxu0 0.0
    %1583 = vmatprep.subr.mxu0 0.0
    %1584 = vmatpush1.msra.mxu0 0.0
    %1585 = vmatprep.subr.mxu0 0.0
    %1586 = vmatpush1.msra.mxu0 0.0
    %1587 = vmatprep.subr.mxu0 0.0
    %1588 = vmatpush1.msra.mxu0 0.0
    %1589 = vmatprep.subr.mxu0 0.0
    %1590 = vmatpush1.msra.mxu0 0.0
    %1591 = vmatprep.subr.mxu0 0.0
    %1592 = vmatpush1.msra.mxu0 %v1553
    %1593 = vmatprep.subr.mxu0 0.0
    %1594 = vmatpush1.msra.mxu0 %v1551
    %1595 = vmatprep.subr.mxu0 0.0
    %1596 = vmatpush1.msra.mxu0 %v1549
    %1597 = vmatprep.subr.mxu0 0.0
    %1598 = vmatpush1.msra.mxu0 %v1547
    %1599 = vmatprep.subr.mxu0 0.0
    %1600 = vmatpush2.msra.mxu0 0.0
    %1601 = vmatprep.subr.mxu0 0.0
    %1602 = vmatpush2.msra.mxu0 0.0
    %1603 = vmatprep.subr.mxu0 0.0
    %1604 = vmatpush2.msra.mxu0 0.0
    %1605 = vmatprep.subr.mxu0 0.0
    %1606 = vmatpush2.msra.mxu0 0.0
    %1607 = vmatprep.subr.mxu0 0.0
    %1608 = vmatpush2.msra.mxu0 0.0
    %1609 = vmatprep.subr.mxu0 0.0
    %1610 = vmatpush2.msra.mxu0 0.0
    %1611 = vmatprep.subr.mxu0 0.0
    %1612 = vmatpush2.msra.mxu0 0.0
    %1613 = vmatprep.subr.mxu0 0.0
    %1614 = vmatpush2.msra.mxu0 0.0
    %1615 = vmatprep.subr.mxu0 0.0
    %1616 = vmatpush2.msra.mxu0 0.0
    %1617 = vmatprep.subr.mxu0 0.0
    %1618 = vmatpush2.msra.mxu0 0.0
    %1619 = vmatprep.subr.mxu0 0.0
    %1620 = vmatpush2.msra.mxu0 0.0
    %1621 = vmatprep.subr.mxu0 0.0
    %1622 = vmatpush2.msra.mxu0 0.0
    %1623 = vmatprep.subr.mxu0 0.0
    %1624 = vmatpush2.msra.mxu0 0.0
    %1625 = vmatprep.subr.mxu0 0.0
    %1626 = vmatpush2.msra.mxu0 0.0
    %1627 = vmatprep.subr.mxu0 0.0
    %1628 = vmatpush2.msra.mxu0 0.0
    %1629 = vmatprep.subr.mxu0 0.0
    %1630 = vmatpush2.msra.mxu0 0.0
    %1631 = vmatprep.mubr.f32.mxu0 0.0
    %1632 = vmatmul.mubr.f32.gmra.mxu0 %v1562
    %v1633 = vpop.f32.mrf.mxu0
    %v1634 = vadd.f32 %v1559, %v1633
    %v1635 = vpop.f32.mrf.mxu0
    %1636 = vmatprep.mubr.f32.mxu0 0.0
    %1637 = vmatmul.mubr.f32.gmra.mxu0 %v1565
    %v1638 = vpop.f32.mrf.mxu0
    %v1639 = vadd.f32 %v1559, %v1638
    %v1640 = vpop.f32.mrf.mxu0
    %1641 = vdwg.mxu0
    %v1642 = vadd.f32 %v1634, %v92
    %v1643 = vadd.f32 %v1639, %v93
    %v1644 = vld [vmem:[%s5 + $0x1] sm:$0x1]
    %v1645 = vsel %vm109, %v1642, 0.0
    %1646 = vadd.xlane.f32.xlu0 %v1645
    %v1647 = vpop.xlane.xlu0 %1646
    %v1648 = vsel %vm109, %v1643, 0.0
    %1649 = vadd.xlane.f32.xlu0 %v1648
    %v1650 = vpop.xlane.xlu0 %1649
    %v1651 = vrcp.pop 32.0
    %v1652 = vmul.f32 %v1647, %v1651
    %v1653 = vmul.f32 %v1650, %v1651
    %v1654 = vsub.f32 %v1642, %v1652
    %v1655 = vsub.f32 %v1643, %v1653
    %v1656 = vmul.f32 %v1654, %v1654
    %v1657 = vmul.f32 %v1655, %v1655
    %v1658 = vsel %vm109, %v1656, 0.0
    %1659 = vadd.xlane.f32.xlu0 %v1658
    %v1660 = vpop.xlane.xlu0 %1659
    %v1661 = vsel %vm109, %v1657, 0.0
    %1662 = vadd.xlane.f32.xlu0 %v1661
    %v1663 = vpop.xlane.xlu0 %1662
    %v1664 = vmul.f32 %v1660, %v1651
    %v1665 = vmul.f32 %v1663, %v1651
    %v1666 = vadd.f32 %v1664, 1e-12
    %v1667 = vadd.f32 %v1665, 1e-12
    %v1668 = vrsqrt.pop %v1666
    %v1669 = vrsqrt.pop %v1667
    %v1670 = vmul.f32 %v1654, %v1668
    %v1671 = vmul.f32 %v1655, %v1669
    %v1673 = vlaneseq
    %v1674 = vshrl.u32 %v1673, 7
    %v1675 = vsub.s32 0, %v1674
    %v1676 = vrot.slane %v1644, %v1675
    %v1678 = vmul.f32 %v1670, %v1676
    %v1679 = vmul.f32 %v1671, %v1676
    %1680 = vrot.lane.b32.xlu0 %v1676, 96
    %v1681 = vpop.permute.xlu0 %1680
    %v1683 = vadd.f32 %v1678, %v1681
    %v1684 = vadd.f32 %v1679, %v1681
    %v1685 = vld [vmem:[#allocation7 + $0x8] sm:$0xff]
    %v1686 = vld [vmem:[#allocation7 + $0x28] sm:$0xff]
    %v1687 = vld [vmem:[#allocation7 + $0x48] sm:$0xff]
    %v1688 = vld [vmem:[#allocation7 + $0x68] sm:$0xff]
    %1689 = vrot.lane.b32.xlu0 %v1676, 64
    %v1690 = vpop.permute.xlu0 %1689
    %v1693 = vsel %vm109, %v1683, 0
    %v1696 = vsel %vm109, %v1684, 0
    %1698 = vmatprep.subr.mxu0 0.0
    %1699 = vmatpush1.msra.mxu0 0.0
    %1700 = vmatprep.subr.mxu0 0.0
    %1701 = vmatpush1.msra.mxu0 0.0
    %1702 = vmatprep.subr.mxu0 0.0
    %1703 = vmatpush1.msra.mxu0 0.0
    %1704 = vmatprep.subr.mxu0 0.0
    %1705 = vmatpush1.msra.mxu0 0.0
    %1706 = vmatprep.subr.mxu0 0.0
    %1707 = vmatpush1.msra.mxu0 0.0
    %1708 = vmatprep.subr.mxu0 0.0
    %1709 = vmatpush1.msra.mxu0 0.0
    %1710 = vmatprep.subr.mxu0 0.0
    %1711 = vmatpush1.msra.mxu0 0.0
    %1712 = vmatprep.subr.mxu0 0.0
    %1713 = vmatpush1.msra.mxu0 0.0
    %1714 = vmatprep.subr.mxu0 0.0
    %1715 = vmatpush1.msra.mxu0 0.0
    %1716 = vmatprep.subr.mxu0 0.0
    %1717 = vmatpush1.msra.mxu0 0.0
    %1718 = vmatprep.subr.mxu0 0.0
    %1719 = vmatpush1.msra.mxu0 0.0
    %1720 = vmatprep.subr.mxu0 0.0
    %1721 = vmatpush1.msra.mxu0 0.0
    %1722 = vmatprep.subr.mxu0 0.0
    %1723 = vmatpush1.msra.mxu0 %v1688
    %1724 = vmatprep.subr.mxu0 0.0
    %1725 = vmatpush1.msra.mxu0 %v1687
    %1726 = vmatprep.subr.mxu0 0.0
    %1727 = vmatpush1.msra.mxu0 %v1686
    %1728 = vmatprep.subr.mxu0 0.0
    %1729 = vmatpush1.msra.mxu0 %v1685
    %1730 = vmatprep.subr.mxu0 0.0
    %1731 = vmatpush2.msra.mxu0 0.0
    %1732 = vmatprep.subr.mxu0 0.0
    %1733 = vmatpush2.msra.mxu0 0.0
    %1734 = vmatprep.subr.mxu0 0.0
    %1735 = vmatpush2.msra.mxu0 0.0
    %1736 = vmatprep.subr.mxu0 0.0
    %1737 = vmatpush2.msra.mxu0 0.0
    %1738 = vmatprep.subr.mxu0 0.0
    %1739 = vmatpush2.msra.mxu0 0.0
    %1740 = vmatprep.subr.mxu0 0.0
    %1741 = vmatpush2.msra.mxu0 0.0
    %1742 = vmatprep.subr.mxu0 0.0
    %1743 = vmatpush2.msra.mxu0 0.0
    %1744 = vmatprep.subr.mxu0 0.0
    %1745 = vmatpush2.msra.mxu0 0.0
    %1746 = vmatprep.subr.mxu0 0.0
    %1747 = vmatpush2.msra.mxu0 0.0
    %1748 = vmatprep.subr.mxu0 0.0
    %1749 = vmatpush2.msra.mxu0 0.0
    %1750 = vmatprep.subr.mxu0 0.0
    %1751 = vmatpush2.msra.mxu0 0.0
    %1752 = vmatprep.subr.mxu0 0.0
    %1753 = vmatpush2.msra.mxu0 0.0
    %1754 = vmatprep.subr.mxu0 0.0
    %1755 = vmatpush2.msra.mxu0 0.0
    %1756 = vmatprep.subr.mxu0 0.0
    %1757 = vmatpush2.msra.mxu0 0.0
    %1758 = vmatprep.subr.mxu0 0.0
    %1759 = vmatpush2.msra.mxu0 0.0
    %1760 = vmatprep.subr.mxu0 0.0
    %1761 = vmatpush2.msra.mxu0 0.0
    %1762 = vmatprep.mubr.f32.mxu0 0.0
    %1763 = vmatmul.mubr.f32.gmra.mxu0 %v1693
    %v1764 = vpop.f32.mrf.mxu0
    %v1765 = vadd.f32 %v1690, %v1764
    %v1766 = vpop.f32.mrf.mxu0
    %1767 = vmatprep.mubr.f32.mxu0 0.0
    %1768 = vmatmul.mubr.f32.gmra.mxu0 %v1696
    %v1769 = vpop.f32.mrf.mxu0
    %v1770 = vadd.f32 %v1690, %v1769
    %v1771 = vpop.f32.mrf.mxu0
    %1772 = vdwg.mxu0
    %v1773 = vld [vmem:[#allocation8] sm:$0xff]
    %v1774 = vld [vmem:[#allocation8 + $0x8] sm:$0xff]
    %v1775 = vld [vmem:[#allocation8 + $0x10] sm:$0xff]
    %v1776 = vld [vmem:[#allocation8 + $0x18] sm:$0xff]
    %v1777 = vld [vmem:[#allocation8 + $0x20] sm:$0xff]
    %v1778 = vld [vmem:[#allocation8 + $0x28] sm:$0xff]
    %v1779 = vld [vmem:[%s5 + $0x1] sm:$0x3]
    %v1781 = vlaneseq
    %v1782 = vshrl.u32 %v1781, 7
    %v1783 = vsub.s32 0, %v1782
    %v1784 = vrot.slane %v1779, %v1783
    %v1785 = vlaneseq
    %v1786 = vshrl.u32 %v1785, 7
    %v1787 = vsub.s32 1, %v1786
    %v1788 = vrot.slane %v1779, %v1787
    %1789 = vrot.lane.b32.xlu0 %v1784, 32
    %v1790 = vpop.permute.xlu0 %1789
    %1791 = vrot.lane.b32.xlu0 %v1788, 32
    %v1792 = vpop.permute.xlu0 %1791
    %v1793 = vsel %vm109, %v1790, %v1792
    %vm1795 = vcmask 392192
    %v1797 = vsel %vm1795, %v94, 0
    %v1800 = vsel %vm1795, %v95, 0
    %v1803 = vsel %vm1795, %v96, 0
    %v1806 = vsel %vm1795, %v97, 0
    %1808 = vmatprep.subr.mxu0 0.0
    %1809 = vmatpush1.msra.mxu0 0.0
    %1810 = vmatprep.subr.mxu0 0.0
    %1811 = vmatpush1.msra.mxu0 0.0
    %1812 = vmatprep.subr.mxu0 0.0
    %1813 = vmatpush1.msra.mxu0 0.0
    %1814 = vmatprep.subr.mxu0 0.0
    %1815 = vmatpush1.msra.mxu0 0.0
    %1816 = vmatprep.subr.mxu0 0.0
    %1817 = vmatpush1.msra.mxu0 0.0
    %1818 = vmatprep.subr.mxu0 0.0
    %1819 = vmatpush1.msra.mxu0 0.0
    %1820 = vmatprep.subr.mxu0 0.0
    %1821 = vmatpush1.msra.mxu0 0.0
    %1822 = vmatprep.subr.mxu0 0.0
    %1823 = vmatpush1.msra.mxu0 0.0
    %1824 = vmatprep.subr.mxu0 0.0
    %1825 = vmatpush1.msra.mxu0 0.0
    %1826 = vmatprep.subr.mxu0 0.0
    %1827 = vmatpush1.msra.mxu0 0.0
    %1828 = vmatprep.subr.mxu0 0.0
    %1829 = vmatpush1.msra.mxu0 %v1778
    %1830 = vmatprep.subr.mxu0 0.0
    %1831 = vmatpush1.msra.mxu0 %v1777
    %1832 = vmatprep.subr.mxu0 0.0
    %1833 = vmatpush1.msra.mxu0 %v1776
    %1834 = vmatprep.subr.mxu0 0.0
    %1835 = vmatpush1.msra.mxu0 %v1775
    %1836 = vmatprep.subr.mxu0 0.0
    %1837 = vmatpush1.msra.mxu0 %v1774
    %1838 = vmatprep.subr.mxu0 0.0
    %1839 = vmatpush1.msra.mxu0 %v1773
    %1840 = vmatprep.subr.mxu0 0.0
    %1841 = vmatpush2.msra.mxu0 0.0
    %1842 = vmatprep.subr.mxu0 0.0
    %1843 = vmatpush2.msra.mxu0 0.0
    %1844 = vmatprep.subr.mxu0 0.0
    %1845 = vmatpush2.msra.mxu0 0.0
    %1846 = vmatprep.subr.mxu0 0.0
    %1847 = vmatpush2.msra.mxu0 0.0
    %1848 = vmatprep.subr.mxu0 0.0
    %1849 = vmatpush2.msra.mxu0 0.0
    %1850 = vmatprep.subr.mxu0 0.0
    %1851 = vmatpush2.msra.mxu0 0.0
    %1852 = vmatprep.subr.mxu0 0.0
    %1853 = vmatpush2.msra.mxu0 0.0
    %1854 = vmatprep.subr.mxu0 0.0
    %1855 = vmatpush2.msra.mxu0 0.0
    %1856 = vmatprep.subr.mxu0 0.0
    %1857 = vmatpush2.msra.mxu0 0.0
    %1858 = vmatprep.subr.mxu0 0.0
    %1859 = vmatpush2.msra.mxu0 0.0
    %1860 = vmatprep.subr.mxu0 0.0
    %1861 = vmatpush2.msra.mxu0 0.0
    %1862 = vmatprep.subr.mxu0 0.0
    %1863 = vmatpush2.msra.mxu0 0.0
    %1864 = vmatprep.subr.mxu0 0.0
    %1865 = vmatpush2.msra.mxu0 0.0
    %1866 = vmatprep.subr.mxu0 0.0
    %1867 = vmatpush2.msra.mxu0 0.0
    %1868 = vmatprep.subr.mxu0 0.0
    %1869 = vmatpush2.msra.mxu0 0.0
    %1870 = vmatprep.subr.mxu0 0.0
    %1871 = vmatpush2.msra.mxu0 0.0
    %1872 = vmatprep.mubr.f32.mxu0 0.0
    %1873 = vmatmul.mubr.f32.gmra.mxu0 %v1797
    %v1874 = vpop.f32.mrf.mxu0
    %v1875 = vadd.f32 %v1793, %v1874
    %v1876 = vpop.f32.mrf.mxu0
    %1877 = vmatprep.mubr.f32.mxu0 0.0
    %1878 = vmatmul.mubr.f32.gmra.mxu0 %v1800
    %v1879 = vpop.f32.mrf.mxu0
    %v1880 = vadd.f32 %v1793, %v1879
    %v1881 = vpop.f32.mrf.mxu0
    %1882 = vmatprep.mubr.f32.mxu0 0.0
    %1883 = vmatmul.mubr.f32.gmra.mxu0 %v1803
    %v1884 = vpop.f32.mrf.mxu0
    %v1885 = vadd.f32 %v1793, %v1884
    %v1886 = vpop.f32.mrf.mxu0
    %1887 = vmatprep.mubr.f32.mxu0 0.0
    %1888 = vmatmul.mubr.f32.gmra.mxu0 %v1806
    %v1889 = vpop.f32.mrf.mxu0
    %v1890 = vadd.f32 %v1793, %v1889
    %v1891 = vpop.f32.mrf.mxu0
    %1892 = vdwg.mxu0
    %v1894 = vsel %vm194, %v1765, 0
    %v1897 = vsel %vm194, %v1875, 0
    %v1900 = vsel %vm194, %v1880, 0
    %1902 = vmatprep.subr.mxu0 0.0
    %1903 = vmatpush1.xpose.msra.mxu0 0.0
    %1904 = vmatprep.subr.mxu0 0.0
    %1905 = vmatpush1.xpose.msra.mxu0 0.0
    %1906 = vmatprep.subr.mxu0 0.0
    %1907 = vmatpush1.xpose.msra.mxu0 0.0
    %1908 = vmatprep.subr.mxu0 0.0
    %1909 = vmatpush1.xpose.msra.mxu0 0.0
    %1910 = vmatprep.subr.mxu0 0.0
    %1911 = vmatpush1.xpose.msra.mxu0 0.0
    %1912 = vmatprep.subr.mxu0 0.0
    %1913 = vmatpush1.xpose.msra.mxu0 0.0
    %1914 = vmatprep.subr.mxu0 0.0
    %1915 = vmatpush1.xpose.msra.mxu0 0.0
    %1916 = vmatprep.subr.mxu0 0.0
    %1917 = vmatpush1.xpose.msra.mxu0 0.0
    %1918 = vmatprep.subr.mxu0 0.0
    %1919 = vmatpush1.xpose.msra.mxu0 0.0
    %1920 = vmatprep.subr.mxu0 0.0
    %1921 = vmatpush1.xpose.msra.mxu0 0.0
    %1922 = vmatprep.subr.mxu0 0.0
    %1923 = vmatpush1.xpose.msra.mxu0 0.0
    %1924 = vmatprep.subr.mxu0 0.0
    %1925 = vmatpush1.xpose.msra.mxu0 0.0
    %1926 = vmatprep.subr.mxu0 0.0
    %1927 = vmatpush1.xpose.msra.mxu0 0.0
    %1928 = vmatprep.subr.mxu0 0.0
    %1929 = vmatpush1.xpose.msra.mxu0 0.0
    %1930 = vmatprep.subr.mxu0 0.0
    %1931 = vmatpush1.xpose.msra.mxu0 %v1900
    %1932 = vmatprep.subr.mxu0 0.0
    %1933 = vmatpush1.xpose.msra.mxu0 %v1897
    %1934 = vmatprep.subr.mxu0 0.0
    %1935 = vmatpush2.xpose.msra.mxu0 0.0
    %1936 = vmatprep.subr.mxu0 0.0
    %1937 = vmatpush2.xpose.msra.mxu0 0.0
    %1938 = vmatprep.subr.mxu0 0.0
    %1939 = vmatpush2.xpose.msra.mxu0 0.0
    %1940 = vmatprep.subr.mxu0 0.0
    %1941 = vmatpush2.xpose.msra.mxu0 0.0
    %1942 = vmatprep.subr.mxu0 0.0
    %1943 = vmatpush2.xpose.msra.mxu0 0.0
    %1944 = vmatprep.subr.mxu0 0.0
    %1945 = vmatpush2.xpose.msra.mxu0 0.0
    %1946 = vmatprep.subr.mxu0 0.0
    %1947 = vmatpush2.xpose.msra.mxu0 0.0
    %1948 = vmatprep.subr.mxu0 0.0
    %1949 = vmatpush2.xpose.msra.mxu0 0.0
    %1950 = vmatprep.subr.mxu0 0.0
    %1951 = vmatpush2.xpose.msra.mxu0 0.0
    %1952 = vmatprep.subr.mxu0 0.0
    %1953 = vmatpush2.xpose.msra.mxu0 0.0
    %1954 = vmatprep.subr.mxu0 0.0
    %1955 = vmatpush2.xpose.msra.mxu0 0.0
    %1956 = vmatprep.subr.mxu0 0.0
    %1957 = vmatpush2.xpose.msra.mxu0 0.0
    %1958 = vmatprep.subr.mxu0 0.0
    %1959 = vmatpush2.xpose.msra.mxu0 0.0
    %1960 = vmatprep.subr.mxu0 0.0
    %1961 = vmatpush2.xpose.msra.mxu0 0.0
    %1962 = vmatprep.subr.mxu0 0.0
    %1963 = vmatpush2.xpose.msra.mxu0 0.0
    %1964 = vmatprep.subr.mxu0 0.0
    %1965 = vmatpush2.xpose.msra.mxu0 0.0
    %1966 = vmatprep.mubr.f32.mxu0 0.0
    %1967 = vmatmul.mubr.f32.gmra.mxu0 %v1894
    %v1968 = vpop.f32.mrf.mxu0
    %v1969 = vadd.f32 0.0, %v1968
    %v1970 = vpop.f32.mrf.mxu0
    %1971 = vdwg.mxu0
    %1972 = vrot.lane.b32.xlu0 %v1765, 120
    %v1973 = vpop.permute.xlu0 %1972
    %1974 = vrot.lane.b32.xlu0 %v1875, 120
    %v1975 = vpop.permute.xlu0 %1974
    %1976 = vrot.lane.b32.xlu0 %v1880, 120
    %v1977 = vpop.permute.xlu0 %1976
    %v1978 = vsel %vm194, %v1973, 0
    %v1980 = vsel %vm194, %v1975, 0
    %v1982 = vsel %vm194, %v1977, 0
    %1984 = vmatprep.subr.mxu0 0.0
    %1985 = vmatpush1.xpose.msra.mxu0 0.0
    %1986 = vmatprep.subr.mxu0 0.0
    %1987 = vmatpush1.xpose.msra.mxu0 0.0
    %1988 = vmatprep.subr.mxu0 0.0
    %1989 = vmatpush1.xpose.msra.mxu0 0.0
    %1990 = vmatprep.subr.mxu0 0.0
    %1991 = vmatpush1.xpose.msra.mxu0 0.0
    %1992 = vmatprep.subr.mxu0 0.0
    %1993 = vmatpush1.xpose.msra.mxu0 0.0
    %1994 = vmatprep.subr.mxu0 0.0
    %1995 = vmatpush1.xpose.msra.mxu0 0.0
    %1996 = vmatprep.subr.mxu0 0.0
    %1997 = vmatpush1.xpose.msra.mxu0 0.0
    %1998 = vmatprep.subr.mxu0 0.0
    %1999 = vmatpush1.xpose.msra.mxu0 0.0
    %2000 = vmatprep.subr.mxu0 0.0
    %2001 = vmatpush1.xpose.msra.mxu0 0.0
    %2002 = vmatprep.subr.mxu0 0.0
    %2003 = vmatpush1.xpose.msra.mxu0 0.0
    %2004 = vmatprep.subr.mxu0 0.0
    %2005 = vmatpush1.xpose.msra.mxu0 0.0
    %2006 = vmatprep.subr.mxu0 0.0
    %2007 = vmatpush1.xpose.msra.mxu0 0.0
    %2008 = vmatprep.subr.mxu0 0.0
    %2009 = vmatpush1.xpose.msra.mxu0 0.0
    %2010 = vmatprep.subr.mxu0 0.0
    %2011 = vmatpush1.xpose.msra.mxu0 0.0
    %2012 = vmatprep.subr.mxu0 0.0
    %2013 = vmatpush1.xpose.msra.mxu0 %v1982
    %2014 = vmatprep.subr.mxu0 0.0
    %2015 = vmatpush1.xpose.msra.mxu0 %v1980
    %2016 = vmatprep.subr.mxu0 0.0
    %2017 = vmatpush2.xpose.msra.mxu0 0.0
    %2018 = vmatprep.subr.mxu0 0.0
    %2019 = vmatpush2.xpose.msra.mxu0 0.0
    %2020 = vmatprep.subr.mxu0 0.0
    %2021 = vmatpush2.xpose.msra.mxu0 0.0
    %2022 = vmatprep.subr.mxu0 0.0
    %2023 = vmatpush2.xpose.msra.mxu0 0.0
    %2024 = vmatprep.subr.mxu0 0.0
    %2025 = vmatpush2.xpose.msra.mxu0 0.0
    %2026 = vmatprep.subr.mxu0 0.0
    %2027 = vmatpush2.xpose.msra.mxu0 0.0
    %2028 = vmatprep.subr.mxu0 0.0
    %2029 = vmatpush2.xpose.msra.mxu0 0.0
    %2030 = vmatprep.subr.mxu0 0.0
    %2031 = vmatpush2.xpose.msra.mxu0 0.0
    %2032 = vmatprep.subr.mxu0 0.0
    %2033 = vmatpush2.xpose.msra.mxu0 0.0
    %2034 = vmatprep.subr.mxu0 0.0
    %2035 = vmatpush2.xpose.msra.mxu0 0.0
    %2036 = vmatprep.subr.mxu0 0.0
    %2037 = vmatpush2.xpose.msra.mxu0 0.0
    %2038 = vmatprep.subr.mxu0 0.0
    %2039 = vmatpush2.xpose.msra.mxu0 0.0
    %2040 = vmatprep.subr.mxu0 0.0
    %2041 = vmatpush2.xpose.msra.mxu0 0.0
    %2042 = vmatprep.subr.mxu0 0.0
    %2043 = vmatpush2.xpose.msra.mxu0 0.0
    %2044 = vmatprep.subr.mxu0 0.0
    %2045 = vmatpush2.xpose.msra.mxu0 0.0
    %2046 = vmatprep.subr.mxu0 0.0
    %2047 = vmatpush2.xpose.msra.mxu0 0.0
    %2048 = vmatprep.mubr.f32.mxu0 0.0
    %2049 = vmatmul.mubr.f32.gmra.mxu0 %v1978
    %v2050 = vpop.f32.mrf.mxu0
    %v2051 = vadd.f32 0.0, %v2050
    %v2052 = vpop.f32.mrf.mxu0
    %2053 = vdwg.mxu0
    %2054 = vrot.lane.b32.xlu0 %v1765, 112
    %v2055 = vpop.permute.xlu0 %2054
    %2056 = vrot.lane.b32.xlu0 %v1875, 112
    %v2057 = vpop.permute.xlu0 %2056
    %2058 = vrot.lane.b32.xlu0 %v1880, 112
    %v2059 = vpop.permute.xlu0 %2058
    %v2060 = vsel %vm194, %v2055, 0
    %v2062 = vsel %vm194, %v2057, 0
    %v2064 = vsel %vm194, %v2059, 0
    %2066 = vmatprep.subr.mxu0 0.0
    %2067 = vmatpush1.xpose.msra.mxu0 0.0
    %2068 = vmatprep.subr.mxu0 0.0
    %2069 = vmatpush1.xpose.msra.mxu0 0.0
    %2070 = vmatprep.subr.mxu0 0.0
    %2071 = vmatpush1.xpose.msra.mxu0 0.0
    %2072 = vmatprep.subr.mxu0 0.0
    %2073 = vmatpush1.xpose.msra.mxu0 0.0
    %2074 = vmatprep.subr.mxu0 0.0
    %2075 = vmatpush1.xpose.msra.mxu0 0.0
    %2076 = vmatprep.subr.mxu0 0.0
    %2077 = vmatpush1.xpose.msra.mxu0 0.0
    %2078 = vmatprep.subr.mxu0 0.0
    %2079 = vmatpush1.xpose.msra.mxu0 0.0
    %2080 = vmatprep.subr.mxu0 0.0
    %2081 = vmatpush1.xpose.msra.mxu0 0.0
    %2082 = vmatprep.subr.mxu0 0.0
    %2083 = vmatpush1.xpose.msra.mxu0 0.0
    %2084 = vmatprep.subr.mxu0 0.0
    %2085 = vmatpush1.xpose.msra.mxu0 0.0
    %2086 = vmatprep.subr.mxu0 0.0
    %2087 = vmatpush1.xpose.msra.mxu0 0.0
    %2088 = vmatprep.subr.mxu0 0.0
    %2089 = vmatpush1.xpose.msra.mxu0 0.0
    %2090 = vmatprep.subr.mxu0 0.0
    %2091 = vmatpush1.xpose.msra.mxu0 0.0
    %2092 = vmatprep.subr.mxu0 0.0
    %2093 = vmatpush1.xpose.msra.mxu0 0.0
    %2094 = vmatprep.subr.mxu0 0.0
    %2095 = vmatpush1.xpose.msra.mxu0 %v2064
    %2096 = vmatprep.subr.mxu0 0.0
    %2097 = vmatpush1.xpose.msra.mxu0 %v2062
    %2098 = vmatprep.subr.mxu0 0.0
    %2099 = vmatpush2.xpose.msra.mxu0 0.0
    %2100 = vmatprep.subr.mxu0 0.0
    %2101 = vmatpush2.xpose.msra.mxu0 0.0
    %2102 = vmatprep.subr.mxu0 0.0
    %2103 = vmatpush2.xpose.msra.mxu0 0.0
    %2104 = vmatprep.subr.mxu0 0.0
    %2105 = vmatpush2.xpose.msra.mxu0 0.0
    %2106 = vmatprep.subr.mxu0 0.0
    %2107 = vmatpush2.xpose.msra.mxu0 0.0
    %2108 = vmatprep.subr.mxu0 0.0
    %2109 = vmatpush2.xpose.msra.mxu0 0.0
    %2110 = vmatprep.subr.mxu0 0.0
    %2111 = vmatpush2.xpose.msra.mxu0 0.0
    %2112 = vmatprep.subr.mxu0 0.0
    %2113 = vmatpush2.xpose.msra.mxu0 0.0
    %2114 = vmatprep.subr.mxu0 0.0
    %2115 = vmatpush2.xpose.msra.mxu0 0.0
    %2116 = vmatprep.subr.mxu0 0.0
    %2117 = vmatpush2.xpose.msra.mxu0 0.0
    %2118 = vmatprep.subr.mxu0 0.0
    %2119 = vmatpush2.xpose.msra.mxu0 0.0
    %2120 = vmatprep.subr.mxu0 0.0
    %2121 = vmatpush2.xpose.msra.mxu0 0.0
    %2122 = vmatprep.subr.mxu0 0.0
    %2123 = vmatpush2.xpose.msra.mxu0 0.0
    %2124 = vmatprep.subr.mxu0 0.0
    %2125 = vmatpush2.xpose.msra.mxu0 0.0
    %2126 = vmatprep.subr.mxu0 0.0
    %2127 = vmatpush2.xpose.msra.mxu0 0.0
    %2128 = vmatprep.subr.mxu0 0.0
    %2129 = vmatpush2.xpose.msra.mxu0 0.0
    %2130 = vmatprep.mubr.f32.mxu0 0.0
    %2131 = vmatmul.mubr.f32.gmra.mxu0 %v2060
    %v2132 = vpop.f32.mrf.mxu0
    %v2133 = vadd.f32 0.0, %v2132
    %v2134 = vpop.f32.mrf.mxu0
    %2135 = vdwg.mxu0
    %2136 = vrot.lane.b32.xlu0 %v1765, 104
    %v2137 = vpop.permute.xlu0 %2136
    %2138 = vrot.lane.b32.xlu0 %v1875, 104
    %v2139 = vpop.permute.xlu0 %2138
    %2140 = vrot.lane.b32.xlu0 %v1880, 104
    %v2141 = vpop.permute.xlu0 %2140
    %v2142 = vsel %vm194, %v2137, 0
    %v2144 = vsel %vm194, %v2139, 0
    %v2146 = vsel %vm194, %v2141, 0
    %2148 = vmatprep.subr.mxu0 0.0
    %2149 = vmatpush1.xpose.msra.mxu0 0.0
    %2150 = vmatprep.subr.mxu0 0.0
    %2151 = vmatpush1.xpose.msra.mxu0 0.0
    %2152 = vmatprep.subr.mxu0 0.0
    %2153 = vmatpush1.xpose.msra.mxu0 0.0
    %2154 = vmatprep.subr.mxu0 0.0
    %2155 = vmatpush1.xpose.msra.mxu0 0.0
    %2156 = vmatprep.subr.mxu0 0.0
    %2157 = vmatpush1.xpose.msra.mxu0 0.0
    %2158 = vmatprep.subr.mxu0 0.0
    %2159 = vmatpush1.xpose.msra.mxu0 0.0
    %2160 = vmatprep.subr.mxu0 0.0
    %2161 = vmatpush1.xpose.msra.mxu0 0.0
    %2162 = vmatprep.subr.mxu0 0.0
    %2163 = vmatpush1.xpose.msra.mxu0 0.0
    %2164 = vmatprep.subr.mxu0 0.0
    %2165 = vmatpush1.xpose.msra.mxu0 0.0
    %2166 = vmatprep.subr.mxu0 0.0
    %2167 = vmatpush1.xpose.msra.mxu0 0.0
    %2168 = vmatprep.subr.mxu0 0.0
    %2169 = vmatpush1.xpose.msra.mxu0 0.0
    %2170 = vmatprep.subr.mxu0 0.0
    %2171 = vmatpush1.xpose.msra.mxu0 0.0
    %2172 = vmatprep.subr.mxu0 0.0
    %2173 = vmatpush1.xpose.msra.mxu0 0.0
    %2174 = vmatprep.subr.mxu0 0.0
    %2175 = vmatpush1.xpose.msra.mxu0 0.0
    %2176 = vmatprep.subr.mxu0 0.0
    %2177 = vmatpush1.xpose.msra.mxu0 %v2146
    %2178 = vmatprep.subr.mxu0 0.0
    %2179 = vmatpush1.xpose.msra.mxu0 %v2144
    %2180 = vmatprep.subr.mxu0 0.0
    %2181 = vmatpush2.xpose.msra.mxu0 0.0
    %2182 = vmatprep.subr.mxu0 0.0
    %2183 = vmatpush2.xpose.msra.mxu0 0.0
    %2184 = vmatprep.subr.mxu0 0.0
    %2185 = vmatpush2.xpose.msra.mxu0 0.0
    %2186 = vmatprep.subr.mxu0 0.0
    %2187 = vmatpush2.xpose.msra.mxu0 0.0
    %2188 = vmatprep.subr.mxu0 0.0
    %2189 = vmatpush2.xpose.msra.mxu0 0.0
    %2190 = vmatprep.subr.mxu0 0.0
    %2191 = vmatpush2.xpose.msra.mxu0 0.0
    %2192 = vmatprep.subr.mxu0 0.0
    %2193 = vmatpush2.xpose.msra.mxu0 0.0
    %2194 = vmatprep.subr.mxu0 0.0
    %2195 = vmatpush2.xpose.msra.mxu0 0.0
    %2196 = vmatprep.subr.mxu0 0.0
    %2197 = vmatpush2.xpose.msra.mxu0 0.0
    %2198 = vmatprep.subr.mxu0 0.0
    %2199 = vmatpush2.xpose.msra.mxu0 0.0
    %2200 = vmatprep.subr.mxu0 0.0
    %2201 = vmatpush2.xpose.msra.mxu0 0.0
    %2202 = vmatprep.subr.mxu0 0.0
    %2203 = vmatpush2.xpose.msra.mxu0 0.0
    %2204 = vmatprep.subr.mxu0 0.0
    %2205 = vmatpush2.xpose.msra.mxu0 0.0
    %2206 = vmatprep.subr.mxu0 0.0
    %2207 = vmatpush2.xpose.msra.mxu0 0.0
    %2208 = vmatprep.subr.mxu0 0.0
    %2209 = vmatpush2.xpose.msra.mxu0 0.0
    %2210 = vmatprep.subr.mxu0 0.0
    %2211 = vmatpush2.xpose.msra.mxu0 0.0
    %2212 = vmatprep.mubr.f32.mxu0 0.0
    %2213 = vmatmul.mubr.f32.gmra.mxu0 %v2142
    %v2214 = vpop.f32.mrf.mxu0
    %v2215 = vadd.f32 0.0, %v2214
    %v2216 = vpop.f32.mrf.mxu0
    %2217 = vdwg.mxu0
    %v2219 = vsel %vm194, %v1770, 0
    %v2222 = vsel %vm194, %v1885, 0
    %v2225 = vsel %vm194, %v1890, 0
    %2227 = vmatprep.subr.mxu0 0.0
    %2228 = vmatpush1.xpose.msra.mxu0 0.0
    %2229 = vmatprep.subr.mxu0 0.0
    %2230 = vmatpush1.xpose.msra.mxu0 0.0
    %2231 = vmatprep.subr.mxu0 0.0
    %2232 = vmatpush1.xpose.msra.mxu0 0.0
    %2233 = vmatprep.subr.mxu0 0.0
    %2234 = vmatpush1.xpose.msra.mxu0 0.0
    %2235 = vmatprep.subr.mxu0 0.0
    %2236 = vmatpush1.xpose.msra.mxu0 0.0
    %2237 = vmatprep.subr.mxu0 0.0
    %2238 = vmatpush1.xpose.msra.mxu0 0.0
    %2239 = vmatprep.subr.mxu0 0.0
    %2240 = vmatpush1.xpose.msra.mxu0 0.0
    %2241 = vmatprep.subr.mxu0 0.0
    %2242 = vmatpush1.xpose.msra.mxu0 0.0
    %2243 = vmatprep.subr.mxu0 0.0
    %2244 = vmatpush1.xpose.msra.mxu0 0.0
    %2245 = vmatprep.subr.mxu0 0.0
    %2246 = vmatpush1.xpose.msra.mxu0 0.0
    %2247 = vmatprep.subr.mxu0 0.0
    %2248 = vmatpush1.xpose.msra.mxu0 0.0
    %2249 = vmatprep.subr.mxu0 0.0
    %2250 = vmatpush1.xpose.msra.mxu0 0.0
    %2251 = vmatprep.subr.mxu0 0.0
    %2252 = vmatpush1.xpose.msra.mxu0 0.0
    %2253 = vmatprep.subr.mxu0 0.0
    %2254 = vmatpush1.xpose.msra.mxu0 0.0
    %2255 = vmatprep.subr.mxu0 0.0
    %2256 = vmatpush1.xpose.msra.mxu0 %v2225
    %2257 = vmatprep.subr.mxu0 0.0
    %2258 = vmatpush1.xpose.msra.mxu0 %v2222
    %2259 = vmatprep.subr.mxu0 0.0
    %2260 = vmatpush2.xpose.msra.mxu0 0.0
    %2261 = vmatprep.subr.mxu0 0.0
    %2262 = vmatpush2.xpose.msra.mxu0 0.0
    %2263 = vmatprep.subr.mxu0 0.0
    %2264 = vmatpush2.xpose.msra.mxu0 0.0
    %2265 = vmatprep.subr.mxu0 0.0
    %2266 = vmatpush2.xpose.msra.mxu0 0.0
    %2267 = vmatprep.subr.mxu0 0.0
    %2268 = vmatpush2.xpose.msra.mxu0 0.0
    %2269 = vmatprep.subr.mxu0 0.0
    %2270 = vmatpush2.xpose.msra.mxu0 0.0
    %2271 = vmatprep.subr.mxu0 0.0
    %2272 = vmatpush2.xpose.msra.mxu0 0.0
    %2273 = vmatprep.subr.mxu0 0.0
    %2274 = vmatpush2.xpose.msra.mxu0 0.0
    %2275 = vmatprep.subr.mxu0 0.0
    %2276 = vmatpush2.xpose.msra.mxu0 0.0
    %2277 = vmatprep.subr.mxu0 0.0
    %2278 = vmatpush2.xpose.msra.mxu0 0.0
    %2279 = vmatprep.subr.mxu0 0.0
    %2280 = vmatpush2.xpose.msra.mxu0 0.0
    %2281 = vmatprep.subr.mxu0 0.0
    %2282 = vmatpush2.xpose.msra.mxu0 0.0
    %2283 = vmatprep.subr.mxu0 0.0
    %2284 = vmatpush2.xpose.msra.mxu0 0.0
    %2285 = vmatprep.subr.mxu0 0.0
    %2286 = vmatpush2.xpose.msra.mxu0 0.0
    %2287 = vmatprep.subr.mxu0 0.0
    %2288 = vmatpush2.xpose.msra.mxu0 0.0
    %2289 = vmatprep.subr.mxu0 0.0
    %2290 = vmatpush2.xpose.msra.mxu0 0.0
    %2291 = vmatprep.mubr.f32.mxu0 0.0
    %2292 = vmatmul.mubr.f32.gmra.mxu0 %v2219
    %v2293 = vpop.f32.mrf.mxu0
    %v2294 = vadd.f32 0.0, %v2293
    %v2295 = vpop.f32.mrf.mxu0
    %2296 = vdwg.mxu0
    %2297 = vrot.lane.b32.xlu0 %v1770, 120
    %v2298 = vpop.permute.xlu0 %2297
    %2299 = vrot.lane.b32.xlu0 %v1885, 120
    %v2300 = vpop.permute.xlu0 %2299
    %2301 = vrot.lane.b32.xlu0 %v1890, 120
    %v2302 = vpop.permute.xlu0 %2301
    %v2303 = vsel %vm194, %v2298, 0
    %v2305 = vsel %vm194, %v2300, 0
    %v2307 = vsel %vm194, %v2302, 0
    %2309 = vmatprep.subr.mxu0 0.0
    %2310 = vmatpush1.xpose.msra.mxu0 0.0
    %2311 = vmatprep.subr.mxu0 0.0
    %2312 = vmatpush1.xpose.msra.mxu0 0.0
    %2313 = vmatprep.subr.mxu0 0.0
    %2314 = vmatpush1.xpose.msra.mxu0 0.0
    %2315 = vmatprep.subr.mxu0 0.0
    %2316 = vmatpush1.xpose.msra.mxu0 0.0
    %2317 = vmatprep.subr.mxu0 0.0
    %2318 = vmatpush1.xpose.msra.mxu0 0.0
    %2319 = vmatprep.subr.mxu0 0.0
    %2320 = vmatpush1.xpose.msra.mxu0 0.0
    %2321 = vmatprep.subr.mxu0 0.0
    %2322 = vmatpush1.xpose.msra.mxu0 0.0
    %2323 = vmatprep.subr.mxu0 0.0
    %2324 = vmatpush1.xpose.msra.mxu0 0.0
    %2325 = vmatprep.subr.mxu0 0.0
    %2326 = vmatpush1.xpose.msra.mxu0 0.0
    %2327 = vmatprep.subr.mxu0 0.0
    %2328 = vmatpush1.xpose.msra.mxu0 0.0
    %2329 = vmatprep.subr.mxu0 0.0
    %2330 = vmatpush1.xpose.msra.mxu0 0.0
    %2331 = vmatprep.subr.mxu0 0.0
    %2332 = vmatpush1.xpose.msra.mxu0 0.0
    %2333 = vmatprep.subr.mxu0 0.0
    %2334 = vmatpush1.xpose.msra.mxu0 0.0
    %2335 = vmatprep.subr.mxu0 0.0
    %2336 = vmatpush1.xpose.msra.mxu0 0.0
    %2337 = vmatprep.subr.mxu0 0.0
    %2338 = vmatpush1.xpose.msra.mxu0 %v2307
    %2339 = vmatprep.subr.mxu0 0.0
    %2340 = vmatpush1.xpose.msra.mxu0 %v2305
    %2341 = vmatprep.subr.mxu0 0.0
    %2342 = vmatpush2.xpose.msra.mxu0 0.0
    %2343 = vmatprep.subr.mxu0 0.0
    %2344 = vmatpush2.xpose.msra.mxu0 0.0
    %2345 = vmatprep.subr.mxu0 0.0
    %2346 = vmatpush2.xpose.msra.mxu0 0.0
    %2347 = vmatprep.subr.mxu0 0.0
    %2348 = vmatpush2.xpose.msra.mxu0 0.0
    %2349 = vmatprep.subr.mxu0 0.0
    %2350 = vmatpush2.xpose.msra.mxu0 0.0
    %2351 = vmatprep.subr.mxu0 0.0
    %2352 = vmatpush2.xpose.msra.mxu0 0.0
    %2353 = vmatprep.subr.mxu0 0.0
    %2354 = vmatpush2.xpose.msra.mxu0 0.0
    %2355 = vmatprep.subr.mxu0 0.0
    %2356 = vmatpush2.xpose.msra.mxu0 0.0
    %2357 = vmatprep.subr.mxu0 0.0
    %2358 = vmatpush2.xpose.msra.mxu0 0.0
    %2359 = vmatprep.subr.mxu0 0.0
    %2360 = vmatpush2.xpose.msra.mxu0 0.0
    %2361 = vmatprep.subr.mxu0 0.0
    %2362 = vmatpush2.xpose.msra.mxu0 0.0
    %2363 = vmatprep.subr.mxu0 0.0
    %2364 = vmatpush2.xpose.msra.mxu0 0.0
    %2365 = vmatprep.subr.mxu0 0.0
    %2366 = vmatpush2.xpose.msra.mxu0 0.0
    %2367 = vmatprep.subr.mxu0 0.0
    %2368 = vmatpush2.xpose.msra.mxu0 0.0
    %2369 = vmatprep.subr.mxu0 0.0
    %2370 = vmatpush2.xpose.msra.mxu0 0.0
    %2371 = vmatprep.subr.mxu0 0.0
    %2372 = vmatpush2.xpose.msra.mxu0 0.0
    %2373 = vmatprep.mubr.f32.mxu0 0.0
    %2374 = vmatmul.mubr.f32.gmra.mxu0 %v2303
    %v2375 = vpop.f32.mrf.mxu0
    %v2376 = vadd.f32 0.0, %v2375
    %v2377 = vpop.f32.mrf.mxu0
    %2378 = vdwg.mxu0
    %2379 = vrot.lane.b32.xlu0 %v1770, 112
    %v2380 = vpop.permute.xlu0 %2379
    %2381 = vrot.lane.b32.xlu0 %v1885, 112
    %v2382 = vpop.permute.xlu0 %2381
    %2383 = vrot.lane.b32.xlu0 %v1890, 112
    %v2384 = vpop.permute.xlu0 %2383
    %v2385 = vsel %vm194, %v2380, 0
    %v2387 = vsel %vm194, %v2382, 0
    %v2389 = vsel %vm194, %v2384, 0
    %2391 = vmatprep.subr.mxu0 0.0
    %2392 = vmatpush1.xpose.msra.mxu0 0.0
    %2393 = vmatprep.subr.mxu0 0.0
    %2394 = vmatpush1.xpose.msra.mxu0 0.0
    %2395 = vmatprep.subr.mxu0 0.0
    %2396 = vmatpush1.xpose.msra.mxu0 0.0
    %2397 = vmatprep.subr.mxu0 0.0
    %2398 = vmatpush1.xpose.msra.mxu0 0.0
    %2399 = vmatprep.subr.mxu0 0.0
    %2400 = vmatpush1.xpose.msra.mxu0 0.0
    %2401 = vmatprep.subr.mxu0 0.0
    %2402 = vmatpush1.xpose.msra.mxu0 0.0
    %2403 = vmatprep.subr.mxu0 0.0
    %2404 = vmatpush1.xpose.msra.mxu0 0.0
    %2405 = vmatprep.subr.mxu0 0.0
    %2406 = vmatpush1.xpose.msra.mxu0 0.0
    %2407 = vmatprep.subr.mxu0 0.0
    %2408 = vmatpush1.xpose.msra.mxu0 0.0
    %2409 = vmatprep.subr.mxu0 0.0
    %2410 = vmatpush1.xpose.msra.mxu0 0.0
    %2411 = vmatprep.subr.mxu0 0.0
    %2412 = vmatpush1.xpose.msra.mxu0 0.0
    %2413 = vmatprep.subr.mxu0 0.0
    %2414 = vmatpush1.xpose.msra.mxu0 0.0
    %2415 = vmatprep.subr.mxu0 0.0
    %2416 = vmatpush1.xpose.msra.mxu0 0.0
    %2417 = vmatprep.subr.mxu0 0.0
    %2418 = vmatpush1.xpose.msra.mxu0 0.0
    %2419 = vmatprep.subr.mxu0 0.0
    %2420 = vmatpush1.xpose.msra.mxu0 %v2389
    %2421 = vmatprep.subr.mxu0 0.0
    %2422 = vmatpush1.xpose.msra.mxu0 %v2387
    %2423 = vmatprep.subr.mxu0 0.0
    %2424 = vmatpush2.xpose.msra.mxu0 0.0
    %2425 = vmatprep.subr.mxu0 0.0
    %2426 = vmatpush2.xpose.msra.mxu0 0.0
    %2427 = vmatprep.subr.mxu0 0.0
    %2428 = vmatpush2.xpose.msra.mxu0 0.0
    %2429 = vmatprep.subr.mxu0 0.0
    %2430 = vmatpush2.xpose.msra.mxu0 0.0
    %2431 = vmatprep.subr.mxu0 0.0
    %2432 = vmatpush2.xpose.msra.mxu0 0.0
    %2433 = vmatprep.subr.mxu0 0.0
    %2434 = vmatpush2.xpose.msra.mxu0 0.0
    %2435 = vmatprep.subr.mxu0 0.0
    %2436 = vmatpush2.xpose.msra.mxu0 0.0
    %2437 = vmatprep.subr.mxu0 0.0
    %2438 = vmatpush2.xpose.msra.mxu0 0.0
    %2439 = vmatprep.subr.mxu0 0.0
    %2440 = vmatpush2.xpose.msra.mxu0 0.0
    %2441 = vmatprep.subr.mxu0 0.0
    %2442 = vmatpush2.xpose.msra.mxu0 0.0
    %2443 = vmatprep.subr.mxu0 0.0
    %2444 = vmatpush2.xpose.msra.mxu0 0.0
    %2445 = vmatprep.subr.mxu0 0.0
    %2446 = vmatpush2.xpose.msra.mxu0 0.0
    %2447 = vmatprep.subr.mxu0 0.0
    %2448 = vmatpush2.xpose.msra.mxu0 0.0
    %2449 = vmatprep.subr.mxu0 0.0
    %2450 = vmatpush2.xpose.msra.mxu0 0.0
    %2451 = vmatprep.subr.mxu0 0.0
    %2452 = vmatpush2.xpose.msra.mxu0 0.0
    %2453 = vmatprep.subr.mxu0 0.0
    %2454 = vmatpush2.xpose.msra.mxu0 0.0
    %2455 = vmatprep.mubr.f32.mxu0 0.0
    %2456 = vmatmul.mubr.f32.gmra.mxu0 %v2385
    %v2457 = vpop.f32.mrf.mxu0
    %v2458 = vadd.f32 0.0, %v2457
    %v2459 = vpop.f32.mrf.mxu0
    %2460 = vdwg.mxu0
    %2461 = vrot.lane.b32.xlu0 %v1770, 104
    %v2462 = vpop.permute.xlu0 %2461
    %2463 = vrot.lane.b32.xlu0 %v1885, 104
    %v2464 = vpop.permute.xlu0 %2463
    %2465 = vrot.lane.b32.xlu0 %v1890, 104
    %v2466 = vpop.permute.xlu0 %2465
    %v2467 = vsel %vm194, %v2462, 0
    %v2469 = vsel %vm194, %v2464, 0
    %v2471 = vsel %vm194, %v2466, 0
    %2473 = vmatprep.subr.mxu0 0.0
    %2474 = vmatpush1.xpose.msra.mxu0 0.0
    %2475 = vmatprep.subr.mxu0 0.0
    %2476 = vmatpush1.xpose.msra.mxu0 0.0
    %2477 = vmatprep.subr.mxu0 0.0
    %2478 = vmatpush1.xpose.msra.mxu0 0.0
    %2479 = vmatprep.subr.mxu0 0.0
    %2480 = vmatpush1.xpose.msra.mxu0 0.0
    %2481 = vmatprep.subr.mxu0 0.0
    %2482 = vmatpush1.xpose.msra.mxu0 0.0
    %2483 = vmatprep.subr.mxu0 0.0
    %2484 = vmatpush1.xpose.msra.mxu0 0.0
    %2485 = vmatprep.subr.mxu0 0.0
    %2486 = vmatpush1.xpose.msra.mxu0 0.0
    %2487 = vmatprep.subr.mxu0 0.0
    %2488 = vmatpush1.xpose.msra.mxu0 0.0
    %2489 = vmatprep.subr.mxu0 0.0
    %2490 = vmatpush1.xpose.msra.mxu0 0.0
    %2491 = vmatprep.subr.mxu0 0.0
    %2492 = vmatpush1.xpose.msra.mxu0 0.0
    %2493 = vmatprep.subr.mxu0 0.0
    %2494 = vmatpush1.xpose.msra.mxu0 0.0
    %2495 = vmatprep.subr.mxu0 0.0
    %2496 = vmatpush1.xpose.msra.mxu0 0.0
    %2497 = vmatprep.subr.mxu0 0.0
    %2498 = vmatpush1.xpose.msra.mxu0 0.0
    %2499 = vmatprep.subr.mxu0 0.0
    %2500 = vmatpush1.xpose.msra.mxu0 0.0
    %2501 = vmatprep.subr.mxu0 0.0
    %2502 = vmatpush1.xpose.msra.mxu0 %v2471
    %2503 = vmatprep.subr.mxu0 0.0
    %2504 = vmatpush1.xpose.msra.mxu0 %v2469
    %2505 = vmatprep.subr.mxu0 0.0
    %2506 = vmatpush2.xpose.msra.mxu0 0.0
    %2507 = vmatprep.subr.mxu0 0.0
    %2508 = vmatpush2.xpose.msra.mxu0 0.0
    %2509 = vmatprep.subr.mxu0 0.0
    %2510 = vmatpush2.xpose.msra.mxu0 0.0
    %2511 = vmatprep.subr.mxu0 0.0
    %2512 = vmatpush2.xpose.msra.mxu0 0.0
    %2513 = vmatprep.subr.mxu0 0.0
    %2514 = vmatpush2.xpose.msra.mxu0 0.0
    %2515 = vmatprep.subr.mxu0 0.0
    %2516 = vmatpush2.xpose.msra.mxu0 0.0
    %2517 = vmatprep.subr.mxu0 0.0
    %2518 = vmatpush2.xpose.msra.mxu0 0.0
    %2519 = vmatprep.subr.mxu0 0.0
    %2520 = vmatpush2.xpose.msra.mxu0 0.0
    %2521 = vmatprep.subr.mxu0 0.0
    %2522 = vmatpush2.xpose.msra.mxu0 0.0
    %2523 = vmatprep.subr.mxu0 0.0
    %2524 = vmatpush2.xpose.msra.mxu0 0.0
    %2525 = vmatprep.subr.mxu0 0.0
    %2526 = vmatpush2.xpose.msra.mxu0 0.0
    %2527 = vmatprep.subr.mxu0 0.0
    %2528 = vmatpush2.xpose.msra.mxu0 0.0
    %2529 = vmatprep.subr.mxu0 0.0
    %2530 = vmatpush2.xpose.msra.mxu0 0.0
    %2531 = vmatprep.subr.mxu0 0.0
    %2532 = vmatpush2.xpose.msra.mxu0 0.0
    %2533 = vmatprep.subr.mxu0 0.0
    %2534 = vmatpush2.xpose.msra.mxu0 0.0
    %2535 = vmatprep.subr.mxu0 0.0
    %2536 = vmatpush2.xpose.msra.mxu0 0.0
    %2537 = vmatprep.mubr.f32.mxu0 0.0
    %2538 = vmatmul.mubr.f32.gmra.mxu0 %v2467
    %v2539 = vpop.f32.mrf.mxu0
    %v2540 = vadd.f32 0.0, %v2539
    %v2541 = vpop.f32.mrf.mxu0
    %2542 = vdwg.mxu0
    %v2543 = vsel %vm1219, %v1969, -inf
    %2544 = vmax.xlane.f32.xlu0 %v2543
    %v2545 = vpop.xlane.xlu0 %2544
    %v2546 = vsel %vm1219, %v2051, -inf
    %2547 = vmax.xlane.f32.xlu0 %v2546
    %v2548 = vpop.xlane.xlu0 %2547
    %v2549 = vsel %vm1219, %v2133, -inf
    %2550 = vmax.xlane.f32.xlu0 %v2549
    %v2551 = vpop.xlane.xlu0 %2550
    %v2552 = vsel %vm1219, %v2215, -inf
    %2553 = vmax.xlane.f32.xlu0 %v2552
    %v2554 = vpop.xlane.xlu0 %2553
    %v2555 = vsel %vm1219, %v2294, -inf
    %2556 = vmax.xlane.f32.xlu0 %v2555
    %v2557 = vpop.xlane.xlu0 %2556
    %v2558 = vsel %vm1219, %v2376, -inf
    %2559 = vmax.xlane.f32.xlu0 %v2558
    %v2560 = vpop.xlane.xlu0 %2559
    %v2561 = vsel %vm1219, %v2458, -inf
    %2562 = vmax.xlane.f32.xlu0 %v2561
    %v2563 = vpop.xlane.xlu0 %2562
    %v2564 = vsel %vm1219, %v2540, -inf
    %2565 = vmax.xlane.f32.xlu0 %v2564
    %v2566 = vpop.xlane.xlu0 %2565
    %v2567 = vsub.f32 %v1969, %v2545
    %v2568 = vsub.f32 %v2051, %v2548
    %v2569 = vsub.f32 %v2133, %v2551
    %v2570 = vsub.f32 %v2215, %v2554
    %v2571 = vsub.f32 %v2294, %v2557
    %v2572 = vsub.f32 %v2376, %v2560
    %v2573 = vsub.f32 %v2458, %v2563
    %v2574 = vsub.f32 %v2540, %v2566
    %v2575 = vmul.f32 %v2567, 1.442695
    %v2576 = vpow.pop %v2575
    %v2577 = vmul.f32 %v2568, 1.442695
    %v2578 = vpow.pop %v2577
    %v2579 = vmul.f32 %v2569, 1.442695
    %v2580 = vpow.pop %v2579
    %v2581 = vmul.f32 %v2570, 1.442695
    %v2582 = vpow.pop %v2581
    %v2583 = vmul.f32 %v2571, 1.442695
    %v2584 = vpow.pop %v2583
    %v2585 = vmul.f32 %v2572, 1.442695
    %v2586 = vpow.pop %v2585
    %v2587 = vmul.f32 %v2573, 1.442695
    %v2588 = vpow.pop %v2587
    %v2589 = vmul.f32 %v2574, 1.442695
    %v2590 = vpow.pop %v2589
    %v2591 = vsel %vm1219, %v2576, 0.0
    %2592 = vadd.xlane.f32.xlu0 %v2591
    %v2593 = vpop.xlane.xlu0 %2592
    %v2594 = vsel %vm1219, %v2578, 0.0
    %2595 = vadd.xlane.f32.xlu0 %v2594
    %v2596 = vpop.xlane.xlu0 %2595
    %v2597 = vsel %vm1219, %v2580, 0.0
    %2598 = vadd.xlane.f32.xlu0 %v2597
    %v2599 = vpop.xlane.xlu0 %2598
    %v2600 = vsel %vm1219, %v2582, 0.0
    %2601 = vadd.xlane.f32.xlu0 %v2600
    %v2602 = vpop.xlane.xlu0 %2601
    %v2603 = vsel %vm1219, %v2584, 0.0
    %2604 = vadd.xlane.f32.xlu0 %v2603
    %v2605 = vpop.xlane.xlu0 %2604
    %v2606 = vsel %vm1219, %v2586, 0.0
    %2607 = vadd.xlane.f32.xlu0 %v2606
    %v2608 = vpop.xlane.xlu0 %2607
    %v2609 = vsel %vm1219, %v2588, 0.0
    %2610 = vadd.xlane.f32.xlu0 %v2609
    %v2611 = vpop.xlane.xlu0 %2610
    %v2612 = vsel %vm1219, %v2590, 0.0
    %2613 = vadd.xlane.f32.xlu0 %v2612
    %v2614 = vpop.xlane.xlu0 %2613
    %v2615 = vrcp.pop %v2593
    %v2616 = vmul.f32 %v2576, %v2615
    %v2617 = vrcp.pop %v2596
    %v2618 = vmul.f32 %v2578, %v2617
    %v2619 = vrcp.pop %v2599
    %v2620 = vmul.f32 %v2580, %v2619
    %v2621 = vrcp.pop %v2602
    %v2622 = vmul.f32 %v2582, %v2621
    %v2623 = vrcp.pop %v2605
    %v2624 = vmul.f32 %v2584, %v2623
    %v2625 = vrcp.pop %v2608
    %v2626 = vmul.f32 %v2586, %v2625
    %v2627 = vrcp.pop %v2611
    %v2628 = vmul.f32 %v2588, %v2627
    %v2629 = vrcp.pop %v2614
    %v2630 = vmul.f32 %v2590, %v2629
    %2631 = vrot.lane.b32.xlu0 %v1875, 96
    %v2632 = vpop.permute.xlu0 %2631
    %2633 = vrot.lane.b32.xlu0 %v1880, 96
    %v2634 = vpop.permute.xlu0 %2633
    %v2638 = vsel %vm1219, %v2616, 0
    %2640 = vmatprep.subr.mxu0 0.0
    %2641 = vmatpush1.msra.mxu0 0.0
    %2642 = vmatprep.subr.mxu0 0.0
    %2643 = vmatpush1.msra.mxu0 0.0
    %2644 = vmatprep.subr.mxu0 0.0
    %2645 = vmatpush1.msra.mxu0 0.0
    %2646 = vmatprep.subr.mxu0 0.0
    %2647 = vmatpush1.msra.mxu0 0.0
    %2648 = vmatprep.subr.mxu0 0.0
    %2649 = vmatpush1.msra.mxu0 0.0
    %2650 = vmatprep.subr.mxu0 0.0
    %2651 = vmatpush1.msra.mxu0 0.0
    %2652 = vmatprep.subr.mxu0 0.0
    %2653 = vmatpush1.msra.mxu0 0.0
    %2654 = vmatprep.subr.mxu0 0.0
    %2655 = vmatpush1.msra.mxu0 0.0
    %2656 = vmatprep.subr.mxu0 0.0
    %2657 = vmatpush1.msra.mxu0 0.0
    %2658 = vmatprep.subr.mxu0 0.0
    %2659 = vmatpush1.msra.mxu0 0.0
    %2660 = vmatprep.subr.mxu0 0.0
    %2661 = vmatpush1.msra.mxu0 0.0
    %2662 = vmatprep.subr.mxu0 0.0
    %2663 = vmatpush1.msra.mxu0 0.0
    %2664 = vmatprep.subr.mxu0 0.0
    %2665 = vmatpush1.msra.mxu0 0.0
    %2666 = vmatprep.subr.mxu0 0.0
    %2667 = vmatpush1.msra.mxu0 0.0
    %2668 = vmatprep.subr.mxu0 0.0
    %2669 = vmatpush1.msra.mxu0 %v2634
    %2670 = vmatprep.subr.mxu0 0.0
    %2671 = vmatpush1.msra.mxu0 %v2632
    %2672 = vmatprep.subr.mxu0 0.0
    %2673 = vmatpush2.msra.mxu0 0.0
    %2674 = vmatprep.subr.mxu0 0.0
    %2675 = vmatpush2.msra.mxu0 0.0
    %2676 = vmatprep.subr.mxu0 0.0
    %2677 = vmatpush2.msra.mxu0 0.0
    %2678 = vmatprep.subr.mxu0 0.0
    %2679 = vmatpush2.msra.mxu0 0.0
    %2680 = vmatprep.subr.mxu0 0.0
    %2681 = vmatpush2.msra.mxu0 0.0
    %2682 = vmatprep.subr.mxu0 0.0
    %2683 = vmatpush2.msra.mxu0 0.0
    %2684 = vmatprep.subr.mxu0 0.0
    %2685 = vmatpush2.msra.mxu0 0.0
    %2686 = vmatprep.subr.mxu0 0.0
    %2687 = vmatpush2.msra.mxu0 0.0
    %2688 = vmatprep.subr.mxu0 0.0
    %2689 = vmatpush2.msra.mxu0 0.0
    %2690 = vmatprep.subr.mxu0 0.0
    %2691 = vmatpush2.msra.mxu0 0.0
    %2692 = vmatprep.subr.mxu0 0.0
    %2693 = vmatpush2.msra.mxu0 0.0
    %2694 = vmatprep.subr.mxu0 0.0
    %2695 = vmatpush2.msra.mxu0 0.0
    %2696 = vmatprep.subr.mxu0 0.0
    %2697 = vmatpush2.msra.mxu0 0.0
    %2698 = vmatprep.subr.mxu0 0.0
    %2699 = vmatpush2.msra.mxu0 0.0
    %2700 = vmatprep.subr.mxu0 0.0
    %2701 = vmatpush2.msra.mxu0 0.0
    %2702 = vmatprep.subr.mxu0 0.0
    %2703 = vmatpush2.msra.mxu0 0.0
    %2704 = vmatprep.mubr.f32.mxu0 0.0
    %2705 = vmatmul.mubr.f32.gmra.mxu0 %v2638
    %v2706 = vpop.f32.mrf.mxu0
    %v2707 = vadd.f32 0.0, %v2706
    %v2708 = vpop.f32.mrf.mxu0
    %2709 = vdwg.mxu0
    %2710 = vrot.lane.b32.xlu0 %v1875, 88
    %v2711 = vpop.permute.xlu0 %2710
    %2712 = vrot.lane.b32.xlu0 %v1880, 88
    %v2713 = vpop.permute.xlu0 %2712
    %v2717 = vsel %vm1219, %v2618, 0
    %2719 = vmatprep.subr.mxu0 0.0
    %2720 = vmatpush1.msra.mxu0 0.0
    %2721 = vmatprep.subr.mxu0 0.0
    %2722 = vmatpush1.msra.mxu0 0.0
    %2723 = vmatprep.subr.mxu0 0.0
    %2724 = vmatpush1.msra.mxu0 0.0
    %2725 = vmatprep.subr.mxu0 0.0
    %2726 = vmatpush1.msra.mxu0 0.0
    %2727 = vmatprep.subr.mxu0 0.0
    %2728 = vmatpush1.msra.mxu0 0.0
    %2729 = vmatprep.subr.mxu0 0.0
    %2730 = vmatpush1.msra.mxu0 0.0
    %2731 = vmatprep.subr.mxu0 0.0
    %2732 = vmatpush1.msra.mxu0 0.0
    %2733 = vmatprep.subr.mxu0 0.0
    %2734 = vmatpush1.msra.mxu0 0.0
    %2735 = vmatprep.subr.mxu0 0.0
    %2736 = vmatpush1.msra.mxu0 0.0
    %2737 = vmatprep.subr.mxu0 0.0
    %2738 = vmatpush1.msra.mxu0 0.0
    %2739 = vmatprep.subr.mxu0 0.0
    %2740 = vmatpush1.msra.mxu0 0.0
    %2741 = vmatprep.subr.mxu0 0.0
    %2742 = vmatpush1.msra.mxu0 0.0
    %2743 = vmatprep.subr.mxu0 0.0
    %2744 = vmatpush1.msra.mxu0 0.0
    %2745 = vmatprep.subr.mxu0 0.0
    %2746 = vmatpush1.msra.mxu0 0.0
    %2747 = vmatprep.subr.mxu0 0.0
    %2748 = vmatpush1.msra.mxu0 %v2713
    %2749 = vmatprep.subr.mxu0 0.0
    %2750 = vmatpush1.msra.mxu0 %v2711
    %2751 = vmatprep.subr.mxu0 0.0
    %2752 = vmatpush2.msra.mxu0 0.0
    %2753 = vmatprep.subr.mxu0 0.0
    %2754 = vmatpush2.msra.mxu0 0.0
    %2755 = vmatprep.subr.mxu0 0.0
    %2756 = vmatpush2.msra.mxu0 0.0
    %2757 = vmatprep.subr.mxu0 0.0
    %2758 = vmatpush2.msra.mxu0 0.0
    %2759 = vmatprep.subr.mxu0 0.0
    %2760 = vmatpush2.msra.mxu0 0.0
    %2761 = vmatprep.subr.mxu0 0.0
    %2762 = vmatpush2.msra.mxu0 0.0
    %2763 = vmatprep.subr.mxu0 0.0
    %2764 = vmatpush2.msra.mxu0 0.0
    %2765 = vmatprep.subr.mxu0 0.0
    %2766 = vmatpush2.msra.mxu0 0.0
    %2767 = vmatprep.subr.mxu0 0.0
    %2768 = vmatpush2.msra.mxu0 0.0
    %2769 = vmatprep.subr.mxu0 0.0
    %2770 = vmatpush2.msra.mxu0 0.0
    %2771 = vmatprep.subr.mxu0 0.0
    %2772 = vmatpush2.msra.mxu0 0.0
    %2773 = vmatprep.subr.mxu0 0.0
    %2774 = vmatpush2.msra.mxu0 0.0
    %2775 = vmatprep.subr.mxu0 0.0
    %2776 = vmatpush2.msra.mxu0 0.0
    %2777 = vmatprep.subr.mxu0 0.0
    %2778 = vmatpush2.msra.mxu0 0.0
    %2779 = vmatprep.subr.mxu0 0.0
    %2780 = vmatpush2.msra.mxu0 0.0
    %2781 = vmatprep.subr.mxu0 0.0
    %2782 = vmatpush2.msra.mxu0 0.0
    %2783 = vmatprep.mubr.f32.mxu0 0.0
    %2784 = vmatmul.mubr.f32.gmra.mxu0 %v2717
    %v2785 = vpop.f32.mrf.mxu0
    %v2786 = vadd.f32 0.0, %v2785
    %v2787 = vpop.f32.mrf.mxu0
    %2788 = vdwg.mxu0
    %2789 = vrot.lane.b32.xlu0 %v1875, 80
    %v2790 = vpop.permute.xlu0 %2789
    %2791 = vrot.lane.b32.xlu0 %v1880, 80
    %v2792 = vpop.permute.xlu0 %2791
    %v2796 = vsel %vm1219, %v2620, 0
    %2798 = vmatprep.subr.mxu0 0.0
    %2799 = vmatpush1.msra.mxu0 0.0
    %2800 = vmatprep.subr.mxu0 0.0
    %2801 = vmatpush1.msra.mxu0 0.0
    %2802 = vmatprep.subr.mxu0 0.0
    %2803 = vmatpush1.msra.mxu0 0.0
    %2804 = vmatprep.subr.mxu0 0.0
    %2805 = vmatpush1.msra.mxu0 0.0
    %2806 = vmatprep.subr.mxu0 0.0
    %2807 = vmatpush1.msra.mxu0 0.0
    %2808 = vmatprep.subr.mxu0 0.0
    %2809 = vmatpush1.msra.mxu0 0.0
    %2810 = vmatprep.subr.mxu0 0.0
    %2811 = vmatpush1.msra.mxu0 0.0
    %2812 = vmatprep.subr.mxu0 0.0
    %2813 = vmatpush1.msra.mxu0 0.0
    %2814 = vmatprep.subr.mxu0 0.0
    %2815 = vmatpush1.msra.mxu0 0.0
    %2816 = vmatprep.subr.mxu0 0.0
    %2817 = vmatpush1.msra.mxu0 0.0
    %2818 = vmatprep.subr.mxu0 0.0
    %2819 = vmatpush1.msra.mxu0 0.0
    %2820 = vmatprep.subr.mxu0 0.0
    %2821 = vmatpush1.msra.mxu0 0.0
    %2822 = vmatprep.subr.mxu0 0.0
    %2823 = vmatpush1.msra.mxu0 0.0
    %2824 = vmatprep.subr.mxu0 0.0
    %2825 = vmatpush1.msra.mxu0 0.0
    %2826 = vmatprep.subr.mxu0 0.0
    %2827 = vmatpush1.msra.mxu0 %v2792
    %2828 = vmatprep.subr.mxu0 0.0
    %2829 = vmatpush1.msra.mxu0 %v2790
    %2830 = vmatprep.subr.mxu0 0.0
    %2831 = vmatpush2.msra.mxu0 0.0
    %2832 = vmatprep.subr.mxu0 0.0
    %2833 = vmatpush2.msra.mxu0 0.0
    %2834 = vmatprep.subr.mxu0 0.0
    %2835 = vmatpush2.msra.mxu0 0.0
    %2836 = vmatprep.subr.mxu0 0.0
    %2837 = vmatpush2.msra.mxu0 0.0
    %2838 = vmatprep.subr.mxu0 0.0
    %2839 = vmatpush2.msra.mxu0 0.0
    %2840 = vmatprep.subr.mxu0 0.0
    %2841 = vmatpush2.msra.mxu0 0.0
    %2842 = vmatprep.subr.mxu0 0.0
    %2843 = vmatpush2.msra.mxu0 0.0
    %2844 = vmatprep.subr.mxu0 0.0
    %2845 = vmatpush2.msra.mxu0 0.0
    %2846 = vmatprep.subr.mxu0 0.0
    %2847 = vmatpush2.msra.mxu0 0.0
    %2848 = vmatprep.subr.mxu0 0.0
    %2849 = vmatpush2.msra.mxu0 0.0
    %2850 = vmatprep.subr.mxu0 0.0
    %2851 = vmatpush2.msra.mxu0 0.0
    %2852 = vmatprep.subr.mxu0 0.0
    %2853 = vmatpush2.msra.mxu0 0.0
    %2854 = vmatprep.subr.mxu0 0.0
    %2855 = vmatpush2.msra.mxu0 0.0
    %2856 = vmatprep.subr.mxu0 0.0
    %2857 = vmatpush2.msra.mxu0 0.0
    %2858 = vmatprep.subr.mxu0 0.0
    %2859 = vmatpush2.msra.mxu0 0.0
    %2860 = vmatprep.subr.mxu0 0.0
    %2861 = vmatpush2.msra.mxu0 0.0
    %2862 = vmatprep.mubr.f32.mxu0 0.0
    %2863 = vmatmul.mubr.f32.gmra.mxu0 %v2796
    %v2864 = vpop.f32.mrf.mxu0
    %v2865 = vadd.f32 0.0, %v2864
    %v2866 = vpop.f32.mrf.mxu0
    %2867 = vdwg.mxu0
    %2868 = vrot.lane.b32.xlu0 %v1875, 72
    %v2869 = vpop.permute.xlu0 %2868
    %2870 = vrot.lane.b32.xlu0 %v1880, 72
    %v2871 = vpop.permute.xlu0 %2870
    %v2875 = vsel %vm1219, %v2622, 0
    %2877 = vmatprep.subr.mxu0 0.0
    %2878 = vmatpush1.msra.mxu0 0.0
    %2879 = vmatprep.subr.mxu0 0.0
    %2880 = vmatpush1.msra.mxu0 0.0
    %2881 = vmatprep.subr.mxu0 0.0
    %2882 = vmatpush1.msra.mxu0 0.0
    %2883 = vmatprep.subr.mxu0 0.0
    %2884 = vmatpush1.msra.mxu0 0.0
    %2885 = vmatprep.subr.mxu0 0.0
    %2886 = vmatpush1.msra.mxu0 0.0
    %2887 = vmatprep.subr.mxu0 0.0
    %2888 = vmatpush1.msra.mxu0 0.0
    %2889 = vmatprep.subr.mxu0 0.0
    %2890 = vmatpush1.msra.mxu0 0.0
    %2891 = vmatprep.subr.mxu0 0.0
    %2892 = vmatpush1.msra.mxu0 0.0
    %2893 = vmatprep.subr.mxu0 0.0
    %2894 = vmatpush1.msra.mxu0 0.0
    %2895 = vmatprep.subr.mxu0 0.0
    %2896 = vmatpush1.msra.mxu0 0.0
    %2897 = vmatprep.subr.mxu0 0.0
    %2898 = vmatpush1.msra.mxu0 0.0
    %2899 = vmatprep.subr.mxu0 0.0
    %2900 = vmatpush1.msra.mxu0 0.0
    %2901 = vmatprep.subr.mxu0 0.0
    %2902 = vmatpush1.msra.mxu0 0.0
    %2903 = vmatprep.subr.mxu0 0.0
    %2904 = vmatpush1.msra.mxu0 0.0
    %2905 = vmatprep.subr.mxu0 0.0
    %2906 = vmatpush1.msra.mxu0 %v2871
    %2907 = vmatprep.subr.mxu0 0.0
    %2908 = vmatpush1.msra.mxu0 %v2869
    %2909 = vmatprep.subr.mxu0 0.0
    %2910 = vmatpush2.msra.mxu0 0.0
    %2911 = vmatprep.subr.mxu0 0.0
    %2912 = vmatpush2.msra.mxu0 0.0
    %2913 = vmatprep.subr.mxu0 0.0
    %2914 = vmatpush2.msra.mxu0 0.0
    %2915 = vmatprep.subr.mxu0 0.0
    %2916 = vmatpush2.msra.mxu0 0.0
    %2917 = vmatprep.subr.mxu0 0.0
    %2918 = vmatpush2.msra.mxu0 0.0
    %2919 = vmatprep.subr.mxu0 0.0
    %2920 = vmatpush2.msra.mxu0 0.0
    %2921 = vmatprep.subr.mxu0 0.0
    %2922 = vmatpush2.msra.mxu0 0.0
    %2923 = vmatprep.subr.mxu0 0.0
    %2924 = vmatpush2.msra.mxu0 0.0
    %2925 = vmatprep.subr.mxu0 0.0
    %2926 = vmatpush2.msra.mxu0 0.0
    %2927 = vmatprep.subr.mxu0 0.0
    %2928 = vmatpush2.msra.mxu0 0.0
    %2929 = vmatprep.subr.mxu0 0.0
    %2930 = vmatpush2.msra.mxu0 0.0
    %2931 = vmatprep.subr.mxu0 0.0
    %2932 = vmatpush2.msra.mxu0 0.0
    %2933 = vmatprep.subr.mxu0 0.0
    %2934 = vmatpush2.msra.mxu0 0.0
    %2935 = vmatprep.subr.mxu0 0.0
    %2936 = vmatpush2.msra.mxu0 0.0
    %2937 = vmatprep.subr.mxu0 0.0
    %2938 = vmatpush2.msra.mxu0 0.0
    %2939 = vmatprep.subr.mxu0 0.0
    %2940 = vmatpush2.msra.mxu0 0.0
    %2941 = vmatprep.mubr.f32.mxu0 0.0
    %2942 = vmatmul.mubr.f32.gmra.mxu0 %v2875
    %v2943 = vpop.f32.mrf.mxu0
    %v2944 = vadd.f32 0.0, %v2943
    %v2945 = vpop.f32.mrf.mxu0
    %2946 = vdwg.mxu0
    %2948 = vrot.lane.b32.xlu0 %v2786, 8
    %v2949 = vpop.permute.xlu0 %2948
    %2952 = vrot.lane.b32.xlu0 %v2865, 16
    %v2953 = vpop.permute.xlu0 %2952
    %2956 = vrot.lane.b32.xlu0 %v2944, 24
    %v2957 = vpop.permute.xlu0 %2956
    %v2959 = vsel %vm194, %v2707, %v2949
    %v2960 = vsel %vm1219, %v2959, %v2953
    %v2961 = vsel %vm1221, %v2960, %v2957
    %2962 = vrot.lane.b32.xlu0 %v1885, 96
    %v2963 = vpop.permute.xlu0 %2962
    %2964 = vrot.lane.b32.xlu0 %v1890, 96
    %v2965 = vpop.permute.xlu0 %2964
    %v2969 = vsel %vm1219, %v2624, 0
    %2971 = vmatprep.subr.mxu0 0.0
    %2972 = vmatpush1.msra.mxu0 0.0
    %2973 = vmatprep.subr.mxu0 0.0
    %2974 = vmatpush1.msra.mxu0 0.0
    %2975 = vmatprep.subr.mxu0 0.0
    %2976 = vmatpush1.msra.mxu0 0.0
    %2977 = vmatprep.subr.mxu0 0.0
    %2978 = vmatpush1.msra.mxu0 0.0
    %2979 = vmatprep.subr.mxu0 0.0
    %2980 = vmatpush1.msra.mxu0 0.0
    %2981 = vmatprep.subr.mxu0 0.0
    %2982 = vmatpush1.msra.mxu0 0.0
    %2983 = vmatprep.subr.mxu0 0.0
    %2984 = vmatpush1.msra.mxu0 0.0
    %2985 = vmatprep.subr.mxu0 0.0
    %2986 = vmatpush1.msra.mxu0 0.0
    %2987 = vmatprep.subr.mxu0 0.0
    %2988 = vmatpush1.msra.mxu0 0.0
    %2989 = vmatprep.subr.mxu0 0.0
    %2990 = vmatpush1.msra.mxu0 0.0
    %2991 = vmatprep.subr.mxu0 0.0
    %2992 = vmatpush1.msra.mxu0 0.0
    %2993 = vmatprep.subr.mxu0 0.0
    %2994 = vmatpush1.msra.mxu0 0.0
    %2995 = vmatprep.subr.mxu0 0.0
    %2996 = vmatpush1.msra.mxu0 0.0
    %2997 = vmatprep.subr.mxu0 0.0
    %2998 = vmatpush1.msra.mxu0 0.0
    %2999 = vmatprep.subr.mxu0 0.0
    %3000 = vmatpush1.msra.mxu0 %v2965
    %3001 = vmatprep.subr.mxu0 0.0
    %3002 = vmatpush1.msra.mxu0 %v2963
    %3003 = vmatprep.subr.mxu0 0.0
    %3004 = vmatpush2.msra.mxu0 0.0
    %3005 = vmatprep.subr.mxu0 0.0
    %3006 = vmatpush2.msra.mxu0 0.0
    %3007 = vmatprep.subr.mxu0 0.0
    %3008 = vmatpush2.msra.mxu0 0.0
    %3009 = vmatprep.subr.mxu0 0.0
    %3010 = vmatpush2.msra.mxu0 0.0
    %3011 = vmatprep.subr.mxu0 0.0
    %3012 = vmatpush2.msra.mxu0 0.0
    %3013 = vmatprep.subr.mxu0 0.0
    %3014 = vmatpush2.msra.mxu0 0.0
    %3015 = vmatprep.subr.mxu0 0.0
    %3016 = vmatpush2.msra.mxu0 0.0
    %3017 = vmatprep.subr.mxu0 0.0
    %3018 = vmatpush2.msra.mxu0 0.0
    %3019 = vmatprep.subr.mxu0 0.0
    %3020 = vmatpush2.msra.mxu0 0.0
    %3021 = vmatprep.subr.mxu0 0.0
    %3022 = vmatpush2.msra.mxu0 0.0
    %3023 = vmatprep.subr.mxu0 0.0
    %3024 = vmatpush2.msra.mxu0 0.0
    %3025 = vmatprep.subr.mxu0 0.0
    %3026 = vmatpush2.msra.mxu0 0.0
    %3027 = vmatprep.subr.mxu0 0.0
    %3028 = vmatpush2.msra.mxu0 0.0
    %3029 = vmatprep.subr.mxu0 0.0
    %3030 = vmatpush2.msra.mxu0 0.0
    %3031 = vmatprep.subr.mxu0 0.0
    %3032 = vmatpush2.msra.mxu0 0.0
    %3033 = vmatprep.subr.mxu0 0.0
    %3034 = vmatpush2.msra.mxu0 0.0
    %3035 = vmatprep.mubr.f32.mxu0 0.0
    %3036 = vmatmul.mubr.f32.gmra.mxu0 %v2969
    %v3037 = vpop.f32.mrf.mxu0
    %v3038 = vadd.f32 0.0, %v3037
    %v3039 = vpop.f32.mrf.mxu0
    %3040 = vdwg.mxu0
    %3041 = vrot.lane.b32.xlu0 %v1885, 88
    %v3042 = vpop.permute.xlu0 %3041
    %3043 = vrot.lane.b32.xlu0 %v1890, 88
    %v3044 = vpop.permute.xlu0 %3043
    %v3048 = vsel %vm1219, %v2626, 0
    %3050 = vmatprep.subr.mxu0 0.0
    %3051 = vmatpush1.msra.mxu0 0.0
    %3052 = vmatprep.subr.mxu0 0.0
    %3053 = vmatpush1.msra.mxu0 0.0
    %3054 = vmatprep.subr.mxu0 0.0
    %3055 = vmatpush1.msra.mxu0 0.0
    %3056 = vmatprep.subr.mxu0 0.0
    %3057 = vmatpush1.msra.mxu0 0.0
    %3058 = vmatprep.subr.mxu0 0.0
    %3059 = vmatpush1.msra.mxu0 0.0
    %3060 = vmatprep.subr.mxu0 0.0
    %3061 = vmatpush1.msra.mxu0 0.0
    %3062 = vmatprep.subr.mxu0 0.0
    %3063 = vmatpush1.msra.mxu0 0.0
    %3064 = vmatprep.subr.mxu0 0.0
    %3065 = vmatpush1.msra.mxu0 0.0
    %3066 = vmatprep.subr.mxu0 0.0
    %3067 = vmatpush1.msra.mxu0 0.0
    %3068 = vmatprep.subr.mxu0 0.0
    %3069 = vmatpush1.msra.mxu0 0.0
    %3070 = vmatprep.subr.mxu0 0.0
    %3071 = vmatpush1.msra.mxu0 0.0
    %3072 = vmatprep.subr.mxu0 0.0
    %3073 = vmatpush1.msra.mxu0 0.0
    %3074 = vmatprep.subr.mxu0 0.0
    %3075 = vmatpush1.msra.mxu0 0.0
    %3076 = vmatprep.subr.mxu0 0.0
    %3077 = vmatpush1.msra.mxu0 0.0
    %3078 = vmatprep.subr.mxu0 0.0
    %3079 = vmatpush1.msra.mxu0 %v3044
    %3080 = vmatprep.subr.mxu0 0.0
    %3081 = vmatpush1.msra.mxu0 %v3042
    %3082 = vmatprep.subr.mxu0 0.0
    %3083 = vmatpush2.msra.mxu0 0.0
    %3084 = vmatprep.subr.mxu0 0.0
    %3085 = vmatpush2.msra.mxu0 0.0
    %3086 = vmatprep.subr.mxu0 0.0
    %3087 = vmatpush2.msra.mxu0 0.0
    %3088 = vmatprep.subr.mxu0 0.0
    %3089 = vmatpush2.msra.mxu0 0.0
    %3090 = vmatprep.subr.mxu0 0.0
    %3091 = vmatpush2.msra.mxu0 0.0
    %3092 = vmatprep.subr.mxu0 0.0
    %3093 = vmatpush2.msra.mxu0 0.0
    %3094 = vmatprep.subr.mxu0 0.0
    %3095 = vmatpush2.msra.mxu0 0.0
    %3096 = vmatprep.subr.mxu0 0.0
    %3097 = vmatpush2.msra.mxu0 0.0
    %3098 = vmatprep.subr.mxu0 0.0
    %3099 = vmatpush2.msra.mxu0 0.0
    %3100 = vmatprep.subr.mxu0 0.0
    %3101 = vmatpush2.msra.mxu0 0.0
    %3102 = vmatprep.subr.mxu0 0.0
    %3103 = vmatpush2.msra.mxu0 0.0
    %3104 = vmatprep.subr.mxu0 0.0
    %3105 = vmatpush2.msra.mxu0 0.0
    %3106 = vmatprep.subr.mxu0 0.0
    %3107 = vmatpush2.msra.mxu0 0.0
    %3108 = vmatprep.subr.mxu0 0.0
    %3109 = vmatpush2.msra.mxu0 0.0
    %3110 = vmatprep.subr.mxu0 0.0
    %3111 = vmatpush2.msra.mxu0 0.0
    %3112 = vmatprep.subr.mxu0 0.0
    %3113 = vmatpush2.msra.mxu0 0.0
    %3114 = vmatprep.mubr.f32.mxu0 0.0
    %3115 = vmatmul.mubr.f32.gmra.mxu0 %v3048
    %v3116 = vpop.f32.mrf.mxu0
    %v3117 = vadd.f32 0.0, %v3116
    %v3118 = vpop.f32.mrf.mxu0
    %3119 = vdwg.mxu0
    %3120 = vrot.lane.b32.xlu0 %v1885, 80
    %v3121 = vpop.permute.xlu0 %3120
    %3122 = vrot.lane.b32.xlu0 %v1890, 80
    %v3123 = vpop.permute.xlu0 %3122
    %v3127 = vsel %vm1219, %v2628, 0
    %3129 = vmatprep.subr.mxu0 0.0
    %3130 = vmatpush1.msra.mxu0 0.0
    %3131 = vmatprep.subr.mxu0 0.0
    %3132 = vmatpush1.msra.mxu0 0.0
    %3133 = vmatprep.subr.mxu0 0.0
    %3134 = vmatpush1.msra.mxu0 0.0
    %3135 = vmatprep.subr.mxu0 0.0
    %3136 = vmatpush1.msra.mxu0 0.0
    %3137 = vmatprep.subr.mxu0 0.0
    %3138 = vmatpush1.msra.mxu0 0.0
    %3139 = vmatprep.subr.mxu0 0.0
    %3140 = vmatpush1.msra.mxu0 0.0
    %3141 = vmatprep.subr.mxu0 0.0
    %3142 = vmatpush1.msra.mxu0 0.0
    %3143 = vmatprep.subr.mxu0 0.0
    %3144 = vmatpush1.msra.mxu0 0.0
    %3145 = vmatprep.subr.mxu0 0.0
    %3146 = vmatpush1.msra.mxu0 0.0
    %3147 = vmatprep.subr.mxu0 0.0
    %3148 = vmatpush1.msra.mxu0 0.0
    %3149 = vmatprep.subr.mxu0 0.0
    %3150 = vmatpush1.msra.mxu0 0.0
    %3151 = vmatprep.subr.mxu0 0.0
    %3152 = vmatpush1.msra.mxu0 0.0
    %3153 = vmatprep.subr.mxu0 0.0
    %3154 = vmatpush1.msra.mxu0 0.0
    %3155 = vmatprep.subr.mxu0 0.0
    %3156 = vmatpush1.msra.mxu0 0.0
    %3157 = vmatprep.subr.mxu0 0.0
    %3158 = vmatpush1.msra.mxu0 %v3123
    %3159 = vmatprep.subr.mxu0 0.0
    %3160 = vmatpush1.msra.mxu0 %v3121
    %3161 = vmatprep.subr.mxu0 0.0
    %3162 = vmatpush2.msra.mxu0 0.0
    %3163 = vmatprep.subr.mxu0 0.0
    %3164 = vmatpush2.msra.mxu0 0.0
    %3165 = vmatprep.subr.mxu0 0.0
    %3166 = vmatpush2.msra.mxu0 0.0
    %3167 = vmatprep.subr.mxu0 0.0
    %3168 = vmatpush2.msra.mxu0 0.0
    %3169 = vmatprep.subr.mxu0 0.0
    %3170 = vmatpush2.msra.mxu0 0.0
    %3171 = vmatprep.subr.mxu0 0.0
    %3172 = vmatpush2.msra.mxu0 0.0
    %3173 = vmatprep.subr.mxu0 0.0
    %3174 = vmatpush2.msra.mxu0 0.0
    %3175 = vmatprep.subr.mxu0 0.0
    %3176 = vmatpush2.msra.mxu0 0.0
    %3177 = vmatprep.subr.mxu0 0.0
    %3178 = vmatpush2.msra.mxu0 0.0
    %3179 = vmatprep.subr.mxu0 0.0
    %3180 = vmatpush2.msra.mxu0 0.0
    %3181 = vmatprep.subr.mxu0 0.0
    %3182 = vmatpush2.msra.mxu0 0.0
    %3183 = vmatprep.subr.mxu0 0.0
    %3184 = vmatpush2.msra.mxu0 0.0
    %3185 = vmatprep.subr.mxu0 0.0
    %3186 = vmatpush2.msra.mxu0 0.0
    %3187 = vmatprep.subr.mxu0 0.0
    %3188 = vmatpush2.msra.mxu0 0.0
    %3189 = vmatprep.subr.mxu0 0.0
    %3190 = vmatpush2.msra.mxu0 0.0
    %3191 = vmatprep.subr.mxu0 0.0
    %3192 = vmatpush2.msra.mxu0 0.0
    %3193 = vmatprep.mubr.f32.mxu0 0.0
    %3194 = vmatmul.mubr.f32.gmra.mxu0 %v3127
    %v3195 = vpop.f32.mrf.mxu0
    %v3196 = vadd.f32 0.0, %v3195
    %v3197 = vpop.f32.mrf.mxu0
    %3198 = vdwg.mxu0
    %3199 = vrot.lane.b32.xlu0 %v1885, 72
    %v3200 = vpop.permute.xlu0 %3199
    %3201 = vrot.lane.b32.xlu0 %v1890, 72
    %v3202 = vpop.permute.xlu0 %3201
    %v3206 = vsel %vm1219, %v2630, 0
    %3208 = vmatprep.subr.mxu0 0.0
    %3209 = vmatpush1.msra.mxu0 0.0
    %3210 = vmatprep.subr.mxu0 0.0
    %3211 = vmatpush1.msra.mxu0 0.0
    %3212 = vmatprep.subr.mxu0 0.0
    %3213 = vmatpush1.msra.mxu0 0.0
    %3214 = vmatprep.subr.mxu0 0.0
    %3215 = vmatpush1.msra.mxu0 0.0
    %3216 = vmatprep.subr.mxu0 0.0
    %3217 = vmatpush1.msra.mxu0 0.0
    %3218 = vmatprep.subr.mxu0 0.0
    %3219 = vmatpush1.msra.mxu0 0.0
    %3220 = vmatprep.subr.mxu0 0.0
    %3221 = vmatpush1.msra.mxu0 0.0
    %3222 = vmatprep.subr.mxu0 0.0
    %3223 = vmatpush1.msra.mxu0 0.0
    %3224 = vmatprep.subr.mxu0 0.0
    %3225 = vmatpush1.msra.mxu0 0.0
    %3226 = vmatprep.subr.mxu0 0.0
    %3227 = vmatpush1.msra.mxu0 0.0
    %3228 = vmatprep.subr.mxu0 0.0
    %3229 = vmatpush1.msra.mxu0 0.0
    %3230 = vmatprep.subr.mxu0 0.0
    %3231 = vmatpush1.msra.mxu0 0.0
    %3232 = vmatprep.subr.mxu0 0.0
    %3233 = vmatpush1.msra.mxu0 0.0
    %3234 = vmatprep.subr.mxu0 0.0
    %3235 = vmatpush1.msra.mxu0 0.0
    %3236 = vmatprep.subr.mxu0 0.0
    %3237 = vmatpush1.msra.mxu0 %v3202
    %3238 = vmatprep.subr.mxu0 0.0
    %3239 = vmatpush1.msra.mxu0 %v3200
    %3240 = vmatprep.subr.mxu0 0.0
    %3241 = vmatpush2.msra.mxu0 0.0
    %3242 = vmatprep.subr.mxu0 0.0
    %3243 = vmatpush2.msra.mxu0 0.0
    %3244 = vmatprep.subr.mxu0 0.0
    %3245 = vmatpush2.msra.mxu0 0.0
    %3246 = vmatprep.subr.mxu0 0.0
    %3247 = vmatpush2.msra.mxu0 0.0
    %3248 = vmatprep.subr.mxu0 0.0
    %3249 = vmatpush2.msra.mxu0 0.0
    %3250 = vmatprep.subr.mxu0 0.0
    %3251 = vmatpush2.msra.mxu0 0.0
    %3252 = vmatprep.subr.mxu0 0.0
    %3253 = vmatpush2.msra.mxu0 0.0
    %3254 = vmatprep.subr.mxu0 0.0
    %3255 = vmatpush2.msra.mxu0 0.0
    %3256 = vmatprep.subr.mxu0 0.0
    %3257 = vmatpush2.msra.mxu0 0.0
    %3258 = vmatprep.subr.mxu0 0.0
    %3259 = vmatpush2.msra.mxu0 0.0
    %3260 = vmatprep.subr.mxu0 0.0
    %3261 = vmatpush2.msra.mxu0 0.0
    %3262 = vmatprep.subr.mxu0 0.0
    %3263 = vmatpush2.msra.mxu0 0.0
    %3264 = vmatprep.subr.mxu0 0.0
    %3265 = vmatpush2.msra.mxu0 0.0
    %3266 = vmatprep.subr.mxu0 0.0
    %3267 = vmatpush2.msra.mxu0 0.0
    %3268 = vmatprep.subr.mxu0 0.0
    %3269 = vmatpush2.msra.mxu0 0.0
    %3270 = vmatprep.subr.mxu0 0.0
    %3271 = vmatpush2.msra.mxu0 0.0
    %3272 = vmatprep.mubr.f32.mxu0 0.0
    %3273 = vmatmul.mubr.f32.gmra.mxu0 %v3206
    %v3274 = vpop.f32.mrf.mxu0
    %v3275 = vadd.f32 0.0, %v3274
    %v3276 = vpop.f32.mrf.mxu0
    %3277 = vdwg.mxu0
    %3279 = vrot.lane.b32.xlu0 %v3117, 8
    %v3280 = vpop.permute.xlu0 %3279
    %3283 = vrot.lane.b32.xlu0 %v3196, 16
    %v3284 = vpop.permute.xlu0 %3283
    %3287 = vrot.lane.b32.xlu0 %v3275, 24
    %v3288 = vpop.permute.xlu0 %3287
    %v3290 = vsel %vm194, %v3038, %v3280
    %v3291 = vsel %vm1219, %v3290, %v3284
    %v3292 = vsel %vm1221, %v3291, %v3288
    %v3293 = vld [vmem:[%s5 + $0x2] sm:$0x1]
    %v3295 = vlaneseq
    %v3296 = vshrl.u32 %v3295, 7
    %v3297 = vsub.s32 0, %v3296
    %v3298 = vrot.slane %v3293, %v3297
    %3303 = vrot.lane.b32.xlu0 %v1685, 96
    %v3304 = vpop.permute.xlu0 %3303
    %3305 = vrot.lane.b32.xlu0 %v1686, 96
    %v3306 = vpop.permute.xlu0 %3305
    %3307 = vrot.lane.b32.xlu0 %v1687, 96
    %v3308 = vpop.permute.xlu0 %3307
    %3309 = vrot.lane.b32.xlu0 %v1688, 96
    %v3310 = vpop.permute.xlu0 %3309
    %3315 = vrot.lane.b32.xlu0 %v3298, 96
    %v3316 = vpop.permute.xlu0 %3315
    %v3319 = vsel %vm109, %v2961, 0
    %v3322 = vsel %vm109, %v3292, 0
    %3324 = vmatprep.subr.mxu0 0.0
    %3325 = vmatpush1.msra.mxu0 0.0
    %3326 = vmatprep.subr.mxu0 0.0
    %3327 = vmatpush1.msra.mxu0 0.0
    %3328 = vmatprep.subr.mxu0 0.0
    %3329 = vmatpush1.msra.mxu0 0.0
    %3330 = vmatprep.subr.mxu0 0.0
    %3331 = vmatpush1.msra.mxu0 0.0
    %3332 = vmatprep.subr.mxu0 0.0
    %3333 = vmatpush1.msra.mxu0 0.0
    %3334 = vmatprep.subr.mxu0 0.0
    %3335 = vmatpush1.msra.mxu0 0.0
    %3336 = vmatprep.subr.mxu0 0.0
    %3337 = vmatpush1.msra.mxu0 0.0
    %3338 = vmatprep.subr.mxu0 0.0
    %3339 = vmatpush1.msra.mxu0 0.0
    %3340 = vmatprep.subr.mxu0 0.0
    %3341 = vmatpush1.msra.mxu0 0.0
    %3342 = vmatprep.subr.mxu0 0.0
    %3343 = vmatpush1.msra.mxu0 0.0
    %3344 = vmatprep.subr.mxu0 0.0
    %3345 = vmatpush1.msra.mxu0 0.0
    %3346 = vmatprep.subr.mxu0 0.0
    %3347 = vmatpush1.msra.mxu0 0.0
    %3348 = vmatprep.subr.mxu0 0.0
    %3349 = vmatpush1.msra.mxu0 %v3310
    %3350 = vmatprep.subr.mxu0 0.0
    %3351 = vmatpush1.msra.mxu0 %v3308
    %3352 = vmatprep.subr.mxu0 0.0
    %3353 = vmatpush1.msra.mxu0 %v3306
    %3354 = vmatprep.subr.mxu0 0.0
    %3355 = vmatpush1.msra.mxu0 %v3304
    %3356 = vmatprep.subr.mxu0 0.0
    %3357 = vmatpush2.msra.mxu0 0.0
    %3358 = vmatprep.subr.mxu0 0.0
    %3359 = vmatpush2.msra.mxu0 0.0
    %3360 = vmatprep.subr.mxu0 0.0
    %3361 = vmatpush2.msra.mxu0 0.0
    %3362 = vmatprep.subr.mxu0 0.0
    %3363 = vmatpush2.msra.mxu0 0.0
    %3364 = vmatprep.subr.mxu0 0.0
    %3365 = vmatpush2.msra.mxu0 0.0
    %3366 = vmatprep.subr.mxu0 0.0
    %3367 = vmatpush2.msra.mxu0 0.0
    %3368 = vmatprep.subr.mxu0 0.0
    %3369 = vmatpush2.msra.mxu0 0.0
    %3370 = vmatprep.subr.mxu0 0.0
    %3371 = vmatpush2.msra.mxu0 0.0
    %3372 = vmatprep.subr.mxu0 0.0
    %3373 = vmatpush2.msra.mxu0 0.0
    %3374 = vmatprep.subr.mxu0 0.0
    %3375 = vmatpush2.msra.mxu0 0.0
    %3376 = vmatprep.subr.mxu0 0.0
    %3377 = vmatpush2.msra.mxu0 0.0
    %3378 = vmatprep.subr.mxu0 0.0
    %3379 = vmatpush2.msra.mxu0 0.0
    %3380 = vmatprep.subr.mxu0 0.0
    %3381 = vmatpush2.msra.mxu0 0.0
    %3382 = vmatprep.subr.mxu0 0.0
    %3383 = vmatpush2.msra.mxu0 0.0
    %3384 = vmatprep.subr.mxu0 0.0
    %3385 = vmatpush2.msra.mxu0 0.0
    %3386 = vmatprep.subr.mxu0 0.0
    %3387 = vmatpush2.msra.mxu0 0.0
    %3388 = vmatprep.mubr.f32.mxu0 0.0
    %3389 = vmatmul.mubr.f32.gmra.mxu0 %v3319
    %v3390 = vpop.f32.mrf.mxu0
    %v3391 = vadd.f32 %v3316, %v3390
    %v3392 = vpop.f32.mrf.mxu0
    %3393 = vmatprep.mubr.f32.mxu0 0.0
    %3394 = vmatmul.mubr.f32.gmra.mxu0 %v3322
    %v3395 = vpop.f32.mrf.mxu0
    %v3396 = vadd.f32 %v3316, %v3395
    %v3397 = vpop.f32.mrf.mxu0
    %3398 = vdwg.mxu0
    %v3399 = vadd.f32 %v3391, %v1683
    %v3400 = vadd.f32 %v3396, %v1684
    %v3401 = vsel %vm109, %v3399, 0.0
    %3402 = vadd.xlane.f32.xlu0 %v3401
    %v3403 = vpop.xlane.xlu0 %3402
    %v3404 = vsel %vm109, %v3400, 0.0
    %3405 = vadd.xlane.f32.xlu0 %v3404
    %v3406 = vpop.xlane.xlu0 %3405
    %v3407 = vmul.f32 %v3403, %v1651
    %v3408 = vmul.f32 %v3406, %v1651
    %v3409 = vsub.f32 %v3399, %v3407
    %v3410 = vsub.f32 %v3400, %v3408
    %v3411 = vmul.f32 %v3409, %v3409
    %v3412 = vmul.f32 %v3410, %v3410
    %v3413 = vsel %vm109, %v3411, 0.0
    %3414 = vadd.xlane.f32.xlu0 %v3413
    %v3415 = vpop.xlane.xlu0 %3414
    %v3416 = vsel %vm109, %v3412, 0.0
    %3417 = vadd.xlane.f32.xlu0 %v3416
    %v3418 = vpop.xlane.xlu0 %3417
    %v3419 = vmul.f32 %v3415, %v1651
    %v3420 = vmul.f32 %v3418, %v1651
    %v3421 = vadd.f32 %v3419, 1e-12
    %v3422 = vadd.f32 %v3420, 1e-12
    %v3423 = vrsqrt.pop %v3421
    %v3424 = vrsqrt.pop %v3422
    %v3425 = vmul.f32 %v3409, %v3423
    %v3426 = vmul.f32 %v3410, %v3424
    %3427 = vrot.lane.b32.xlu0 %v3298, 64
    %v3428 = vpop.permute.xlu0 %3427
    %v3430 = vmul.f32 %v3425, %v3428
    %v3431 = vmul.f32 %v3426, %v3428
    %3432 = vrot.lane.b32.xlu0 %v3298, 32
    %v3433 = vpop.permute.xlu0 %3432
    %v3435 = vadd.f32 %v3430, %v3433
    %v3436 = vadd.f32 %v3431, %v3433
    %v3437 = vld [vmem:[%s5 + $0x3] sm:$0x1]
    %v3439 = vlaneseq
    %v3440 = vshrl.u32 %v3439, 7
    %v3441 = vsub.s32 0, %v3440
    %v3442 = vrot.slane %v3437, %v3441
    %3444 = vrot.lane.b32.xlu0 %v1685, 64
    %v3445 = vpop.permute.xlu0 %3444
    %3446 = vrot.lane.b32.xlu0 %v1686, 64
    %v3447 = vpop.permute.xlu0 %3446
    %3448 = vrot.lane.b32.xlu0 %v1687, 64
    %v3449 = vpop.permute.xlu0 %3448
    %3450 = vrot.lane.b32.xlu0 %v1688, 64
    %v3451 = vpop.permute.xlu0 %3450
    %v3457 = vsel %vm109, %v3435, 0
    %v3460 = vsel %vm109, %v3436, 0
    %3462 = vmatprep.subr.mxu0 0.0
    %3463 = vmatpush1.msra.mxu0 0.0
    %3464 = vmatprep.subr.mxu0 0.0
    %3465 = vmatpush1.msra.mxu0 0.0
    %3466 = vmatprep.subr.mxu0 0.0
    %3467 = vmatpush1.msra.mxu0 0.0
    %3468 = vmatprep.subr.mxu0 0.0
    %3469 = vmatpush1.msra.mxu0 0.0
    %3470 = vmatprep.subr.mxu0 0.0
    %3471 = vmatpush1.msra.mxu0 0.0
    %3472 = vmatprep.subr.mxu0 0.0
    %3473 = vmatpush1.msra.mxu0 0.0
    %3474 = vmatprep.subr.mxu0 0.0
    %3475 = vmatpush1.msra.mxu0 0.0
    %3476 = vmatprep.subr.mxu0 0.0
    %3477 = vmatpush1.msra.mxu0 0.0
    %3478 = vmatprep.subr.mxu0 0.0
    %3479 = vmatpush1.msra.mxu0 0.0
    %3480 = vmatprep.subr.mxu0 0.0
    %3481 = vmatpush1.msra.mxu0 0.0
    %3482 = vmatprep.subr.mxu0 0.0
    %3483 = vmatpush1.msra.mxu0 0.0
    %3484 = vmatprep.subr.mxu0 0.0
    %3485 = vmatpush1.msra.mxu0 0.0
    %3486 = vmatprep.subr.mxu0 0.0
    %3487 = vmatpush1.msra.mxu0 %v3451
    %3488 = vmatprep.subr.mxu0 0.0
    %3489 = vmatpush1.msra.mxu0 %v3449
    %3490 = vmatprep.subr.mxu0 0.0
    %3491 = vmatpush1.msra.mxu0 %v3447
    %3492 = vmatprep.subr.mxu0 0.0
    %3493 = vmatpush1.msra.mxu0 %v3445
    %3494 = vmatprep.subr.mxu0 0.0
    %3495 = vmatpush2.msra.mxu0 0.0
    %3496 = vmatprep.subr.mxu0 0.0
    %3497 = vmatpush2.msra.mxu0 0.0
    %3498 = vmatprep.subr.mxu0 0.0
    %3499 = vmatpush2.msra.mxu0 0.0
    %3500 = vmatprep.subr.mxu0 0.0
    %3501 = vmatpush2.msra.mxu0 0.0
    %3502 = vmatprep.subr.mxu0 0.0
    %3503 = vmatpush2.msra.mxu0 0.0
    %3504 = vmatprep.subr.mxu0 0.0
    %3505 = vmatpush2.msra.mxu0 0.0
    %3506 = vmatprep.subr.mxu0 0.0
    %3507 = vmatpush2.msra.mxu0 0.0
    %3508 = vmatprep.subr.mxu0 0.0
    %3509 = vmatpush2.msra.mxu0 0.0
    %3510 = vmatprep.subr.mxu0 0.0
    %3511 = vmatpush2.msra.mxu0 0.0
    %3512 = vmatprep.subr.mxu0 0.0
    %3513 = vmatpush2.msra.mxu0 0.0
    %3514 = vmatprep.subr.mxu0 0.0
    %3515 = vmatpush2.msra.mxu0 0.0
    %3516 = vmatprep.subr.mxu0 0.0
    %3517 = vmatpush2.msra.mxu0 0.0
    %3518 = vmatprep.subr.mxu0 0.0
    %3519 = vmatpush2.msra.mxu0 0.0
    %3520 = vmatprep.subr.mxu0 0.0
    %3521 = vmatpush2.msra.mxu0 0.0
    %3522 = vmatprep.subr.mxu0 0.0
    %3523 = vmatpush2.msra.mxu0 0.0
    %3524 = vmatprep.subr.mxu0 0.0
    %3525 = vmatpush2.msra.mxu0 0.0
    %3526 = vmatprep.mubr.f32.mxu0 0.0
    %3527 = vmatmul.mubr.f32.gmra.mxu0 %v3457
    %v3528 = vpop.f32.mrf.mxu0
    %v3529 = vadd.f32 %v3442, %v3528
    %v3530 = vpop.f32.mrf.mxu0
    %3531 = vmatprep.mubr.f32.mxu0 0.0
    %3532 = vmatmul.mubr.f32.gmra.mxu0 %v3460
    %v3533 = vpop.f32.mrf.mxu0
    %v3534 = vadd.f32 %v3442, %v3533
    %v3535 = vpop.f32.mrf.mxu0
    %3536 = vdwg.mxu0
    %v3537 = vmul.f32 %v3529, %v3529
    %v3538 = vmul.f32 %v3534, %v3534
    %v3539 = vmul.f32 %v3529, %v3537
    %v3540 = vmul.f32 %v3534, %v3538
    %v3541 = vmul.f32 %v3539, 0.044715
    %v3542 = vmul.f32 %v3540, 0.044715
    %v3543 = vadd.f32 %v3529, %v3541
    %v3544 = vadd.f32 %v3534, %v3542
    %v3545 = vmul.f32 %v3543, 0.7978846
    %v3546 = vmul.f32 %v3544, 0.7978846
    %v3547 = vtanh.pop %v3545
    %v3548 = vtanh.pop %v3546
    %v3549 = vadd.f32 %v3547, 1.0
    %v3550 = vadd.f32 %v3548, 1.0
    %v3551 = vmul.f32 %v3549, 0.5
    %v3552 = vmul.f32 %v3550, 0.5
    %v3553 = vmul.f32 %v3529, %v3551
    %v3554 = vmul.f32 %v3534, %v3552
    %v3555 = vld [vmem:[#allocation10] sm:$0xff]
    %v3556 = vld [vmem:[#allocation10 + $0x8] sm:$0xff]
    %v3557 = vld [vmem:[#allocation10 + $0x10] sm:$0xff]
    %v3558 = vld [vmem:[#allocation10 + $0x18] sm:$0xff]
    %v3559 = vld [vmem:[#allocation10 + $0x20] sm:$0xff]
    %v3560 = vld [vmem:[#allocation10 + $0x28] sm:$0xff]
    %v3561 = vld [vmem:[#allocation10 + $0x30] sm:$0xff]
    %v3562 = vld [vmem:[#allocation10 + $0x38] sm:$0xff]
    %3563 = vrot.lane.b32.xlu0 %v3442, 64
    %v3564 = vpop.permute.xlu0 %3563
    %vm3566 = vcmask 523264
    %v3568 = vsel %vm3566, %v3553, 0
    %v3571 = vsel %vm3566, %v3554, 0
    %3573 = vmatprep.subr.mxu0 0.0
    %3574 = vmatpush1.msra.mxu0 0.0
    %3575 = vmatprep.subr.mxu0 0.0
    %3576 = vmatpush1.msra.mxu0 0.0
    %3577 = vmatprep.subr.mxu0 0.0
    %3578 = vmatpush1.msra.mxu0 0.0
    %3579 = vmatprep.subr.mxu0 0.0
    %3580 = vmatpush1.msra.mxu0 0.0
    %3581 = vmatprep.subr.mxu0 0.0
    %3582 = vmatpush1.msra.mxu0 0.0
    %3583 = vmatprep.subr.mxu0 0.0
    %3584 = vmatpush1.msra.mxu0 0.0
    %3585 = vmatprep.subr.mxu0 0.0
    %3586 = vmatpush1.msra.mxu0 0.0
    %3587 = vmatprep.subr.mxu0 0.0
    %3588 = vmatpush1.msra.mxu0 0.0
    %3589 = vmatprep.subr.mxu0 0.0
    %3590 = vmatpush1.msra.mxu0 %v3562
    %3591 = vmatprep.subr.mxu0 0.0
    %3592 = vmatpush1.msra.mxu0 %v3561
    %3593 = vmatprep.subr.mxu0 0.0
    %3594 = vmatpush1.msra.mxu0 %v3560
    %3595 = vmatprep.subr.mxu0 0.0
    %3596 = vmatpush1.msra.mxu0 %v3559
    %3597 = vmatprep.subr.mxu0 0.0
    %3598 = vmatpush1.msra.mxu0 %v3558
    %3599 = vmatprep.subr.mxu0 0.0
    %3600 = vmatpush1.msra.mxu0 %v3557
    %3601 = vmatprep.subr.mxu0 0.0
    %3602 = vmatpush1.msra.mxu0 %v3556
    %3603 = vmatprep.subr.mxu0 0.0
    %3604 = vmatpush1.msra.mxu0 %v3555
    %3605 = vmatprep.subr.mxu0 0.0
    %3606 = vmatpush2.msra.mxu0 0.0
    %3607 = vmatprep.subr.mxu0 0.0
    %3608 = vmatpush2.msra.mxu0 0.0
    %3609 = vmatprep.subr.mxu0 0.0
    %3610 = vmatpush2.msra.mxu0 0.0
    %3611 = vmatprep.subr.mxu0 0.0
    %3612 = vmatpush2.msra.mxu0 0.0
    %3613 = vmatprep.subr.mxu0 0.0
    %3614 = vmatpush2.msra.mxu0 0.0
    %3615 = vmatprep.subr.mxu0 0.0
    %3616 = vmatpush2.msra.mxu0 0.0
    %3617 = vmatprep.subr.mxu0 0.0
    %3618 = vmatpush2.msra.mxu0 0.0
    %3619 = vmatprep.subr.mxu0 0.0
    %3620 = vmatpush2.msra.mxu0 0.0
    %3621 = vmatprep.subr.mxu0 0.0
    %3622 = vmatpush2.msra.mxu0 0.0
    %3623 = vmatprep.subr.mxu0 0.0
    %3624 = vmatpush2.msra.mxu0 0.0
    %3625 = vmatprep.subr.mxu0 0.0
    %3626 = vmatpush2.msra.mxu0 0.0
    %3627 = vmatprep.subr.mxu0 0.0
    %3628 = vmatpush2.msra.mxu0 0.0
    %3629 = vmatprep.subr.mxu0 0.0
    %3630 = vmatpush2.msra.mxu0 0.0
    %3631 = vmatprep.subr.mxu0 0.0
    %3632 = vmatpush2.msra.mxu0 0.0
    %3633 = vmatprep.subr.mxu0 0.0
    %3634 = vmatpush2.msra.mxu0 0.0
    %3635 = vmatprep.subr.mxu0 0.0
    %3636 = vmatpush2.msra.mxu0 0.0
    %3637 = vmatprep.mubr.f32.mxu0 0.0
    %3638 = vmatmul.mubr.f32.gmra.mxu0 %v3568
    %v3639 = vpop.f32.mrf.mxu0
    %v3640 = vadd.f32 %v3564, %v3639
    %v3641 = vpop.f32.mrf.mxu0
    %3642 = vmatprep.mubr.f32.mxu0 0.0
    %3643 = vmatmul.mubr.f32.gmra.mxu0 %v3571
    %v3644 = vpop.f32.mrf.mxu0
    %v3645 = vadd.f32 %v3564, %v3644
    %v3646 = vpop.f32.mrf.mxu0
    %3647 = vdwg.mxu0
    %v3648 = vadd.f32 %v3640, %v3435
    %v3649 = vadd.f32 %v3645, %v3436
    %v3650 = vld [vmem:[%s5 + $0x4] sm:$0x1]
    %v3651 = vsel %vm109, %v3648, 0.0
    %3652 = vadd.xlane.f32.xlu0 %v3651
    %v3653 = vpop.xlane.xlu0 %3652
    %v3654 = vsel %vm109, %v3649, 0.0
    %3655 = vadd.xlane.f32.xlu0 %v3654
    %v3656 = vpop.xlane.xlu0 %3655
    %v3657 = vmul.f32 %v3653, %v1651
    %v3658 = vmul.f32 %v3656, %v1651
    %v3659 = vsub.f32 %v3648, %v3657
    %v3660 = vsub.f32 %v3649, %v3658
    %v3661 = vmul.f32 %v3659, %v3659
    %v3662 = vmul.f32 %v3660, %v3660
    %v3663 = vsel %vm109, %v3661, 0.0
    %3664 = vadd.xlane.f32.xlu0 %v3663
    %v3665 = vpop.xlane.xlu0 %3664
    %v3666 = vsel %vm109, %v3662, 0.0
    %3667 = vadd.xlane.f32.xlu0 %v3666
    %v3668 = vpop.xlane.xlu0 %3667
    %v3669 = vmul.f32 %v3665, %v1651
    %v3670 = vmul.f32 %v3668, %v1651
    %v3671 = vadd.f32 %v3669, 1e-12
    %v3672 = vadd.f32 %v3670, 1e-12
    %v3673 = vrsqrt.pop %v3671
    %v3674 = vrsqrt.pop %v3672
    %v3675 = vmul.f32 %v3659, %v3673
    %v3676 = vmul.f32 %v3660, %v3674
    %3677 = vrot.lane.b32.xlu0 %v3442, 32
    %v3678 = vpop.permute.xlu0 %3677
    %v3680 = vmul.f32 %v3675, %v3678
    %v3681 = vmul.f32 %v3676, %v3678
    %v3683 = vlaneseq
    %v3684 = vshrl.u32 %v3683, 7
    %v3685 = vsub.s32 0, %v3684
    %v3686 = vrot.slane %v3650, %v3685
    %v3688 = vadd.f32 %v3680, %v3686
    %v3689 = vadd.f32 %v3681, %v3686
    %v3690 = vld [vmem:[#allocation7 + $0x10] sm:$0xff]
    %v3691 = vld [vmem:[#allocation7 + $0x30] sm:$0xff]
    %v3692 = vld [vmem:[#allocation7 + $0x50] sm:$0xff]
    %v3693 = vld [vmem:[#allocation7 + $0x70] sm:$0xff]
    %3694 = vrot.lane.b32.xlu0 %v3686, 96
    %v3695 = vpop.permute.xlu0 %3694
    %v3698 = vsel %vm109, %v3688, 0
    %v3701 = vsel %vm109, %v3689, 0
    %3703 = vmatprep.subr.mxu0 0.0
    %3704 = vmatpush1.msra.mxu0 0.0
    %3705 = vmatprep.subr.mxu0 0.0
    %3706 = vmatpush1.msra.mxu0 0.0
    %3707 = vmatprep.subr.mxu0 0.0
    %3708 = vmatpush1.msra.mxu0 0.0
    %3709 = vmatprep.subr.mxu0 0.0
    %3710 = vmatpush1.msra.mxu0 0.0
    %3711 = vmatprep.subr.mxu0 0.0
    %3712 = vmatpush1.msra.mxu0 0.0
    %3713 = vmatprep.subr.mxu0 0.0
    %3714 = vmatpush1.msra.mxu0 0.0
    %3715 = vmatprep.subr.mxu0 0.0
    %3716 = vmatpush1.msra.mxu0 0.0
    %3717 = vmatprep.subr.mxu0 0.0
    %3718 = vmatpush1.msra.mxu0 0.0
    %3719 = vmatprep.subr.mxu0 0.0
    %3720 = vmatpush1.msra.mxu0 0.0
    %3721 = vmatprep.subr.mxu0 0.0
    %3722 = vmatpush1.msra.mxu0 0.0
    %3723 = vmatprep.subr.mxu0 0.0
    %3724 = vmatpush1.msra.mxu0 0.0
    %3725 = vmatprep.subr.mxu0 0.0
    %3726 = vmatpush1.msra.mxu0 0.0
    %3727 = vmatprep.subr.mxu0 0.0
    %3728 = vmatpush1.msra.mxu0 %v3693
    %3729 = vmatprep.subr.mxu0 0.0
    %3730 = vmatpush1.msra.mxu0 %v3692
    %3731 = vmatprep.subr.mxu0 0.0
    %3732 = vmatpush1.msra.mxu0 %v3691
    %3733 = vmatprep.subr.mxu0 0.0
    %3734 = vmatpush1.msra.mxu0 %v3690
    %3735 = vmatprep.subr.mxu0 0.0
    %3736 = vmatpush2.msra.mxu0 0.0
    %3737 = vmatprep.subr.mxu0 0.0
    %3738 = vmatpush2.msra.mxu0 0.0
    %3739 = vmatprep.subr.mxu0 0.0
    %3740 = vmatpush2.msra.mxu0 0.0
    %3741 = vmatprep.subr.mxu0 0.0
    %3742 = vmatpush2.msra.mxu0 0.0
    %3743 = vmatprep.subr.mxu0 0.0
    %3744 = vmatpush2.msra.mxu0 0.0
    %3745 = vmatprep.subr.mxu0 0.0
    %3746 = vmatpush2.msra.mxu0 0.0
    %3747 = vmatprep.subr.mxu0 0.0
    %3748 = vmatpush2.msra.mxu0 0.0
    %3749 = vmatprep.subr.mxu0 0.0
    %3750 = vmatpush2.msra.mxu0 0.0
    %3751 = vmatprep.subr.mxu0 0.0
    %3752 = vmatpush2.msra.mxu0 0.0
    %3753 = vmatprep.subr.mxu0 0.0
    %3754 = vmatpush2.msra.mxu0 0.0
    %3755 = vmatprep.subr.mxu0 0.0
    %3756 = vmatpush2.msra.mxu0 0.0
    %3757 = vmatprep.subr.mxu0 0.0
    %3758 = vmatpush2.msra.mxu0 0.0
    %3759 = vmatprep.subr.mxu0 0.0
    %3760 = vmatpush2.msra.mxu0 0.0
    %3761 = vmatprep.subr.mxu0 0.0
    %3762 = vmatpush2.msra.mxu0 0.0
    %3763 = vmatprep.subr.mxu0 0.0
    %3764 = vmatpush2.msra.mxu0 0.0
    %3765 = vmatprep.subr.mxu0 0.0
    %3766 = vmatpush2.msra.mxu0 0.0
    %3767 = vmatprep.mubr.f32.mxu0 0.0
    %3768 = vmatmul.mubr.f32.gmra.mxu0 %v3698
    %v3769 = vpop.f32.mrf.mxu0
    %v3770 = vadd.f32 %v3695, %v3769
    %v3771 = vpop.f32.mrf.mxu0
    %3772 = vmatprep.mubr.f32.mxu0 0.0
    %3773 = vmatmul.mubr.f32.gmra.mxu0 %v3701
    %v3774 = vpop.f32.mrf.mxu0
    %v3775 = vadd.f32 %v3695, %v3774
    %v3776 = vpop.f32.mrf.mxu0
    %3777 = vdwg.mxu0
    %3779 = vrot.lane.b32.xlu0 %v3770, 96
    %v3780 = vpop.permute.xlu0 %3779
    %v3781 = vsel %vm194, %v3770, 0
    %v3783 = vsel %vm194, %v3780, 0
    %3785 = vmatprep.subr.mxu0 0.0
    %3786 = vmatpush1.xpose.msra.mxu0 0.0
    %3787 = vmatprep.subr.mxu0 0.0
    %3788 = vmatpush1.xpose.msra.mxu0 0.0
    %3789 = vmatprep.subr.mxu0 0.0
    %3790 = vmatpush1.xpose.msra.mxu0 0.0
    %3791 = vmatprep.subr.mxu0 0.0
    %3792 = vmatpush1.xpose.msra.mxu0 0.0
    %3793 = vmatprep.subr.mxu0 0.0
    %3794 = vmatpush1.xpose.msra.mxu0 0.0
    %3795 = vmatprep.subr.mxu0 0.0
    %3796 = vmatpush1.xpose.msra.mxu0 0.0
    %3797 = vmatprep.subr.mxu0 0.0
    %3798 = vmatpush1.xpose.msra.mxu0 0.0
    %3799 = vmatprep.subr.mxu0 0.0
    %3800 = vmatpush1.xpose.msra.mxu0 0.0
    %3801 = vmatprep.subr.mxu0 0.0
    %3802 = vmatpush1.xpose.msra.mxu0 0.0
    %3803 = vmatprep.subr.mxu0 0.0
    %3804 = vmatpush1.xpose.msra.mxu0 0.0
    %3805 = vmatprep.subr.mxu0 0.0
    %3806 = vmatpush1.xpose.msra.mxu0 0.0
    %3807 = vmatprep.subr.mxu0 0.0
    %3808 = vmatpush1.xpose.msra.mxu0 0.0
    %3809 = vmatprep.subr.mxu0 0.0
    %3810 = vmatpush1.xpose.msra.mxu0 0.0
    %3811 = vmatprep.subr.mxu0 0.0
    %3812 = vmatpush1.xpose.msra.mxu0 0.0
    %3813 = vmatprep.subr.mxu0 0.0
    %3814 = vmatpush1.xpose.msra.mxu0 0.0
    %3815 = vmatprep.subr.mxu0 0.0
    %3816 = vmatpush1.xpose.msra.mxu0 %v3783
    %3817 = vmatprep.subr.mxu0 0.0
    %3818 = vmatpush2.xpose.msra.mxu0 0.0
    %3819 = vmatprep.subr.mxu0 0.0
    %3820 = vmatpush2.xpose.msra.mxu0 0.0
    %3821 = vmatprep.subr.mxu0 0.0
    %3822 = vmatpush2.xpose.msra.mxu0 0.0
    %3823 = vmatprep.subr.mxu0 0.0
    %3824 = vmatpush2.xpose.msra.mxu0 0.0
    %3825 = vmatprep.subr.mxu0 0.0
    %3826 = vmatpush2.xpose.msra.mxu0 0.0
    %3827 = vmatprep.subr.mxu0 0.0
    %3828 = vmatpush2.xpose.msra.mxu0 0.0
    %3829 = vmatprep.subr.mxu0 0.0
    %3830 = vmatpush2.xpose.msra.mxu0 0.0
    %3831 = vmatprep.subr.mxu0 0.0
    %3832 = vmatpush2.xpose.msra.mxu0 0.0
    %3833 = vmatprep.subr.mxu0 0.0
    %3834 = vmatpush2.xpose.msra.mxu0 0.0
    %3835 = vmatprep.subr.mxu0 0.0
    %3836 = vmatpush2.xpose.msra.mxu0 0.0
    %3837 = vmatprep.subr.mxu0 0.0
    %3838 = vmatpush2.xpose.msra.mxu0 0.0
    %3839 = vmatprep.subr.mxu0 0.0
    %3840 = vmatpush2.xpose.msra.mxu0 0.0
    %3841 = vmatprep.subr.mxu0 0.0
    %3842 = vmatpush2.xpose.msra.mxu0 0.0
    %3843 = vmatprep.subr.mxu0 0.0
    %3844 = vmatpush2.xpose.msra.mxu0 0.0
    %3845 = vmatprep.subr.mxu0 0.0
    %3846 = vmatpush2.xpose.msra.mxu0 0.0
    %3847 = vmatprep.subr.mxu0 0.0
    %3848 = vmatpush2.xpose.msra.mxu0 0.0
    %3849 = vmatprep.mubr.f32.mxu0 0.0
    %3850 = vmatmul.mubr.f32.gmra.mxu0 %v3781
    %v3851 = vpop.f32.mrf.mxu0
    %v3852 = vadd.f32 0.0, %v3851
    %v3853 = vpop.f32.mrf.mxu0
    %3854 = vdwg.mxu0
    %3855 = vrot.lane.b32.xlu0 %v3770, 120
    %v3856 = vpop.permute.xlu0 %3855
    %3857 = vrot.lane.b32.xlu0 %v3770, 88
    %v3858 = vpop.permute.xlu0 %3857
    %v3859 = vsel %vm194, %v3856, 0
    %v3861 = vsel %vm194, %v3858, 0
    %3863 = vmatprep.subr.mxu0 0.0
    %3864 = vmatpush1.xpose.msra.mxu0 0.0
    %3865 = vmatprep.subr.mxu0 0.0
    %3866 = vmatpush1.xpose.msra.mxu0 0.0
    %3867 = vmatprep.subr.mxu0 0.0
    %3868 = vmatpush1.xpose.msra.mxu0 0.0
    %3869 = vmatprep.subr.mxu0 0.0
    %3870 = vmatpush1.xpose.msra.mxu0 0.0
    %3871 = vmatprep.subr.mxu0 0.0
    %3872 = vmatpush1.xpose.msra.mxu0 0.0
    %3873 = vmatprep.subr.mxu0 0.0
    %3874 = vmatpush1.xpose.msra.mxu0 0.0
    %3875 = vmatprep.subr.mxu0 0.0
    %3876 = vmatpush1.xpose.msra.mxu0 0.0
    %3877 = vmatprep.subr.mxu0 0.0
    %3878 = vmatpush1.xpose.msra.mxu0 0.0
    %3879 = vmatprep.subr.mxu0 0.0
    %3880 = vmatpush1.xpose.msra.mxu0 0.0
    %3881 = vmatprep.subr.mxu0 0.0
    %3882 = vmatpush1.xpose.msra.mxu0 0.0
    %3883 = vmatprep.subr.mxu0 0.0
    %3884 = vmatpush1.xpose.msra.mxu0 0.0
    %3885 = vmatprep.subr.mxu0 0.0
    %3886 = vmatpush1.xpose.msra.mxu0 0.0
    %3887 = vmatprep.subr.mxu0 0.0
    %3888 = vmatpush1.xpose.msra.mxu0 0.0
    %3889 = vmatprep.subr.mxu0 0.0
    %3890 = vmatpush1.xpose.msra.mxu0 0.0
    %3891 = vmatprep.subr.mxu0 0.0
    %3892 = vmatpush1.xpose.msra.mxu0 0.0
    %3893 = vmatprep.subr.mxu0 0.0
    %3894 = vmatpush1.xpose.msra.mxu0 %v3861
    %3895 = vmatprep.subr.mxu0 0.0
    %3896 = vmatpush2.xpose.msra.mxu0 0.0
    %3897 = vmatprep.subr.mxu0 0.0
    %3898 = vmatpush2.xpose.msra.mxu0 0.0
    %3899 = vmatprep.subr.mxu0 0.0
    %3900 = vmatpush2.xpose.msra.mxu0 0.0
    %3901 = vmatprep.subr.mxu0 0.0
    %3902 = vmatpush2.xpose.msra.mxu0 0.0
    %3903 = vmatprep.subr.mxu0 0.0
    %3904 = vmatpush2.xpose.msra.mxu0 0.0
    %3905 = vmatprep.subr.mxu0 0.0
    %3906 = vmatpush2.xpose.msra.mxu0 0.0
    %3907 = vmatprep.subr.mxu0 0.0
    %3908 = vmatpush2.xpose.msra.mxu0 0.0
    %3909 = vmatprep.subr.mxu0 0.0
    %3910 = vmatpush2.xpose.msra.mxu0 0.0
    %3911 = vmatprep.subr.mxu0 0.0
    %3912 = vmatpush2.xpose.msra.mxu0 0.0
    %3913 = vmatprep.subr.mxu0 0.0
    %3914 = vmatpush2.xpose.msra.mxu0 0.0
    %3915 = vmatprep.subr.mxu0 0.0
    %3916 = vmatpush2.xpose.msra.mxu0 0.0
    %3917 = vmatprep.subr.mxu0 0.0
    %3918 = vmatpush2.xpose.msra.mxu0 0.0
    %3919 = vmatprep.subr.mxu0 0.0
    %3920 = vmatpush2.xpose.msra.mxu0 0.0
    %3921 = vmatprep.subr.mxu0 0.0
    %3922 = vmatpush2.xpose.msra.mxu0 0.0
    %3923 = vmatprep.subr.mxu0 0.0
    %3924 = vmatpush2.xpose.msra.mxu0 0.0
    %3925 = vmatprep.subr.mxu0 0.0
    %3926 = vmatpush2.xpose.msra.mxu0 0.0
    %3927 = vmatprep.mubr.f32.mxu0 0.0
    %3928 = vmatmul.mubr.f32.gmra.mxu0 %v3859
    %v3929 = vpop.f32.mrf.mxu0
    %v3930 = vadd.f32 0.0, %v3929
    %v3931 = vpop.f32.mrf.mxu0
    %3932 = vdwg.mxu0
    %3933 = vrot.lane.b32.xlu0 %v3770, 112
    %v3934 = vpop.permute.xlu0 %3933
    %3935 = vrot.lane.b32.xlu0 %v3770, 80
    %v3936 = vpop.permute.xlu0 %3935
    %v3937 = vsel %vm194, %v3934, 0
    %v3939 = vsel %vm194, %v3936, 0
    %3941 = vmatprep.subr.mxu0 0.0
    %3942 = vmatpush1.xpose.msra.mxu0 0.0
    %3943 = vmatprep.subr.mxu0 0.0
    %3944 = vmatpush1.xpose.msra.mxu0 0.0
    %3945 = vmatprep.subr.mxu0 0.0
    %3946 = vmatpush1.xpose.msra.mxu0 0.0
    %3947 = vmatprep.subr.mxu0 0.0
    %3948 = vmatpush1.xpose.msra.mxu0 0.0
    %3949 = vmatprep.subr.mxu0 0.0
    %3950 = vmatpush1.xpose.msra.mxu0 0.0
    %3951 = vmatprep.subr.mxu0 0.0
    %3952 = vmatpush1.xpose.msra.mxu0 0.0
    %3953 = vmatprep.subr.mxu0 0.0
    %3954 = vmatpush1.xpose.msra.mxu0 0.0
    %3955 = vmatprep.subr.mxu0 0.0
    %3956 = vmatpush1.xpose.msra.mxu0 0.0
    %3957 = vmatprep.subr.mxu0 0.0
    %3958 = vmatpush1.xpose.msra.mxu0 0.0
    %3959 = vmatprep.subr.mxu0 0.0
    %3960 = vmatpush1.xpose.msra.mxu0 0.0
    %3961 = vmatprep.subr.mxu0 0.0
    %3962 = vmatpush1.xpose.msra.mxu0 0.0
    %3963 = vmatprep.subr.mxu0 0.0
    %3964 = vmatpush1.xpose.msra.mxu0 0.0
    %3965 = vmatprep.subr.mxu0 0.0
    %3966 = vmatpush1.xpose.msra.mxu0 0.0
    %3967 = vmatprep.subr.mxu0 0.0
    %3968 = vmatpush1.xpose.msra.mxu0 0.0
    %3969 = vmatprep.subr.mxu0 0.0
    %3970 = vmatpush1.xpose.msra.mxu0 0.0
    %3971 = vmatprep.subr.mxu0 0.0
    %3972 = vmatpush1.xpose.msra.mxu0 %v3939
    %3973 = vmatprep.subr.mxu0 0.0
    %3974 = vmatpush2.xpose.msra.mxu0 0.0
    %3975 = vmatprep.subr.mxu0 0.0
    %3976 = vmatpush2.xpose.msra.mxu0 0.0
    %3977 = vmatprep.subr.mxu0 0.0
    %3978 = vmatpush2.xpose.msra.mxu0 0.0
    %3979 = vmatprep.subr.mxu0 0.0
    %3980 = vmatpush2.xpose.msra.mxu0 0.0
    %3981 = vmatprep.subr.mxu0 0.0
    %3982 = vmatpush2.xpose.msra.mxu0 0.0
    %3983 = vmatprep.subr.mxu0 0.0
    %3984 = vmatpush2.xpose.msra.mxu0 0.0
    %3985 = vmatprep.subr.mxu0 0.0
    %3986 = vmatpush2.xpose.msra.mxu0 0.0
    %3987 = vmatprep.subr.mxu0 0.0
    %3988 = vmatpush2.xpose.msra.mxu0 0.0
    %3989 = vmatprep.subr.mxu0 0.0
    %3990 = vmatpush2.xpose.msra.mxu0 0.0
    %3991 = vmatprep.subr.mxu0 0.0
    %3992 = vmatpush2.xpose.msra.mxu0 0.0
    %3993 = vmatprep.subr.mxu0 0.0
    %3994 = vmatpush2.xpose.msra.mxu0 0.0
    %3995 = vmatprep.subr.mxu0 0.0
    %3996 = vmatpush2.xpose.msra.mxu0 0.0
    %3997 = vmatprep.subr.mxu0 0.0
    %3998 = vmatpush2.xpose.msra.mxu0 0.0
    %3999 = vmatprep.subr.mxu0 0.0
    %4000 = vmatpush2.xpose.msra.mxu0 0.0
    %4001 = vmatprep.subr.mxu0 0.0
    %4002 = vmatpush2.xpose.msra.mxu0 0.0
    %4003 = vmatprep.subr.mxu0 0.0
    %4004 = vmatpush2.xpose.msra.mxu0 0.0
    %4005 = vmatprep.mubr.f32.mxu0 0.0
    %4006 = vmatmul.mubr.f32.gmra.mxu0 %v3937
    %v4007 = vpop.f32.mrf.mxu0
    %v4008 = vadd.f32 0.0, %v4007
    %v4009 = vpop.f32.mrf.mxu0
    %4010 = vdwg.mxu0
    %4011 = vrot.lane.b32.xlu0 %v3770, 104
    %v4012 = vpop.permute.xlu0 %4011
    %4013 = vrot.lane.b32.xlu0 %v3770, 72
    %v4014 = vpop.permute.xlu0 %4013
    %v4015 = vsel %vm194, %v4012, 0
    %v4017 = vsel %vm194, %v4014, 0
    %4019 = vmatprep.subr.mxu0 0.0
    %4020 = vmatpush1.xpose.msra.mxu0 0.0
    %4021 = vmatprep.subr.mxu0 0.0
    %4022 = vmatpush1.xpose.msra.mxu0 0.0
    %4023 = vmatprep.subr.mxu0 0.0
    %4024 = vmatpush1.xpose.msra.mxu0 0.0
    %4025 = vmatprep.subr.mxu0 0.0
    %4026 = vmatpush1.xpose.msra.mxu0 0.0
    %4027 = vmatprep.subr.mxu0 0.0
    %4028 = vmatpush1.xpose.msra.mxu0 0.0
    %4029 = vmatprep.subr.mxu0 0.0
    %4030 = vmatpush1.xpose.msra.mxu0 0.0
    %4031 = vmatprep.subr.mxu0 0.0
    %4032 = vmatpush1.xpose.msra.mxu0 0.0
    %4033 = vmatprep.subr.mxu0 0.0
    %4034 = vmatpush1.xpose.msra.mxu0 0.0
    %4035 = vmatprep.subr.mxu0 0.0
    %4036 = vmatpush1.xpose.msra.mxu0 0.0
    %4037 = vmatprep.subr.mxu0 0.0
    %4038 = vmatpush1.xpose.msra.mxu0 0.0
    %4039 = vmatprep.subr.mxu0 0.0
    %4040 = vmatpush1.xpose.msra.mxu0 0.0
    %4041 = vmatprep.subr.mxu0 0.0
    %4042 = vmatpush1.xpose.msra.mxu0 0.0
    %4043 = vmatprep.subr.mxu0 0.0
    %4044 = vmatpush1.xpose.msra.mxu0 0.0
    %4045 = vmatprep.subr.mxu0 0.0
    %4046 = vmatpush1.xpose.msra.mxu0 0.0
    %4047 = vmatprep.subr.mxu0 0.0
    %4048 = vmatpush1.xpose.msra.mxu0 0.0
    %4049 = vmatprep.subr.mxu0 0.0
    %4050 = vmatpush1.xpose.msra.mxu0 %v4017
    %4051 = vmatprep.subr.mxu0 0.0
    %4052 = vmatpush2.xpose.msra.mxu0 0.0
    %4053 = vmatprep.subr.mxu0 0.0
    %4054 = vmatpush2.xpose.msra.mxu0 0.0
    %4055 = vmatprep.subr.mxu0 0.0
    %4056 = vmatpush2.xpose.msra.mxu0 0.0
    %4057 = vmatprep.subr.mxu0 0.0
    %4058 = vmatpush2.xpose.msra.mxu0 0.0
    %4059 = vmatprep.subr.mxu0 0.0
    %4060 = vmatpush2.xpose.msra.mxu0 0.0
    %4061 = vmatprep.subr.mxu0 0.0
    %4062 = vmatpush2.xpose.msra.mxu0 0.0
    %4063 = vmatprep.subr.mxu0 0.0
    %4064 = vmatpush2.xpose.msra.mxu0 0.0
    %4065 = vmatprep.subr.mxu0 0.0
    %4066 = vmatpush2.xpose.msra.mxu0 0.0
    %4067 = vmatprep.subr.mxu0 0.0
    %4068 = vmatpush2.xpose.msra.mxu0 0.0
    %4069 = vmatprep.subr.mxu0 0.0
    %4070 = vmatpush2.xpose.msra.mxu0 0.0
    %4071 = vmatprep.subr.mxu0 0.0
    %4072 = vmatpush2.xpose.msra.mxu0 0.0
    %4073 = vmatprep.subr.mxu0 0.0
    %4074 = vmatpush2.xpose.msra.mxu0 0.0
    %4075 = vmatprep.subr.mxu0 0.0
    %4076 = vmatpush2.xpose.msra.mxu0 0.0
    %4077 = vmatprep.subr.mxu0 0.0
    %4078 = vmatpush2.xpose.msra.mxu0 0.0
    %4079 = vmatprep.subr.mxu0 0.0
    %4080 = vmatpush2.xpose.msra.mxu0 0.0
    %4081 = vmatprep.subr.mxu0 0.0
    %4082 = vmatpush2.xpose.msra.mxu0 0.0
    %4083 = vmatprep.mubr.f32.mxu0 0.0
    %4084 = vmatmul.mubr.f32.gmra.mxu0 %v4015
    %v4085 = vpop.f32.mrf.mxu0
    %v4086 = vadd.f32 0.0, %v4085
    %v4087 = vpop.f32.mrf.mxu0
    %4088 = vdwg.mxu0
    %4090 = vrot.lane.b32.xlu0 %v3775, 96
    %v4091 = vpop.permute.xlu0 %4090
    %v4092 = vsel %vm194, %v3775, 0
    %v4094 = vsel %vm194, %v4091, 0
    %4096 = vmatprep.subr.mxu0 0.0
    %4097 = vmatpush1.xpose.msra.mxu0 0.0
    %4098 = vmatprep.subr.mxu0 0.0
    %4099 = vmatpush1.xpose.msra.mxu0 0.0
    %4100 = vmatprep.subr.mxu0 0.0
    %4101 = vmatpush1.xpose.msra.mxu0 0.0
    %4102 = vmatprep.subr.mxu0 0.0
    %4103 = vmatpush1.xpose.msra.mxu0 0.0
    %4104 = vmatprep.subr.mxu0 0.0
    %4105 = vmatpush1.xpose.msra.mxu0 0.0
    %4106 = vmatprep.subr.mxu0 0.0
    %4107 = vmatpush1.xpose.msra.mxu0 0.0
    %4108 = vmatprep.subr.mxu0 0.0
    %4109 = vmatpush1.xpose.msra.mxu0 0.0
    %4110 = vmatprep.subr.mxu0 0.0
    %4111 = vmatpush1.xpose.msra.mxu0 0.0
    %4112 = vmatprep.subr.mxu0 0.0
    %4113 = vmatpush1.xpose.msra.mxu0 0.0
    %4114 = vmatprep.subr.mxu0 0.0
    %4115 = vmatpush1.xpose.msra.mxu0 0.0
    %4116 = vmatprep.subr.mxu0 0.0
    %4117 = vmatpush1.xpose.msra.mxu0 0.0
    %4118 = vmatprep.subr.mxu0 0.0
    %4119 = vmatpush1.xpose.msra.mxu0 0.0
    %4120 = vmatprep.subr.mxu0 0.0
    %4121 = vmatpush1.xpose.msra.mxu0 0.0
    %4122 = vmatprep.subr.mxu0 0.0
    %4123 = vmatpush1.xpose.msra.mxu0 0.0
    %4124 = vmatprep.subr.mxu0 0.0
    %4125 = vmatpush1.xpose.msra.mxu0 0.0
    %4126 = vmatprep.subr.mxu0 0.0
    %4127 = vmatpush1.xpose.msra.mxu0 %v4094
    %4128 = vmatprep.subr.mxu0 0.0
    %4129 = vmatpush2.xpose.msra.mxu0 0.0
    %4130 = vmatprep.subr.mxu0 0.0
    %4131 = vmatpush2.xpose.msra.mxu0 0.0
    %4132 = vmatprep.subr.mxu0 0.0
    %4133 = vmatpush2.xpose.msra.mxu0 0.0
    %4134 = vmatprep.subr.mxu0 0.0
    %4135 = vmatpush2.xpose.msra.mxu0 0.0
    %4136 = vmatprep.subr.mxu0 0.0
    %4137 = vmatpush2.xpose.msra.mxu0 0.0
    %4138 = vmatprep.subr.mxu0 0.0
    %4139 = vmatpush2.xpose.msra.mxu0 0.0
    %4140 = vmatprep.subr.mxu0 0.0
    %4141 = vmatpush2.xpose.msra.mxu0 0.0
    %4142 = vmatprep.subr.mxu0 0.0
    %4143 = vmatpush2.xpose.msra.mxu0 0.0
    %4144 = vmatprep.subr.mxu0 0.0
    %4145 = vmatpush2.xpose.msra.mxu0 0.0
    %4146 = vmatprep.subr.mxu0 0.0
    %4147 = vmatpush2.xpose.msra.mxu0 0.0
    %4148 = vmatprep.subr.mxu0 0.0
    %4149 = vmatpush2.xpose.msra.mxu0 0.0
    %4150 = vmatprep.subr.mxu0 0.0
    %4151 = vmatpush2.xpose.msra.mxu0 0.0
    %4152 = vmatprep.subr.mxu0 0.0
    %4153 = vmatpush2.xpose.msra.mxu0 0.0
    %4154 = vmatprep.subr.mxu0 0.0
    %4155 = vmatpush2.xpose.msra.mxu0 0.0
    %4156 = vmatprep.subr.mxu0 0.0
    %4157 = vmatpush2.xpose.msra.mxu0 0.0
    %4158 = vmatprep.subr.mxu0 0.0
    %4159 = vmatpush2.xpose.msra.mxu0 0.0
    %4160 = vmatprep.mubr.f32.mxu0 0.0
    %4161 = vmatmul.mubr.f32.gmra.mxu0 %v4092
    %v4162 = vpop.f32.mrf.mxu0
    %v4163 = vadd.f32 0.0, %v4162
    %v4164 = vpop.f32.mrf.mxu0
    %4165 = vdwg.mxu0
    %4166 = vrot.lane.b32.xlu0 %v3775, 120
    %v4167 = vpop.permute.xlu0 %4166
    %4168 = vrot.lane.b32.xlu0 %v3775, 88
    %v4169 = vpop.permute.xlu0 %4168
    %v4170 = vsel %vm194, %v4167, 0
    %v4172 = vsel %vm194, %v4169, 0
    %4174 = vmatprep.subr.mxu0 0.0
    %4175 = vmatpush1.xpose.msra.mxu0 0.0
    %4176 = vmatprep.subr.mxu0 0.0
    %4177 = vmatpush1.xpose.msra.mxu0 0.0
    %4178 = vmatprep.subr.mxu0 0.0
    %4179 = vmatpush1.xpose.msra.mxu0 0.0
    %4180 = vmatprep.subr.mxu0 0.0
    %4181 = vmatpush1.xpose.msra.mxu0 0.0
    %4182 = vmatprep.subr.mxu0 0.0
    %4183 = vmatpush1.xpose.msra.mxu0 0.0
    %4184 = vmatprep.subr.mxu0 0.0
    %4185 = vmatpush1.xpose.msra.mxu0 0.0
    %4186 = vmatprep.subr.mxu0 0.0
    %4187 = vmatpush1.xpose.msra.mxu0 0.0
    %4188 = vmatprep.subr.mxu0 0.0
    %4189 = vmatpush1.xpose.msra.mxu0 0.0
    %4190 = vmatprep.subr.mxu0 0.0
    %4191 = vmatpush1.xpose.msra.mxu0 0.0
    %4192 = vmatprep.subr.mxu0 0.0
    %4193 = vmatpush1.xpose.msra.mxu0 0.0
    %4194 = vmatprep.subr.mxu0 0.0
    %4195 = vmatpush1.xpose.msra.mxu0 0.0
    %4196 = vmatprep.subr.mxu0 0.0
    %4197 = vmatpush1.xpose.msra.mxu0 0.0
    %4198 = vmatprep.subr.mxu0 0.0
    %4199 = vmatpush1.xpose.msra.mxu0 0.0
    %4200 = vmatprep.subr.mxu0 0.0
    %4201 = vmatpush1.xpose.msra.mxu0 0.0
    %4202 = vmatprep.subr.mxu0 0.0
    %4203 = vmatpush1.xpose.msra.mxu0 0.0
    %4204 = vmatprep.subr.mxu0 0.0
    %4205 = vmatpush1.xpose.msra.mxu0 %v4172
    %4206 = vmatprep.subr.mxu0 0.0
    %4207 = vmatpush2.xpose.msra.mxu0 0.0
    %4208 = vmatprep.subr.mxu0 0.0
    %4209 = vmatpush2.xpose.msra.mxu0 0.0
    %4210 = vmatprep.subr.mxu0 0.0
    %4211 = vmatpush2.xpose.msra.mxu0 0.0
    %4212 = vmatprep.subr.mxu0 0.0
    %4213 = vmatpush2.xpose.msra.mxu0 0.0
    %4214 = vmatprep.subr.mxu0 0.0
    %4215 = vmatpush2.xpose.msra.mxu0 0.0
    %4216 = vmatprep.subr.mxu0 0.0
    %4217 = vmatpush2.xpose.msra.mxu0 0.0
    %4218 = vmatprep.subr.mxu0 0.0
    %4219 = vmatpush2.xpose.msra.mxu0 0.0
    %4220 = vmatprep.subr.mxu0 0.0
    %4221 = vmatpush2.xpose.msra.mxu0 0.0
    %4222 = vmatprep.subr.mxu0 0.0
    %4223 = vmatpush2.xpose.msra.mxu0 0.0
    %4224 = vmatprep.subr.mxu0 0.0
    %4225 = vmatpush2.xpose.msra.mxu0 0.0
    %4226 = vmatprep.subr.mxu0 0.0
    %4227 = vmatpush2.xpose.msra.mxu0 0.0
    %4228 = vmatprep.subr.mxu0 0.0
    %4229 = vmatpush2.xpose.msra.mxu0 0.0
    %4230 = vmatprep.subr.mxu0 0.0
    %4231 = vmatpush2.xpose.msra.mxu0 0.0
    %4232 = vmatprep.subr.mxu0 0.0
    %4233 = vmatpush2.xpose.msra.mxu0 0.0
    %4234 = vmatprep.subr.mxu0 0.0
    %4235 = vmatpush2.xpose.msra.mxu0 0.0
    %4236 = vmatprep.subr.mxu0 0.0
    %4237 = vmatpush2.xpose.msra.mxu0 0.0
    %4238 = vmatprep.mubr.f32.mxu0 0.0
    %4239 = vmatmul.mubr.f32.gmra.mxu0 %v4170
    %v4240 = vpop.f32.mrf.mxu0
    %v4241 = vadd.f32 0.0, %v4240
    %v4242 = vpop.f32.mrf.mxu0
    %4243 = vdwg.mxu0
    %4244 = vrot.lane.b32.xlu0 %v3775, 112
    %v4245 = vpop.permute.xlu0 %4244
    %4246 = vrot.lane.b32.xlu0 %v3775, 80
    %v4247 = vpop.permute.xlu0 %4246
    %v4248 = vsel %vm194, %v4245, 0
    %v4250 = vsel %vm194, %v4247, 0
    %4252 = vmatprep.subr.mxu0 0.0
    %4253 = vmatpush1.xpose.msra.mxu0 0.0
    %4254 = vmatprep.subr.mxu0 0.0
    %4255 = vmatpush1.xpose.msra.mxu0 0.0
    %4256 = vmatprep.subr.mxu0 0.0
    %4257 = vmatpush1.xpose.msra.mxu0 0.0
    %4258 = vmatprep.subr.mxu0 0.0
    %4259 = vmatpush1.xpose.msra.mxu0 0.0
    %4260 = vmatprep.subr.mxu0 0.0
    %4261 = vmatpush1.xpose.msra.mxu0 0.0
    %4262 = vmatprep.subr.mxu0 0.0
    %4263 = vmatpush1.xpose.msra.mxu0 0.0
    %4264 = vmatprep.subr.mxu0 0.0
    %4265 = vmatpush1.xpose.msra.mxu0 0.0
    %4266 = vmatprep.subr.mxu0 0.0
    %4267 = vmatpush1.xpose.msra.mxu0 0.0
    %4268 = vmatprep.subr.mxu0 0.0
    %4269 = vmatpush1.xpose.msra.mxu0 0.0
    %4270 = vmatprep.subr.mxu0 0.0
    %4271 = vmatpush1.xpose.msra.mxu0 0.0
    %4272 = vmatprep.subr.mxu0 0.0
    %4273 = vmatpush1.xpose.msra.mxu0 0.0
    %4274 = vmatprep.subr.mxu0 0.0
    %4275 = vmatpush1.xpose.msra.mxu0 0.0
    %4276 = vmatprep.subr.mxu0 0.0
    %4277 = vmatpush1.xpose.msra.mxu0 0.0
    %4278 = vmatprep.subr.mxu0 0.0
    %4279 = vmatpush1.xpose.msra.mxu0 0.0
    %4280 = vmatprep.subr.mxu0 0.0
    %4281 = vmatpush1.xpose.msra.mxu0 0.0
    %4282 = vmatprep.subr.mxu0 0.0
    %4283 = vmatpush1.xpose.msra.mxu0 %v4250
    %4284 = vmatprep.subr.mxu0 0.0
    %4285 = vmatpush2.xpose.msra.mxu0 0.0
    %4286 = vmatprep.subr.mxu0 0.0
    %4287 = vmatpush2.xpose.msra.mxu0 0.0
    %4288 = vmatprep.subr.mxu0 0.0
    %4289 = vmatpush2.xpose.msra.mxu0 0.0
    %4290 = vmatprep.subr.mxu0 0.0
    %4291 = vmatpush2.xpose.msra.mxu0 0.0
    %4292 = vmatprep.subr.mxu0 0.0
    %4293 = vmatpush2.xpose.msra.mxu0 0.0
    %4294 = vmatprep.subr.mxu0 0.0
    %4295 = vmatpush2.xpose.msra.mxu0 0.0
    %4296 = vmatprep.subr.mxu0 0.0
    %4297 = vmatpush2.xpose.msra.mxu0 0.0
    %4298 = vmatprep.subr.mxu0 0.0
    %4299 = vmatpush2.xpose.msra.mxu0 0.0
    %4300 = vmatprep.subr.mxu0 0.0
    %4301 = vmatpush2.xpose.msra.mxu0 0.0
    %4302 = vmatprep.subr.mxu0 0.0
    %4303 = vmatpush2.xpose.msra.mxu0 0.0
    %4304 = vmatprep.subr.mxu0 0.0
    %4305 = vmatpush2.xpose.msra.mxu0 0.0
    %4306 = vmatprep.subr.mxu0 0.0
    %4307 = vmatpush2.xpose.msra.mxu0 0.0
    %4308 = vmatprep.subr.mxu0 0.0
    %4309 = vmatpush2.xpose.msra.mxu0 0.0
    %4310 = vmatprep.subr.mxu0 0.0
    %4311 = vmatpush2.xpose.msra.mxu0 0.0
    %4312 = vmatprep.subr.mxu0 0.0
    %4313 = vmatpush2.xpose.msra.mxu0 0.0
    %4314 = vmatprep.subr.mxu0 0.0
    %4315 = vmatpush2.xpose.msra.mxu0 0.0
    %4316 = vmatprep.mubr.f32.mxu0 0.0
    %4317 = vmatmul.mubr.f32.gmra.mxu0 %v4248
    %v4318 = vpop.f32.mrf.mxu0
    %v4319 = vadd.f32 0.0, %v4318
    %v4320 = vpop.f32.mrf.mxu0
    %4321 = vdwg.mxu0
    %4322 = vrot.lane.b32.xlu0 %v3775, 104
    %v4323 = vpop.permute.xlu0 %4322
    %4324 = vrot.lane.b32.xlu0 %v3775, 72
    %v4325 = vpop.permute.xlu0 %4324
    %v4326 = vsel %vm194, %v4323, 0
    %v4328 = vsel %vm194, %v4325, 0
    %4330 = vmatprep.subr.mxu0 0.0
    %4331 = vmatpush1.xpose.msra.mxu0 0.0
    %4332 = vmatprep.subr.mxu0 0.0
    %4333 = vmatpush1.xpose.msra.mxu0 0.0
    %4334 = vmatprep.subr.mxu0 0.0
    %4335 = vmatpush1.xpose.msra.mxu0 0.0
    %4336 = vmatprep.subr.mxu0 0.0
    %4337 = vmatpush1.xpose.msra.mxu0 0.0
    %4338 = vmatprep.subr.mxu0 0.0
    %4339 = vmatpush1.xpose.msra.mxu0 0.0
    %4340 = vmatprep.subr.mxu0 0.0
    %4341 = vmatpush1.xpose.msra.mxu0 0.0
    %4342 = vmatprep.subr.mxu0 0.0
    %4343 = vmatpush1.xpose.msra.mxu0 0.0
    %4344 = vmatprep.subr.mxu0 0.0
    %4345 = vmatpush1.xpose.msra.mxu0 0.0
    %4346 = vmatprep.subr.mxu0 0.0
    %4347 = vmatpush1.xpose.msra.mxu0 0.0
    %4348 = vmatprep.subr.mxu0 0.0
    %4349 = vmatpush1.xpose.msra.mxu0 0.0
    %4350 = vmatprep.subr.mxu0 0.0
    %4351 = vmatpush1.xpose.msra.mxu0 0.0
    %4352 = vmatprep.subr.mxu0 0.0
    %4353 = vmatpush1.xpose.msra.mxu0 0.0
    %4354 = vmatprep.subr.mxu0 0.0
    %4355 = vmatpush1.xpose.msra.mxu0 0.0
    %4356 = vmatprep.subr.mxu0 0.0
    %4357 = vmatpush1.xpose.msra.mxu0 0.0
    %4358 = vmatprep.subr.mxu0 0.0
    %4359 = vmatpush1.xpose.msra.mxu0 0.0
    %4360 = vmatprep.subr.mxu0 0.0
    %4361 = vmatpush1.xpose.msra.mxu0 %v4328
    %4362 = vmatprep.subr.mxu0 0.0
    %4363 = vmatpush2.xpose.msra.mxu0 0.0
    %4364 = vmatprep.subr.mxu0 0.0
    %4365 = vmatpush2.xpose.msra.mxu0 0.0
    %4366 = vmatprep.subr.mxu0 0.0
    %4367 = vmatpush2.xpose.msra.mxu0 0.0
    %4368 = vmatprep.subr.mxu0 0.0
    %4369 = vmatpush2.xpose.msra.mxu0 0.0
    %4370 = vmatprep.subr.mxu0 0.0
    %4371 = vmatpush2.xpose.msra.mxu0 0.0
    %4372 = vmatprep.subr.mxu0 0.0
    %4373 = vmatpush2.xpose.msra.mxu0 0.0
    %4374 = vmatprep.subr.mxu0 0.0
    %4375 = vmatpush2.xpose.msra.mxu0 0.0
    %4376 = vmatprep.subr.mxu0 0.0
    %4377 = vmatpush2.xpose.msra.mxu0 0.0
    %4378 = vmatprep.subr.mxu0 0.0
    %4379 = vmatpush2.xpose.msra.mxu0 0.0
    %4380 = vmatprep.subr.mxu0 0.0
    %4381 = vmatpush2.xpose.msra.mxu0 0.0
    %4382 = vmatprep.subr.mxu0 0.0
    %4383 = vmatpush2.xpose.msra.mxu0 0.0
    %4384 = vmatprep.subr.mxu0 0.0
    %4385 = vmatpush2.xpose.msra.mxu0 0.0
    %4386 = vmatprep.subr.mxu0 0.0
    %4387 = vmatpush2.xpose.msra.mxu0 0.0
    %4388 = vmatprep.subr.mxu0 0.0
    %4389 = vmatpush2.xpose.msra.mxu0 0.0
    %4390 = vmatprep.subr.mxu0 0.0
    %4391 = vmatpush2.xpose.msra.mxu0 0.0
    %4392 = vmatprep.subr.mxu0 0.0
    %4393 = vmatpush2.xpose.msra.mxu0 0.0
    %4394 = vmatprep.mubr.f32.mxu0 0.0
    %4395 = vmatmul.mubr.f32.gmra.mxu0 %v4326
    %v4396 = vpop.f32.mrf.mxu0
    %v4397 = vadd.f32 0.0, %v4396
    %v4398 = vpop.f32.mrf.mxu0
    %4399 = vdwg.mxu0
    %v4400 = vsel %vm194, %v3852, -inf
    %4401 = vmax.xlane.f32.xlu0 %v4400
    %v4402 = vpop.xlane.xlu0 %4401
    %v4403 = vsel %vm194, %v3930, -inf
    %4404 = vmax.xlane.f32.xlu0 %v4403
    %v4405 = vpop.xlane.xlu0 %4404
    %v4406 = vsel %vm194, %v4008, -inf
    %4407 = vmax.xlane.f32.xlu0 %v4406
    %v4408 = vpop.xlane.xlu0 %4407
    %v4409 = vsel %vm194, %v4086, -inf
    %4410 = vmax.xlane.f32.xlu0 %v4409
    %v4411 = vpop.xlane.xlu0 %4410
    %v4412 = vsel %vm194, %v4163, -inf
    %4413 = vmax.xlane.f32.xlu0 %v4412
    %v4414 = vpop.xlane.xlu0 %4413
    %v4415 = vsel %vm194, %v4241, -inf
    %4416 = vmax.xlane.f32.xlu0 %v4415
    %v4417 = vpop.xlane.xlu0 %4416
    %v4418 = vsel %vm194, %v4319, -inf
    %4419 = vmax.xlane.f32.xlu0 %v4418
    %v4420 = vpop.xlane.xlu0 %4419
    %v4421 = vsel %vm194, %v4397, -inf
    %4422 = vmax.xlane.f32.xlu0 %v4421
    %v4423 = vpop.xlane.xlu0 %4422
    %v4424 = vsub.f32 %v3852, %v4402
    %v4425 = vsub.f32 %v3930, %v4405
    %v4426 = vsub.f32 %v4008, %v4408
    %v4427 = vsub.f32 %v4086, %v4411
    %v4428 = vsub.f32 %v4163, %v4414
    %v4429 = vsub.f32 %v4241, %v4417
    %v4430 = vsub.f32 %v4319, %v4420
    %v4431 = vsub.f32 %v4397, %v4423
    %v4432 = vmul.f32 %v4424, 1.442695
    %v4433 = vpow.pop %v4432
    %v4434 = vmul.f32 %v4425, 1.442695
    %v4435 = vpow.pop %v4434
    %v4436 = vmul.f32 %v4426, 1.442695
    %v4437 = vpow.pop %v4436
    %v4438 = vmul.f32 %v4427, 1.442695
    %v4439 = vpow.pop %v4438
    %v4440 = vmul.f32 %v4428, 1.442695
    %v4441 = vpow.pop %v4440
    %v4442 = vmul.f32 %v4429, 1.442695
    %v4443 = vpow.pop %v4442
    %v4444 = vmul.f32 %v4430, 1.442695
    %v4445 = vpow.pop %v4444
    %v4446 = vmul.f32 %v4431, 1.442695
    %v4447 = vpow.pop %v4446
    %v4448 = vsel %vm194, %v4433, 0.0
    %4449 = vadd.xlane.f32.xlu0 %v4448
    %v4450 = vpop.xlane.xlu0 %4449
    %v4451 = vsel %vm194, %v4435, 0.0
    %4452 = vadd.xlane.f32.xlu0 %v4451
    %v4453 = vpop.xlane.xlu0 %4452
    %v4454 = vsel %vm194, %v4437, 0.0
    %4455 = vadd.xlane.f32.xlu0 %v4454
    %v4456 = vpop.xlane.xlu0 %4455
    %v4457 = vsel %vm194, %v4439, 0.0
    %4458 = vadd.xlane.f32.xlu0 %v4457
    %v4459 = vpop.xlane.xlu0 %4458
    %v4460 = vsel %vm194, %v4441, 0.0
    %4461 = vadd.xlane.f32.xlu0 %v4460
    %v4462 = vpop.xlane.xlu0 %4461
    %v4463 = vsel %vm194, %v4443, 0.0
    %4464 = vadd.xlane.f32.xlu0 %v4463
    %v4465 = vpop.xlane.xlu0 %4464
    %v4466 = vsel %vm194, %v4445, 0.0
    %4467 = vadd.xlane.f32.xlu0 %v4466
    %v4468 = vpop.xlane.xlu0 %4467
    %v4469 = vsel %vm194, %v4447, 0.0
    %4470 = vadd.xlane.f32.xlu0 %v4469
    %v4471 = vpop.xlane.xlu0 %4470
    %v4472 = vrcp.pop %v4450
    %v4473 = vmul.f32 %v4433, %v4472
    %v4474 = vrcp.pop %v4453
    %v4475 = vmul.f32 %v4435, %v4474
    %v4476 = vrcp.pop %v4456
    %v4477 = vmul.f32 %v4437, %v4476
    %v4478 = vrcp.pop %v4459
    %v4479 = vmul.f32 %v4439, %v4478
    %v4480 = vrcp.pop %v4462
    %v4481 = vmul.f32 %v4441, %v4480
    %v4482 = vrcp.pop %v4465
    %v4483 = vmul.f32 %v4443, %v4482
    %v4484 = vrcp.pop %v4468
    %v4485 = vmul.f32 %v4445, %v4484
    %v4486 = vrcp.pop %v4471
    %v4487 = vmul.f32 %v4447, %v4486
    %4488 = vrot.lane.b32.xlu0 %v3770, 64
    %v4489 = vpop.permute.xlu0 %4488
    %v4492 = vsel %vm194, %v4473, 0
    %4494 = vmatprep.subr.mxu0 0.0
    %4495 = vmatpush1.msra.mxu0 0.0
    %4496 = vmatprep.subr.mxu0 0.0
    %4497 = vmatpush1.msra.mxu0 0.0
    %4498 = vmatprep.subr.mxu0 0.0
    %4499 = vmatpush1.msra.mxu0 0.0
    %4500 = vmatprep.subr.mxu0 0.0
    %4501 = vmatpush1.msra.mxu0 0.0
    %4502 = vmatprep.subr.mxu0 0.0
    %4503 = vmatpush1.msra.mxu0 0.0
    %4504 = vmatprep.subr.mxu0 0.0
    %4505 = vmatpush1.msra.mxu0 0.0
    %4506 = vmatprep.subr.mxu0 0.0
    %4507 = vmatpush1.msra.mxu0 0.0
    %4508 = vmatprep.subr.mxu0 0.0
    %4509 = vmatpush1.msra.mxu0 0.0
    %4510 = vmatprep.subr.mxu0 0.0
    %4511 = vmatpush1.msra.mxu0 0.0
    %4512 = vmatprep.subr.mxu0 0.0
    %4513 = vmatpush1.msra.mxu0 0.0
    %4514 = vmatprep.subr.mxu0 0.0
    %4515 = vmatpush1.msra.mxu0 0.0
    %4516 = vmatprep.subr.mxu0 0.0
    %4517 = vmatpush1.msra.mxu0 0.0
    %4518 = vmatprep.subr.mxu0 0.0
    %4519 = vmatpush1.msra.mxu0 0.0
    %4520 = vmatprep.subr.mxu0 0.0
    %4521 = vmatpush1.msra.mxu0 0.0
    %4522 = vmatprep.subr.mxu0 0.0
    %4523 = vmatpush1.msra.mxu0 0.0
    %4524 = vmatprep.subr.mxu0 0.0
    %4525 = vmatpush1.msra.mxu0 %v4489
    %4526 = vmatprep.subr.mxu0 0.0
    %4527 = vmatpush2.msra.mxu0 0.0
    %4528 = vmatprep.subr.mxu0 0.0
    %4529 = vmatpush2.msra.mxu0 0.0
    %4530 = vmatprep.subr.mxu0 0.0
    %4531 = vmatpush2.msra.mxu0 0.0
    %4532 = vmatprep.subr.mxu0 0.0
    %4533 = vmatpush2.msra.mxu0 0.0
    %4534 = vmatprep.subr.mxu0 0.0
    %4535 = vmatpush2.msra.mxu0 0.0
    %4536 = vmatprep.subr.mxu0 0.0
    %4537 = vmatpush2.msra.mxu0 0.0
    %4538 = vmatprep.subr.mxu0 0.0
    %4539 = vmatpush2.msra.mxu0 0.0
    %4540 = vmatprep.subr.mxu0 0.0
    %4541 = vmatpush2.msra.mxu0 0.0
    %4542 = vmatprep.subr.mxu0 0.0
    %4543 = vmatpush2.msra.mxu0 0.0
    %4544 = vmatprep.subr.mxu0 0.0
    %4545 = vmatpush2.msra.mxu0 0.0
    %4546 = vmatprep.subr.mxu0 0.0
    %4547 = vmatpush2.msra.mxu0 0.0
    %4548 = vmatprep.subr.mxu0 0.0
    %4549 = vmatpush2.msra.mxu0 0.0
    %4550 = vmatprep.subr.mxu0 0.0
    %4551 = vmatpush2.msra.mxu0 0.0
    %4552 = vmatprep.subr.mxu0 0.0
    %4553 = vmatpush2.msra.mxu0 0.0
    %4554 = vmatprep.subr.mxu0 0.0
    %4555 = vmatpush2.msra.mxu0 0.0
    %4556 = vmatprep.subr.mxu0 0.0
    %4557 = vmatpush2.msra.mxu0 0.0
    %4558 = vmatprep.mubr.f32.mxu0 0.0
    %4559 = vmatmul.mubr.f32.gmra.mxu0 %v4492
    %v4560 = vpop.f32.mrf.mxu0
    %v4561 = vadd.f32 0.0, %v4560
    %v4562 = vpop.f32.mrf.mxu0
    %4563 = vdwg.mxu0
    %4564 = vrot.lane.b32.xlu0 %v3770, 56
    %v4565 = vpop.permute.xlu0 %4564
    %v4568 = vsel %vm194, %v4475, 0
    %4570 = vmatprep.subr.mxu0 0.0
    %4571 = vmatpush1.msra.mxu0 0.0
    %4572 = vmatprep.subr.mxu0 0.0
    %4573 = vmatpush1.msra.mxu0 0.0
    %4574 = vmatprep.subr.mxu0 0.0
    %4575 = vmatpush1.msra.mxu0 0.0
    %4576 = vmatprep.subr.mxu0 0.0
    %4577 = vmatpush1.msra.mxu0 0.0
    %4578 = vmatprep.subr.mxu0 0.0
    %4579 = vmatpush1.msra.mxu0 0.0
    %4580 = vmatprep.subr.mxu0 0.0
    %4581 = vmatpush1.msra.mxu0 0.0
    %4582 = vmatprep.subr.mxu0 0.0
    %4583 = vmatpush1.msra.mxu0 0.0
    %4584 = vmatprep.subr.mxu0 0.0
    %4585 = vmatpush1.msra.mxu0 0.0
    %4586 = vmatprep.subr.mxu0 0.0
    %4587 = vmatpush1.msra.mxu0 0.0
    %4588 = vmatprep.subr.mxu0 0.0
    %4589 = vmatpush1.msra.mxu0 0.0
    %4590 = vmatprep.subr.mxu0 0.0
    %4591 = vmatpush1.msra.mxu0 0.0
    %4592 = vmatprep.subr.mxu0 0.0
    %4593 = vmatpush1.msra.mxu0 0.0
    %4594 = vmatprep.subr.mxu0 0.0
    %4595 = vmatpush1.msra.mxu0 0.0
    %4596 = vmatprep.subr.mxu0 0.0
    %4597 = vmatpush1.msra.mxu0 0.0
    %4598 = vmatprep.subr.mxu0 0.0
    %4599 = vmatpush1.msra.mxu0 0.0
    %4600 = vmatprep.subr.mxu0 0.0
    %4601 = vmatpush1.msra.mxu0 %v4565
    %4602 = vmatprep.subr.mxu0 0.0
    %4603 = vmatpush2.msra.mxu0 0.0
    %4604 = vmatprep.subr.mxu0 0.0
    %4605 = vmatpush2.msra.mxu0 0.0
    %4606 = vmatprep.subr.mxu0 0.0
    %4607 = vmatpush2.msra.mxu0 0.0
    %4608 = vmatprep.subr.mxu0 0.0
    %4609 = vmatpush2.msra.mxu0 0.0
    %4610 = vmatprep.subr.mxu0 0.0
    %4611 = vmatpush2.msra.mxu0 0.0
    %4612 = vmatprep.subr.mxu0 0.0
    %4613 = vmatpush2.msra.mxu0 0.0
    %4614 = vmatprep.subr.mxu0 0.0
    %4615 = vmatpush2.msra.mxu0 0.0
    %4616 = vmatprep.subr.mxu0 0.0
    %4617 = vmatpush2.msra.mxu0 0.0
    %4618 = vmatprep.subr.mxu0 0.0
    %4619 = vmatpush2.msra.mxu0 0.0
    %4620 = vmatprep.subr.mxu0 0.0
    %4621 = vmatpush2.msra.mxu0 0.0
    %4622 = vmatprep.subr.mxu0 0.0
    %4623 = vmatpush2.msra.mxu0 0.0
    %4624 = vmatprep.subr.mxu0 0.0
    %4625 = vmatpush2.msra.mxu0 0.0
    %4626 = vmatprep.subr.mxu0 0.0
    %4627 = vmatpush2.msra.mxu0 0.0
    %4628 = vmatprep.subr.mxu0 0.0
    %4629 = vmatpush2.msra.mxu0 0.0
    %4630 = vmatprep.subr.mxu0 0.0
    %4631 = vmatpush2.msra.mxu0 0.0
    %4632 = vmatprep.subr.mxu0 0.0
    %4633 = vmatpush2.msra.mxu0 0.0
    %4634 = vmatprep.mubr.f32.mxu0 0.0
    %4635 = vmatmul.mubr.f32.gmra.mxu0 %v4568
    %v4636 = vpop.f32.mrf.mxu0
    %v4637 = vadd.f32 0.0, %v4636
    %v4638 = vpop.f32.mrf.mxu0
    %4639 = vdwg.mxu0
    %4640 = vrot.lane.b32.xlu0 %v3770, 48
    %v4641 = vpop.permute.xlu0 %4640
    %v4644 = vsel %vm194, %v4477, 0
    %4646 = vmatprep.subr.mxu0 0.0
    %4647 = vmatpush1.msra.mxu0 0.0
    %4648 = vmatprep.subr.mxu0 0.0
    %4649 = vmatpush1.msra.mxu0 0.0
    %4650 = vmatprep.subr.mxu0 0.0
    %4651 = vmatpush1.msra.mxu0 0.0
    %4652 = vmatprep.subr.mxu0 0.0
    %4653 = vmatpush1.msra.mxu0 0.0
    %4654 = vmatprep.subr.mxu0 0.0
    %4655 = vmatpush1.msra.mxu0 0.0
    %4656 = vmatprep.subr.mxu0 0.0
    %4657 = vmatpush1.msra.mxu0 0.0
    %4658 = vmatprep.subr.mxu0 0.0
    %4659 = vmatpush1.msra.mxu0 0.0
    %4660 = vmatprep.subr.mxu0 0.0
    %4661 = vmatpush1.msra.mxu0 0.0
    %4662 = vmatprep.subr.mxu0 0.0
    %4663 = vmatpush1.msra.mxu0 0.0
    %4664 = vmatprep.subr.mxu0 0.0
    %4665 = vmatpush1.msra.mxu0 0.0
    %4666 = vmatprep.subr.mxu0 0.0
    %4667 = vmatpush1.msra.mxu0 0.0
    %4668 = vmatprep.subr.mxu0 0.0
    %4669 = vmatpush1.msra.mxu0 0.0
    %4670 = vmatprep.subr.mxu0 0.0
    %4671 = vmatpush1.msra.mxu0 0.0
    %4672 = vmatprep.subr.mxu0 0.0
    %4673 = vmatpush1.msra.mxu0 0.0
    %4674 = vmatprep.subr.mxu0 0.0
    %4675 = vmatpush1.msra.mxu0 0.0
    %4676 = vmatprep.subr.mxu0 0.0
    %4677 = vmatpush1.msra.mxu0 %v4641
    %4678 = vmatprep.subr.mxu0 0.0
    %4679 = vmatpush2.msra.mxu0 0.0
    %4680 = vmatprep.subr.mxu0 0.0
    %4681 = vmatpush2.msra.mxu0 0.0
    %4682 = vmatprep.subr.mxu0 0.0
    %4683 = vmatpush2.msra.mxu0 0.0
    %4684 = vmatprep.subr.mxu0 0.0
    %4685 = vmatpush2.msra.mxu0 0.0
    %4686 = vmatprep.subr.mxu0 0.0
    %4687 = vmatpush2.msra.mxu0 0.0
    %4688 = vmatprep.subr.mxu0 0.0
    %4689 = vmatpush2.msra.mxu0 0.0
    %4690 = vmatprep.subr.mxu0 0.0
    %4691 = vmatpush2.msra.mxu0 0.0
    %4692 = vmatprep.subr.mxu0 0.0
    %4693 = vmatpush2.msra.mxu0 0.0
    %4694 = vmatprep.subr.mxu0 0.0
    %4695 = vmatpush2.msra.mxu0 0.0
    %4696 = vmatprep.subr.mxu0 0.0
    %4697 = vmatpush2.msra.mxu0 0.0
    %4698 = vmatprep.subr.mxu0 0.0
    %4699 = vmatpush2.msra.mxu0 0.0
    %4700 = vmatprep.subr.mxu0 0.0
    %4701 = vmatpush2.msra.mxu0 0.0
    %4702 = vmatprep.subr.mxu0 0.0
    %4703 = vmatpush2.msra.mxu0 0.0
    %4704 = vmatprep.subr.mxu0 0.0
    %4705 = vmatpush2.msra.mxu0 0.0
    %4706 = vmatprep.subr.mxu0 0.0
    %4707 = vmatpush2.msra.mxu0 0.0
    %4708 = vmatprep.subr.mxu0 0.0
    %4709 = vmatpush2.msra.mxu0 0.0
    %4710 = vmatprep.mubr.f32.mxu0 0.0
    %4711 = vmatmul.mubr.f32.gmra.mxu0 %v4644
    %v4712 = vpop.f32.mrf.mxu0
    %v4713 = vadd.f32 0.0, %v4712
    %v4714 = vpop.f32.mrf.mxu0
    %4715 = vdwg.mxu0
    %4716 = vrot.lane.b32.xlu0 %v3770, 40
    %v4717 = vpop.permute.xlu0 %4716
    %v4720 = vsel %vm194, %v4479, 0
    %4722 = vmatprep.subr.mxu0 0.0
    %4723 = vmatpush1.msra.mxu0 0.0
    %4724 = vmatprep.subr.mxu0 0.0
    %4725 = vmatpush1.msra.mxu0 0.0
    %4726 = vmatprep.subr.mxu0 0.0
    %4727 = vmatpush1.msra.mxu0 0.0
    %4728 = vmatprep.subr.mxu0 0.0
    %4729 = vmatpush1.msra.mxu0 0.0
    %4730 = vmatprep.subr.mxu0 0.0
    %4731 = vmatpush1.msra.mxu0 0.0
    %4732 = vmatprep.subr.mxu0 0.0
    %4733 = vmatpush1.msra.mxu0 0.0
    %4734 = vmatprep.subr.mxu0 0.0
    %4735 = vmatpush1.msra.mxu0 0.0
    %4736 = vmatprep.subr.mxu0 0.0
    %4737 = vmatpush1.msra.mxu0 0.0
    %4738 = vmatprep.subr.mxu0 0.0
    %4739 = vmatpush1.msra.mxu0 0.0
    %4740 = vmatprep.subr.mxu0 0.0
    %4741 = vmatpush1.msra.mxu0 0.0
    %4742 = vmatprep.subr.mxu0 0.0
    %4743 = vmatpush1.msra.mxu0 0.0
    %4744 = vmatprep.subr.mxu0 0.0
    %4745 = vmatpush1.msra.mxu0 0.0
    %4746 = vmatprep.subr.mxu0 0.0
    %4747 = vmatpush1.msra.mxu0 0.0
    %4748 = vmatprep.subr.mxu0 0.0
    %4749 = vmatpush1.msra.mxu0 0.0
    %4750 = vmatprep.subr.mxu0 0.0
    %4751 = vmatpush1.msra.mxu0 0.0
    %4752 = vmatprep.subr.mxu0 0.0
    %4753 = vmatpush1.msra.mxu0 %v4717
    %4754 = vmatprep.subr.mxu0 0.0
    %4755 = vmatpush2.msra.mxu0 0.0
    %4756 = vmatprep.subr.mxu0 0.0
    %4757 = vmatpush2.msra.mxu0 0.0
    %4758 = vmatprep.subr.mxu0 0.0
    %4759 = vmatpush2.msra.mxu0 0.0
    %4760 = vmatprep.subr.mxu0 0.0
    %4761 = vmatpush2.msra.mxu0 0.0
    %4762 = vmatprep.subr.mxu0 0.0
    %4763 = vmatpush2.msra.mxu0 0.0
    %4764 = vmatprep.subr.mxu0 0.0
    %4765 = vmatpush2.msra.mxu0 0.0
    %4766 = vmatprep.subr.mxu0 0.0
    %4767 = vmatpush2.msra.mxu0 0.0
    %4768 = vmatprep.subr.mxu0 0.0
    %4769 = vmatpush2.msra.mxu0 0.0
    %4770 = vmatprep.subr.mxu0 0.0
    %4771 = vmatpush2.msra.mxu0 0.0
    %4772 = vmatprep.subr.mxu0 0.0
    %4773 = vmatpush2.msra.mxu0 0.0
    %4774 = vmatprep.subr.mxu0 0.0
    %4775 = vmatpush2.msra.mxu0 0.0
    %4776 = vmatprep.subr.mxu0 0.0
    %4777 = vmatpush2.msra.mxu0 0.0
    %4778 = vmatprep.subr.mxu0 0.0
    %4779 = vmatpush2.msra.mxu0 0.0
    %4780 = vmatprep.subr.mxu0 0.0
    %4781 = vmatpush2.msra.mxu0 0.0
    %4782 = vmatprep.subr.mxu0 0.0
    %4783 = vmatpush2.msra.mxu0 0.0
    %4784 = vmatprep.subr.mxu0 0.0
    %4785 = vmatpush2.msra.mxu0 0.0
    %4786 = vmatprep.mubr.f32.mxu0 0.0
    %4787 = vmatmul.mubr.f32.gmra.mxu0 %v4720
    %v4788 = vpop.f32.mrf.mxu0
    %v4789 = vadd.f32 0.0, %v4788
    %v4790 = vpop.f32.mrf.mxu0
    %4791 = vdwg.mxu0
    %4793 = vrot.lane.b32.xlu0 %v4637, 8
    %v4794 = vpop.permute.xlu0 %4793
    %4797 = vrot.lane.b32.xlu0 %v4713, 16
    %v4798 = vpop.permute.xlu0 %4797
    %4801 = vrot.lane.b32.xlu0 %v4789, 24
    %v4802 = vpop.permute.xlu0 %4801
    %v4804 = vsel %vm194, %v4561, %v4794
    %v4805 = vsel %vm1219, %v4804, %v4798
    %v4806 = vsel %vm1221, %v4805, %v4802
    %4807 = vrot.lane.b32.xlu0 %v3775, 64
    %v4808 = vpop.permute.xlu0 %4807
    %v4811 = vsel %vm194, %v4481, 0
    %4813 = vmatprep.subr.mxu0 0.0
    %4814 = vmatpush1.msra.mxu0 0.0
    %4815 = vmatprep.subr.mxu0 0.0
    %4816 = vmatpush1.msra.mxu0 0.0
    %4817 = vmatprep.subr.mxu0 0.0
    %4818 = vmatpush1.msra.mxu0 0.0
    %4819 = vmatprep.subr.mxu0 0.0
    %4820 = vmatpush1.msra.mxu0 0.0
    %4821 = vmatprep.subr.mxu0 0.0
    %4822 = vmatpush1.msra.mxu0 0.0
    %4823 = vmatprep.subr.mxu0 0.0
    %4824 = vmatpush1.msra.mxu0 0.0
    %4825 = vmatprep.subr.mxu0 0.0
    %4826 = vmatpush1.msra.mxu0 0.0
    %4827 = vmatprep.subr.mxu0 0.0
    %4828 = vmatpush1.msra.mxu0 0.0
    %4829 = vmatprep.subr.mxu0 0.0
    %4830 = vmatpush1.msra.mxu0 0.0
    %4831 = vmatprep.subr.mxu0 0.0
    %4832 = vmatpush1.msra.mxu0 0.0
    %4833 = vmatprep.subr.mxu0 0.0
    %4834 = vmatpush1.msra.mxu0 0.0
    %4835 = vmatprep.subr.mxu0 0.0
    %4836 = vmatpush1.msra.mxu0 0.0
    %4837 = vmatprep.subr.mxu0 0.0
    %4838 = vmatpush1.msra.mxu0 0.0
    %4839 = vmatprep.subr.mxu0 0.0
    %4840 = vmatpush1.msra.mxu0 0.0
    %4841 = vmatprep.subr.mxu0 0.0
    %4842 = vmatpush1.msra.mxu0 0.0
    %4843 = vmatprep.subr.mxu0 0.0
    %4844 = vmatpush1.msra.mxu0 %v4808
    %4845 = vmatprep.subr.mxu0 0.0
    %4846 = vmatpush2.msra.mxu0 0.0
    %4847 = vmatprep.subr.mxu0 0.0
    %4848 = vmatpush2.msra.mxu0 0.0
    %4849 = vmatprep.subr.mxu0 0.0
    %4850 = vmatpush2.msra.mxu0 0.0
    %4851 = vmatprep.subr.mxu0 0.0
    %4852 = vmatpush2.msra.mxu0 0.0
    %4853 = vmatprep.subr.mxu0 0.0
    %4854 = vmatpush2.msra.mxu0 0.0
    %4855 = vmatprep.subr.mxu0 0.0
    %4856 = vmatpush2.msra.mxu0 0.0
    %4857 = vmatprep.subr.mxu0 0.0
    %4858 = vmatpush2.msra.mxu0 0.0
    %4859 = vmatprep.subr.mxu0 0.0
    %4860 = vmatpush2.msra.mxu0 0.0
    %4861 = vmatprep.subr.mxu0 0.0
    %4862 = vmatpush2.msra.mxu0 0.0
    %4863 = vmatprep.subr.mxu0 0.0
    %4864 = vmatpush2.msra.mxu0 0.0
    %4865 = vmatprep.subr.mxu0 0.0
    %4866 = vmatpush2.msra.mxu0 0.0
    %4867 = vmatprep.subr.mxu0 0.0
    %4868 = vmatpush2.msra.mxu0 0.0
    %4869 = vmatprep.subr.mxu0 0.0
    %4870 = vmatpush2.msra.mxu0 0.0
    %4871 = vmatprep.subr.mxu0 0.0
    %4872 = vmatpush2.msra.mxu0 0.0
    %4873 = vmatprep.subr.mxu0 0.0
    %4874 = vmatpush2.msra.mxu0 0.0
    %4875 = vmatprep.subr.mxu0 0.0
    %4876 = vmatpush2.msra.mxu0 0.0
    %4877 = vmatprep.mubr.f32.mxu0 0.0
    %4878 = vmatmul.mubr.f32.gmra.mxu0 %v4811
    %v4879 = vpop.f32.mrf.mxu0
    %v4880 = vadd.f32 0.0, %v4879
    %v4881 = vpop.f32.mrf.mxu0
    %4882 = vdwg.mxu0
    %4883 = vrot.lane.b32.xlu0 %v3775, 56
    %v4884 = vpop.permute.xlu0 %4883
    %v4887 = vsel %vm194, %v4483, 0
    %4889 = vmatprep.subr.mxu0 0.0
    %4890 = vmatpush1.msra.mxu0 0.0
    %4891 = vmatprep.subr.mxu0 0.0
    %4892 = vmatpush1.msra.mxu0 0.0
    %4893 = vmatprep.subr.mxu0 0.0
    %4894 = vmatpush1.msra.mxu0 0.0
    %4895 = vmatprep.subr.mxu0 0.0
    %4896 = vmatpush1.msra.mxu0 0.0
    %4897 = vmatprep.subr.mxu0 0.0
    %4898 = vmatpush1.msra.mxu0 0.0
    %4899 = vmatprep.subr.mxu0 0.0
    %4900 = vmatpush1.msra.mxu0 0.0
    %4901 = vmatprep.subr.mxu0 0.0
    %4902 = vmatpush1.msra.mxu0 0.0
    %4903 = vmatprep.subr.mxu0 0.0
    %4904 = vmatpush1.msra.mxu0 0.0
    %4905 = vmatprep.subr.mxu0 0.0
    %4906 = vmatpush1.msra.mxu0 0.0
    %4907 = vmatprep.subr.mxu0 0.0
    %4908 = vmatpush1.msra.mxu0 0.0
    %4909 = vmatprep.subr.mxu0 0.0
    %4910 = vmatpush1.msra.mxu0 0.0
    %4911 = vmatprep.subr.mxu0 0.0
    %4912 = vmatpush1.msra.mxu0 0.0
    %4913 = vmatprep.subr.mxu0 0.0
    %4914 = vmatpush1.msra.mxu0 0.0
    %4915 = vmatprep.subr.mxu0 0.0
    %4916 = vmatpush1.msra.mxu0 0.0
    %4917 = vmatprep.subr.mxu0 0.0
    %4918 = vmatpush1.msra.mxu0 0.0
    %4919 = vmatprep.subr.mxu0 0.0
    %4920 = vmatpush1.msra.mxu0 %v4884
    %4921 = vmatprep.subr.mxu0 0.0
    %4922 = vmatpush2.msra.mxu0 0.0
    %4923 = vmatprep.subr.mxu0 0.0
    %4924 = vmatpush2.msra.mxu0 0.0
    %4925 = vmatprep.subr.mxu0 0.0
    %4926 = vmatpush2.msra.mxu0 0.0
    %4927 = vmatprep.subr.mxu0 0.0
    %4928 = vmatpush2.msra.mxu0 0.0
    %4929 = vmatprep.subr.mxu0 0.0
    %4930 = vmatpush2.msra.mxu0 0.0
    %4931 = vmatprep.subr.mxu0 0.0
    %4932 = vmatpush2.msra.mxu0 0.0
    %4933 = vmatprep.subr.mxu0 0.0
    %4934 = vmatpush2.msra.mxu0 0.0
    %4935 = vmatprep.subr.mxu0 0.0
    %4936 = vmatpush2.msra.mxu0 0.0
    %4937 = vmatprep.subr.mxu0 0.0
    %4938 = vmatpush2.msra.mxu0 0.0
    %4939 = vmatprep.subr.mxu0 0.0
    %4940 = vmatpush2.msra.mxu0 0.0
    %4941 = vmatprep.subr.mxu0 0.0
    %4942 = vmatpush2.msra.mxu0 0.0
    %4943 = vmatprep.subr.mxu0 0.0
    %4944 = vmatpush2.msra.mxu0 0.0
    %4945 = vmatprep.subr.mxu0 0.0
    %4946 = vmatpush2.msra.mxu0 0.0
    %4947 = vmatprep.subr.mxu0 0.0
    %4948 = vmatpush2.msra.mxu0 0.0
    %4949 = vmatprep.subr.mxu0 0.0
    %4950 = vmatpush2.msra.mxu0 0.0
    %4951 = vmatprep.subr.mxu0 0.0
    %4952 = vmatpush2.msra.mxu0 0.0
    %4953 = vmatprep.mubr.f32.mxu0 0.0
    %4954 = vmatmul.mubr.f32.gmra.mxu0 %v4887
    %v4955 = vpop.f32.mrf.mxu0
    %v4956 = vadd.f32 0.0, %v4955
    %v4957 = vpop.f32.mrf.mxu0
    %4958 = vdwg.mxu0
    %4959 = vrot.lane.b32.xlu0 %v3775, 48
    %v4960 = vpop.permute.xlu0 %4959
    %v4963 = vsel %vm194, %v4485, 0
    %4965 = vmatprep.subr.mxu0 0.0
    %4966 = vmatpush1.msra.mxu0 0.0
    %4967 = vmatprep.subr.mxu0 0.0
    %4968 = vmatpush1.msra.mxu0 0.0
    %4969 = vmatprep.subr.mxu0 0.0
    %4970 = vmatpush1.msra.mxu0 0.0
    %4971 = vmatprep.subr.mxu0 0.0
    %4972 = vmatpush1.msra.mxu0 0.0
    %4973 = vmatprep.subr.mxu0 0.0
    %4974 = vmatpush1.msra.mxu0 0.0
    %4975 = vmatprep.subr.mxu0 0.0
    %4976 = vmatpush1.msra.mxu0 0.0
    %4977 = vmatprep.subr.mxu0 0.0
    %4978 = vmatpush1.msra.mxu0 0.0
    %4979 = vmatprep.subr.mxu0 0.0
    %4980 = vmatpush1.msra.mxu0 0.0
    %4981 = vmatprep.subr.mxu0 0.0
    %4982 = vmatpush1.msra.mxu0 0.0
    %4983 = vmatprep.subr.mxu0 0.0
    %4984 = vmatpush1.msra.mxu0 0.0
    %4985 = vmatprep.subr.mxu0 0.0
    %4986 = vmatpush1.msra.mxu0 0.0
    %4987 = vmatprep.subr.mxu0 0.0
    %4988 = vmatpush1.msra.mxu0 0.0
    %4989 = vmatprep.subr.mxu0 0.0
    %4990 = vmatpush1.msra.mxu0 0.0
    %4991 = vmatprep.subr.mxu0 0.0
    %4992 = vmatpush1.msra.mxu0 0.0
    %4993 = vmatprep.subr.mxu0 0.0
    %4994 = vmatpush1.msra.mxu0 0.0
    %4995 = vmatprep.subr.mxu0 0.0
    %4996 = vmatpush1.msra.mxu0 %v4960
    %4997 = vmatprep.subr.mxu0 0.0
    %4998 = vmatpush2.msra.mxu0 0.0
    %4999 = vmatprep.subr.mxu0 0.0
    %5000 = vmatpush2.msra.mxu0 0.0
    %5001 = vmatprep.subr.mxu0 0.0
    %5002 = vmatpush2.msra.mxu0 0.0
    %5003 = vmatprep.subr.mxu0 0.0
    %5004 = vmatpush2.msra.mxu0 0.0
    %5005 = vmatprep.subr.mxu0 0.0
    %5006 = vmatpush2.msra.mxu0 0.0
    %5007 = vmatprep.subr.mxu0 0.0
    %5008 = vmatpush2.msra.mxu0 0.0
    %5009 = vmatprep.subr.mxu0 0.0
    %5010 = vmatpush2.msra.mxu0 0.0
    %5011 = vmatprep.subr.mxu0 0.0
    %5012 = vmatpush2.msra.mxu0 0.0
    %5013 = vmatprep.subr.mxu0 0.0
    %5014 = vmatpush2.msra.mxu0 0.0
    %5015 = vmatprep.subr.mxu0 0.0
    %5016 = vmatpush2.msra.mxu0 0.0
    %5017 = vmatprep.subr.mxu0 0.0
    %5018 = vmatpush2.msra.mxu0 0.0
    %5019 = vmatprep.subr.mxu0 0.0
    %5020 = vmatpush2.msra.mxu0 0.0
    %5021 = vmatprep.subr.mxu0 0.0
    %5022 = vmatpush2.msra.mxu0 0.0
    %5023 = vmatprep.subr.mxu0 0.0
    %5024 = vmatpush2.msra.mxu0 0.0
    %5025 = vmatprep.subr.mxu0 0.0
    %5026 = vmatpush2.msra.mxu0 0.0
    %5027 = vmatprep.subr.mxu0 0.0
    %5028 = vmatpush2.msra.mxu0 0.0
    %5029 = vmatprep.mubr.f32.mxu0 0.0
    %5030 = vmatmul.mubr.f32.gmra.mxu0 %v4963
    %v5031 = vpop.f32.mrf.mxu0
    %v5032 = vadd.f32 0.0, %v5031
    %v5033 = vpop.f32.mrf.mxu0
    %5034 = vdwg.mxu0
    %5035 = vrot.lane.b32.xlu0 %v3775, 40
    %v5036 = vpop.permute.xlu0 %5035
    %v5039 = vsel %vm194, %v4487, 0
    %5041 = vmatprep.subr.mxu0 0.0
    %5042 = vmatpush1.msra.mxu0 0.0
    %5043 = vmatprep.subr.mxu0 0.0
    %5044 = vmatpush1.msra.mxu0 0.0
    %5045 = vmatprep.subr.mxu0 0.0
    %5046 = vmatpush1.msra.mxu0 0.0
    %5047 = vmatprep.subr.mxu0 0.0
    %5048 = vmatpush1.msra.mxu0 0.0
    %5049 = vmatprep.subr.mxu0 0.0
    %5050 = vmatpush1.msra.mxu0 0.0
    %5051 = vmatprep.subr.mxu0 0.0
    %5052 = vmatpush1.msra.mxu0 0.0
    %5053 = vmatprep.subr.mxu0 0.0
    %5054 = vmatpush1.msra.mxu0 0.0
    %5055 = vmatprep.subr.mxu0 0.0
    %5056 = vmatpush1.msra.mxu0 0.0
    %5057 = vmatprep.subr.mxu0 0.0
    %5058 = vmatpush1.msra.mxu0 0.0
    %5059 = vmatprep.subr.mxu0 0.0
    %5060 = vmatpush1.msra.mxu0 0.0
    %5061 = vmatprep.subr.mxu0 0.0
    %5062 = vmatpush1.msra.mxu0 0.0
    %5063 = vmatprep.subr.mxu0 0.0
    %5064 = vmatpush1.msra.mxu0 0.0
    %5065 = vmatprep.subr.mxu0 0.0
    %5066 = vmatpush1.msra.mxu0 0.0
    %5067 = vmatprep.subr.mxu0 0.0
    %5068 = vmatpush1.msra.mxu0 0.0
    %5069 = vmatprep.subr.mxu0 0.0
    %5070 = vmatpush1.msra.mxu0 0.0
    %5071 = vmatprep.subr.mxu0 0.0
    %5072 = vmatpush1.msra.mxu0 %v5036
    %5073 = vmatprep.subr.mxu0 0.0
    %5074 = vmatpush2.msra.mxu0 0.0
    %5075 = vmatprep.subr.mxu0 0.0
    %5076 = vmatpush2.msra.mxu0 0.0
    %5077 = vmatprep.subr.mxu0 0.0
    %5078 = vmatpush2.msra.mxu0 0.0
    %5079 = vmatprep.subr.mxu0 0.0
    %5080 = vmatpush2.msra.mxu0 0.0
    %5081 = vmatprep.subr.mxu0 0.0
    %5082 = vmatpush2.msra.mxu0 0.0
    %5083 = vmatprep.subr.mxu0 0.0
    %5084 = vmatpush2.msra.mxu0 0.0
    %5085 = vmatprep.subr.mxu0 0.0
    %5086 = vmatpush2.msra.mxu0 0.0
    %5087 = vmatprep.subr.mxu0 0.0
    %5088 = vmatpush2.msra.mxu0 0.0
    %5089 = vmatprep.subr.mxu0 0.0
    %5090 = vmatpush2.msra.mxu0 0.0
    %5091 = vmatprep.subr.mxu0 0.0
    %5092 = vmatpush2.msra.mxu0 0.0
    %5093 = vmatprep.subr.mxu0 0.0
    %5094 = vmatpush2.msra.mxu0 0.0
    %5095 = vmatprep.subr.mxu0 0.0
    %5096 = vmatpush2.msra.mxu0 0.0
    %5097 = vmatprep.subr.mxu0 0.0
    %5098 = vmatpush2.msra.mxu0 0.0
    %5099 = vmatprep.subr.mxu0 0.0
    %5100 = vmatpush2.msra.mxu0 0.0
    %5101 = vmatprep.subr.mxu0 0.0
    %5102 = vmatpush2.msra.mxu0 0.0
    %5103 = vmatprep.subr.mxu0 0.0
    %5104 = vmatpush2.msra.mxu0 0.0
    %5105 = vmatprep.mubr.f32.mxu0 0.0
    %5106 = vmatmul.mubr.f32.gmra.mxu0 %v5039
    %v5107 = vpop.f32.mrf.mxu0
    %v5108 = vadd.f32 0.0, %v5107
    %v5109 = vpop.f32.mrf.mxu0
    %5110 = vdwg.mxu0
    %5112 = vrot.lane.b32.xlu0 %v4956, 8
    %v5113 = vpop.permute.xlu0 %5112
    %5116 = vrot.lane.b32.xlu0 %v5032, 16
    %v5117 = vpop.permute.xlu0 %5116
    %5120 = vrot.lane.b32.xlu0 %v5108, 24
    %v5121 = vpop.permute.xlu0 %5120
    %v5123 = vsel %vm194, %v4880, %v5113
    %v5124 = vsel %vm1219, %v5123, %v5117
    %v5125 = vsel %vm1221, %v5124, %v5121
    %v5126 = vld [vmem:[%s5 + $0x5] sm:$0x1]
    %v5128 = vlaneseq
    %v5129 = vshrl.u32 %v5128, 7
    %v5130 = vsub.s32 0, %v5129
    %v5131 = vrot.slane %v5126, %v5130
    %5137 = vrot.lane.b32.xlu0 %v3690, 32
    %v5138 = vpop.permute.xlu0 %5137
    %5139 = vrot.lane.b32.xlu0 %v3691, 32
    %v5140 = vpop.permute.xlu0 %5139
    %5141 = vrot.lane.b32.xlu0 %v3692, 32
    %v5142 = vpop.permute.xlu0 %5141
    %5143 = vrot.lane.b32.xlu0 %v3693, 32
    %v5144 = vpop.permute.xlu0 %5143
    %v5150 = vsel %vm109, %v4806, 0
    %v5153 = vsel %vm109, %v5125, 0
    %5155 = vmatprep.subr.mxu0 0.0
    %5156 = vmatpush1.msra.mxu0 0.0
    %5157 = vmatprep.subr.mxu0 0.0
    %5158 = vmatpush1.msra.mxu0 0.0
    %5159 = vmatprep.subr.mxu0 0.0
    %5160 = vmatpush1.msra.mxu0 0.0
    %5161 = vmatprep.subr.mxu0 0.0
    %5162 = vmatpush1.msra.mxu0 0.0
    %5163 = vmatprep.subr.mxu0 0.0
    %5164 = vmatpush1.msra.mxu0 0.0
    %5165 = vmatprep.subr.mxu0 0.0
    %5166 = vmatpush1.msra.mxu0 0.0
    %5167 = vmatprep.subr.mxu0 0.0
    %5168 = vmatpush1.msra.mxu0 0.0
    %5169 = vmatprep.subr.mxu0 0.0
    %5170 = vmatpush1.msra.mxu0 0.0
    %5171 = vmatprep.subr.mxu0 0.0
    %5172 = vmatpush1.msra.mxu0 0.0
    %5173 = vmatprep.subr.mxu0 0.0
    %5174 = vmatpush1.msra.mxu0 0.0
    %5175 = vmatprep.subr.mxu0 0.0
    %5176 = vmatpush1.msra.mxu0 0.0
    %5177 = vmatprep.subr.mxu0 0.0
    %5178 = vmatpush1.msra.mxu0 0.0
    %5179 = vmatprep.subr.mxu0 0.0
    %5180 = vmatpush1.msra.mxu0 %v5144
    %5181 = vmatprep.subr.mxu0 0.0
    %5182 = vmatpush1.msra.mxu0 %v5142
    %5183 = vmatprep.subr.mxu0 0.0
    %5184 = vmatpush1.msra.mxu0 %v5140
    %5185 = vmatprep.subr.mxu0 0.0
    %5186 = vmatpush1.msra.mxu0 %v5138
    %5187 = vmatprep.subr.mxu0 0.0
    %5188 = vmatpush2.msra.mxu0 0.0
    %5189 = vmatprep.subr.mxu0 0.0
    %5190 = vmatpush2.msra.mxu0 0.0
    %5191 = vmatprep.subr.mxu0 0.0
    %5192 = vmatpush2.msra.mxu0 0.0
    %5193 = vmatprep.subr.mxu0 0.0
    %5194 = vmatpush2.msra.mxu0 0.0
    %5195 = vmatprep.subr.mxu0 0.0
    %5196 = vmatpush2.msra.mxu0 0.0
    %5197 = vmatprep.subr.mxu0 0.0
    %5198 = vmatpush2.msra.mxu0 0.0
    %5199 = vmatprep.subr.mxu0 0.0
    %5200 = vmatpush2.msra.mxu0 0.0
    %5201 = vmatprep.subr.mxu0 0.0
    %5202 = vmatpush2.msra.mxu0 0.0
    %5203 = vmatprep.subr.mxu0 0.0
    %5204 = vmatpush2.msra.mxu0 0.0
    %5205 = vmatprep.subr.mxu0 0.0
    %5206 = vmatpush2.msra.mxu0 0.0
    %5207 = vmatprep.subr.mxu0 0.0
    %5208 = vmatpush2.msra.mxu0 0.0
    %5209 = vmatprep.subr.mxu0 0.0
    %5210 = vmatpush2.msra.mxu0 0.0
    %5211 = vmatprep.subr.mxu0 0.0
    %5212 = vmatpush2.msra.mxu0 0.0
    %5213 = vmatprep.subr.mxu0 0.0
    %5214 = vmatpush2.msra.mxu0 0.0
    %5215 = vmatprep.subr.mxu0 0.0
    %5216 = vmatpush2.msra.mxu0 0.0
    %5217 = vmatprep.subr.mxu0 0.0
    %5218 = vmatpush2.msra.mxu0 0.0
    %5219 = vmatprep.mubr.f32.mxu0 0.0
    %5220 = vmatmul.mubr.f32.gmra.mxu0 %v5150
    %v5221 = vpop.f32.mrf.mxu0
    %v5222 = vadd.f32 %v5131, %v5221
    %v5223 = vpop.f32.mrf.mxu0
    %5224 = vmatprep.mubr.f32.mxu0 0.0
    %5225 = vmatmul.mubr.f32.gmra.mxu0 %v5153
    %v5226 = vpop.f32.mrf.mxu0
    %v5227 = vadd.f32 %v5131, %v5226
    %v5228 = vpop.f32.mrf.mxu0
    %5229 = vdwg.mxu0
    %v5230 = vadd.f32 %v5222, %v3688
    %v5231 = vadd.f32 %v5227, %v3689
    %v5232 = vsel %vm109, %v5230, 0.0
    %5233 = vadd.xlane.f32.xlu0 %v5232
    %v5234 = vpop.xlane.xlu0 %5233
    %v5235 = vsel %vm109, %v5231, 0.0
    %5236 = vadd.xlane.f32.xlu0 %v5235
    %v5237 = vpop.xlane.xlu0 %5236
    %v5238 = vmul.f32 %v5234, %v1651
    %v5239 = vmul.f32 %v5237, %v1651
    %v5240 = vsub.f32 %v5230, %v5238
    %v5241 = vsub.f32 %v5231, %v5239
    %v5242 = vmul.f32 %v5240, %v5240
    %v5243 = vmul.f32 %v5241, %v5241
    %v5244 = vsel %vm109, %v5242, 0.0
    %5245 = vadd.xlane.f32.xlu0 %v5244
    %v5246 = vpop.xlane.xlu0 %5245
    %v5247 = vsel %vm109, %v5243, 0.0
    %5248 = vadd.xlane.f32.xlu0 %v5247
    %v5249 = vpop.xlane.xlu0 %5248
    %v5250 = vmul.f32 %v5246, %v1651
    %v5251 = vmul.f32 %v5249, %v1651
    %v5252 = vadd.f32 %v5250, 1e-12
    %v5253 = vadd.f32 %v5251, 1e-12
    %v5254 = vrsqrt.pop %v5252
    %v5255 = vrsqrt.pop %v5253
    %v5256 = vmul.f32 %v5240, %v5254
    %v5257 = vmul.f32 %v5241, %v5255
    %5258 = vrot.lane.b32.xlu0 %v5131, 96
    %v5259 = vpop.permute.xlu0 %5258
    %v5261 = vmul.f32 %v5256, %v5259
    %v5262 = vmul.f32 %v5257, %v5259
    %5263 = vrot.lane.b32.xlu0 %v5131, 64
    %v5264 = vpop.permute.xlu0 %5263
    %v5266 = vadd.f32 %v5261, %v5264
    %v5267 = vadd.f32 %v5262, %v5264
    %v5268 = vld [vmem:[#allocation7 + $0x18] sm:$0xff]
    %v5269 = vld [vmem:[#allocation7 + $0x38] sm:$0xff]
    %v5270 = vld [vmem:[#allocation7 + $0x58] sm:$0xff]
    %v5271 = vld [vmem:[#allocation7 + $0x78] sm:$0xff]
    %v5272 = vld [vmem:[%s5 + $0x5] sm:$0x3]
    %v5274 = vlaneseq
    %v5275 = vshrl.u32 %v5274, 7
    %v5276 = vsub.s32 0, %v5275
    %v5277 = vrot.slane %v5272, %v5276
    %v5278 = vlaneseq
    %v5279 = vshrl.u32 %v5278, 7
    %v5280 = vsub.s32 1, %v5279
    %v5281 = vrot.slane %v5272, %v5280
    %5282 = vrot.lane.b32.xlu0 %v5277, 32
    %v5283 = vpop.permute.xlu0 %5282
    %5284 = vrot.lane.b32.xlu0 %v5281, 32
    %v5285 = vpop.permute.xlu0 %5284
    %v5286 = vsel %vm109, %v5283, %v5285
    %v5289 = vsel %vm109, %v5266, 0
    %v5292 = vsel %vm109, %v5267, 0
    %5294 = vmatprep.subr.mxu0 0.0
    %5295 = vmatpush1.msra.mxu0 0.0
    %5296 = vmatprep.subr.mxu0 0.0
    %5297 = vmatpush1.msra.mxu0 0.0
    %5298 = vmatprep.subr.mxu0 0.0
    %5299 = vmatpush1.msra.mxu0 0.0
    %5300 = vmatprep.subr.mxu0 0.0
    %5301 = vmatpush1.msra.mxu0 0.0
    %5302 = vmatprep.subr.mxu0 0.0
    %5303 = vmatpush1.msra.mxu0 0.0
    %5304 = vmatprep.subr.mxu0 0.0
    %5305 = vmatpush1.msra.mxu0 0.0
    %5306 = vmatprep.subr.mxu0 0.0
    %5307 = vmatpush1.msra.mxu0 0.0
    %5308 = vmatprep.subr.mxu0 0.0
    %5309 = vmatpush1.msra.mxu0 0.0
    %5310 = vmatprep.subr.mxu0 0.0
    %5311 = vmatpush1.msra.mxu0 0.0
    %5312 = vmatprep.subr.mxu0 0.0
    %5313 = vmatpush1.msra.mxu0 0.0
    %5314 = vmatprep.subr.mxu0 0.0
    %5315 = vmatpush1.msra.mxu0 0.0
    %5316 = vmatprep.subr.mxu0 0.0
    %5317 = vmatpush1.msra.mxu0 0.0
    %5318 = vmatprep.subr.mxu0 0.0
    %5319 = vmatpush1.msra.mxu0 %v5271
    %5320 = vmatprep.subr.mxu0 0.0
    %5321 = vmatpush1.msra.mxu0 %v5270
    %5322 = vmatprep.subr.mxu0 0.0
    %5323 = vmatpush1.msra.mxu0 %v5269
    %5324 = vmatprep.subr.mxu0 0.0
    %5325 = vmatpush1.msra.mxu0 %v5268
    %5326 = vmatprep.subr.mxu0 0.0
    %5327 = vmatpush2.msra.mxu0 0.0
    %5328 = vmatprep.subr.mxu0 0.0
    %5329 = vmatpush2.msra.mxu0 0.0
    %5330 = vmatprep.subr.mxu0 0.0
    %5331 = vmatpush2.msra.mxu0 0.0
    %5332 = vmatprep.subr.mxu0 0.0
    %5333 = vmatpush2.msra.mxu0 0.0
    %5334 = vmatprep.subr.mxu0 0.0
    %5335 = vmatpush2.msra.mxu0 0.0
    %5336 = vmatprep.subr.mxu0 0.0
    %5337 = vmatpush2.msra.mxu0 0.0
    %5338 = vmatprep.subr.mxu0 0.0
    %5339 = vmatpush2.msra.mxu0 0.0
    %5340 = vmatprep.subr.mxu0 0.0
    %5341 = vmatpush2.msra.mxu0 0.0
    %5342 = vmatprep.subr.mxu0 0.0
    %5343 = vmatpush2.msra.mxu0 0.0
    %5344 = vmatprep.subr.mxu0 0.0
    %5345 = vmatpush2.msra.mxu0 0.0
    %5346 = vmatprep.subr.mxu0 0.0
    %5347 = vmatpush2.msra.mxu0 0.0
    %5348 = vmatprep.subr.mxu0 0.0
    %5349 = vmatpush2.msra.mxu0 0.0
    %5350 = vmatprep.subr.mxu0 0.0
    %5351 = vmatpush2.msra.mxu0 0.0
    %5352 = vmatprep.subr.mxu0 0.0
    %5353 = vmatpush2.msra.mxu0 0.0
    %5354 = vmatprep.subr.mxu0 0.0
    %5355 = vmatpush2.msra.mxu0 0.0
    %5356 = vmatprep.subr.mxu0 0.0
    %5357 = vmatpush2.msra.mxu0 0.0
    %5358 = vmatprep.mubr.f32.mxu0 0.0
    %5359 = vmatmul.mubr.f32.gmra.mxu0 %v5289
    %v5360 = vpop.f32.mrf.mxu0
    %v5361 = vadd.f32 %v5286, %v5360
    %v5362 = vpop.f32.mrf.mxu0
    %5363 = vmatprep.mubr.f32.mxu0 0.0
    %5364 = vmatmul.mubr.f32.gmra.mxu0 %v5292
    %v5365 = vpop.f32.mrf.mxu0
    %v5366 = vadd.f32 %v5286, %v5365
    %v5367 = vpop.f32.mrf.mxu0
    %5368 = vdwg.mxu0
    %v5369 = vmul.f32 %v5361, %v5361
    %v5370 = vmul.f32 %v5366, %v5366
    %v5371 = vmul.f32 %v5361, %v5369
    %v5372 = vmul.f32 %v5366, %v5370
    %v5373 = vmul.f32 %v5371, 0.044715
    %v5374 = vmul.f32 %v5372, 0.044715
    %v5375 = vadd.f32 %v5361, %v5373
    %v5376 = vadd.f32 %v5366, %v5374
    %v5377 = vmul.f32 %v5375, 0.7978846
    %v5378 = vmul.f32 %v5376, 0.7978846
    %v5379 = vtanh.pop %v5377
    %v5380 = vtanh.pop %v5378
    %v5381 = vadd.f32 %v5379, 1.0
    %v5382 = vadd.f32 %v5380, 1.0
    %v5383 = vmul.f32 %v5381, 0.5
    %v5384 = vmul.f32 %v5382, 0.5
    %v5385 = vmul.f32 %v5361, %v5383
    %v5386 = vmul.f32 %v5366, %v5384
    %v5387 = vld [vmem:[%s5 + $0x6] sm:$0x1]
    %v5389 = vlaneseq
    %v5390 = vshrl.u32 %v5389, 7
    %v5391 = vsub.s32 0, %v5390
    %v5392 = vrot.slane %v5387, %v5391
    %5401 = vrot.lane.b32.xlu0 %v3555, 96
    %v5402 = vpop.permute.xlu0 %5401
    %5403 = vrot.lane.b32.xlu0 %v3556, 96
    %v5404 = vpop.permute.xlu0 %5403
    %5405 = vrot.lane.b32.xlu0 %v3557, 96
    %v5406 = vpop.permute.xlu0 %5405
    %5407 = vrot.lane.b32.xlu0 %v3558, 96
    %v5408 = vpop.permute.xlu0 %5407
    %5409 = vrot.lane.b32.xlu0 %v3559, 96
    %v5410 = vpop.permute.xlu0 %5409
    %5411 = vrot.lane.b32.xlu0 %v3560, 96
    %v5412 = vpop.permute.xlu0 %5411
    %5413 = vrot.lane.b32.xlu0 %v3561, 96
    %v5414 = vpop.permute.xlu0 %5413
    %5415 = vrot.lane.b32.xlu0 %v3562, 96
    %v5416 = vpop.permute.xlu0 %5415
    %5425 = vrot.lane.b32.xlu0 %v5392, 96
    %v5426 = vpop.permute.xlu0 %5425
    %v5429 = vsel %vm3566, %v5385, 0
    %v5432 = vsel %vm3566, %v5386, 0
    %5434 = vmatprep.subr.mxu0 0.0
    %5435 = vmatpush1.msra.mxu0 0.0
    %5436 = vmatprep.subr.mxu0 0.0
    %5437 = vmatpush1.msra.mxu0 0.0
    %5438 = vmatprep.subr.mxu0 0.0
    %5439 = vmatpush1.msra.mxu0 0.0
    %5440 = vmatprep.subr.mxu0 0.0
    %5441 = vmatpush1.msra.mxu0 0.0
    %5442 = vmatprep.subr.mxu0 0.0
    %5443 = vmatpush1.msra.mxu0 0.0
    %5444 = vmatprep.subr.mxu0 0.0
    %5445 = vmatpush1.msra.mxu0 0.0
    %5446 = vmatprep.subr.mxu0 0.0
    %5447 = vmatpush1.msra.mxu0 0.0
    %5448 = vmatprep.subr.mxu0 0.0
    %5449 = vmatpush1.msra.mxu0 0.0
    %5450 = vmatprep.subr.mxu0 0.0
    %5451 = vmatpush1.msra.mxu0 %v5416
    %5452 = vmatprep.subr.mxu0 0.0
    %5453 = vmatpush1.msra.mxu0 %v5414
    %5454 = vmatprep.subr.mxu0 0.0
    %5455 = vmatpush1.msra.mxu0 %v5412
    %5456 = vmatprep.subr.mxu0 0.0
    %5457 = vmatpush1.msra.mxu0 %v5410
    %5458 = vmatprep.subr.mxu0 0.0
    %5459 = vmatpush1.msra.mxu0 %v5408
    %5460 = vmatprep.subr.mxu0 0.0
    %5461 = vmatpush1.msra.mxu0 %v5406
    %5462 = vmatprep.subr.mxu0 0.0
    %5463 = vmatpush1.msra.mxu0 %v5404
    %5464 = vmatprep.subr.mxu0 0.0
    %5465 = vmatpush1.msra.mxu0 %v5402
    %5466 = vmatprep.subr.mxu0 0.0
    %5467 = vmatpush2.msra.mxu0 0.0
    %5468 = vmatprep.subr.mxu0 0.0
    %5469 = vmatpush2.msra.mxu0 0.0
    %5470 = vmatprep.subr.mxu0 0.0
    %5471 = vmatpush2.msra.mxu0 0.0
    %5472 = vmatprep.subr.mxu0 0.0
    %5473 = vmatpush2.msra.mxu0 0.0
    %5474 = vmatprep.subr.mxu0 0.0
    %5475 = vmatpush2.msra.mxu0 0.0
    %5476 = vmatprep.subr.mxu0 0.0
    %5477 = vmatpush2.msra.mxu0 0.0
    %5478 = vmatprep.subr.mxu0 0.0
    %5479 = vmatpush2.msra.mxu0 0.0
    %5480 = vmatprep.subr.mxu0 0.0
    %5481 = vmatpush2.msra.mxu0 0.0
    %5482 = vmatprep.subr.mxu0 0.0
    %5483 = vmatpush2.msra.mxu0 0.0
    %5484 = vmatprep.subr.mxu0 0.0
    %5485 = vmatpush2.msra.mxu0 0.0
    %5486 = vmatprep.subr.mxu0 0.0
    %5487 = vmatpush2.msra.mxu0 0.0
    %5488 = vmatprep.subr.mxu0 0.0
    %5489 = vmatpush2.msra.mxu0 0.0
    %5490 = vmatprep.subr.mxu0 0.0
    %5491 = vmatpush2.msra.mxu0 0.0
    %5492 = vmatprep.subr.mxu0 0.0
    %5493 = vmatpush2.msra.mxu0 0.0
    %5494 = vmatprep.subr.mxu0 0.0
    %5495 = vmatpush2.msra.mxu0 0.0
    %5496 = vmatprep.subr.mxu0 0.0
    %5497 = vmatpush2.msra.mxu0 0.0
    %5498 = vmatprep.mubr.f32.mxu0 0.0
    %5499 = vmatmul.mubr.f32.gmra.mxu0 %v5429
    %v5500 = vpop.f32.mrf.mxu0
    %v5501 = vadd.f32 %v5426, %v5500
    %v5502 = vpop.f32.mrf.mxu0
    %5503 = vmatprep.mubr.f32.mxu0 0.0
    %5504 = vmatmul.mubr.f32.gmra.mxu0 %v5432
    %v5505 = vpop.f32.mrf.mxu0
    %v5506 = vadd.f32 %v5426, %v5505
    %v5507 = vpop.f32.mrf.mxu0
    %5508 = vdwg.mxu0
    %v5509 = vadd.f32 %v5501, %v5266
    %v5510 = vadd.f32 %v5506, %v5267
    %v5511 = vsel %vm109, %v5509, 0.0
    %5512 = vadd.xlane.f32.xlu0 %v5511
    %v5513 = vpop.xlane.xlu0 %5512
    %v5514 = vsel %vm109, %v5510, 0.0
    %5515 = vadd.xlane.f32.xlu0 %v5514
    %v5516 = vpop.xlane.xlu0 %5515
    %v5517 = vmul.f32 %v5513, %v1651
    %v5518 = vmul.f32 %v5516, %v1651
    %v5519 = vsub.f32 %v5509, %v5517
    %v5520 = vsub.f32 %v5510, %v5518
    %v5521 = vmul.f32 %v5519, %v5519
    %v5522 = vmul.f32 %v5520, %v5520
    %v5523 = vsel %vm109, %v5521, 0.0
    %5524 = vadd.xlane.f32.xlu0 %v5523
    %v5525 = vpop.xlane.xlu0 %5524
    %v5526 = vsel %vm109, %v5522, 0.0
    %5527 = vadd.xlane.f32.xlu0 %v5526
    %v5528 = vpop.xlane.xlu0 %5527
    %v5529 = vmul.f32 %v5525, %v1651
    %v5530 = vmul.f32 %v5528, %v1651
    %v5531 = vadd.f32 %v5529, 1e-12
    %v5532 = vadd.f32 %v5530, 1e-12
    %v5533 = vrsqrt.pop %v5531
    %v5534 = vrsqrt.pop %v5532
    %v5535 = vmul.f32 %v5519, %v5533
    %v5536 = vmul.f32 %v5520, %v5534
    %5537 = vrot.lane.b32.xlu0 %v5392, 64
    %v5538 = vpop.permute.xlu0 %5537
    %v5540 = vmul.f32 %v5535, %v5538
    %v5541 = vmul.f32 %v5536, %v5538
    %5542 = vrot.lane.b32.xlu0 %v5392, 32
    %v5543 = vpop.permute.xlu0 %5542
    %v5545 = vadd.f32 %v5540, %v5543
    %v5546 = vadd.f32 %v5541, %v5543
    %5547 = vst.msk [vmem:[#allocation11] sm:$0xff] %vm109, %v5545
    %5548 = vst.msk [vmem:[#allocation11 + $0x8] sm:$0xff] %vm109, %v5546
    // Predicated region
    $region46: #{fwd.1} parent=1 // pred_check
      _
    $region47: #{fwd.1} parent=1 // pred_check_branch
      %5550 = sbr.rel (0) target = $region49
    $region48: #{fwd.1} parent=1 // pred_region
      %s5552 = ssub.s32 256, 256
      %5553 = vsyncadd [#allocation4], %s5552
      %s5554 = sshll.u32 [#allocation11], 4
      %s5555 = int_to_ptr.vmem [resolvable:$true] %s5554
      %5560 = dma.vmem_to_hbm [thread:$0]  %s5555, 256, %s6, [#allocation4], 128, 128, 8
    $region49: #{fwd.1} parent=1 // pred_fallthru
      _
    // Predicated region
    $region50: #{fwd.1} parent=1 // pred_check
      _
    $region51: #{fwd.1} parent=1 // pred_check_branch
      %5562 = sbr.rel (0) target = $region53
    $region52: #{fwd.1} parent=1 // pred_region
      %5563 = dma.done [#allocation4], 256
    $region53: #{fwd.1} parent=1 // pred_fallthru
      _
    %5564 = vsyncpa [#allocation3], 1
    %5565 = vsyncpa [#allocation6], 1
    %5566 = vsyncpa [#allocation9], 1
    %5567 = vsyncpa [#allocation4], 1

</llo_original>
